<compile_context>
chip_gen: v6e
topology: v6e:2x2x1
jax: 0.10.0
libtpu: 0.0.40
codegen_flags: <defaults>
</compile_context>

<pallas_src>
import functools

import jax
import jax.numpy as jnp
import numpy as np
from jax.experimental import pallas as pl
from jax.experimental.pallas import tpu as pltpu

BN_EPS = 1e-5
LANE = 128
MIB = 1024 * 1024


def _round_up(x, m):
    return (x + m - 1) // m * m


def _vmem_limit(footprint_bytes):
    # Floor 32 MiB (safe on every generation, incl. v7x's 64 MiB physical VMEM),
    # cap 96 MiB (v5e/v6e have 128 MiB), 2x headroom over the per-step footprint.
    return int(min(96 * MIB, max(32 * MIB, 2 * footprint_bytes)))


# --------------------------------------------------------------------------- #
# Kernels
# --------------------------------------------------------------------------- #
def _conv3x3_kernel(x_ref, w_ref, scale_ref, shift_ref,
                    out_ref, stats_ref, yp_ref, *, H, W, apply_act):
    """Per-image: (optional fused BN-affine + ReLU) -> 3x3 conv (stride 1, pad 1).

    x_ref     : (1, H*W, Cp) bf16  input activation, flattened spatial, lane-dense
    w_ref     : (9, Cp, Cp)  bf16  conv taps, tap-major
    scale_ref : (1, Cp)      f32   fused BN scale for the input (used iff apply_act)
    shift_ref : (1, Cp)      f32   fused BN shift for the input (used iff apply_act)
    out_ref   : (1, H*W, Cp) bf16  conv output (pre-BN), rounded from the f32 acc
    stats_ref : (1, 2, Cp)   f32   per-image [sum, sum-of-squares] of the f32 acc
    yp_ref    : (H+2, W+2, Cp) bf16 scratch: spatially zero-padded activated input
    """
    Cp = x_ref.shape[-1]

    x = x_ref[0]                                               # (H*W, Cp) bf16
    if apply_act:                                              # BN affine + ReLU in f32
        x = jnp.maximum(
            x.astype(jnp.float32) * scale_ref[...] + shift_ref[...],
            0.0).astype(jnp.bfloat16)

    # Zero only the 1-pixel halo; the interior is fully overwritten each step.
    # TODO(synk): zero the halo once per core (needs a core-aware first-iteration
    # guard under megacore partitioning); per-step cost is a few masked stores.
    yp_ref[0:1, :, :] = jnp.zeros((1, W + 2, Cp), jnp.bfloat16)
    yp_ref[H + 1:H + 2, :, :] = jnp.zeros((1, W + 2, Cp), jnp.bfloat16)
    yp_ref[:, 0:1, :] = jnp.zeros((H + 2, 1, Cp), jnp.bfloat16)
    yp_ref[:, W + 1:W + 2, :] = jnp.zeros((H + 2, 1, Cp), jnp.bfloat16)
    yp_ref[1:H + 1, 1:W + 1, :] = x.reshape(H, W, Cp)

    # 9 accumulating K=Cp MXU dots taken straight off the shifted windows of
    # the padded scratch — no im2col patch matrix is ever materialized.
    acc = jnp.zeros((H * W, Cp), jnp.float32)
    for k in range(9):
        dy, dx = divmod(k, 3)
        patch = yp_ref[dy:dy + H, dx:dx + W, :].reshape(H * W, Cp)
        acc = acc + jnp.dot(patch, w_ref[k],
                            preferred_element_type=jnp.float32)

    out_ref[0] = acc.astype(out_ref.dtype)                     # bf16 HBM store

    # Per-image BN partial statistics from the exact f32 accumulator
    # (reduced across the batch in the wrapper).
    # TODO(synk): switch to a compensated / mean-centered variance if N*H*W grows
    # large enough for E[x^2]-E[x]^2 cancellation to matter.
    stats_ref[0, 0:1, :] = jnp.sum(acc, axis=0, keepdims=True)
    stats_ref[0, 1:2, :] = jnp.sum(acc * acc, axis=0, keepdims=True)


def _bn_add_relu_kernel(c_ref, x_ref, scale_ref, shift_ref, out_ref):
    """out = relu(bn2(conv2) + residual) — f32 VPU math, bf16 lane-dense store."""
    y = (c_ref[0].astype(jnp.float32) * scale_ref[...] + shift_ref[...]
         + x_ref[0].astype(jnp.float32))
    out_ref[0] = jnp.maximum(y, 0.0).astype(out_ref.dtype)


# --------------------------------------------------------------------------- #
# pallas_call builders
# --------------------------------------------------------------------------- #
def _conv_call(N, H, W, Cp, apply_act):
    M = H * W
    kernel = functools.partial(_conv3x3_kernel, H=H, W=W, apply_act=apply_act)

    act_bytes = M * Cp * 2                       # one bf16 activation block
    w_bytes = 9 * Cp * Cp * 2                    # bf16 weights
    footprint = (2 * act_bytes                   # input, double-buffered
                 + 2 * w_bytes                   # weights, double-buffered
                 + 2 * act_bytes                 # output, double-buffered
                 + (H + 2) * (W + 2) * Cp * 2    # padded-activation scratch
                 + 16 * Cp * 4)                  # scale/shift/stats (tiny)
    cost = pl.CostEstimate(
        flops=2 * N * M * 9 * Cp * Cp,
        transcendentals=0,
        bytes_accessed=N * (2 * act_bytes + 2 * Cp * 4) + w_bytes + 2 * Cp * 4)

    # TODO(synk): for ResNet-scale H/W, tile the H axis (1-row halo) and process
    # several images per grid step so both v7x TensorCores get work and the
    # per-step footprint is re-derived for 32 MiB scoped VMEM.
    # TODO(synk): for C=64 stages, pack two taps' channels per 128-lane group
    # (K = round_up(9*C, 128)) to cut the 4x zero-pad waste in the contraction.
    # TODO(synk): pin the grid-invariant weight block single-buffered
    # (pipeline_mode=pl.Buffered(1)) once needed; negligible at Cp=128.
    return pl.pallas_call(
        kernel,
        out_shape=(jax.ShapeDtypeStruct((N, M, Cp), jnp.bfloat16),
                   jax.ShapeDtypeStruct((N, 2, Cp), jnp.float32)),
        grid_spec=pltpu.PrefetchScalarGridSpec(
            num_scalar_prefetch=0,
            grid=(N,),
            in_specs=[
                pl.BlockSpec((1, M, Cp), lambda n: (n, 0, 0)),   # activation (bf16)
                pl.BlockSpec((9, Cp, Cp), lambda n: (0, 0, 0)),  # weights (bf16)
                pl.BlockSpec((1, Cp), lambda n: (0, 0)),         # fused BN scale
                pl.BlockSpec((1, Cp), lambda n: (0, 0)),         # fused BN shift
            ],
            out_specs=[
                pl.BlockSpec((1, M, Cp), lambda n: (n, 0, 0)),   # conv output (bf16)
                pl.BlockSpec((1, 2, Cp), lambda n: (n, 0, 0)),   # per-image stats
            ],
            scratch_shapes=[
                pltpu.VMEM((H + 2, W + 2, Cp), jnp.bfloat16),    # padded activation
            ],
        ),
        compiler_params=pltpu.CompilerParams(
            dimension_semantics=("parallel",),
            vmem_limit_bytes=_vmem_limit(footprint),
        ),
        cost_estimate=cost,
    )


def _epilogue_call(N, M, Cp):
    act_bytes = M * Cp * 2
    footprint = 6 * act_bytes + 16 * Cp * 4      # c2 + residual + out, double-buffered
    return pl.pallas_call(
        _bn_add_relu_kernel,
        out_shape=jax.ShapeDtypeStruct((N, M, Cp), jnp.bfloat16),
        grid_spec=pltpu.PrefetchScalarGridSpec(
            num_scalar_prefetch=0,
            grid=(N,),
            in_specs=[
                pl.BlockSpec((1, M, Cp), lambda n: (n, 0, 0)),   # conv2 output (bf16)
                pl.BlockSpec((1, M, Cp), lambda n: (n, 0, 0)),   # residual (bf16)
                pl.BlockSpec((1, Cp), lambda n: (0, 0)),         # bn2 scale
                pl.BlockSpec((1, Cp), lambda n: (0, 0)),         # bn2 shift
            ],
            out_specs=pl.BlockSpec((1, M, Cp), lambda n: (n, 0, 0)),
        ),
        # Pure streaming pass: write the result in place over conv2's HBM buffer.
        input_output_aliases={0: 0},
        compiler_params=pltpu.CompilerParams(
            dimension_semantics=("parallel",),
            vmem_limit_bytes=_vmem_limit(footprint),
        ),
    )


# --------------------------------------------------------------------------- #
# Wrapper
# --------------------------------------------------------------------------- #
def _pack_weight(w_hwio, Cp):
    kh, kw, ci, co = w_hwio.shape
    wp = jnp.zeros((kh * kw, Cp, Cp), jnp.float32)
    wp = wp.at[:, :ci, :co].set(
        jnp.asarray(w_hwio, jnp.float32).reshape(kh * kw, ci, co))
    return wp.astype(jnp.bfloat16)


def _pack_vec(v, Cp):
    v = jnp.asarray(v, jnp.float32).reshape(1, -1)
    return jnp.pad(v, ((0, 0), (0, Cp - v.shape[1])))


def _bn_affine(stats, gamma_p, beta_p, count):
    """Fold training-mode BN (batch stats, biased var) into a per-channel affine."""
    total = jnp.sum(stats, axis=0)                      # (2, Cp)
    mean = total[0] / count
    var = jnp.maximum(total[1] / count - mean * mean, 0.0)
    scale = gamma_p * jax.lax.rsqrt(var + BN_EPS)       # (1, Cp)
    shift = beta_p - mean * scale
    return scale, shift


@jax.jit
def basic_block_forward(x_nchw, w1, w2, g1, b1, g2, b2):
    """BasicBlock forward.  x_nchw: (N,C,H,W) f32; w1/w2: (3,3,C,C) HWIO; g*/b*: (1,C)."""
    N, C, H, W = x_nchw.shape
    # Only the module's default config is supported: stride=1, inplanes==planes,
    # downsample=None (identity residual).  Fail loudly otherwise.
    assert w1.shape == (3, 3, C, C) and w2.shape == (3, 3, C, C), \
        "only stride=1, Cin==Cout, downsample=None is supported"

    Cp = _round_up(C, LANE)
    M = H * W

    # NCHW -> lane-dense packed bf16 layout (N, H*W, Cp), channels zero-padded to 128.
    # TODO(synk): in a full network, keep activations in this packed bf16 layout
    # across blocks instead of converting at every block boundary.
    x = jnp.transpose(x_nchw, (0, 2, 3, 1)).reshape(N, M, C).astype(jnp.float32)
    x = jnp.pad(x, ((0, 0), (0, 0), (0, Cp - C))).astype(jnp.bfloat16)

    w1p, w2p = _pack_weight(w1, Cp), _pack_weight(w2, Cp)
    g1p, b1p = _pack_vec(g1, Cp), _pack_vec(b1, Cp)
    g2p, b2p = _pack_vec(g2, Cp), _pack_vec(b2, Cp)
    unit = jnp.zeros((1, Cp), jnp.float32)              # dummy affine for conv1

    # conv1 (+ per-image BN1 partial stats, taken from the f32 accumulator)
    c1, st1 = _conv_call(N, H, W, Cp, apply_act=False)(x, w1p, unit, unit)
    scale1, shift1 = _bn_affine(st1, g1p, b1p, N * M)

    # fused [bn1 affine + relu] + conv2 (+ per-image BN2 partial stats)
    c2, st2 = _conv_call(N, H, W, Cp, apply_act=True)(c1, w2p, scale1, shift1)
    scale2, shift2 = _bn_affine(st2, g2p, b2p, N * M)

    # bn2 affine + residual add + relu (written in place over c2's buffer)
    out = _epilogue_call(N, M, Cp)(c2, x, scale2, shift2)

    out = out[:, :, :C].astype(jnp.float32).reshape(N, H, W, C)
    return jnp.transpose(out, (0, 3, 1, 2))             # back to NCHW


# --------------------------------------------------------------------------- #
# Pure-JAX references
# --------------------------------------------------------------------------- #
def _conv3x3_ref(x_nhwc, w_hwio, conv_dtype):
    return jax.lax.conv_general_dilated(
        x_nhwc.astype(conv_dtype), w_hwio.astype(conv_dtype),
        window_strides=(1, 1), padding=((1, 1), (1, 1)),
        dimension_numbers=("NHWC", "HWIO", "NHWC"),
        preferred_element_type=jnp.float32)


def _bn_ref(x_nhwc, gamma, beta):
    mean = jnp.mean(x_nhwc, axis=(0, 1, 2), keepdims=True)
    var = jnp.mean((x_nhwc - mean) ** 2, axis=(0, 1, 2), keepdims=True)
    return (x_nhwc - mean) * jax.lax.rsqrt(var + BN_EPS) * gamma + beta


def basic_block_ref(x_nchw, w1, w2, g1, b1, g2, b2, conv_dtype=jnp.float32):
    """conv_dtype=bfloat16 mirrors the kernel's MXU precision (f32 accumulation)."""
    x = jnp.transpose(x_nchw, (0, 2, 3, 1)).astype(jnp.float32)
    out = jnp.maximum(_bn_ref(_conv3x3_ref(x, w1, conv_dtype), g1, b1), 0.0)
    out = _bn_ref(_conv3x3_ref(out, w2, conv_dtype), g2, b2)
    out = jnp.maximum(out + x, 0.0)
    return jnp.transpose(out, (0, 3, 1, 2))


if __name__ == "__main__":
    # small shapes consistent with BasicBlock(inplanes=4, planes=4, stride=1)
    N, C, H, W = 2, 4, 16, 16
    key = jax.random.PRNGKey(0)
    kx, k1, k2, kg1, kb1, kg2, kb2 = jax.random.split(key, 7)

    x = jax.random.normal(kx, (N, C, H, W), dtype=jnp.float32)
    w1 = jax.random.normal(k1, (3, 3, C, C), dtype=jnp.float32) * 0.2
    w2 = jax.random.normal(k2, (3, 3, C, C), dtype=jnp.float32) * 0.2
    g1 = 1.0 + 0.1 * jax.random.normal(kg1, (1, C), dtype=jnp.float32)
    b1 = 0.1 * jax.random.normal(kb1, (1, C), dtype=jnp.float32)
    g2 = 1.0 + 0.1 * jax.random.normal(kg2, (1, C), dtype=jnp.float32)
    b2 = 0.1 * jax.random.normal(kb2, (1, C), dtype=jnp.float32)

    out = jax.block_until_ready(basic_block_forward(x, w1, w2, g1, b1, g2, b2))

    # check vs a reference that mirrors the kernel's bf16-MXU / f32-accum math
    # (tolerance accounts for the bf16 storage of intermediates in HBM)
    ref_bf16 = jax.block_until_ready(
        basic_block_ref(x, w1, w2, g1, b1, g2, b2, conv_dtype=jnp.bfloat16))
    np.testing.assert_allclose(np.asarray(out), np.asarray(ref_bf16),
                               rtol=6e-2, atol=6e-2)

    # loose sanity check vs the pure-f32 reference (bf16 conv + bf16 intermediates)
    ref_f32 = jax.block_until_ready(
        basic_block_ref(x, w1, w2, g1, b1, g2, b2, conv_dtype=jnp.float32))
    np.testing.assert_allclose(np.asarray(out), np.asarray(ref_f32),
                               rtol=2e-1, atol=2e-1)

    print("KERNEL_OK")
</pallas_src>

<mosaic_0001>
module attributes {stable_mosaic.version = 11 : i64} {
  func.func @_bn_add_relu_kernel(%arg0: i32, %arg1: memref<1x256x128xbf16, #tpu.memory_space<vmem>>, %arg2: memref<1x256x128xbf16, #tpu.memory_space<vmem>>, %arg3: memref<1x128xf32, #tpu.memory_space<vmem>>, %arg4: memref<1x128xf32, #tpu.memory_space<vmem>>, %arg5: memref<1x256x128xbf16, #tpu.memory_space<vmem>>) attributes {dimension_semantics = [#tpu.dimension_semantics<parallel>], iteration_bounds = array<i64: 2>, scalar_prefetch = 0 : i64, scratch_operands = 0 : i64, tpu.core_type = #tpu.core_type<tc>, window_params = [{transform_indices = @transform_0, window_bounds = array<i64: 1, 256, 128>}, {transform_indices = @transform_1, window_bounds = array<i64: 1, 256, 128>}, {pipeline_mode = #tpu.pipeline_mode<synchronous>, transform_indices = @transform_2, window_bounds = array<i64: 1, 128>}, {pipeline_mode = #tpu.pipeline_mode<synchronous>, transform_indices = @transform_3, window_bounds = array<i64: 1, 128>}, {transform_indices = @transform_4, window_bounds = array<i64: 1, 256, 128>}]} {
    %c0 = arith.constant 0 : index
    %c0_0 = arith.constant 0 : index
    %c0_1 = arith.constant 0 : index
    %0 = vector.load %arg1[%c0, %c0_0, %c0_1] : memref<1x256x128xbf16, #tpu.memory_space<vmem>>, vector<1x256x128xbf16>
    %1 = vector.shape_cast %0 : vector<1x256x128xbf16> to vector<256x128xbf16>
    %2 = arith.extf %1 : vector<256x128xbf16> to vector<256x128xf32>
    %c0_2 = arith.constant 0 : index
    %c0_3 = arith.constant 0 : index
    %3 = vector.load %arg3[%c0_2, %c0_3] : memref<1x128xf32, #tpu.memory_space<vmem>>, vector<1x128xf32>
    %4 = vector.broadcast %3 : vector<1x128xf32> to vector<256x128xf32>
    %5 = arith.mulf %2, %4 : vector<256x128xf32>
    %c0_4 = arith.constant 0 : index
    %c0_5 = arith.constant 0 : index
    %6 = vector.load %arg4[%c0_4, %c0_5] : memref<1x128xf32, #tpu.memory_space<vmem>>, vector<1x128xf32>
    %7 = vector.broadcast %6 : vector<1x128xf32> to vector<256x128xf32>
    %8 = arith.addf %5, %7 : vector<256x128xf32>
    %c0_6 = arith.constant 0 : index
    %c0_7 = arith.constant 0 : index
    %c0_8 = arith.constant 0 : index
    %9 = vector.load %arg2[%c0_6, %c0_7, %c0_8] : memref<1x256x128xbf16, #tpu.memory_space<vmem>>, vector<1x256x128xbf16>
    %10 = vector.shape_cast %9 : vector<1x256x128xbf16> to vector<256x128xbf16>
    %11 = arith.extf %10 : vector<256x128xbf16> to vector<256x128xf32>
    %12 = arith.addf %8, %11 : vector<256x128xf32>
    %cst = arith.constant 0.000000e+00 : f32
    %13 = vector.broadcast %cst : f32 to vector<256x128xf32>
    %14 = arith.maximumf %12, %13 : vector<256x128xf32>
    %15 = arith.truncf %14 : vector<256x128xf32> to vector<256x128xbf16>
    %c0_9 = arith.constant 0 : index
    %c0_10 = arith.constant 0 : index
    %c0_11 = arith.constant 0 : index
    %16 = vector.load %arg5[%c0_9, %c0_10, %c0_11] : memref<1x256x128xbf16, #tpu.memory_space<vmem>>, vector<1x256x128xbf16>
    %17 = vector.shape_cast %16 : vector<1x256x128xbf16> to vector<256x128xbf16>
    %18 = vector.shape_cast %15 : vector<256x128xbf16> to vector<1x256x128xbf16>
    tpu.vector_store %arg5[%c0_9, %c0_10, %c0_11], %18 {strides = array<i32>} : memref<1x256x128xbf16, #tpu.memory_space<vmem>>, vector<1x256x128xbf16>,
    return
  }
  func.func @transform_0(%arg0: i32) -> (i32, i32, i32) {
    %c0_i32 = arith.constant 0 : i32
    %c0_i32_0 = arith.constant 0 : i32
    %c0_i32_1 = arith.constant 0 : i32
    return %arg0, %c0_i32, %c0_i32_0 : i32, i32, i32
  }
  func.func @transform_1(%arg0: i32) -> (i32, i32, i32) {
    %c0_i32 = arith.constant 0 : i32
    %c0_i32_0 = arith.constant 0 : i32
    %c0_i32_1 = arith.constant 0 : i32
    return %arg0, %c0_i32, %c0_i32_0 : i32, i32, i32
  }
  func.func @transform_2(%arg0: i32) -> (i32, i32) {
    %c0_i32 = arith.constant 0 : i32
    %c0_i32_0 = arith.constant 0 : i32
    %c0_i32_1 = arith.constant 0 : i32
    return %c0_i32, %c0_i32_0 : i32, i32
  }
  func.func @transform_3(%arg0: i32) -> (i32, i32) {
    %c0_i32 = arith.constant 0 : i32
    %c0_i32_0 = arith.constant 0 : i32
    %c0_i32_1 = arith.constant 0 : i32
    return %c0_i32, %c0_i32_0 : i32, i32
  }
  func.func @transform_4(%arg0: i32) -> (i32, i32, i32) {
    %c0_i32 = arith.constant 0 : i32
    %c0_i32_0 = arith.constant 0 : i32
    %c0_i32_1 = arith.constant 0 : i32
    return %arg0, %c0_i32, %c0_i32_0 : i32, i32, i32
  }
}

module attributes {stable_mosaic.version = 11 : i64} {
  func.func @_conv3x3_kernel(%arg0: i32, %arg1: memref<1x256x128xbf16, #tpu.memory_space<vmem>>, %arg2: memref<9x128x128xbf16, #tpu.memory_space<vmem>>, %arg3: memref<1x128xf32, #tpu.memory_space<vmem>>, %arg4: memref<1x128xf32, #tpu.memory_space<vmem>>, %arg5: memref<1x256x128xbf16, #tpu.memory_space<vmem>>, %arg6: memref<1x2x128xf32, #tpu.memory_space<vmem>>, %arg7: memref<18x18x128xbf16, #tpu.memory_space<vmem>>) attributes {dimension_semantics = [#tpu.dimension_semantics<parallel>], iteration_bounds = array<i64: 2>, scalar_prefetch = 0 : i64, scratch_operands = 1 : i64, tpu.core_type = #tpu.core_type<tc>, window_params = [{transform_indices = @transform_0, window_bounds = array<i64: 1, 256, 128>}, {pipeline_mode = #tpu.pipeline_mode<synchronous>, transform_indices = @transform_1, window_bounds = array<i64: 9, 128, 128>}, {pipeline_mode = #tpu.pipeline_mode<synchronous>, transform_indices = @transform_2, window_bounds = array<i64: 1, 128>}, {pipeline_mode = #tpu.pipeline_mode<synchronous>, transform_indices = @transform_3, window_bounds = array<i64: 1, 128>}, {transform_indices = @transform_4, window_bounds = array<i64: 1, 256, 128>}, {transform_indices = @transform_5, window_bounds = array<i64: 1, 2, 128>}]} {
    %c0 = arith.constant 0 : index
    %c0_0 = arith.constant 0 : index
    %c0_1 = arith.constant 0 : index
    %0 = vector.load %arg1[%c0, %c0_0, %c0_1] : memref<1x256x128xbf16, #tpu.memory_space<vmem>>, vector<1x256x128xbf16>
    %1 = vector.shape_cast %0 : vector<1x256x128xbf16> to vector<256x128xbf16>
    %2 = arith.extf %1 : vector<256x128xbf16> to vector<256x128xf32>
    %c0_2 = arith.constant 0 : index
    %c0_3 = arith.constant 0 : index
    %3 = vector.load %arg3[%c0_2, %c0_3] : memref<1x128xf32, #tpu.memory_space<vmem>>, vector<1x128xf32>
    %4 = vector.broadcast %3 : vector<1x128xf32> to vector<256x128xf32>
    %5 = arith.mulf %2, %4 : vector<256x128xf32>
    %c0_4 = arith.constant 0 : index
    %c0_5 = arith.constant 0 : index
    %6 = vector.load %arg4[%c0_4, %c0_5] : memref<1x128xf32, #tpu.memory_space<vmem>>, vector<1x128xf32>
    %7 = vector.broadcast %6 : vector<1x128xf32> to vector<256x128xf32>
    %8 = arith.addf %5, %7 : vector<256x128xf32>
    %cst = arith.constant 0.000000e+00 : f32
    %9 = vector.broadcast %cst : f32 to vector<256x128xf32>
    %10 = arith.maximumf %8, %9 : vector<256x128xf32>
    %11 = arith.truncf %10 : vector<256x128xf32> to vector<256x128xbf16>
    %cst_6 = arith.constant 0.000000e+00 : bf16
    %12 = vector.broadcast %cst_6 : bf16 to vector<1x18x128xbf16>
    %c0_7 = arith.constant 0 : index
    %c0_8 = arith.constant 0 : index
    %c0_9 = arith.constant 0 : index
    %13 = vector.load %arg7[%c0_7, %c0_8, %c0_9] : memref<18x18x128xbf16, #tpu.memory_space<vmem>>, vector<1x18x128xbf16>
    tpu.vector_store %arg7[%c0_7, %c0_8, %c0_9], %12 {strides = array<i32>} : memref<18x18x128xbf16, #tpu.memory_space<vmem>>, vector<1x18x128xbf16>,
    %cst_10 = arith.constant 0.000000e+00 : bf16
    %14 = vector.broadcast %cst_10 : bf16 to vector<1x18x128xbf16>
    %c17 = arith.constant 17 : index
    %c0_11 = arith.constant 0 : index
    %c0_12 = arith.constant 0 : index
    %15 = vector.load %arg7[%c17, %c0_11, %c0_12] : memref<18x18x128xbf16, #tpu.memory_space<vmem>>, vector<1x18x128xbf16>
    tpu.vector_store %arg7[%c17, %c0_11, %c0_12], %14 {strides = array<i32>} : memref<18x18x128xbf16, #tpu.memory_space<vmem>>, vector<1x18x128xbf16>,
    %cst_13 = arith.constant 0.000000e+00 : bf16
    %16 = vector.broadcast %cst_13 : bf16 to vector<18x1x128xbf16>
    %c0_14 = arith.constant 0 : index
    %c0_15 = arith.constant 0 : index
    %c0_16 = arith.constant 0 : index
    %17 = vector.load %arg7[%c0_14, %c0_15, %c0_16] : memref<18x18x128xbf16, #tpu.memory_space<vmem>>, vector<18x1x128xbf16>
    tpu.vector_store %arg7[%c0_14, %c0_15, %c0_16], %16 {strides = array<i32>} : memref<18x18x128xbf16, #tpu.memory_space<vmem>>, vector<18x1x128xbf16>,
    %cst_17 = arith.constant 0.000000e+00 : bf16
    %18 = vector.broadcast %cst_17 : bf16 to vector<18x1x128xbf16>
    %c0_18 = arith.constant 0 : index
    %c17_19 = arith.constant 17 : index
    %c0_20 = arith.constant 0 : index
    %19 = vector.load %arg7[%c0_18, %c17_19, %c0_20] : memref<18x18x128xbf16, #tpu.memory_space<vmem>>, vector<18x1x128xbf16>
    tpu.vector_store %arg7[%c0_18, %c17_19, %c0_20], %18 {strides = array<i32>} : memref<18x18x128xbf16, #tpu.memory_space<vmem>>, vector<18x1x128xbf16>,
    %20 = vector.shape_cast %11 : vector<256x128xbf16> to vector<16x16x128xbf16>
    %c1 = arith.constant 1 : index
    %c1_21 = arith.constant 1 : index
    %c0_22 = arith.constant 0 : index
    %21 = vector.load %arg7[%c1, %c1_21, %c0_22] : memref<18x18x128xbf16, #tpu.memory_space<vmem>>, vector<16x16x128xbf16>
    tpu.vector_store %arg7[%c1, %c1_21, %c0_22], %20 {strides = array<i32>} : memref<18x18x128xbf16, #tpu.memory_space<vmem>>, vector<16x16x128xbf16>,
    %cst_23 = arith.constant 0.000000e+00 : f32
    %22 = vector.broadcast %cst_23 : f32 to vector<256x128xf32>
    %c0_24 = arith.constant 0 : index
    %c0_25 = arith.constant 0 : index
    %c0_26 = arith.constant 0 : index
    %23 = vector.load %arg7[%c0_24, %c0_25, %c0_26] : memref<18x18x128xbf16, #tpu.memory_space<vmem>>, vector<16x16x128xbf16>
    %24 = vector.shape_cast %23 : vector<16x16x128xbf16> to vector<256x128xbf16>
    %c0_27 = arith.constant 0 : index
    %c0_28 = arith.constant 0 : index
    %c0_29 = arith.constant 0 : index
    %25 = vector.load %arg2[%c0_27, %c0_28, %c0_29] : memref<9x128x128xbf16, #tpu.memory_space<vmem>>, vector<1x128x128xbf16>
    %26 = vector.shape_cast %25 : vector<1x128x128xbf16> to vector<128x128xbf16>
    %cst_30 = arith.constant dense<0.000000e+00> : vector<256x128xf32>
    %27 = tpu.matmul %24, %26, %cst_30 {dimension_numbers = #tpu.dot_dimension_numbers<[1], [0], [0], [1], [0, 0, 1, 1], [], []>} : vector<256x128xbf16>, vector<128x128xbf16>, vector<256x128xf32> -> vector<256x128xf32>
    %28 = arith.addf %22, %27 : vector<256x128xf32>
    %c0_31 = arith.constant 0 : index
    %c1_32 = arith.constant 1 : index
    %c0_33 = arith.constant 0 : index
    %29 = vector.load %arg7[%c0_31, %c1_32, %c0_33] : memref<18x18x128xbf16, #tpu.memory_space<vmem>>, vector<16x16x128xbf16>
    %30 = vector.shape_cast %29 : vector<16x16x128xbf16> to vector<256x128xbf16>
    %c1_34 = arith.constant 1 : index
    %c0_35 = arith.constant 0 : index
    %c0_36 = arith.constant 0 : index
    %31 = vector.load %arg2[%c1_34, %c0_35, %c0_36] : memref<9x128x128xbf16, #tpu.memory_space<vmem>>, vector<1x128x128xbf16>
    %32 = vector.shape_cast %31 : vector<1x128x128xbf16> to vector<128x128xbf16>
    %cst_37 = arith.constant dense<0.000000e+00> : vector<256x128xf32>
    %33 = tpu.matmul %30, %32, %cst_37 {dimension_numbers = #tpu.dot_dimension_numbers<[1], [0], [0], [1], [0, 0, 1, 1], [], []>} : vector<256x128xbf16>, vector<128x128xbf16>, vector<256x128xf32> -> vector<256x128xf32>
    %34 = arith.addf %28, %33 : vector<256x128xf32>
    %c0_38 = arith.constant 0 : index
    %c2 = arith.constant 2 : index
    %c0_39 = arith.constant 0 : index
    %35 = vector.load %arg7[%c0_38, %c2, %c0_39] : memref<18x18x128xbf16, #tpu.memory_space<vmem>>, vector<16x16x128xbf16>
    %36 = vector.shape_cast %35 : vector<16x16x128xbf16> to vector<256x128xbf16>
    %c2_40 = arith.constant 2 : index
    %c0_41 = arith.constant 0 : index
    %c0_42 = arith.constant 0 : index
    %37 = vector.load %arg2[%c2_40, %c0_41, %c0_42] : memref<9x128x128xbf16, #tpu.memory_space<vmem>>, vector<1x128x128xbf16>
    %38 = vector.shape_cast %37 : vector<1x128x128xbf16> to vector<128x128xbf16>
    %cst_43 = arith.constant dense<0.000000e+00> : vector<256x128xf32>
    %39 = tpu.matmul %36, %38, %cst_43 {dimension_numbers = #tpu.dot_dimension_numbers<[1], [0], [0], [1], [0, 0, 1, 1], [], []>} : vector<256x128xbf16>, vector<128x128xbf16>, vector<256x128xf32> -> vector<256x128xf32>
    %40 = arith.addf %34, %39 : vector<256x128xf32>
    %c1_44 = arith.constant 1 : index
    %c0_45 = arith.constant 0 : index
    %c0_46 = arith.constant 0 : index
    %41 = vector.load %arg7[%c1_44, %c0_45, %c0_46] : memref<18x18x128xbf16, #tpu.memory_space<vmem>>, vector<16x16x128xbf16>
    %42 = vector.shape_cast %41 : vector<16x16x128xbf16> to vector<256x128xbf16>
    %c3 = arith.constant 3 : index
    %c0_47 = arith.constant 0 : index
    %c0_48 = arith.constant 0 : index
    %43 = vector.load %arg2[%c3, %c0_47, %c0_48] : memref<9x128x128xbf16, #tpu.memory_space<vmem>>, vector<1x128x128xbf16>
    %44 = vector.shape_cast %43 : vector<1x128x128xbf16> to vector<128x128xbf16>
    %cst_49 = arith.constant dense<0.000000e+00> : vector<256x128xf32>
    %45 = tpu.matmul %42, %44, %cst_49 {dimension_numbers = #tpu.dot_dimension_numbers<[1], [0], [0], [1], [0, 0, 1, 1], [], []>} : vector<256x128xbf16>, vector<128x128xbf16>, vector<256x128xf32> -> vector<256x128xf32>
    %46 = arith.addf %40, %45 : vector<256x128xf32>
    %c1_50 = arith.constant 1 : index
    %c1_51 = arith.constant 1 : index
    %c0_52 = arith.constant 0 : index
    %47 = vector.load %arg7[%c1_50, %c1_51, %c0_52] : memref<18x18x128xbf16, #tpu.memory_space<vmem>>, vector<16x16x128xbf16>
    %48 = vector.shape_cast %47 : vector<16x16x128xbf16> to vector<256x128xbf16>
    %c4 = arith.constant 4 : index
    %c0_53 = arith.constant 0 : index
    %c0_54 = arith.constant 0 : index
    %49 = vector.load %arg2[%c4, %c0_53, %c0_54] : memref<9x128x128xbf16, #tpu.memory_space<vmem>>, vector<1x128x128xbf16>
    %50 = vector.shape_cast %49 : vector<1x128x128xbf16> to vector<128x128xbf16>
    %cst_55 = arith.constant dense<0.000000e+00> : vector<256x128xf32>
    %51 = tpu.matmul %48, %50, %cst_55 {dimension_numbers = #tpu.dot_dimension_numbers<[1], [0], [0], [1], [0, 0, 1, 1], [], []>} : vector<256x128xbf16>, vector<128x128xbf16>, vector<256x128xf32> -> vector<256x128xf32>
    %52 = arith.addf %46, %51 : vector<256x128xf32>
    %c1_56 = arith.constant 1 : index
    %c2_57 = arith.constant 2 : index
    %c0_58 = arith.constant 0 : index
    %53 = vector.load %arg7[%c1_56, %c2_57, %c0_58] : memref<18x18x128xbf16, #tpu.memory_space<vmem>>, vector<16x16x128xbf16>
    %54 = vector.shape_cast %53 : vector<16x16x128xbf16> to vector<256x128xbf16>
    %c5 = arith.constant 5 : index
    %c0_59 = arith.constant 0 : index
    %c0_60 = arith.constant 0 : index
    %55 = vector.load %arg2[%c5, %c0_59, %c0_60] : memref<9x128x128xbf16, #tpu.memory_space<vmem>>, vector<1x128x128xbf16>
    %56 = vector.shape_cast %55 : vector<1x128x128xbf16> to vector<128x128xbf16>
    %cst_61 = arith.constant dense<0.000000e+00> : vector<256x128xf32>
    %57 = tpu.matmul %54, %56, %cst_61 {dimension_numbers = #tpu.dot_dimension_numbers<[1], [0], [0], [1], [0, 0, 1, 1], [], []>} : vector<256x128xbf16>, vector<128x128xbf16>, vector<256x128xf32> -> vector<256x128xf32>
    %58 = arith.addf %52, %57 : vector<256x128xf32>
    %c2_62 = arith.constant 2 : index
    %c0_63 = arith.constant 0 : index
    %c0_64 = arith.constant 0 : index
    %59 = vector.load %arg7[%c2_62, %c0_63, %c0_64] : memref<18x18x128xbf16, #tpu.memory_space<vmem>>, vector<16x16x128xbf16>
    %60 = vector.shape_cast %59 : vector<16x16x128xbf16> to vector<256x128xbf16>
    %c6 = arith.constant 6 : index
    %c0_65 = arith.constant 0 : index
    %c0_66 = arith.constant 0 : index
    %61 = vector.load %arg2[%c6, %c0_65, %c0_66] : memref<9x128x128xbf16, #tpu.memory_space<vmem>>, vector<1x128x128xbf16>
    %62 = vector.shape_cast %61 : vector<1x128x128xbf16> to vector<128x128xbf16>
    %cst_67 = arith.constant dense<0.000000e+00> : vector<256x128xf32>
    %63 = tpu.matmul %60, %62, %cst_67 {dimension_numbers = #tpu.dot_dimension_numbers<[1], [0], [0], [1], [0, 0, 1, 1], [], []>} : vector<256x128xbf16>, vector<128x128xbf16>, vector<256x128xf32> -> vector<256x128xf32>
    %64 = arith.addf %58, %63 : vector<256x128xf32>
    %c2_68 = arith.constant 2 : index
    %c1_69 = arith.constant 1 : index
    %c0_70 = arith.constant 0 : index
    %65 = vector.load %arg7[%c2_68, %c1_69, %c0_70] : memref<18x18x128xbf16, #tpu.memory_space<vmem>>, vector<16x16x128xbf16>
    %66 = vector.shape_cast %65 : vector<16x16x128xbf16> to vector<256x128xbf16>
    %c7 = arith.constant 7 : index
    %c0_71 = arith.constant 0 : index
    %c0_72 = arith.constant 0 : index
    %67 = vector.load %arg2[%c7, %c0_71, %c0_72] : memref<9x128x128xbf16, #tpu.memory_space<vmem>>, vector<1x128x128xbf16>
    %68 = vector.shape_cast %67 : vector<1x128x128xbf16> to vector<128x128xbf16>
    %cst_73 = arith.constant dense<0.000000e+00> : vector<256x128xf32>
    %69 = tpu.matmul %66, %68, %cst_73 {dimension_numbers = #tpu.dot_dimension_numbers<[1], [0], [0], [1], [0, 0, 1, 1], [], []>} : vector<256x128xbf16>, vector<128x128xbf16>, vector<256x128xf32> -> vector<256x128xf32>
    %70 = arith.addf %64, %69 : vector<256x128xf32>
    %c2_74 = arith.constant 2 : index
    %c2_75 = arith.constant 2 : index
    %c0_76 = arith.constant 0 : index
    %71 = vector.load %arg7[%c2_74, %c2_75, %c0_76] : memref<18x18x128xbf16, #tpu.memory_space<vmem>>, vector<16x16x128xbf16>
    %72 = vector.shape_cast %71 : vector<16x16x128xbf16> to vector<256x128xbf16>
    %c8 = arith.constant 8 : index
    %c0_77 = arith.constant 0 : index
    %c0_78 = arith.constant 0 : index
    %73 = vector.load %arg2[%c8, %c0_77, %c0_78] : memref<9x128x128xbf16, #tpu.memory_space<vmem>>, vector<1x128x128xbf16>
    %74 = vector.shape_cast %73 : vector<1x128x128xbf16> to vector<128x128xbf16>
    %cst_79 = arith.constant dense<0.000000e+00> : vector<256x128xf32>
    %75 = tpu.matmul %72, %74, %cst_79 {dimension_numbers = #tpu.dot_dimension_numbers<[1], [0], [0], [1], [0, 0, 1, 1], [], []>} : vector<256x128xbf16>, vector<128x128xbf16>, vector<256x128xf32> -> vector<256x128xf32>
    %76 = arith.addf %70, %75 : vector<256x128xf32>
    %77 = arith.truncf %76 : vector<256x128xf32> to vector<256x128xbf16>
    %c0_80 = arith.constant 0 : index
    %c0_81 = arith.constant 0 : index
    %c0_82 = arith.constant 0 : index
    %78 = vector.load %arg5[%c0_80, %c0_81, %c0_82] : memref<1x256x128xbf16, #tpu.memory_space<vmem>>, vector<1x256x128xbf16>
    %79 = vector.shape_cast %78 : vector<1x256x128xbf16> to vector<256x128xbf16>
    %80 = vector.shape_cast %77 : vector<256x128xbf16> to vector<1x256x128xbf16>
    tpu.vector_store %arg5[%c0_80, %c0_81, %c0_82], %80 {strides = array<i32>} : memref<1x256x128xbf16, #tpu.memory_space<vmem>>, vector<1x256x128xbf16>,
    %cst_83 = arith.constant dense<0.000000e+00> : vector<128xf32>
    %81 = vector.multi_reduction <add>, %76, %cst_83 [0] : vector<256x128xf32> to vector<128xf32>
    %82 = vector.shape_cast %81 : vector<128xf32> to vector<1x128xf32>
    %c0_84 = arith.constant 0 : index
    %c0_85 = arith.constant 0 : index
    %c0_86 = arith.constant 0 : index
    %83 = vector.load %arg6[%c0_84, %c0_85, %c0_86] : memref<1x2x128xf32, #tpu.memory_space<vmem>>, vector<1x1x128xf32>
    %84 = vector.shape_cast %83 : vector<1x1x128xf32> to vector<1x128xf32>
    %85 = vector.shape_cast %82 : vector<1x128xf32> to vector<1x1x128xf32>
    tpu.vector_store %arg6[%c0_84, %c0_85, %c0_86], %85 {strides = array<i32>} : memref<1x2x128xf32, #tpu.memory_space<vmem>>, vector<1x1x128xf32>,
    %86 = arith.mulf %76, %76 : vector<256x128xf32>
    %cst_87 = arith.constant dense<0.000000e+00> : vector<128xf32>
    %87 = vector.multi_reduction <add>, %86, %cst_87 [0] : vector<256x128xf32> to vector<128xf32>
    %88 = vector.shape_cast %87 : vector<128xf32> to vector<1x128xf32>
    %c0_88 = arith.constant 0 : index
    %c1_89 = arith.constant 1 : index
    %c0_90 = arith.constant 0 : index
    %89 = vector.load %arg6[%c0_88, %c1_89, %c0_90] : memref<1x2x128xf32, #tpu.memory_space<vmem>>, vector<1x1x128xf32>
    %90 = vector.shape_cast %89 : vector<1x1x128xf32> to vector<1x128xf32>
    %91 = vector.shape_cast %88 : vector<1x128xf32> to vector<1x1x128xf32>
    tpu.vector_store %arg6[%c0_88, %c1_89, %c0_90], %91 {strides = array<i32>} : memref<1x2x128xf32, #tpu.memory_space<vmem>>, vector<1x1x128xf32>,
    return
  }
  func.func @transform_0(%arg0: i32) -> (i32, i32, i32) {
    %c0_i32 = arith.constant 0 : i32
    %c0_i32_0 = arith.constant 0 : i32
    %c0_i32_1 = arith.constant 0 : i32
    return %arg0, %c0_i32, %c0_i32_0 : i32, i32, i32
  }
  func.func @transform_1(%arg0: i32) -> (i32, i32, i32) {
    %c0_i32 = arith.constant 0 : i32
    %c0_i32_0 = arith.constant 0 : i32
    %c0_i32_1 = arith.constant 0 : i32
    %c0_i32_2 = arith.constant 0 : i32
    return %c0_i32, %c0_i32_0, %c0_i32_1 : i32, i32, i32
  }
  func.func @transform_2(%arg0: i32) -> (i32, i32) {
    %c0_i32 = arith.constant 0 : i32
    %c0_i32_0 = arith.constant 0 : i32
    %c0_i32_1 = arith.constant 0 : i32
    return %c0_i32, %c0_i32_0 : i32, i32
  }
  func.func @transform_3(%arg0: i32) -> (i32, i32) {
    %c0_i32 = arith.constant 0 : i32
    %c0_i32_0 = arith.constant 0 : i32
    %c0_i32_1 = arith.constant 0 : i32
    return %c0_i32, %c0_i32_0 : i32, i32
  }
  func.func @transform_4(%arg0: i32) -> (i32, i32, i32) {
    %c0_i32 = arith.constant 0 : i32
    %c0_i32_0 = arith.constant 0 : i32
    %c0_i32_1 = arith.constant 0 : i32
    return %arg0, %c0_i32, %c0_i32_0 : i32, i32, i32
  }
  func.func @transform_5(%arg0: i32) -> (i32, i32, i32) {
    %c0_i32 = arith.constant 0 : i32
    %c0_i32_0 = arith.constant 0 : i32
    %c0_i32_1 = arith.constant 0 : i32
    return %arg0, %c0_i32, %c0_i32_0 : i32, i32, i32
  }
}

module attributes {stable_mosaic.version = 11 : i64} {
  func.func @_conv3x3_kernel(%arg0: i32, %arg1: memref<1x256x128xbf16, #tpu.memory_space<vmem>>, %arg2: memref<9x128x128xbf16, #tpu.memory_space<vmem>>, %arg3: memref<1x128xf32, #tpu.memory_space<vmem>>, %arg4: memref<1x128xf32, #tpu.memory_space<vmem>>, %arg5: memref<1x256x128xbf16, #tpu.memory_space<vmem>>, %arg6: memref<1x2x128xf32, #tpu.memory_space<vmem>>, %arg7: memref<18x18x128xbf16, #tpu.memory_space<vmem>>) attributes {dimension_semantics = [#tpu.dimension_semantics<parallel>], iteration_bounds = array<i64: 2>, scalar_prefetch = 0 : i64, scratch_operands = 1 : i64, tpu.core_type = #tpu.core_type<tc>, window_params = [{transform_indices = @transform_0, window_bounds = array<i64: 1, 256, 128>}, {pipeline_mode = #tpu.pipeline_mode<synchronous>, transform_indices = @transform_1, window_bounds = array<i64: 9, 128, 128>}, {pipeline_mode = #tpu.pipeline_mode<synchronous>, transform_indices = @transform_2, window_bounds = array<i64: 1, 128>}, {pipeline_mode = #tpu.pipeline_mode<synchronous>, transform_indices = @transform_3, window_bounds = array<i64: 1, 128>}, {transform_indices = @transform_4, window_bounds = array<i64: 1, 256, 128>}, {transform_indices = @transform_5, window_bounds = array<i64: 1, 2, 128>}]} {
    %c0 = arith.constant 0 : index
    %c0_0 = arith.constant 0 : index
    %c0_1 = arith.constant 0 : index
    %0 = vector.load %arg1[%c0, %c0_0, %c0_1] : memref<1x256x128xbf16, #tpu.memory_space<vmem>>, vector<1x256x128xbf16>
    %1 = vector.shape_cast %0 : vector<1x256x128xbf16> to vector<256x128xbf16>
    %cst = arith.constant 0.000000e+00 : bf16
    %2 = vector.broadcast %cst : bf16 to vector<1x18x128xbf16>
    %c0_2 = arith.constant 0 : index
    %c0_3 = arith.constant 0 : index
    %c0_4 = arith.constant 0 : index
    %3 = vector.load %arg7[%c0_2, %c0_3, %c0_4] : memref<18x18x128xbf16, #tpu.memory_space<vmem>>, vector<1x18x128xbf16>
    tpu.vector_store %arg7[%c0_2, %c0_3, %c0_4], %2 {strides = array<i32>} : memref<18x18x128xbf16, #tpu.memory_space<vmem>>, vector<1x18x128xbf16>,
    %cst_5 = arith.constant 0.000000e+00 : bf16
    %4 = vector.broadcast %cst_5 : bf16 to vector<1x18x128xbf16>
    %c17 = arith.constant 17 : index
    %c0_6 = arith.constant 0 : index
    %c0_7 = arith.constant 0 : index
    %5 = vector.load %arg7[%c17, %c0_6, %c0_7] : memref<18x18x128xbf16, #tpu.memory_space<vmem>>, vector<1x18x128xbf16>
    tpu.vector_store %arg7[%c17, %c0_6, %c0_7], %4 {strides = array<i32>} : memref<18x18x128xbf16, #tpu.memory_space<vmem>>, vector<1x18x128xbf16>,
    %cst_8 = arith.constant 0.000000e+00 : bf16
    %6 = vector.broadcast %cst_8 : bf16 to vector<18x1x128xbf16>
    %c0_9 = arith.constant 0 : index
    %c0_10 = arith.constant 0 : index
    %c0_11 = arith.constant 0 : index
    %7 = vector.load %arg7[%c0_9, %c0_10, %c0_11] : memref<18x18x128xbf16, #tpu.memory_space<vmem>>, vector<18x1x128xbf16>
    tpu.vector_store %arg7[%c0_9, %c0_10, %c0_11], %6 {strides = array<i32>} : memref<18x18x128xbf16, #tpu.memory_space<vmem>>, vector<18x1x128xbf16>,
    %cst_12 = arith.constant 0.000000e+00 : bf16
    %8 = vector.broadcast %cst_12 : bf16 to vector<18x1x128xbf16>
    %c0_13 = arith.constant 0 : index
    %c17_14 = arith.constant 17 : index
    %c0_15 = arith.constant 0 : index
    %9 = vector.load %arg7[%c0_13, %c17_14, %c0_15] : memref<18x18x128xbf16, #tpu.memory_space<vmem>>, vector<18x1x128xbf16>
    tpu.vector_store %arg7[%c0_13, %c17_14, %c0_15], %8 {strides = array<i32>} : memref<18x18x128xbf16, #tpu.memory_space<vmem>>, vector<18x1x128xbf16>,
    %10 = vector.shape_cast %1 : vector<256x128xbf16> to vector<16x16x128xbf16>
    %c1 = arith.constant 1 : index
    %c1_16 = arith.constant 1 : index
    %c0_17 = arith.constant 0 : index
    %11 = vector.load %arg7[%c1, %c1_16, %c0_17] : memref<18x18x128xbf16, #tpu.memory_space<vmem>>, vector<16x16x128xbf16>
    tpu.vector_store %arg7[%c1, %c1_16, %c0_17], %10 {strides = array<i32>} : memref<18x18x128xbf16, #tpu.memory_space<vmem>>, vector<16x16x128xbf16>,
    %cst_18 = arith.constant 0.000000e+00 : f32
    %12 = vector.broadcast %cst_18 : f32 to vector<256x128xf32>
    %c0_19 = arith.constant 0 : index
    %c0_20 = arith.constant 0 : index
    %c0_21 = arith.constant 0 : index
    %13 = vector.load %arg7[%c0_19, %c0_20, %c0_21] : memref<18x18x128xbf16, #tpu.memory_space<vmem>>, vector<16x16x128xbf16>
    %14 = vector.shape_cast %13 : vector<16x16x128xbf16> to vector<256x128xbf16>
    %c0_22 = arith.constant 0 : index
    %c0_23 = arith.constant 0 : index
    %c0_24 = arith.constant 0 : index
    %15 = vector.load %arg2[%c0_22, %c0_23, %c0_24] : memref<9x128x128xbf16, #tpu.memory_space<vmem>>, vector<1x128x128xbf16>
    %16 = vector.shape_cast %15 : vector<1x128x128xbf16> to vector<128x128xbf16>
    %cst_25 = arith.constant dense<0.000000e+00> : vector<256x128xf32>
    %17 = tpu.matmul %14, %16, %cst_25 {dimension_numbers = #tpu.dot_dimension_numbers<[1], [0], [0], [1], [0, 0, 1, 1], [], []>} : vector<256x128xbf16>, vector<128x128xbf16>, vector<256x128xf32> -> vector<256x128xf32>
    %18 = arith.addf %12, %17 : vector<256x128xf32>
    %c0_26 = arith.constant 0 : index
    %c1_27 = arith.constant 1 : index
    %c0_28 = arith.constant 0 : index
    %19 = vector.load %arg7[%c0_26, %c1_27, %c0_28] : memref<18x18x128xbf16, #tpu.memory_space<vmem>>, vector<16x16x128xbf16>
    %20 = vector.shape_cast %19 : vector<16x16x128xbf16> to vector<256x128xbf16>
    %c1_29 = arith.constant 1 : index
    %c0_30 = arith.constant 0 : index
    %c0_31 = arith.constant 0 : index
    %21 = vector.load %arg2[%c1_29, %c0_30, %c0_31] : memref<9x128x128xbf16, #tpu.memory_space<vmem>>, vector<1x128x128xbf16>
    %22 = vector.shape_cast %21 : vector<1x128x128xbf16> to vector<128x128xbf16>
    %cst_32 = arith.constant dense<0.000000e+00> : vector<256x128xf32>
    %23 = tpu.matmul %20, %22, %cst_32 {dimension_numbers = #tpu.dot_dimension_numbers<[1], [0], [0], [1], [0, 0, 1, 1], [], []>} : vector<256x128xbf16>, vector<128x128xbf16>, vector<256x128xf32> -> vector<256x128xf32>
    %24 = arith.addf %18, %23 : vector<256x128xf32>
    %c0_33 = arith.constant 0 : index
    %c2 = arith.constant 2 : index
    %c0_34 = arith.constant 0 : index
    %25 = vector.load %arg7[%c0_33, %c2, %c0_34] : memref<18x18x128xbf16, #tpu.memory_space<vmem>>, vector<16x16x128xbf16>
    %26 = vector.shape_cast %25 : vector<16x16x128xbf16> to vector<256x128xbf16>
    %c2_35 = arith.constant 2 : index
    %c0_36 = arith.constant 0 : index
    %c0_37 = arith.constant 0 : index
    %27 = vector.load %arg2[%c2_35, %c0_36, %c0_37] : memref<9x128x128xbf16, #tpu.memory_space<vmem>>, vector<1x128x128xbf16>
    %28 = vector.shape_cast %27 : vector<1x128x128xbf16> to vector<128x128xbf16>
    %cst_38 = arith.constant dense<0.000000e+00> : vector<256x128xf32>
    %29 = tpu.matmul %26, %28, %cst_38 {dimension_numbers = #tpu.dot_dimension_numbers<[1], [0], [0], [1], [0, 0, 1, 1], [], []>} : vector<256x128xbf16>, vector<128x128xbf16>, vector<256x128xf32> -> vector<256x128xf32>
    %30 = arith.addf %24, %29 : vector<256x128xf32>
    %c1_39 = arith.constant 1 : index
    %c0_40 = arith.constant 0 : index
    %c0_41 = arith.constant 0 : index
    %31 = vector.load %arg7[%c1_39, %c0_40, %c0_41] : memref<18x18x128xbf16, #tpu.memory_space<vmem>>, vector<16x16x128xbf16>
    %32 = vector.shape_cast %31 : vector<16x16x128xbf16> to vector<256x128xbf16>
    %c3 = arith.constant 3 : index
    %c0_42 = arith.constant 0 : index
    %c0_43 = arith.constant 0 : index
    %33 = vector.load %arg2[%c3, %c0_42, %c0_43] : memref<9x128x128xbf16, #tpu.memory_space<vmem>>, vector<1x128x128xbf16>
    %34 = vector.shape_cast %33 : vector<1x128x128xbf16> to vector<128x128xbf16>
    %cst_44 = arith.constant dense<0.000000e+00> : vector<256x128xf32>
    %35 = tpu.matmul %32, %34, %cst_44 {dimension_numbers = #tpu.dot_dimension_numbers<[1], [0], [0], [1], [0, 0, 1, 1], [], []>} : vector<256x128xbf16>, vector<128x128xbf16>, vector<256x128xf32> -> vector<256x128xf32>
    %36 = arith.addf %30, %35 : vector<256x128xf32>
    %c1_45 = arith.constant 1 : index
    %c1_46 = arith.constant 1 : index
    %c0_47 = arith.constant 0 : index
    %37 = vector.load %arg7[%c1_45, %c1_46, %c0_47] : memref<18x18x128xbf16, #tpu.memory_space<vmem>>, vector<16x16x128xbf16>
    %38 = vector.shape_cast %37 : vector<16x16x128xbf16> to vector<256x128xbf16>
    %c4 = arith.constant 4 : index
    %c0_48 = arith.constant 0 : index
    %c0_49 = arith.constant 0 : index
    %39 = vector.load %arg2[%c4, %c0_48, %c0_49] : memref<9x128x128xbf16, #tpu.memory_space<vmem>>, vector<1x128x128xbf16>
    %40 = vector.shape_cast %39 : vector<1x128x128xbf16> to vector<128x128xbf16>
    %cst_50 = arith.constant dense<0.000000e+00> : vector<256x128xf32>
    %41 = tpu.matmul %38, %40, %cst_50 {dimension_numbers = #tpu.dot_dimension_numbers<[1], [0], [0], [1], [0, 0, 1, 1], [], []>} : vector<256x128xbf16>, vector<128x128xbf16>, vector<256x128xf32> -> vector<256x128xf32>
    %42 = arith.addf %36, %41 : vector<256x128xf32>
    %c1_51 = arith.constant 1 : index
    %c2_52 = arith.constant 2 : index
    %c0_53 = arith.constant 0 : index
    %43 = vector.load %arg7[%c1_51, %c2_52, %c0_53] : memref<18x18x128xbf16, #tpu.memory_space<vmem>>, vector<16x16x128xbf16>
    %44 = vector.shape_cast %43 : vector<16x16x128xbf16> to vector<256x128xbf16>
    %c5 = arith.constant 5 : index
    %c0_54 = arith.constant 0 : index
    %c0_55 = arith.constant 0 : index
    %45 = vector.load %arg2[%c5, %c0_54, %c0_55] : memref<9x128x128xbf16, #tpu.memory_space<vmem>>, vector<1x128x128xbf16>
    %46 = vector.shape_cast %45 : vector<1x128x128xbf16> to vector<128x128xbf16>
    %cst_56 = arith.constant dense<0.000000e+00> : vector<256x128xf32>
    %47 = tpu.matmul %44, %46, %cst_56 {dimension_numbers = #tpu.dot_dimension_numbers<[1], [0], [0], [1], [0, 0, 1, 1], [], []>} : vector<256x128xbf16>, vector<128x128xbf16>, vector<256x128xf32> -> vector<256x128xf32>
    %48 = arith.addf %42, %47 : vector<256x128xf32>
    %c2_57 = arith.constant 2 : index
    %c0_58 = arith.constant 0 : index
    %c0_59 = arith.constant 0 : index
    %49 = vector.load %arg7[%c2_57, %c0_58, %c0_59] : memref<18x18x128xbf16, #tpu.memory_space<vmem>>, vector<16x16x128xbf16>
    %50 = vector.shape_cast %49 : vector<16x16x128xbf16> to vector<256x128xbf16>
    %c6 = arith.constant 6 : index
    %c0_60 = arith.constant 0 : index
    %c0_61 = arith.constant 0 : index
    %51 = vector.load %arg2[%c6, %c0_60, %c0_61] : memref<9x128x128xbf16, #tpu.memory_space<vmem>>, vector<1x128x128xbf16>
    %52 = vector.shape_cast %51 : vector<1x128x128xbf16> to vector<128x128xbf16>
    %cst_62 = arith.constant dense<0.000000e+00> : vector<256x128xf32>
    %53 = tpu.matmul %50, %52, %cst_62 {dimension_numbers = #tpu.dot_dimension_numbers<[1], [0], [0], [1], [0, 0, 1, 1], [], []>} : vector<256x128xbf16>, vector<128x128xbf16>, vector<256x128xf32> -> vector<256x128xf32>
    %54 = arith.addf %48, %53 : vector<256x128xf32>
    %c2_63 = arith.constant 2 : index
    %c1_64 = arith.constant 1 : index
    %c0_65 = arith.constant 0 : index
    %55 = vector.load %arg7[%c2_63, %c1_64, %c0_65] : memref<18x18x128xbf16, #tpu.memory_space<vmem>>, vector<16x16x128xbf16>
    %56 = vector.shape_cast %55 : vector<16x16x128xbf16> to vector<256x128xbf16>
    %c7 = arith.constant 7 : index
    %c0_66 = arith.constant 0 : index
    %c0_67 = arith.constant 0 : index
    %57 = vector.load %arg2[%c7, %c0_66, %c0_67] : memref<9x128x128xbf16, #tpu.memory_space<vmem>>, vector<1x128x128xbf16>
    %58 = vector.shape_cast %57 : vector<1x128x128xbf16> to vector<128x128xbf16>
    %cst_68 = arith.constant dense<0.000000e+00> : vector<256x128xf32>
    %59 = tpu.matmul %56, %58, %cst_68 {dimension_numbers = #tpu.dot_dimension_numbers<[1], [0], [0], [1], [0, 0, 1, 1], [], []>} : vector<256x128xbf16>, vector<128x128xbf16>, vector<256x128xf32> -> vector<256x128xf32>
    %60 = arith.addf %54, %59 : vector<256x128xf32>
    %c2_69 = arith.constant 2 : index
    %c2_70 = arith.constant 2 : index
    %c0_71 = arith.constant 0 : index
    %61 = vector.load %arg7[%c2_69, %c2_70, %c0_71] : memref<18x18x128xbf16, #tpu.memory_space<vmem>>, vector<16x16x128xbf16>
    %62 = vector.shape_cast %61 : vector<16x16x128xbf16> to vector<256x128xbf16>
    %c8 = arith.constant 8 : index
    %c0_72 = arith.constant 0 : index
    %c0_73 = arith.constant 0 : index
    %63 = vector.load %arg2[%c8, %c0_72, %c0_73] : memref<9x128x128xbf16, #tpu.memory_space<vmem>>, vector<1x128x128xbf16>
    %64 = vector.shape_cast %63 : vector<1x128x128xbf16> to vector<128x128xbf16>
    %cst_74 = arith.constant dense<0.000000e+00> : vector<256x128xf32>
    %65 = tpu.matmul %62, %64, %cst_74 {dimension_numbers = #tpu.dot_dimension_numbers<[1], [0], [0], [1], [0, 0, 1, 1], [], []>} : vector<256x128xbf16>, vector<128x128xbf16>, vector<256x128xf32> -> vector<256x128xf32>
    %66 = arith.addf %60, %65 : vector<256x128xf32>
    %67 = arith.truncf %66 : vector<256x128xf32> to vector<256x128xbf16>
    %c0_75 = arith.constant 0 : index
    %c0_76 = arith.constant 0 : index
    %c0_77 = arith.constant 0 : index
    %68 = vector.load %arg5[%c0_75, %c0_76, %c0_77] : memref<1x256x128xbf16, #tpu.memory_space<vmem>>, vector<1x256x128xbf16>
    %69 = vector.shape_cast %68 : vector<1x256x128xbf16> to vector<256x128xbf16>
    %70 = vector.shape_cast %67 : vector<256x128xbf16> to vector<1x256x128xbf16>
    tpu.vector_store %arg5[%c0_75, %c0_76, %c0_77], %70 {strides = array<i32>} : memref<1x256x128xbf16, #tpu.memory_space<vmem>>, vector<1x256x128xbf16>,
    %cst_78 = arith.constant dense<0.000000e+00> : vector<128xf32>
    %71 = vector.multi_reduction <add>, %66, %cst_78 [0] : vector<256x128xf32> to vector<128xf32>
    %72 = vector.shape_cast %71 : vector<128xf32> to vector<1x128xf32>
    %c0_79 = arith.constant 0 : index
    %c0_80 = arith.constant 0 : index
    %c0_81 = arith.constant 0 : index
    %73 = vector.load %arg6[%c0_79, %c0_80, %c0_81] : memref<1x2x128xf32, #tpu.memory_space<vmem>>, vector<1x1x128xf32>
    %74 = vector.shape_cast %73 : vector<1x1x128xf32> to vector<1x128xf32>
    %75 = vector.shape_cast %72 : vector<1x128xf32> to vector<1x1x128xf32>
    tpu.vector_store %arg6[%c0_79, %c0_80, %c0_81], %75 {strides = array<i32>} : memref<1x2x128xf32, #tpu.memory_space<vmem>>, vector<1x1x128xf32>,
    %76 = arith.mulf %66, %66 : vector<256x128xf32>
    %cst_82 = arith.constant dense<0.000000e+00> : vector<128xf32>
    %77 = vector.multi_reduction <add>, %76, %cst_82 [0] : vector<256x128xf32> to vector<128xf32>
    %78 = vector.shape_cast %77 : vector<128xf32> to vector<1x128xf32>
    %c0_83 = arith.constant 0 : index
    %c1_84 = arith.constant 1 : index
    %c0_85 = arith.constant 0 : index
    %79 = vector.load %arg6[%c0_83, %c1_84, %c0_85] : memref<1x2x128xf32, #tpu.memory_space<vmem>>, vector<1x1x128xf32>
    %80 = vector.shape_cast %79 : vector<1x1x128xf32> to vector<1x128xf32>
    %81 = vector.shape_cast %78 : vector<1x128xf32> to vector<1x1x128xf32>
    tpu.vector_store %arg6[%c0_83, %c1_84, %c0_85], %81 {strides = array<i32>} : memref<1x2x128xf32, #tpu.memory_space<vmem>>, vector<1x1x128xf32>,
    return
  }
  func.func @transform_0(%arg0: i32) -> (i32, i32, i32) {
    %c0_i32 = arith.constant 0 : i32
    %c0_i32_0 = arith.constant 0 : i32
    %c0_i32_1 = arith.constant 0 : i32
    return %arg0, %c0_i32, %c0_i32_0 : i32, i32, i32
  }
  func.func @transform_1(%arg0: i32) -> (i32, i32, i32) {
    %c0_i32 = arith.constant 0 : i32
    %c0_i32_0 = arith.constant 0 : i32
    %c0_i32_1 = arith.constant 0 : i32
    %c0_i32_2 = arith.constant 0 : i32
    return %c0_i32, %c0_i32_0, %c0_i32_1 : i32, i32, i32
  }
  func.func @transform_2(%arg0: i32) -> (i32, i32) {
    %c0_i32 = arith.constant 0 : i32
    %c0_i32_0 = arith.constant 0 : i32
    %c0_i32_1 = arith.constant 0 : i32
    return %c0_i32, %c0_i32_0 : i32, i32
  }
  func.func @transform_3(%arg0: i32) -> (i32, i32) {
    %c0_i32 = arith.constant 0 : i32
    %c0_i32_0 = arith.constant 0 : i32
    %c0_i32_1 = arith.constant 0 : i32
    return %c0_i32, %c0_i32_0 : i32, i32
  }
  func.func @transform_4(%arg0: i32) -> (i32, i32, i32) {
    %c0_i32 = arith.constant 0 : i32
    %c0_i32_0 = arith.constant 0 : i32
    %c0_i32_1 = arith.constant 0 : i32
    return %arg0, %c0_i32, %c0_i32_0 : i32, i32, i32
  }
  func.func @transform_5(%arg0: i32) -> (i32, i32, i32) {
    %c0_i32 = arith.constant 0 : i32
    %c0_i32_0 = arith.constant 0 : i32
    %c0_i32_1 = arith.constant 0 : i32
    return %arg0, %c0_i32, %c0_i32_0 : i32, i32, i32
  }
}

</mosaic_0001>

<llo_original>
// kernel: basic_block_forward.5
$region0: #{basic_block_forward.5}
  #allocation0 [shape = 'u32[]', space=smem, size = 0x4, offset = 0x4, fixed_abs, tag = 'smem constant byte address 0x4 - core index']
  #allocation1 [shape = 'u32[144,128]{1,0:T(1,128)}', space=vmem, size = 0x12000, scoped, tag = 'internal scratch']
  %s0 = inlined_call_operand.vmem [shape: bf16[2,256,128], index: 0, kind: input, shape index: {}, may-alias: {0,4}]
  %s1 = inlined_call_operand.vmem [shape: bf16[2,256,128], index: 1, kind: input, shape index: {}]
  %s2 = inlined_call_operand.vmem [shape: f32[1,128], index: 2, kind: input, shape index: {}]
  %s3 = inlined_call_operand.vmem [shape: f32[1,128], index: 3, kind: input, shape index: {}]
  %s4 = inlined_call_operand.vmem [shape: bf16[2,256,128], index: 4, kind: output, shape index: {}, may-alias: {0,4}]
  %s5 = sld [smem:[#allocation0]]
  $region49: #{basic_block_forward.5} parent=0
    _
  %s7 = ssub.s32 1, %s5
  %s8 = scalar_select 0, %s7, %s5
  loop: start=0, step=1, limit=4
  $region2: #{basic_block_forward.5} parent=0 // loop_pre_header
    _
  $region3: #{basic_block_forward.5} parent=0 // loop_header
    %s10 = sphi 0, %s14
    %p11 = scmp.ge.s32.totalorder %s10, 4
    %s20 = sphi 0, %s22
    %s23 = sphi 0, %s20
    %s24 = sphi 0, %s23
    %s40 = sphi 0, %s24
    %s46 = sphi 0, %s48
    %s49 = sphi 0, %s46
    %s50 = sphi 0, %s49
    %s66 = sphi 0, %s50
    %s70 = sphi 0, %s70
    %s72 = sphi 0, %s70
    %s73 = sphi 0, %s72
    %s87 = sphi 0, %s73
    %s91 = sphi 0, %s91
    %s93 = sphi 0, %s91
    %s94 = sphi 0, %s93
    %s108 = sphi 0, %s94
    %s114 = sphi 0, %s116
    %s117 = sphi 0, %s114
    %s118 = sphi 0, %s117
    %s134 = sphi 0, %s118
  $region4: #{basic_block_forward.5} parent=0 // loop_header_branch
    %13 = sbr.rel (%p11) target = $region8
  $region5: #{basic_block_forward.5} parent=0 // loop_body
    %s15 = ssub.s32 %s10, 1
    %s16 = ssub.s32 %s10, 2
    %s17 = sadd.s32 %s10, 1
    %s18 = ssub.s32 %s10, %s17
    %p19 = scmp.eq.s32.totalorder %s18, 0
    %s21 = sadd.s32 %s20, 1
    %s22 = scalar_select %p19, %s20, %s21
    %p25 = pneg %p19
    %p26 = scmp.eq.s32.totalorder %s10, 1
    %p27 = por %p25, %p26
    %p28 = scmp.ne.s32.totalorder %s20, %s23
    %p29 = scmp.eq.s32.totalorder %s10, 0
    %p30 = por %p28, %p29
    %p31 = scmp.ne.s32.totalorder %s20, %s23
    %p32 = scmp.eq.s32.totalorder %s15, 1
    %p33 = por %p31, %p32
    %p34 = scmp.ne.s32.totalorder %s23, %s24
    %p35 = scmp.eq.s32.totalorder %s15, 0
    %p36 = por %p34, %p35
    %p37 = scmp.ne.s32.totalorder %s23, %s24
    %p38 = scmp.eq.s32.totalorder %s16, 1
    %p39 = por %p37, %p38
    %p41 = scmp.ne.s32.totalorder %s24, %s40
    %p42 = scmp.eq.s32.totalorder %s16, 0
    %p43 = por %p41, %p42
    %s44 = ssub.s32 %s10, %s17
    %p45 = scmp.eq.s32.totalorder %s44, 0
    %s47 = sadd.s32 %s46, 1
    %s48 = scalar_select %p45, %s46, %s47
    %p51 = pneg %p45
    %p52 = scmp.eq.s32.totalorder %s10, 1
    %p53 = por %p51, %p52
    %p54 = scmp.ne.s32.totalorder %s46, %s49
    %p55 = scmp.eq.s32.totalorder %s10, 0
    %p56 = por %p54, %p55
    %p57 = scmp.ne.s32.totalorder %s46, %s49
    %p58 = scmp.eq.s32.totalorder %s15, 1
    %p59 = por %p57, %p58
    %p60 = scmp.ne.s32.totalorder %s49, %s50
    %p61 = scmp.eq.s32.totalorder %s15, 0
    %p62 = por %p60, %p61
    %p63 = scmp.ne.s32.totalorder %s49, %s50
    %p64 = scmp.eq.s32.totalorder %s16, 1
    %p65 = por %p63, %p64
    %p67 = scmp.ne.s32.totalorder %s50, %s66
    %p68 = scmp.eq.s32.totalorder %s16, 0
    %p69 = por %p67, %p68
    %s71 = sadd.s32 %s70, 1
    %p74 = scmp.eq.s32.totalorder %s10, 1
    %p75 = scmp.ne.s32.totalorder %s70, %s72
    %p76 = scmp.eq.s32.totalorder %s10, 0
    %p77 = por %p75, %p76
    %p78 = scmp.ne.s32.totalorder %s70, %s72
    %p79 = scmp.eq.s32.totalorder %s15, 1
    %p80 = por %p78, %p79
    %p81 = scmp.ne.s32.totalorder %s72, %s73
    %p82 = scmp.eq.s32.totalorder %s15, 0
    %p83 = por %p81, %p82
    %p84 = scmp.ne.s32.totalorder %s72, %s73
    %p85 = scmp.eq.s32.totalorder %s16, 1
    %p86 = por %p84, %p85
    %p88 = scmp.ne.s32.totalorder %s73, %s87
    %p89 = scmp.eq.s32.totalorder %s16, 0
    %p90 = por %p88, %p89
    %s92 = sadd.s32 %s91, 1
    %p95 = scmp.eq.s32.totalorder %s10, 1
    %p96 = scmp.ne.s32.totalorder %s91, %s93
    %p97 = scmp.eq.s32.totalorder %s10, 0
    %p98 = por %p96, %p97
    %p99 = scmp.ne.s32.totalorder %s91, %s93
    %p100 = scmp.eq.s32.totalorder %s15, 1
    %p101 = por %p99, %p100
    %p102 = scmp.ne.s32.totalorder %s93, %s94
    %p103 = scmp.eq.s32.totalorder %s15, 0
    %p104 = por %p102, %p103
    %p105 = scmp.ne.s32.totalorder %s93, %s94
    %p106 = scmp.eq.s32.totalorder %s16, 1
    %p107 = por %p105, %p106
    %p109 = scmp.ne.s32.totalorder %s94, %s108
    %p110 = scmp.eq.s32.totalorder %s16, 0
    %p111 = por %p109, %p110
    %s112 = ssub.s32 %s10, %s17
    %p113 = scmp.eq.s32.totalorder %s112, 0
    %s115 = sadd.s32 %s114, 1
    %s116 = scalar_select %p113, %s114, %s115
    %p119 = pneg %p113
    %p120 = scmp.eq.s32.totalorder %s10, 1
    %p121 = por %p119, %p120
    %p122 = scmp.ne.s32.totalorder %s114, %s117
    %p123 = scmp.eq.s32.totalorder %s10, 0
    %p124 = por %p122, %p123
    %p125 = scmp.ne.s32.totalorder %s114, %s117
    %p126 = scmp.eq.s32.totalorder %s15, 1
    %p127 = por %p125, %p126
    %p128 = scmp.ne.s32.totalorder %s117, %s118
    %p129 = scmp.eq.s32.totalorder %s15, 0
    %p130 = por %p128, %p129
    %p131 = scmp.ne.s32.totalorder %s117, %s118
    %p132 = scmp.eq.s32.totalorder %s16, 1
    %p133 = por %p131, %p132
    %p135 = scmp.ne.s32.totalorder %s118, %s134
    %p136 = scmp.eq.s32.totalorder %s16, 0
    %p137 = por %p135, %p136
    %p138 = scmp.le.s32.totalorder 1, %s10
    %p139 = scmp.lt.s32.totalorder %s10, 3
    %p140 = pnand %p138, %p139
    %p141 = pneg %p140
    // Predicated region
    $region9: #{basic_block_forward.5} parent=5 // pred_check
      _
    $region10: #{basic_block_forward.5} parent=5 // pred_check_branch
      %143 = sbr.rel (%p140) target = $region12
    $region11: #{basic_block_forward.5} parent=5 // pred_region
      %s144 = ssub.s32 %s10, 1
      // Predicated region
      $region13: #{basic_block_forward.5} parent=11 // pred_check
        %p145 = pneg %p83
      $region14: #{basic_block_forward.5} parent=11 // pred_check_branch
        %147 = sbr.rel (%p145) target = $region16
      $region15: #{basic_block_forward.5} parent=11 // pred_region
        _
      $region16: #{basic_block_forward.5} parent=11 // pred_fallthru
        _
      // Predicated region
      $region17: #{basic_block_forward.5} parent=11 // pred_check
        %p148 = pneg %p104
      $region18: #{basic_block_forward.5} parent=11 // pred_check_branch
        %150 = sbr.rel (%p148) target = $region20
      $region19: #{basic_block_forward.5} parent=11 // pred_region
        _
      $region20: #{basic_block_forward.5} parent=11 // pred_fallthru
        _
    $region12: #{basic_block_forward.5} parent=5 // pred_fallthru
      _
    %p151 = scmp.lt.s32.totalorder %s10, 2
    // Predicated region
    $region21: #{basic_block_forward.5} parent=5 // pred_check
      %p152 = pneg %p151
    $region22: #{basic_block_forward.5} parent=5 // pred_check_branch
      %154 = sbr.rel (%p152) target = $region24
    $region23: #{basic_block_forward.5} parent=5 // pred_region
      // Predicated region
      $region25: #{basic_block_forward.5} parent=23 // pred_check
        %p155 = pneg %p30
      $region26: #{basic_block_forward.5} parent=23 // pred_check_branch
        %157 = sbr.rel (%p155) target = $region28
      $region27: #{basic_block_forward.5} parent=23 // pred_region
        %p158 = scmp.lt.s32.totalorder %s10, 1
        %s159 = scalar_select %p158, %s10, 1
        %s160 = smul.addr %s159, 32
        %s161 = smul.addr %s160, 4
        %s162 = scalar_lea.vmem %s0, %s161
      $region28: #{basic_block_forward.5} parent=23 // pred_fallthru
        _
      // Predicated region
      $region29: #{basic_block_forward.5} parent=23 // pred_check
        %p163 = pneg %p56
      $region30: #{basic_block_forward.5} parent=23 // pred_check_branch
        %165 = sbr.rel (%p163) target = $region32
      $region31: #{basic_block_forward.5} parent=23 // pred_region
        %p166 = scmp.lt.s32.totalorder %s10, 1
        %s167 = scalar_select %p166, %s10, 1
        %s168 = smul.addr %s167, 32
        %s169 = smul.addr %s168, 4
        %s170 = scalar_lea.vmem %s1, %s169
      $region32: #{basic_block_forward.5} parent=23 // pred_fallthru
        _
    $region24: #{basic_block_forward.5} parent=5 // pred_fallthru
      _
    %p171 = scmp.le.s32.totalorder 1, %s10
    %p172 = scmp.lt.s32.totalorder %s10, 3
    %p173 = pnand %p171, %p172
    %p174 = pneg %p173
    // Predicated region
    $region33: #{basic_block_forward.5} parent=5 // pred_check
      _
    $region34: #{basic_block_forward.5} parent=5 // pred_check_branch
      %176 = sbr.rel (%p173) target = $region36
    $region35: #{basic_block_forward.5} parent=5 // pred_region
      %s177 = ssub.s32 %s10, 1
      %p178 = scmp.lt.s32.totalorder %s15, 1
      %s179 = scalar_select %p178, %s15, 1
      %s180 = smul.addr %s179, 32
      %s181 = smul.addr %s180, 4
      %s182 = scalar_lea.vmem %s0, %s181
      %p183 = pneg %p36
      %p184 = pneg %p33
      %p185 = scmp.lt.s32.totalorder %s15, 1
      %s186 = scalar_select %p185, %s15, 1
      %s187 = smul.addr %s186, 32
      %s188 = smul.addr %s187, 4
      %s189 = scalar_lea.vmem %s1, %s188
      %p190 = pneg %p62
      %p191 = pneg %p59
      %p192 = pneg %p83
      %p193 = pneg %p80
      %p194 = pneg %p104
      %p195 = pneg %p101
      %p196 = pneg %p130
      %p197 = pneg %p127
      %p198 = scmp.lt.s32.totalorder %s15, 1
      %s199 = scalar_select %p198, %s15, 1
      %s200 = smul.addr %s199, 32
      %s201 = smul.addr %s200, 4
      %s202 = scalar_lea.vmem %s4, %s201
      %p203 = scmp.lt.s32.totalorder %s15, 1
      %s204 = scalar_select %p203, %s15, 1
      %s205 = smul.addr %s204, 32
      %s206 = smul.addr %s205, 4
      %s207 = scalar_lea.vmem %s0, %s206
      %p208 = scmp.lt.s32.totalorder %s15, 1
      %s209 = scalar_select %p208, %s15, 1
      %s210 = smul.addr %s209, 32
      %s211 = smul.addr %s210, 4
      %s212 = scalar_lea.vmem %s1, %s211
      %p213 = scmp.lt.s32.totalorder %s15, 1
      %s214 = scalar_select %p213, %s15, 1
      %s215 = smul.addr %s214, 32
      %s216 = smul.addr %s215, 4
      %s217 = scalar_lea.vmem %s4, %s216
      %v218 = vld [vmem:[%s207] sm:$0xf]
      %v219 = vld [vmem:[%s207 + $0x4] sm:$0xf]
      %v220 = vld [vmem:[%s207 + $0x8] sm:$0xf]
      %v221 = vld [vmem:[%s207 + $0xc] sm:$0xf]
      %v222 = vld [vmem:[%s207 + $0x10] sm:$0xf]
      %v223 = vld [vmem:[%s207 + $0x14] sm:$0xf]
      %v224 = vld [vmem:[%s207 + $0x18] sm:$0xf]
      %v225 = vld [vmem:[%s207 + $0x1c] sm:$0xf]
      %v226 = vld [vmem:[%s207 + $0x20] sm:$0xf]
      %v227 = vld [vmem:[%s207 + $0x24] sm:$0xf]
      %v228 = vld [vmem:[%s207 + $0x28] sm:$0xf]
      %v229 = vld [vmem:[%s207 + $0x2c] sm:$0xf]
      %v230 = vld [vmem:[%s207 + $0x30] sm:$0xf]
      %v231 = vld [vmem:[%s207 + $0x34] sm:$0xf]
      %v232 = vld [vmem:[%s207 + $0x38] sm:$0xf]
      %v233 = vld [vmem:[%s207 + $0x3c] sm:$0xf]
      %v234 = vld [vmem:[%s207 + $0x40] sm:$0xf]
      %v235 = vld [vmem:[%s207 + $0x44] sm:$0xf]
      %v236 = vld [vmem:[%s207 + $0x48] sm:$0xf]
      %v237 = vld [vmem:[%s207 + $0x4c] sm:$0xf]
      %v238 = vld [vmem:[%s207 + $0x50] sm:$0xf]
      %v239 = vld [vmem:[%s207 + $0x54] sm:$0xf]
      %v240 = vld [vmem:[%s207 + $0x58] sm:$0xf]
      %v241 = vld [vmem:[%s207 + $0x5c] sm:$0xf]
      %v242 = vld [vmem:[%s207 + $0x60] sm:$0xf]
      %v243 = vld [vmem:[%s207 + $0x64] sm:$0xf]
      %v244 = vld [vmem:[%s207 + $0x68] sm:$0xf]
      %v245 = vld [vmem:[%s207 + $0x6c] sm:$0xf]
      %v246 = vld [vmem:[%s207 + $0x70] sm:$0xf]
      %v247 = vld [vmem:[%s207 + $0x74] sm:$0xf]
      %v248 = vld [vmem:[%s207 + $0x78] sm:$0xf]
      %v249 = vld [vmem:[%s207 + $0x7c] sm:$0xf]
      %v250 = vunpack.c.l.bf16 %v218
      %v251 = vunpack.c.l.bf16 %v219
      %v252 = vunpack.c.l.bf16 %v220
      %v253 = vunpack.c.l.bf16 %v221
      %v254 = vunpack.c.l.bf16 %v222
      %v255 = vunpack.c.l.bf16 %v223
      %v256 = vunpack.c.l.bf16 %v224
      %v257 = vunpack.c.l.bf16 %v225
      %v258 = vunpack.c.l.bf16 %v226
      %v259 = vunpack.c.l.bf16 %v227
      %v260 = vunpack.c.l.bf16 %v228
      %v261 = vunpack.c.l.bf16 %v229
      %v262 = vunpack.c.l.bf16 %v230
      %v263 = vunpack.c.l.bf16 %v231
      %v264 = vunpack.c.l.bf16 %v232
      %v265 = vunpack.c.l.bf16 %v233
      %v266 = vunpack.c.l.bf16 %v234
      %v267 = vunpack.c.l.bf16 %v235
      %v268 = vunpack.c.l.bf16 %v236
      %v269 = vunpack.c.l.bf16 %v237
      %v270 = vunpack.c.l.bf16 %v238
      %v271 = vunpack.c.l.bf16 %v239
      %v272 = vunpack.c.l.bf16 %v240
      %v273 = vunpack.c.l.bf16 %v241
      %v274 = vunpack.c.l.bf16 %v242
      %v275 = vunpack.c.l.bf16 %v243
      %v276 = vunpack.c.l.bf16 %v244
      %v277 = vunpack.c.l.bf16 %v245
      %v278 = vunpack.c.l.bf16 %v246
      %v279 = vunpack.c.l.bf16 %v247
      %v280 = vunpack.c.l.bf16 %v248
      %v281 = vunpack.c.l.bf16 %v249
      %v282 = vld [vmem:[%s2] sm:$0x1]
      %v284 = vlaneseq
      %v285 = vshrl.u32 %v284, 7
      %v286 = vsub.s32 0, %v285
      %v287 = vrot.slane %v282, %v286
      %v289 = vmul.f32 %v250, %v287
      %v290 = vmul.f32 %v251, %v287
      %v291 = vmul.f32 %v252, %v287
      %v292 = vmul.f32 %v253, %v287
      %v293 = vmul.f32 %v254, %v287
      %v294 = vmul.f32 %v255, %v287
      %v295 = vmul.f32 %v256, %v287
      %v296 = vmul.f32 %v257, %v287
      %v297 = vmul.f32 %v258, %v287
      %v298 = vmul.f32 %v259, %v287
      %v299 = vmul.f32 %v260, %v287
      %v300 = vmul.f32 %v261, %v287
      %v301 = vmul.f32 %v262, %v287
      %v302 = vmul.f32 %v263, %v287
      %v303 = vmul.f32 %v264, %v287
      %v304 = vmul.f32 %v265, %v287
      %v305 = vmul.f32 %v266, %v287
      %v306 = vmul.f32 %v267, %v287
      %v307 = vmul.f32 %v268, %v287
      %v308 = vmul.f32 %v269, %v287
      %v309 = vmul.f32 %v270, %v287
      %v310 = vmul.f32 %v271, %v287
      %v311 = vmul.f32 %v272, %v287
      %v312 = vmul.f32 %v273, %v287
      %v313 = vmul.f32 %v274, %v287
      %v314 = vmul.f32 %v275, %v287
      %v315 = vmul.f32 %v276, %v287
      %v316 = vmul.f32 %v277, %v287
      %v317 = vmul.f32 %v278, %v287
      %v318 = vmul.f32 %v279, %v287
      %v319 = vmul.f32 %v280, %v287
      %v320 = vmul.f32 %v281, %v287
      %v321 = vld [vmem:[%s3] sm:$0x1]
      %v323 = vlaneseq
      %v324 = vshrl.u32 %v323, 7
      %v325 = vsub.s32 0, %v324
      %v326 = vrot.slane %v321, %v325
      %v328 = vadd.f32 %v289, %v326
      %v329 = vadd.f32 %v290, %v326
      %v330 = vadd.f32 %v291, %v326
      %v331 = vadd.f32 %v292, %v326
      %v332 = vadd.f32 %v293, %v326
      %v333 = vadd.f32 %v294, %v326
      %v334 = vadd.f32 %v295, %v326
      %v335 = vadd.f32 %v296, %v326
      %v336 = vadd.f32 %v297, %v326
      %v337 = vadd.f32 %v298, %v326
      %v338 = vadd.f32 %v299, %v326
      %v339 = vadd.f32 %v300, %v326
      %v340 = vadd.f32 %v301, %v326
      %v341 = vadd.f32 %v302, %v326
      %v342 = vadd.f32 %v303, %v326
      %v343 = vadd.f32 %v304, %v326
      %v344 = vadd.f32 %v305, %v326
      %v345 = vadd.f32 %v306, %v326
      %v346 = vadd.f32 %v307, %v326
      %v347 = vadd.f32 %v308, %v326
      %v348 = vadd.f32 %v309, %v326
      %v349 = vadd.f32 %v310, %v326
      %v350 = vadd.f32 %v311, %v326
      %v351 = vadd.f32 %v312, %v326
      %v352 = vadd.f32 %v313, %v326
      %v353 = vadd.f32 %v314, %v326
      %v354 = vadd.f32 %v315, %v326
      %v355 = vadd.f32 %v316, %v326
      %v356 = vadd.f32 %v317, %v326
      %v357 = vadd.f32 %v318, %v326
      %v358 = vadd.f32 %v319, %v326
      %v359 = vadd.f32 %v320, %v326
      %v360 = vld [vmem:[%s212] sm:$0xf]
      %v361 = vld [vmem:[%s212 + $0x4] sm:$0xf]
      %v362 = vld [vmem:[%s212 + $0x8] sm:$0xf]
      %v363 = vld [vmem:[%s212 + $0xc] sm:$0xf]
      %v364 = vld [vmem:[%s212 + $0x10] sm:$0xf]
      %v365 = vld [vmem:[%s212 + $0x14] sm:$0xf]
      %v366 = vld [vmem:[%s212 + $0x18] sm:$0xf]
      %v367 = vld [vmem:[%s212 + $0x1c] sm:$0xf]
      %v368 = vld [vmem:[%s212 + $0x20] sm:$0xf]
      %v369 = vld [vmem:[%s212 + $0x24] sm:$0xf]
      %v370 = vld [vmem:[%s212 + $0x28] sm:$0xf]
      %v371 = vld [vmem:[%s212 + $0x2c] sm:$0xf]
      %v372 = vld [vmem:[%s212 + $0x30] sm:$0xf]
      %v373 = vld [vmem:[%s212 + $0x34] sm:$0xf]
      %v374 = vld [vmem:[%s212 + $0x38] sm:$0xf]
      %v375 = vld [vmem:[%s212 + $0x3c] sm:$0xf]
      %v376 = vld [vmem:[%s212 + $0x40] sm:$0xf]
      %v377 = vld [vmem:[%s212 + $0x44] sm:$0xf]
      %v378 = vld [vmem:[%s212 + $0x48] sm:$0xf]
      %v379 = vld [vmem:[%s212 + $0x4c] sm:$0xf]
      %v380 = vld [vmem:[%s212 + $0x50] sm:$0xf]
      %v381 = vld [vmem:[%s212 + $0x54] sm:$0xf]
      %v382 = vld [vmem:[%s212 + $0x58] sm:$0xf]
      %v383 = vld [vmem:[%s212 + $0x5c] sm:$0xf]
      %v384 = vld [vmem:[%s212 + $0x60] sm:$0xf]
      %v385 = vld [vmem:[%s212 + $0x64] sm:$0xf]
      %v386 = vld [vmem:[%s212 + $0x68] sm:$0xf]
      %v387 = vld [vmem:[%s212 + $0x6c] sm:$0xf]
      %v388 = vld [vmem:[%s212 + $0x70] sm:$0xf]
      %v389 = vld [vmem:[%s212 + $0x74] sm:$0xf]
      %v390 = vld [vmem:[%s212 + $0x78] sm:$0xf]
      %v391 = vld [vmem:[%s212 + $0x7c] sm:$0xf]
      %v392 = vunpack.c.l.bf16 %v360
      %v393 = vunpack.c.l.bf16 %v361
      %v394 = vunpack.c.l.bf16 %v362
      %v395 = vunpack.c.l.bf16 %v363
      %v396 = vunpack.c.l.bf16 %v364
      %v397 = vunpack.c.l.bf16 %v365
      %v398 = vunpack.c.l.bf16 %v366
      %v399 = vunpack.c.l.bf16 %v367
      %v400 = vunpack.c.l.bf16 %v368
      %v401 = vunpack.c.l.bf16 %v369
      %v402 = vunpack.c.l.bf16 %v370
      %v403 = vunpack.c.l.bf16 %v371
      %v404 = vunpack.c.l.bf16 %v372
      %v405 = vunpack.c.l.bf16 %v373
      %v406 = vunpack.c.l.bf16 %v374
      %v407 = vunpack.c.l.bf16 %v375
      %v408 = vunpack.c.l.bf16 %v376
      %v409 = vunpack.c.l.bf16 %v377
      %v410 = vunpack.c.l.bf16 %v378
      %v411 = vunpack.c.l.bf16 %v379
      %v412 = vunpack.c.l.bf16 %v380
      %v413 = vunpack.c.l.bf16 %v381
      %v414 = vunpack.c.l.bf16 %v382
      %v415 = vunpack.c.l.bf16 %v383
      %v416 = vunpack.c.l.bf16 %v384
      %v417 = vunpack.c.l.bf16 %v385
      %v418 = vunpack.c.l.bf16 %v386
      %v419 = vunpack.c.l.bf16 %v387
      %v420 = vunpack.c.l.bf16 %v388
      %v421 = vunpack.c.l.bf16 %v389
      %v422 = vunpack.c.l.bf16 %v390
      %v423 = vunpack.c.l.bf16 %v391
      %v424 = vadd.f32 %v328, %v392
      %v425 = vadd.f32 %v329, %v393
      %v426 = vadd.f32 %v330, %v394
      %v427 = vadd.f32 %v331, %v395
      %v428 = vadd.f32 %v332, %v396
      %v429 = vadd.f32 %v333, %v397
      %v430 = vadd.f32 %v334, %v398
      %v431 = vadd.f32 %v335, %v399
      %v432 = vadd.f32 %v336, %v400
      %v433 = vadd.f32 %v337, %v401
      %v434 = vadd.f32 %v338, %v402
      %v435 = vadd.f32 %v339, %v403
      %v436 = vadd.f32 %v340, %v404
      %v437 = vadd.f32 %v341, %v405
      %v438 = vadd.f32 %v342, %v406
      %v439 = vadd.f32 %v343, %v407
      %v440 = vadd.f32 %v344, %v408
      %v441 = vadd.f32 %v345, %v409
      %v442 = vadd.f32 %v346, %v410
      %v443 = vadd.f32 %v347, %v411
      %v444 = vadd.f32 %v348, %v412
      %v445 = vadd.f32 %v349, %v413
      %v446 = vadd.f32 %v350, %v414
      %v447 = vadd.f32 %v351, %v415
      %v448 = vadd.f32 %v352, %v416
      %v449 = vadd.f32 %v353, %v417
      %v450 = vadd.f32 %v354, %v418
      %v451 = vadd.f32 %v355, %v419
      %v452 = vadd.f32 %v356, %v420
      %v453 = vadd.f32 %v357, %v421
      %v454 = vadd.f32 %v358, %v422
      %v455 = vadd.f32 %v359, %v423
      %v456 = vmax.f32 %v424, 0.0
      %v457 = vmax.f32 %v425, 0.0
      %v458 = vmax.f32 %v426, 0.0
      %v459 = vmax.f32 %v427, 0.0
      %v460 = vmax.f32 %v428, 0.0
      %v461 = vmax.f32 %v429, 0.0
      %v462 = vmax.f32 %v430, 0.0
      %v463 = vmax.f32 %v431, 0.0
      %v464 = vmax.f32 %v432, 0.0
      %v465 = vmax.f32 %v433, 0.0
      %v466 = vmax.f32 %v434, 0.0
      %v467 = vmax.f32 %v435, 0.0
      %v468 = vmax.f32 %v436, 0.0
      %v469 = vmax.f32 %v437, 0.0
      %v470 = vmax.f32 %v438, 0.0
      %v471 = vmax.f32 %v439, 0.0
      %v472 = vmax.f32 %v440, 0.0
      %v473 = vmax.f32 %v441, 0.0
      %v474 = vmax.f32 %v442, 0.0
      %v475 = vmax.f32 %v443, 0.0
      %v476 = vmax.f32 %v444, 0.0
      %v477 = vmax.f32 %v445, 0.0
      %v478 = vmax.f32 %v446, 0.0
      %v479 = vmax.f32 %v447, 0.0
      %v480 = vmax.f32 %v448, 0.0
      %v481 = vmax.f32 %v449, 0.0
      %v482 = vmax.f32 %v450, 0.0
      %v483 = vmax.f32 %v451, 0.0
      %v484 = vmax.f32 %v452, 0.0
      %v485 = vmax.f32 %v453, 0.0
      %v486 = vmax.f32 %v454, 0.0
      %v487 = vmax.f32 %v455, 0.0
      %v488 = vpack.c.bf16 %v457, %v456
      %v489 = vpack.c.bf16 %v459, %v458
      %v490 = vpack.c.bf16 %v461, %v460
      %v491 = vpack.c.bf16 %v463, %v462
      %v492 = vpack.c.bf16 %v465, %v464
      %v493 = vpack.c.bf16 %v467, %v466
      %v494 = vpack.c.bf16 %v469, %v468
      %v495 = vpack.c.bf16 %v471, %v470
      %v496 = vpack.c.bf16 %v473, %v472
      %v497 = vpack.c.bf16 %v475, %v474
      %v498 = vpack.c.bf16 %v477, %v476
      %v499 = vpack.c.bf16 %v479, %v478
      %v500 = vpack.c.bf16 %v481, %v480
      %v501 = vpack.c.bf16 %v483, %v482
      %v502 = vpack.c.bf16 %v485, %v484
      %v503 = vpack.c.bf16 %v487, %v486
      %v520 = vunpack.c.l.b16 %v488
      %v521 = vunpack.c.h.b16 %v488
      %v522 = vunpack.c.l.b16 %v489
      %v523 = vunpack.c.h.b16 %v489
      %v524 = vunpack.c.l.b16 %v490
      %v525 = vunpack.c.h.b16 %v490
      %v526 = vunpack.c.l.b16 %v491
      %v527 = vunpack.c.h.b16 %v491
      %v528 = vunpack.c.l.b16 %v492
      %v529 = vunpack.c.h.b16 %v492
      %v530 = vunpack.c.l.b16 %v493
      %v531 = vunpack.c.h.b16 %v493
      %v532 = vunpack.c.l.b16 %v494
      %v533 = vunpack.c.h.b16 %v494
      %v534 = vunpack.c.l.b16 %v495
      %v535 = vunpack.c.h.b16 %v495
      %v536 = vunpack.c.l.b16 %v496
      %v537 = vunpack.c.h.b16 %v496
      %v538 = vunpack.c.l.b16 %v497
      %v539 = vunpack.c.h.b16 %v497
      %v540 = vunpack.c.l.b16 %v498
      %v541 = vunpack.c.h.b16 %v498
      %v542 = vunpack.c.l.b16 %v499
      %v543 = vunpack.c.h.b16 %v499
      %v544 = vunpack.c.l.b16 %v500
      %v545 = vunpack.c.h.b16 %v500
      %v546 = vunpack.c.l.b16 %v501
      %v547 = vunpack.c.h.b16 %v501
      %v548 = vunpack.c.l.b16 %v502
      %v549 = vunpack.c.h.b16 %v502
      %v550 = vunpack.c.l.b16 %v503
      %v551 = vunpack.c.h.b16 %v503
      %v552 = vpack.c.b16 %v520, %v520
      %v553 = vpack.c.b16 %v521, %v521
      %v554 = vpack.c.b16 %v522, %v522
      %v555 = vpack.c.b16 %v523, %v523
      %v556 = vpack.c.b16 %v524, %v524
      %v557 = vpack.c.b16 %v525, %v525
      %v558 = vpack.c.b16 %v526, %v526
      %v559 = vpack.c.b16 %v527, %v527
      %v560 = vpack.c.b16 %v528, %v528
      %v561 = vpack.c.b16 %v529, %v529
      %v562 = vpack.c.b16 %v530, %v530
      %v563 = vpack.c.b16 %v531, %v531
      %v564 = vpack.c.b16 %v532, %v532
      %v565 = vpack.c.b16 %v533, %v533
      %v566 = vpack.c.b16 %v534, %v534
      %v567 = vpack.c.b16 %v535, %v535
      %v568 = vpack.c.b16 %v536, %v536
      %v569 = vpack.c.b16 %v537, %v537
      %v570 = vpack.c.b16 %v538, %v538
      %v571 = vpack.c.b16 %v539, %v539
      %v572 = vpack.c.b16 %v540, %v540
      %v573 = vpack.c.b16 %v541, %v541
      %v574 = vpack.c.b16 %v542, %v542
      %v575 = vpack.c.b16 %v543, %v543
      %v576 = vpack.c.b16 %v544, %v544
      %v577 = vpack.c.b16 %v545, %v545
      %v578 = vpack.c.b16 %v546, %v546
      %v579 = vpack.c.b16 %v547, %v547
      %v580 = vpack.c.b16 %v548, %v548
      %v581 = vpack.c.b16 %v549, %v549
      %v582 = vpack.c.b16 %v550, %v550
      %v583 = vpack.c.b16 %v551, %v551
      %616 = vst [vmem:[%s217] sm:$0xf] %v552
      %617 = vst [vmem:[%s217 + $0x4] sm:$0xf] %v553
      %618 = vst [vmem:[%s217 + $0x8] sm:$0xf] %v554
      %619 = vst [vmem:[%s217 + $0xc] sm:$0xf] %v555
      %620 = vst [vmem:[%s217 + $0x10] sm:$0xf] %v556
      %621 = vst [vmem:[%s217 + $0x14] sm:$0xf] %v557
      %622 = vst [vmem:[%s217 + $0x18] sm:$0xf] %v558
      %623 = vst [vmem:[%s217 + $0x1c] sm:$0xf] %v559
      %624 = vst [vmem:[%s217 + $0x20] sm:$0xf] %v560
      %625 = vst [vmem:[%s217 + $0x24] sm:$0xf] %v561
      %626 = vst [vmem:[%s217 + $0x28] sm:$0xf] %v562
      %627 = vst [vmem:[%s217 + $0x2c] sm:$0xf] %v563
      %628 = vst [vmem:[%s217 + $0x30] sm:$0xf] %v564
      %629 = vst [vmem:[%s217 + $0x34] sm:$0xf] %v565
      %630 = vst [vmem:[%s217 + $0x38] sm:$0xf] %v566
      %631 = vst [vmem:[%s217 + $0x3c] sm:$0xf] %v567
      %632 = vst [vmem:[%s217 + $0x40] sm:$0xf] %v568
      %633 = vst [vmem:[%s217 + $0x44] sm:$0xf] %v569
      %634 = vst [vmem:[%s217 + $0x48] sm:$0xf] %v570
      %635 = vst [vmem:[%s217 + $0x4c] sm:$0xf] %v571
      %636 = vst [vmem:[%s217 + $0x50] sm:$0xf] %v572
      %637 = vst [vmem:[%s217 + $0x54] sm:$0xf] %v573
      %638 = vst [vmem:[%s217 + $0x58] sm:$0xf] %v574
      %639 = vst [vmem:[%s217 + $0x5c] sm:$0xf] %v575
      %640 = vst [vmem:[%s217 + $0x60] sm:$0xf] %v576
      %641 = vst [vmem:[%s217 + $0x64] sm:$0xf] %v577
      %642 = vst [vmem:[%s217 + $0x68] sm:$0xf] %v578
      %643 = vst [vmem:[%s217 + $0x6c] sm:$0xf] %v579
      %644 = vst [vmem:[%s217 + $0x70] sm:$0xf] %v580
      %645 = vst [vmem:[%s217 + $0x74] sm:$0xf] %v581
      %646 = vst [vmem:[%s217 + $0x78] sm:$0xf] %v582
      %647 = vst [vmem:[%s217 + $0x7c] sm:$0xf] %v583
      %p648 = scmp.lt.s32.totalorder %s15, 1
      %s649 = scalar_select %p648, %s15, 1
      %s650 = smul.addr %s649, 32
      %s651 = smul.addr %s650, 4
      %s652 = scalar_lea.vmem %s4, %s651
      // Predicated region
      $region37: #{basic_block_forward.5} parent=35 // pred_check
        %p653 = pneg %p127
      $region38: #{basic_block_forward.5} parent=35 // pred_check_branch
        %655 = sbr.rel (%p653) target = $region40
      $region39: #{basic_block_forward.5} parent=35 // pred_region
        _
      $region40: #{basic_block_forward.5} parent=35 // pred_fallthru
        _
    $region36: #{basic_block_forward.5} parent=5 // pred_fallthru
      _
    %p656 = scmp.le.s32.totalorder 2, %s10
    // Predicated region
    $region41: #{basic_block_forward.5} parent=5 // pred_check
      %p657 = pneg %p656
    $region42: #{basic_block_forward.5} parent=5 // pred_check_branch
      %659 = sbr.rel (%p657) target = $region44
    $region43: #{basic_block_forward.5} parent=5 // pred_region
      %s660 = ssub.s32 %s10, 2
      // Predicated region
      $region45: #{basic_block_forward.5} parent=43 // pred_check
        %p661 = pneg %p133
      $region46: #{basic_block_forward.5} parent=43 // pred_check_branch
        %663 = sbr.rel (%p661) target = $region48
      $region47: #{basic_block_forward.5} parent=43 // pred_region
        %p664 = scmp.lt.s32.totalorder %s16, 1
        %s665 = scalar_select %p664, %s16, 1
        %s666 = smul.addr %s665, 32
        %s667 = smul.addr %s666, 4
        %s668 = scalar_lea.vmem %s4, %s667
      $region48: #{basic_block_forward.5} parent=43 // pred_fallthru
        _
    $region44: #{basic_block_forward.5} parent=5 // pred_fallthru
      _
  $region6: #{basic_block_forward.5} parent=0 // loop_footer
    %s14 = sadd.s32 1, %s10
  $region7: #{basic_block_forward.5} parent=0 // loop_footer_branch
    %9 = sbr.rel target = $region3
  $region8: #{basic_block_forward.5} parent=0 // loop_exit
    _

// kernel: basic_block_forward.3
$region0: #{basic_block_forward.3}
  #allocation0 [shape = 'u32[]', space=smem, size = 0x4, offset = 0x4, fixed_abs, tag = 'smem constant byte address 0x4 - core index']
  #allocation1 [shape = 'u32[144,128]{1,0:T(1,128)}', space=vmem, size = 0x12000, scoped, tag = 'internal scratch']
  #allocation2 [shape = 'bf16[18,18,128]{2,1,0:T(8,128)(2,1)}', space=vmem, size = 0x1b000, scoped, tag = 'scratch operand']
  %s0 = inlined_call_operand.vmem [shape: bf16[2,256,128], index: 0, kind: input, shape index: {}]
  %s1 = inlined_call_operand.vmem [shape: bf16[9,128,128], index: 1, kind: input, shape index: {}]
  %s2 = inlined_call_operand.vmem [shape: f32[1,128], index: 2, kind: input, shape index: {}, may-alias: {2,3}]
  %s3 = inlined_call_operand.vmem [shape: f32[1,128], index: 3, kind: input, shape index: {}, may-alias: {2,3}]
  %s4 = inlined_call_operand.vmem [shape: bf16[2,256,128], index: 4, kind: output, shape index: {0}]
  %s5 = inlined_call_operand.vmem [shape: f32[2,2,128], index: 5, kind: output, shape index: {1}]
  %6 = xla_tuple %s4, %s5
  %s7 = sld [smem:[#allocation0]]
  $region57: #{basic_block_forward.3} parent=0
    _
  %s9 = ssub.s32 1, %s7
  %s10 = scalar_select 0, %s9, %s7
  loop: start=0, step=1, limit=4
  $region2: #{basic_block_forward.3} parent=0 // loop_pre_header
    _
  $region3: #{basic_block_forward.3} parent=0 // loop_header
    %s12 = sphi 0, %s16
    %p13 = scmp.ge.s32.totalorder %s12, 4
    %s22 = sphi 0, %s24
    %s25 = sphi 0, %s22
    %s26 = sphi 0, %s25
    %s42 = sphi 0, %s26
    %s46 = sphi 0, %s46
    %s48 = sphi 0, %s46
    %s49 = sphi 0, %s48
    %s63 = sphi 0, %s49
    %s67 = sphi 0, %s67
    %s69 = sphi 0, %s67
    %s70 = sphi 0, %s69
    %s84 = sphi 0, %s70
    %s88 = sphi 0, %s88
    %s90 = sphi 0, %s88
    %s91 = sphi 0, %s90
    %s105 = sphi 0, %s91
    %s111 = sphi 0, %s113
    %s114 = sphi 0, %s111
    %s115 = sphi 0, %s114
    %s131 = sphi 0, %s115
    %s137 = sphi 0, %s139
    %s140 = sphi 0, %s137
    %s141 = sphi 0, %s140
    %s157 = sphi 0, %s141
  $region4: #{basic_block_forward.3} parent=0 // loop_header_branch
    %15 = sbr.rel (%p13) target = $region8
  $region5: #{basic_block_forward.3} parent=0 // loop_body
    %s17 = ssub.s32 %s12, 1
    %s18 = ssub.s32 %s12, 2
    %s19 = sadd.s32 %s12, 1
    %s20 = ssub.s32 %s12, %s19
    %p21 = scmp.eq.s32.totalorder %s20, 0
    %s23 = sadd.s32 %s22, 1
    %s24 = scalar_select %p21, %s22, %s23
    %p27 = pneg %p21
    %p28 = scmp.eq.s32.totalorder %s12, 1
    %p29 = por %p27, %p28
    %p30 = scmp.ne.s32.totalorder %s22, %s25
    %p31 = scmp.eq.s32.totalorder %s12, 0
    %p32 = por %p30, %p31
    %p33 = scmp.ne.s32.totalorder %s22, %s25
    %p34 = scmp.eq.s32.totalorder %s17, 1
    %p35 = por %p33, %p34
    %p36 = scmp.ne.s32.totalorder %s25, %s26
    %p37 = scmp.eq.s32.totalorder %s17, 0
    %p38 = por %p36, %p37
    %p39 = scmp.ne.s32.totalorder %s25, %s26
    %p40 = scmp.eq.s32.totalorder %s18, 1
    %p41 = por %p39, %p40
    %p43 = scmp.ne.s32.totalorder %s26, %s42
    %p44 = scmp.eq.s32.totalorder %s18, 0
    %p45 = por %p43, %p44
    %s47 = sadd.s32 %s46, 1
    %p50 = scmp.eq.s32.totalorder %s12, 1
    %p51 = scmp.ne.s32.totalorder %s46, %s48
    %p52 = scmp.eq.s32.totalorder %s12, 0
    %p53 = por %p51, %p52
    %p54 = scmp.ne.s32.totalorder %s46, %s48
    %p55 = scmp.eq.s32.totalorder %s17, 1
    %p56 = por %p54, %p55
    %p57 = scmp.ne.s32.totalorder %s48, %s49
    %p58 = scmp.eq.s32.totalorder %s17, 0
    %p59 = por %p57, %p58
    %p60 = scmp.ne.s32.totalorder %s48, %s49
    %p61 = scmp.eq.s32.totalorder %s18, 1
    %p62 = por %p60, %p61
    %p64 = scmp.ne.s32.totalorder %s49, %s63
    %p65 = scmp.eq.s32.totalorder %s18, 0
    %p66 = por %p64, %p65
    %s68 = sadd.s32 %s67, 1
    %p71 = scmp.eq.s32.totalorder %s12, 1
    %p72 = scmp.ne.s32.totalorder %s67, %s69
    %p73 = scmp.eq.s32.totalorder %s12, 0
    %p74 = por %p72, %p73
    %p75 = scmp.ne.s32.totalorder %s67, %s69
    %p76 = scmp.eq.s32.totalorder %s17, 1
    %p77 = por %p75, %p76
    %p78 = scmp.ne.s32.totalorder %s69, %s70
    %p79 = scmp.eq.s32.totalorder %s17, 0
    %p80 = por %p78, %p79
    %p81 = scmp.ne.s32.totalorder %s69, %s70
    %p82 = scmp.eq.s32.totalorder %s18, 1
    %p83 = por %p81, %p82
    %p85 = scmp.ne.s32.totalorder %s70, %s84
    %p86 = scmp.eq.s32.totalorder %s18, 0
    %p87 = por %p85, %p86
    %s89 = sadd.s32 %s88, 1
    %p92 = scmp.eq.s32.totalorder %s12, 1
    %p93 = scmp.ne.s32.totalorder %s88, %s90
    %p94 = scmp.eq.s32.totalorder %s12, 0
    %p95 = por %p93, %p94
    %p96 = scmp.ne.s32.totalorder %s88, %s90
    %p97 = scmp.eq.s32.totalorder %s17, 1
    %p98 = por %p96, %p97
    %p99 = scmp.ne.s32.totalorder %s90, %s91
    %p100 = scmp.eq.s32.totalorder %s17, 0
    %p101 = por %p99, %p100
    %p102 = scmp.ne.s32.totalorder %s90, %s91
    %p103 = scmp.eq.s32.totalorder %s18, 1
    %p104 = por %p102, %p103
    %p106 = scmp.ne.s32.totalorder %s91, %s105
    %p107 = scmp.eq.s32.totalorder %s18, 0
    %p108 = por %p106, %p107
    %s109 = ssub.s32 %s12, %s19
    %p110 = scmp.eq.s32.totalorder %s109, 0
    %s112 = sadd.s32 %s111, 1
    %s113 = scalar_select %p110, %s111, %s112
    %p116 = pneg %p110
    %p117 = scmp.eq.s32.totalorder %s12, 1
    %p118 = por %p116, %p117
    %p119 = scmp.ne.s32.totalorder %s111, %s114
    %p120 = scmp.eq.s32.totalorder %s12, 0
    %p121 = por %p119, %p120
    %p122 = scmp.ne.s32.totalorder %s111, %s114
    %p123 = scmp.eq.s32.totalorder %s17, 1
    %p124 = por %p122, %p123
    %p125 = scmp.ne.s32.totalorder %s114, %s115
    %p126 = scmp.eq.s32.totalorder %s17, 0
    %p127 = por %p125, %p126
    %p128 = scmp.ne.s32.totalorder %s114, %s115
    %p129 = scmp.eq.s32.totalorder %s18, 1
    %p130 = por %p128, %p129
    %p132 = scmp.ne.s32.totalorder %s115, %s131
    %p133 = scmp.eq.s32.totalorder %s18, 0
    %p134 = por %p132, %p133
    %s135 = ssub.s32 %s12, %s19
    %p136 = scmp.eq.s32.totalorder %s135, 0
    %s138 = sadd.s32 %s137, 1
    %s139 = scalar_select %p136, %s137, %s138
    %p142 = pneg %p136
    %p143 = scmp.eq.s32.totalorder %s12, 1
    %p144 = por %p142, %p143
    %p145 = scmp.ne.s32.totalorder %s137, %s140
    %p146 = scmp.eq.s32.totalorder %s12, 0
    %p147 = por %p145, %p146
    %p148 = scmp.ne.s32.totalorder %s137, %s140
    %p149 = scmp.eq.s32.totalorder %s17, 1
    %p150 = por %p148, %p149
    %p151 = scmp.ne.s32.totalorder %s140, %s141
    %p152 = scmp.eq.s32.totalorder %s17, 0
    %p153 = por %p151, %p152
    %p154 = scmp.ne.s32.totalorder %s140, %s141
    %p155 = scmp.eq.s32.totalorder %s18, 1
    %p156 = por %p154, %p155
    %p158 = scmp.ne.s32.totalorder %s141, %s157
    %p159 = scmp.eq.s32.totalorder %s18, 0
    %p160 = por %p158, %p159
    %p161 = scmp.le.s32.totalorder 1, %s12
    %p162 = scmp.lt.s32.totalorder %s12, 3
    %p163 = pnand %p161, %p162
    %p164 = pneg %p163
    // Predicated region
    $region9: #{basic_block_forward.3} parent=5 // pred_check
      _
    $region10: #{basic_block_forward.3} parent=5 // pred_check_branch
      %166 = sbr.rel (%p163) target = $region12
    $region11: #{basic_block_forward.3} parent=5 // pred_region
      %s167 = ssub.s32 %s12, 1
      // Predicated region
      $region13: #{basic_block_forward.3} parent=11 // pred_check
        %p168 = pneg %p59
      $region14: #{basic_block_forward.3} parent=11 // pred_check_branch
        %170 = sbr.rel (%p168) target = $region16
      $region15: #{basic_block_forward.3} parent=11 // pred_region
        _
      $region16: #{basic_block_forward.3} parent=11 // pred_fallthru
        _
      // Predicated region
      $region17: #{basic_block_forward.3} parent=11 // pred_check
        %p171 = pneg %p80
      $region18: #{basic_block_forward.3} parent=11 // pred_check_branch
        %173 = sbr.rel (%p171) target = $region20
      $region19: #{basic_block_forward.3} parent=11 // pred_region
        _
      $region20: #{basic_block_forward.3} parent=11 // pred_fallthru
        _
      // Predicated region
      $region21: #{basic_block_forward.3} parent=11 // pred_check
        %p174 = pneg %p101
      $region22: #{basic_block_forward.3} parent=11 // pred_check_branch
        %176 = sbr.rel (%p174) target = $region24
      $region23: #{basic_block_forward.3} parent=11 // pred_region
        _
      $region24: #{basic_block_forward.3} parent=11 // pred_fallthru
        _
    $region12: #{basic_block_forward.3} parent=5 // pred_fallthru
      _
    %p177 = scmp.lt.s32.totalorder %s12, 2
    // Predicated region
    $region25: #{basic_block_forward.3} parent=5 // pred_check
      %p178 = pneg %p177
    $region26: #{basic_block_forward.3} parent=5 // pred_check_branch
      %180 = sbr.rel (%p178) target = $region28
    $region27: #{basic_block_forward.3} parent=5 // pred_region
      // Predicated region
      $region29: #{basic_block_forward.3} parent=27 // pred_check
        %p181 = pneg %p32
      $region30: #{basic_block_forward.3} parent=27 // pred_check_branch
        %183 = sbr.rel (%p181) target = $region32
      $region31: #{basic_block_forward.3} parent=27 // pred_region
        %p184 = scmp.lt.s32.totalorder %s12, 1
        %s185 = scalar_select %p184, %s12, 1
        %s186 = smul.addr %s185, 32
        %s187 = smul.addr %s186, 4
        %s188 = scalar_lea.vmem %s0, %s187
      $region32: #{basic_block_forward.3} parent=27 // pred_fallthru
        _
    $region28: #{basic_block_forward.3} parent=5 // pred_fallthru
      _
    %p189 = scmp.le.s32.totalorder 1, %s12
    %p190 = scmp.lt.s32.totalorder %s12, 3
    %p191 = pnand %p189, %p190
    %p192 = pneg %p191
    // Predicated region
    $region33: #{basic_block_forward.3} parent=5 // pred_check
      _
    $region34: #{basic_block_forward.3} parent=5 // pred_check_branch
      %194 = sbr.rel (%p191) target = $region36
    $region35: #{basic_block_forward.3} parent=5 // pred_region
      %s195 = ssub.s32 %s12, 1
      %p196 = scmp.lt.s32.totalorder %s17, 1
      %s197 = scalar_select %p196, %s17, 1
      %s198 = smul.addr %s197, 32
      %s199 = smul.addr %s198, 4
      %s200 = scalar_lea.vmem %s0, %s199
      %p201 = pneg %p38
      %p202 = pneg %p35
      %p203 = pneg %p59
      %p204 = pneg %p56
      %p205 = pneg %p80
      %p206 = pneg %p77
      %p207 = pneg %p101
      %p208 = pneg %p98
      %p209 = pneg %p127
      %p210 = pneg %p124
      %p211 = scmp.lt.s32.totalorder %s17, 1
      %s212 = scalar_select %p211, %s17, 1
      %s213 = smul.addr %s212, 32
      %s214 = smul.addr %s213, 4
      %s215 = scalar_lea.vmem %s4, %s214
      %p216 = pneg %p153
      %p217 = pneg %p150
      %p218 = scmp.lt.s32.totalorder %s17, 1
      %s219 = scalar_select %p218, %s17, 1
      %s220 = smul.addr %s219, 2
      %s221 = scalar_lea.vmem %s5, %s220
      %p222 = scmp.lt.s32.totalorder %s17, 1
      %s223 = scalar_select %p222, %s17, 1
      %s224 = smul.addr %s223, 32
      %s225 = smul.addr %s224, 4
      %s226 = scalar_lea.vmem %s0, %s225
      %p227 = scmp.lt.s32.totalorder %s17, 1
      %s228 = scalar_select %p227, %s17, 1
      %s229 = smul.addr %s228, 32
      %s230 = smul.addr %s229, 4
      %s231 = scalar_lea.vmem %s4, %s230
      %p232 = scmp.lt.s32.totalorder %s17, 1
      %s233 = scalar_select %p232, %s17, 1
      %s234 = smul.addr %s233, 2
      %s235 = scalar_lea.vmem %s5, %s234
      %v237 = vld [vmem:[%s226] sm:$0xf]
      %v238 = vld [vmem:[%s226 + $0x4] sm:$0xf]
      %v239 = vld [vmem:[%s226 + $0x8] sm:$0xf]
      %v240 = vld [vmem:[%s226 + $0xc] sm:$0xf]
      %v241 = vld [vmem:[%s226 + $0x10] sm:$0xf]
      %v242 = vld [vmem:[%s226 + $0x14] sm:$0xf]
      %v243 = vld [vmem:[%s226 + $0x18] sm:$0xf]
      %v244 = vld [vmem:[%s226 + $0x1c] sm:$0xf]
      %v245 = vld [vmem:[%s226 + $0x20] sm:$0xf]
      %v246 = vld [vmem:[%s226 + $0x24] sm:$0xf]
      %v247 = vld [vmem:[%s226 + $0x28] sm:$0xf]
      %v248 = vld [vmem:[%s226 + $0x2c] sm:$0xf]
      %v249 = vld [vmem:[%s226 + $0x30] sm:$0xf]
      %v250 = vld [vmem:[%s226 + $0x34] sm:$0xf]
      %v251 = vld [vmem:[%s226 + $0x38] sm:$0xf]
      %v252 = vld [vmem:[%s226 + $0x3c] sm:$0xf]
      %v253 = vld [vmem:[%s226 + $0x40] sm:$0xf]
      %v254 = vld [vmem:[%s226 + $0x44] sm:$0xf]
      %v255 = vld [vmem:[%s226 + $0x48] sm:$0xf]
      %v256 = vld [vmem:[%s226 + $0x4c] sm:$0xf]
      %v257 = vld [vmem:[%s226 + $0x50] sm:$0xf]
      %v258 = vld [vmem:[%s226 + $0x54] sm:$0xf]
      %v259 = vld [vmem:[%s226 + $0x58] sm:$0xf]
      %v260 = vld [vmem:[%s226 + $0x5c] sm:$0xf]
      %v261 = vld [vmem:[%s226 + $0x60] sm:$0xf]
      %v262 = vld [vmem:[%s226 + $0x64] sm:$0xf]
      %v263 = vld [vmem:[%s226 + $0x68] sm:$0xf]
      %v264 = vld [vmem:[%s226 + $0x6c] sm:$0xf]
      %v265 = vld [vmem:[%s226 + $0x70] sm:$0xf]
      %v266 = vld [vmem:[%s226 + $0x74] sm:$0xf]
      %v267 = vld [vmem:[%s226 + $0x78] sm:$0xf]
      %v268 = vld [vmem:[%s226 + $0x7c] sm:$0xf]
      %269 = vst [vmem:[#allocation2] sm:$0xf] 0
      %270 = vst [vmem:[#allocation2 + $0x4] sm:$0xf] 0
      %271 = vst [vmem:[#allocation2 + $0x8] sm:$0x1] 0
      %s272 = scalar_lea.vmem [#allocation2], 204
      %273 = vst [vmem:[%s272] sm:$0xf] 0
      %274 = vst [vmem:[%s272 + $0x4] sm:$0xf] 0
      %275 = vst [vmem:[%s272 + $0x8] sm:$0x1] 0
      %vm276 = vcmask 1040384
      %vm277 = vsmask.f32 256
      %vm278 = vmand %vm276, %vm277
      %v279 = vld [vmem:[#allocation2] sm:$0x1]
      %v280 = vsel %vm278, 0, %v279
      %281 = vst [vmem:[#allocation2] sm:$0x1] %v280
      %v282 = vld [vmem:[#allocation2 + $0xc] sm:$0x1]
      %v283 = vsel %vm278, 0, %v282
      %284 = vst [vmem:[#allocation2 + $0xc] sm:$0x1] %v283
      %v285 = vld [vmem:[#allocation2 + $0x18] sm:$0x1]
      %v286 = vsel %vm278, 0, %v285
      %287 = vst [vmem:[#allocation2 + $0x18] sm:$0x1] %v286
      %v288 = vld [vmem:[#allocation2 + $0x24] sm:$0x1]
      %v289 = vsel %vm278, 0, %v288
      %290 = vst [vmem:[#allocation2 + $0x24] sm:$0x1] %v289
      %v291 = vld [vmem:[#allocation2 + $0x30] sm:$0x1]
      %v292 = vsel %vm278, 0, %v291
      %293 = vst [vmem:[#allocation2 + $0x30] sm:$0x1] %v292
      %v294 = vld [vmem:[#allocation2 + $0x3c] sm:$0x1]
      %v295 = vsel %vm278, 0, %v294
      %296 = vst [vmem:[#allocation2 + $0x3c] sm:$0x1] %v295
      %v297 = vld [vmem:[#allocation2 + $0x48] sm:$0x1]
      %v298 = vsel %vm278, 0, %v297
      %299 = vst [vmem:[#allocation2 + $0x48] sm:$0x1] %v298
      %v300 = vld [vmem:[#allocation2 + $0x54] sm:$0x1]
      %v301 = vsel %vm278, 0, %v300
      %302 = vst [vmem:[#allocation2 + $0x54] sm:$0x1] %v301
      %v303 = vld [vmem:[#allocation2 + $0x60] sm:$0x1]
      %v304 = vsel %vm278, 0, %v303
      %305 = vst [vmem:[#allocation2 + $0x60] sm:$0x1] %v304
      %v306 = vld [vmem:[#allocation2 + $0x6c] sm:$0x1]
      %v307 = vsel %vm278, 0, %v306
      %308 = vst [vmem:[#allocation2 + $0x6c] sm:$0x1] %v307
      %v309 = vld [vmem:[#allocation2 + $0x78] sm:$0x1]
      %v310 = vsel %vm278, 0, %v309
      %311 = vst [vmem:[#allocation2 + $0x78] sm:$0x1] %v310
      %v312 = vld [vmem:[#allocation2 + $0x84] sm:$0x1]
      %v313 = vsel %vm278, 0, %v312
      %314 = vst [vmem:[#allocation2 + $0x84] sm:$0x1] %v313
      %v315 = vld [vmem:[#allocation2 + $0x90] sm:$0x1]
      %v316 = vsel %vm278, 0, %v315
      %317 = vst [vmem:[#allocation2 + $0x90] sm:$0x1] %v316
      %v318 = vld [vmem:[#allocation2 + $0x9c] sm:$0x1]
      %v319 = vsel %vm278, 0, %v318
      %320 = vst [vmem:[#allocation2 + $0x9c] sm:$0x1] %v319
      %v321 = vld [vmem:[#allocation2 + $0xa8] sm:$0x1]
      %v322 = vsel %vm278, 0, %v321
      %323 = vst [vmem:[#allocation2 + $0xa8] sm:$0x1] %v322
      %v324 = vld [vmem:[#allocation2 + $0xb4] sm:$0x1]
      %v325 = vsel %vm278, 0, %v324
      %326 = vst [vmem:[#allocation2 + $0xb4] sm:$0x1] %v325
      %v327 = vld [vmem:[#allocation2 + $0xc0] sm:$0x1]
      %v328 = vsel %vm278, 0, %v327
      %329 = vst [vmem:[#allocation2 + $0xc0] sm:$0x1] %v328
      %v330 = vld [vmem:[#allocation2 + $0xcc] sm:$0x1]
      %v331 = vsel %vm278, 0, %v330
      %332 = vst [vmem:[#allocation2 + $0xcc] sm:$0x1] %v331
      %vm333 = vsmask.f32 7938
      %vm334 = vmand %vm276, %vm333
      %v335 = vld [vmem:[#allocation2 + $0x8] sm:$0x1]
      %v336 = vsel %vm334, 0, %v335
      %337 = vst [vmem:[#allocation2 + $0x8] sm:$0x1] %v336
      %v338 = vld [vmem:[#allocation2 + $0x14] sm:$0x1]
      %v339 = vsel %vm334, 0, %v338
      %340 = vst [vmem:[#allocation2 + $0x14] sm:$0x1] %v339
      %v341 = vld [vmem:[#allocation2 + $0x20] sm:$0x1]
      %v342 = vsel %vm334, 0, %v341
      %343 = vst [vmem:[#allocation2 + $0x20] sm:$0x1] %v342
      %v344 = vld [vmem:[#allocation2 + $0x2c] sm:$0x1]
      %v345 = vsel %vm334, 0, %v344
      %346 = vst [vmem:[#allocation2 + $0x2c] sm:$0x1] %v345
      %v347 = vld [vmem:[#allocation2 + $0x38] sm:$0x1]
      %v348 = vsel %vm334, 0, %v347
      %349 = vst [vmem:[#allocation2 + $0x38] sm:$0x1] %v348
      %v350 = vld [vmem:[#allocation2 + $0x44] sm:$0x1]
      %v351 = vsel %vm334, 0, %v350
      %352 = vst [vmem:[#allocation2 + $0x44] sm:$0x1] %v351
      %v353 = vld [vmem:[#allocation2 + $0x50] sm:$0x1]
      %v354 = vsel %vm334, 0, %v353
      %355 = vst [vmem:[#allocation2 + $0x50] sm:$0x1] %v354
      %v356 = vld [vmem:[#allocation2 + $0x5c] sm:$0x1]
      %v357 = vsel %vm334, 0, %v356
      %358 = vst [vmem:[#allocation2 + $0x5c] sm:$0x1] %v357
      %v359 = vld [vmem:[#allocation2 + $0x68] sm:$0x1]
      %v360 = vsel %vm334, 0, %v359
      %361 = vst [vmem:[#allocation2 + $0x68] sm:$0x1] %v360
      %v362 = vld [vmem:[#allocation2 + $0x74] sm:$0x1]
      %v363 = vsel %vm334, 0, %v362
      %364 = vst [vmem:[#allocation2 + $0x74] sm:$0x1] %v363
      %v365 = vld [vmem:[#allocation2 + $0x80] sm:$0x1]
      %v366 = vsel %vm334, 0, %v365
      %367 = vst [vmem:[#allocation2 + $0x80] sm:$0x1] %v366
      %v368 = vld [vmem:[#allocation2 + $0x8c] sm:$0x1]
      %v369 = vsel %vm334, 0, %v368
      %370 = vst [vmem:[#allocation2 + $0x8c] sm:$0x1] %v369
      %v371 = vld [vmem:[#allocation2 + $0x98] sm:$0x1]
      %v372 = vsel %vm334, 0, %v371
      %373 = vst [vmem:[#allocation2 + $0x98] sm:$0x1] %v372
      %v374 = vld [vmem:[#allocation2 + $0xa4] sm:$0x1]
      %v375 = vsel %vm334, 0, %v374
      %376 = vst [vmem:[#allocation2 + $0xa4] sm:$0x1] %v375
      %v377 = vld [vmem:[#allocation2 + $0xb0] sm:$0x1]
      %v378 = vsel %vm334, 0, %v377
      %379 = vst [vmem:[#allocation2 + $0xb0] sm:$0x1] %v378
      %v380 = vld [vmem:[#allocation2 + $0xbc] sm:$0x1]
      %v381 = vsel %vm334, 0, %v380
      %382 = vst [vmem:[#allocation2 + $0xbc] sm:$0x1] %v381
      %v383 = vld [vmem:[#allocation2 + $0xc8] sm:$0x1]
      %v384 = vsel %vm334, 0, %v383
      %385 = vst [vmem:[#allocation2 + $0xc8] sm:$0x1] %v384
      %v386 = vld [vmem:[#allocation2 + $0xd4] sm:$0x1]
      %v387 = vsel %vm334, 0, %v386
      %388 = vst [vmem:[#allocation2 + $0xd4] sm:$0x1] %v387
      %vm389 = vsmask.f32 4368
      %vm390 = vmor %vm277, %vm389
      %v392 = vshrl.u32 %v237, 16
      %v394 = vrot.slane %v392, 7
      %v395 = vshll.u32 %v237, 16
      %v397 = vor.u32 %v394, %v395
      %v398 = vrot.slane %v394, 4
      %v400 = vshrl.u32 %v238, 16
      %v402 = vrot.slane %v400, 7
      %v403 = vshll.u32 %v238, 16
      %v405 = vor.u32 %v402, %v403
      %v406 = vsel %vm390, %v398, %v405
      %v407 = vrot.slane %v402, 4
      %v409 = vshrl.u32 %v239, 16
      %v411 = vrot.slane %v409, 7
      %v412 = vshll.u32 %v239, 16
      %v414 = vor.u32 %v411, %v412
      %v415 = vrot.slane %v411, 4
      %v417 = vshrl.u32 %v240, 16
      %v419 = vrot.slane %v417, 7
      %v420 = vshll.u32 %v240, 16
      %v422 = vor.u32 %v419, %v420
      %v423 = vsel %vm390, %v415, %v422
      %v424 = vrot.slane %v419, 4
      %v426 = vshrl.u32 %v241, 16
      %v428 = vrot.slane %v426, 7
      %v429 = vshll.u32 %v241, 16
      %v431 = vor.u32 %v428, %v429
      %v432 = vrot.slane %v428, 4
      %v434 = vshrl.u32 %v242, 16
      %v436 = vrot.slane %v434, 7
      %v437 = vshll.u32 %v242, 16
      %v439 = vor.u32 %v436, %v437
      %v440 = vsel %vm390, %v432, %v439
      %v441 = vrot.slane %v436, 4
      %v443 = vshrl.u32 %v243, 16
      %v445 = vrot.slane %v443, 7
      %v446 = vshll.u32 %v243, 16
      %v448 = vor.u32 %v445, %v446
      %v449 = vrot.slane %v445, 4
      %v451 = vshrl.u32 %v244, 16
      %v453 = vrot.slane %v451, 7
      %v454 = vshll.u32 %v244, 16
      %v456 = vor.u32 %v453, %v454
      %v457 = vsel %vm390, %v449, %v456
      %v458 = vrot.slane %v453, 4
      %v460 = vshrl.u32 %v245, 16
      %v462 = vrot.slane %v460, 7
      %v463 = vshll.u32 %v245, 16
      %v465 = vor.u32 %v462, %v463
      %v466 = vrot.slane %v462, 4
      %v468 = vshrl.u32 %v246, 16
      %v470 = vrot.slane %v468, 7
      %v471 = vshll.u32 %v246, 16
      %v473 = vor.u32 %v470, %v471
      %v474 = vsel %vm390, %v466, %v473
      %v475 = vrot.slane %v470, 4
      %v477 = vshrl.u32 %v247, 16
      %v479 = vrot.slane %v477, 7
      %v480 = vshll.u32 %v247, 16
      %v482 = vor.u32 %v479, %v480
      %v483 = vrot.slane %v479, 4
      %v485 = vshrl.u32 %v248, 16
      %v487 = vrot.slane %v485, 7
      %v488 = vshll.u32 %v248, 16
      %v490 = vor.u32 %v487, %v488
      %v491 = vsel %vm390, %v483, %v490
      %v492 = vrot.slane %v487, 4
      %v494 = vshrl.u32 %v249, 16
      %v496 = vrot.slane %v494, 7
      %v497 = vshll.u32 %v249, 16
      %v499 = vor.u32 %v496, %v497
      %v500 = vrot.slane %v496, 4
      %v502 = vshrl.u32 %v250, 16
      %v504 = vrot.slane %v502, 7
      %v505 = vshll.u32 %v250, 16
      %v507 = vor.u32 %v504, %v505
      %v508 = vsel %vm390, %v500, %v507
      %v509 = vrot.slane %v504, 4
      %v511 = vshrl.u32 %v251, 16
      %v513 = vrot.slane %v511, 7
      %v514 = vshll.u32 %v251, 16
      %v516 = vor.u32 %v513, %v514
      %v517 = vrot.slane %v513, 4
      %v519 = vshrl.u32 %v252, 16
      %v521 = vrot.slane %v519, 7
      %v522 = vshll.u32 %v252, 16
      %v524 = vor.u32 %v521, %v522
      %v525 = vsel %vm390, %v517, %v524
      %v526 = vrot.slane %v521, 4
      %v528 = vshrl.u32 %v253, 16
      %v530 = vrot.slane %v528, 7
      %v531 = vshll.u32 %v253, 16
      %v533 = vor.u32 %v530, %v531
      %v534 = vrot.slane %v530, 4
      %v536 = vshrl.u32 %v254, 16
      %v538 = vrot.slane %v536, 7
      %v539 = vshll.u32 %v254, 16
      %v541 = vor.u32 %v538, %v539
      %v542 = vsel %vm390, %v534, %v541
      %v543 = vrot.slane %v538, 4
      %v545 = vshrl.u32 %v255, 16
      %v547 = vrot.slane %v545, 7
      %v548 = vshll.u32 %v255, 16
      %v550 = vor.u32 %v547, %v548
      %v551 = vrot.slane %v547, 4
      %v553 = vshrl.u32 %v256, 16
      %v555 = vrot.slane %v553, 7
      %v556 = vshll.u32 %v256, 16
      %v558 = vor.u32 %v555, %v556
      %v559 = vsel %vm390, %v551, %v558
      %v560 = vrot.slane %v555, 4
      %v562 = vshrl.u32 %v257, 16
      %v564 = vrot.slane %v562, 7
      %v565 = vshll.u32 %v257, 16
      %v567 = vor.u32 %v564, %v565
      %v568 = vrot.slane %v564, 4
      %v570 = vshrl.u32 %v258, 16
      %v572 = vrot.slane %v570, 7
      %v573 = vshll.u32 %v258, 16
      %v575 = vor.u32 %v572, %v573
      %v576 = vsel %vm390, %v568, %v575
      %v577 = vrot.slane %v572, 4
      %v579 = vshrl.u32 %v259, 16
      %v581 = vrot.slane %v579, 7
      %v582 = vshll.u32 %v259, 16
      %v584 = vor.u32 %v581, %v582
      %v585 = vrot.slane %v581, 4
      %v587 = vshrl.u32 %v260, 16
      %v589 = vrot.slane %v587, 7
      %v590 = vshll.u32 %v260, 16
      %v592 = vor.u32 %v589, %v590
      %v593 = vsel %vm390, %v585, %v592
      %v594 = vrot.slane %v589, 4
      %v596 = vshrl.u32 %v261, 16
      %v598 = vrot.slane %v596, 7
      %v599 = vshll.u32 %v261, 16
      %v601 = vor.u32 %v598, %v599
      %v602 = vrot.slane %v598, 4
      %v604 = vshrl.u32 %v262, 16
      %v606 = vrot.slane %v604, 7
      %v607 = vshll.u32 %v262, 16
      %v609 = vor.u32 %v606, %v607
      %v610 = vsel %vm390, %v602, %v609
      %v611 = vrot.slane %v606, 4
      %v613 = vshrl.u32 %v263, 16
      %v615 = vrot.slane %v613, 7
      %v616 = vshll.u32 %v263, 16
      %v618 = vor.u32 %v615, %v616
      %v619 = vrot.slane %v615, 4
      %v621 = vshrl.u32 %v264, 16
      %v623 = vrot.slane %v621, 7
      %v624 = vshll.u32 %v264, 16
      %v626 = vor.u32 %v623, %v624
      %v627 = vsel %vm390, %v619, %v626
      %v628 = vrot.slane %v623, 4
      %v630 = vshrl.u32 %v265, 16
      %v632 = vrot.slane %v630, 7
      %v633 = vshll.u32 %v265, 16
      %v635 = vor.u32 %v632, %v633
      %v636 = vrot.slane %v632, 4
      %v638 = vshrl.u32 %v266, 16
      %v640 = vrot.slane %v638, 7
      %v641 = vshll.u32 %v266, 16
      %v643 = vor.u32 %v640, %v641
      %v644 = vsel %vm390, %v636, %v643
      %v645 = vrot.slane %v640, 4
      %v647 = vshrl.u32 %v267, 16
      %v649 = vrot.slane %v647, 7
      %v650 = vshll.u32 %v267, 16
      %v652 = vor.u32 %v649, %v650
      %v653 = vrot.slane %v649, 4
      %v655 = vshrl.u32 %v268, 16
      %v657 = vrot.slane %v655, 7
      %v658 = vshll.u32 %v268, 16
      %v660 = vor.u32 %v657, %v658
      %v661 = vsel %vm390, %v653, %v660
      %v662 = vrot.slane %v657, 4
      %s711 = scalar_lea.vmem [#allocation2], 12
      %vm712 = vcmask 1043456
      %vm713 = vmand %vm712, %vm333
      %v714 = vld [vmem:[%s711] sm:$0xf]
      %v715 = vsel %vm713, %v397, %v714
      %716 = vst [vmem:[%s711] sm:$0xf] %v715
      %717 = vst [vmem:[%s711 + $0x4] sm:$0xf] %v406
      %v718 = vld [vmem:[%s711 + $0x8] sm:$0x1]
      %v719 = vsel %vm278, %v407, %v718
      %720 = vst [vmem:[%s711 + $0x8] sm:$0x1] %v719
      %v721 = vld [vmem:[%s711 + $0xc] sm:$0xf]
      %v722 = vsel %vm713, %v414, %v721
      %723 = vst [vmem:[%s711 + $0xc] sm:$0xf] %v722
      %724 = vst [vmem:[%s711 + $0x10] sm:$0xf] %v423
      %v725 = vld [vmem:[%s711 + $0x14] sm:$0x1]
      %v726 = vsel %vm278, %v424, %v725
      %727 = vst [vmem:[%s711 + $0x14] sm:$0x1] %v726
      %v728 = vld [vmem:[%s711 + $0x18] sm:$0xf]
      %v729 = vsel %vm713, %v431, %v728
      %730 = vst [vmem:[%s711 + $0x18] sm:$0xf] %v729
      %731 = vst [vmem:[%s711 + $0x1c] sm:$0xf] %v440
      %v732 = vld [vmem:[%s711 + $0x20] sm:$0x1]
      %v733 = vsel %vm278, %v441, %v732
      %734 = vst [vmem:[%s711 + $0x20] sm:$0x1] %v733
      %v735 = vld [vmem:[%s711 + $0x24] sm:$0xf]
      %v736 = vsel %vm713, %v448, %v735
      %737 = vst [vmem:[%s711 + $0x24] sm:$0xf] %v736
      %738 = vst [vmem:[%s711 + $0x28] sm:$0xf] %v457
      %v739 = vld [vmem:[%s711 + $0x2c] sm:$0x1]
      %v740 = vsel %vm278, %v458, %v739
      %741 = vst [vmem:[%s711 + $0x2c] sm:$0x1] %v740
      %v742 = vld [vmem:[%s711 + $0x30] sm:$0xf]
      %v743 = vsel %vm713, %v465, %v742
      %744 = vst [vmem:[%s711 + $0x30] sm:$0xf] %v743
      %745 = vst [vmem:[%s711 + $0x34] sm:$0xf] %v474
      %v746 = vld [vmem:[%s711 + $0x38] sm:$0x1]
      %v747 = vsel %vm278, %v475, %v746
      %748 = vst [vmem:[%s711 + $0x38] sm:$0x1] %v747
      %v749 = vld [vmem:[%s711 + $0x3c] sm:$0xf]
      %v750 = vsel %vm713, %v482, %v749
      %751 = vst [vmem:[%s711 + $0x3c] sm:$0xf] %v750
      %752 = vst [vmem:[%s711 + $0x40] sm:$0xf] %v491
      %v753 = vld [vmem:[%s711 + $0x44] sm:$0x1]
      %v754 = vsel %vm278, %v492, %v753
      %755 = vst [vmem:[%s711 + $0x44] sm:$0x1] %v754
      %v756 = vld [vmem:[%s711 + $0x48] sm:$0xf]
      %v757 = vsel %vm713, %v499, %v756
      %758 = vst [vmem:[%s711 + $0x48] sm:$0xf] %v757
      %759 = vst [vmem:[%s711 + $0x4c] sm:$0xf] %v508
      %v760 = vld [vmem:[%s711 + $0x50] sm:$0x1]
      %v761 = vsel %vm278, %v509, %v760
      %762 = vst [vmem:[%s711 + $0x50] sm:$0x1] %v761
      %v763 = vld [vmem:[%s711 + $0x54] sm:$0xf]
      %v764 = vsel %vm713, %v516, %v763
      %765 = vst [vmem:[%s711 + $0x54] sm:$0xf] %v764
      %766 = vst [vmem:[%s711 + $0x58] sm:$0xf] %v525
      %v767 = vld [vmem:[%s711 + $0x5c] sm:$0x1]
      %v768 = vsel %vm278, %v526, %v767
      %769 = vst [vmem:[%s711 + $0x5c] sm:$0x1] %v768
      %v770 = vld [vmem:[%s711 + $0x60] sm:$0xf]
      %v771 = vsel %vm713, %v533, %v770
      %772 = vst [vmem:[%s711 + $0x60] sm:$0xf] %v771
      %773 = vst [vmem:[%s711 + $0x64] sm:$0xf] %v542
      %v774 = vld [vmem:[%s711 + $0x68] sm:$0x1]
      %v775 = vsel %vm278, %v543, %v774
      %776 = vst [vmem:[%s711 + $0x68] sm:$0x1] %v775
      %v777 = vld [vmem:[%s711 + $0x6c] sm:$0xf]
      %v778 = vsel %vm713, %v550, %v777
      %779 = vst [vmem:[%s711 + $0x6c] sm:$0xf] %v778
      %780 = vst [vmem:[%s711 + $0x70] sm:$0xf] %v559
      %v781 = vld [vmem:[%s711 + $0x74] sm:$0x1]
      %v782 = vsel %vm278, %v560, %v781
      %783 = vst [vmem:[%s711 + $0x74] sm:$0x1] %v782
      %v784 = vld [vmem:[%s711 + $0x78] sm:$0xf]
      %v785 = vsel %vm713, %v567, %v784
      %786 = vst [vmem:[%s711 + $0x78] sm:$0xf] %v785
      %787 = vst [vmem:[%s711 + $0x7c] sm:$0xf] %v576
      %v788 = vld [vmem:[%s711 + $0x80] sm:$0x1]
      %v789 = vsel %vm278, %v577, %v788
      %790 = vst [vmem:[%s711 + $0x80] sm:$0x1] %v789
      %v791 = vld [vmem:[%s711 + $0x84] sm:$0xf]
      %v792 = vsel %vm713, %v584, %v791
      %793 = vst [vmem:[%s711 + $0x84] sm:$0xf] %v792
      %794 = vst [vmem:[%s711 + $0x88] sm:$0xf] %v593
      %v795 = vld [vmem:[%s711 + $0x8c] sm:$0x1]
      %v796 = vsel %vm278, %v594, %v795
      %797 = vst [vmem:[%s711 + $0x8c] sm:$0x1] %v796
      %v798 = vld [vmem:[%s711 + $0x90] sm:$0xf]
      %v799 = vsel %vm713, %v601, %v798
      %800 = vst [vmem:[%s711 + $0x90] sm:$0xf] %v799
      %801 = vst [vmem:[%s711 + $0x94] sm:$0xf] %v610
      %v802 = vld [vmem:[%s711 + $0x98] sm:$0x1]
      %v803 = vsel %vm278, %v611, %v802
      %804 = vst [vmem:[%s711 + $0x98] sm:$0x1] %v803
      %v805 = vld [vmem:[%s711 + $0x9c] sm:$0xf]
      %v806 = vsel %vm713, %v618, %v805
      %807 = vst [vmem:[%s711 + $0x9c] sm:$0xf] %v806
      %808 = vst [vmem:[%s711 + $0xa0] sm:$0xf] %v627
      %v809 = vld [vmem:[%s711 + $0xa4] sm:$0x1]
      %v810 = vsel %vm278, %v628, %v809
      %811 = vst [vmem:[%s711 + $0xa4] sm:$0x1] %v810
      %v812 = vld [vmem:[%s711 + $0xa8] sm:$0xf]
      %v813 = vsel %vm713, %v635, %v812
      %814 = vst [vmem:[%s711 + $0xa8] sm:$0xf] %v813
      %815 = vst [vmem:[%s711 + $0xac] sm:$0xf] %v644
      %v816 = vld [vmem:[%s711 + $0xb0] sm:$0x1]
      %v817 = vsel %vm278, %v645, %v816
      %818 = vst [vmem:[%s711 + $0xb0] sm:$0x1] %v817
      %v819 = vld [vmem:[%s711 + $0xb4] sm:$0xf]
      %v820 = vsel %vm713, %v652, %v819
      %821 = vst [vmem:[%s711 + $0xb4] sm:$0xf] %v820
      %822 = vst [vmem:[%s711 + $0xb8] sm:$0xf] %v661
      %v823 = vld [vmem:[%s711 + $0xbc] sm:$0x1]
      %v824 = vsel %vm278, %v662, %v823
      %825 = vst [vmem:[%s711 + $0xbc] sm:$0x1] %v824
      %v826 = vld [vmem:[#allocation2] sm:$0xf]
      %v827 = vld [vmem:[#allocation2 + $0x4] sm:$0xf]
      %v828 = vld [vmem:[#allocation2 + $0xc] sm:$0xf]
      %v829 = vld [vmem:[#allocation2 + $0x10] sm:$0xf]
      %v830 = vld [vmem:[#allocation2 + $0x18] sm:$0xf]
      %v831 = vld [vmem:[#allocation2 + $0x1c] sm:$0xf]
      %v832 = vld [vmem:[#allocation2 + $0x24] sm:$0xf]
      %v833 = vld [vmem:[#allocation2 + $0x28] sm:$0xf]
      %v834 = vld [vmem:[#allocation2 + $0x30] sm:$0xf]
      %v835 = vld [vmem:[#allocation2 + $0x34] sm:$0xf]
      %v836 = vld [vmem:[#allocation2 + $0x3c] sm:$0xf]
      %v837 = vld [vmem:[#allocation2 + $0x40] sm:$0xf]
      %v838 = vld [vmem:[#allocation2 + $0x48] sm:$0xf]
      %v839 = vld [vmem:[#allocation2 + $0x4c] sm:$0xf]
      %v840 = vld [vmem:[#allocation2 + $0x54] sm:$0xf]
      %v841 = vld [vmem:[#allocation2 + $0x58] sm:$0xf]
      %v842 = vld [vmem:[#allocation2 + $0x60] sm:$0xf]
      %v843 = vld [vmem:[#allocation2 + $0x64] sm:$0xf]
      %v844 = vld [vmem:[#allocation2 + $0x6c] sm:$0xf]
      %v845 = vld [vmem:[#allocation2 + $0x70] sm:$0xf]
      %v846 = vld [vmem:[#allocation2 + $0x78] sm:$0xf]
      %v847 = vld [vmem:[#allocation2 + $0x7c] sm:$0xf]
      %v848 = vld [vmem:[#allocation2 + $0x84] sm:$0xf]
      %v849 = vld [vmem:[#allocation2 + $0x88] sm:$0xf]
      %v850 = vld [vmem:[#allocation2 + $0x90] sm:$0xf]
      %v851 = vld [vmem:[#allocation2 + $0x94] sm:$0xf]
      %v852 = vld [vmem:[#allocation2 + $0x9c] sm:$0xf]
      %v853 = vld [vmem:[#allocation2 + $0xa0] sm:$0xf]
      %v854 = vld [vmem:[#allocation2 + $0xa8] sm:$0xf]
      %v855 = vld [vmem:[#allocation2 + $0xac] sm:$0xf]
      %v856 = vld [vmem:[#allocation2 + $0xb4] sm:$0xf]
      %v857 = vld [vmem:[#allocation2 + $0xb8] sm:$0xf]
      %v858 = vld [vmem:[%s1] sm:$0xf]
      %v859 = vld [vmem:[%s1 + $0x4] sm:$0xf]
      %v860 = vld [vmem:[%s1 + $0x8] sm:$0xf]
      %v861 = vld [vmem:[%s1 + $0xc] sm:$0xf]
      %v862 = vld [vmem:[%s1 + $0x10] sm:$0xf]
      %v863 = vld [vmem:[%s1 + $0x14] sm:$0xf]
      %v864 = vld [vmem:[%s1 + $0x18] sm:$0xf]
      %v865 = vld [vmem:[%s1 + $0x1c] sm:$0xf]
      %v866 = vld [vmem:[%s1 + $0x20] sm:$0xf]
      %v867 = vld [vmem:[%s1 + $0x24] sm:$0xf]
      %v868 = vld [vmem:[%s1 + $0x28] sm:$0xf]
      %v869 = vld [vmem:[%s1 + $0x2c] sm:$0xf]
      %v870 = vld [vmem:[%s1 + $0x30] sm:$0xf]
      %v871 = vld [vmem:[%s1 + $0x34] sm:$0xf]
      %v872 = vld [vmem:[%s1 + $0x38] sm:$0xf]
      %v873 = vld [vmem:[%s1 + $0x3c] sm:$0xf]
      %v874 = vld [vmem:[#allocation2 + $0x8] sm:$0x1]
      %v875 = vld [vmem:[#allocation2 + $0x14] sm:$0x1]
      %v876 = vld [vmem:[#allocation2 + $0x20] sm:$0x1]
      %v877 = vld [vmem:[#allocation2 + $0x2c] sm:$0x1]
      %v878 = vld [vmem:[#allocation2 + $0x38] sm:$0x1]
      %v879 = vld [vmem:[#allocation2 + $0x44] sm:$0x1]
      %v880 = vld [vmem:[#allocation2 + $0x50] sm:$0x1]
      %v881 = vld [vmem:[#allocation2 + $0x5c] sm:$0x1]
      %v882 = vld [vmem:[#allocation2 + $0x68] sm:$0x1]
      %v883 = vld [vmem:[#allocation2 + $0x74] sm:$0x1]
      %v884 = vld [vmem:[#allocation2 + $0x80] sm:$0x1]
      %v885 = vld [vmem:[#allocation2 + $0x8c] sm:$0x1]
      %v886 = vld [vmem:[#allocation2 + $0x98] sm:$0x1]
      %v887 = vld [vmem:[#allocation2 + $0xa4] sm:$0x1]
      %v888 = vld [vmem:[#allocation2 + $0xb0] sm:$0x1]
      %v889 = vld [vmem:[#allocation2 + $0xbc] sm:$0x1]
      %vm890 = vsmask.f32 3328
      %vm891 = vsmask.f32 7440
      %vm892 = vmor %vm890, %vm891
      %v894 = vshrl.u32 %v826, 16
      %v896 = vrot.slane %v894, 4
      %v897 = vshll.u32 %v826, 16
      %v899 = vrot.slane %v897, 5
      %v900 = vor.u32 %v896, %v899
      %v901 = vrot.slane %v900, 4
      %v903 = vshll.u32 %v827, 16
      %v905 = vrot.slane %v903, 5
      %v906 = vsel %vm892, %v901, %v905
      %v907 = vshrl.u32 %v827, 16
      %v909 = vrot.slane %v907, 4
      %v910 = vor.u32 %v909, %v905
      %v911 = vrot.slane %v910, 4
      %v913 = vshll.u32 %v874, 16
      %v915 = vrot.slane %v913, 5
      %v916 = vsel %vm892, %v911, %v915
      %v918 = vshrl.u32 %v828, 16
      %v920 = vrot.slane %v918, 4
      %v921 = vshll.u32 %v828, 16
      %v923 = vrot.slane %v921, 5
      %v924 = vor.u32 %v920, %v923
      %v925 = vrot.slane %v924, 4
      %v927 = vshll.u32 %v829, 16
      %v929 = vrot.slane %v927, 5
      %v930 = vsel %vm892, %v925, %v929
      %v931 = vshrl.u32 %v829, 16
      %v933 = vrot.slane %v931, 4
      %v934 = vor.u32 %v933, %v929
      %v935 = vrot.slane %v934, 4
      %v937 = vshll.u32 %v875, 16
      %v939 = vrot.slane %v937, 5
      %v940 = vsel %vm892, %v935, %v939
      %v942 = vshrl.u32 %v830, 16
      %v944 = vrot.slane %v942, 4
      %v945 = vshll.u32 %v830, 16
      %v947 = vrot.slane %v945, 5
      %v948 = vor.u32 %v944, %v947
      %v949 = vrot.slane %v948, 4
      %v951 = vshll.u32 %v831, 16
      %v953 = vrot.slane %v951, 5
      %v954 = vsel %vm892, %v949, %v953
      %v955 = vshrl.u32 %v831, 16
      %v957 = vrot.slane %v955, 4
      %v958 = vor.u32 %v957, %v953
      %v959 = vrot.slane %v958, 4
      %v961 = vshll.u32 %v876, 16
      %v963 = vrot.slane %v961, 5
      %v964 = vsel %vm892, %v959, %v963
      %v966 = vshrl.u32 %v832, 16
      %v968 = vrot.slane %v966, 4
      %v969 = vshll.u32 %v832, 16
      %v971 = vrot.slane %v969, 5
      %v972 = vor.u32 %v968, %v971
      %v973 = vrot.slane %v972, 4
      %v975 = vshll.u32 %v833, 16
      %v977 = vrot.slane %v975, 5
      %v978 = vsel %vm892, %v973, %v977
      %v979 = vshrl.u32 %v833, 16
      %v981 = vrot.slane %v979, 4
      %v982 = vor.u32 %v981, %v977
      %v983 = vrot.slane %v982, 4
      %v985 = vshll.u32 %v877, 16
      %v987 = vrot.slane %v985, 5
      %v988 = vsel %vm892, %v983, %v987
      %v990 = vshrl.u32 %v834, 16
      %v992 = vrot.slane %v990, 4
      %v993 = vshll.u32 %v834, 16
      %v995 = vrot.slane %v993, 5
      %v996 = vor.u32 %v992, %v995
      %v997 = vrot.slane %v996, 4
      %v999 = vshll.u32 %v835, 16
      %v1001 = vrot.slane %v999, 5
      %v1002 = vsel %vm892, %v997, %v1001
      %v1003 = vshrl.u32 %v835, 16
      %v1005 = vrot.slane %v1003, 4
      %v1006 = vor.u32 %v1005, %v1001
      %v1007 = vrot.slane %v1006, 4
      %v1009 = vshll.u32 %v878, 16
      %v1011 = vrot.slane %v1009, 5
      %v1012 = vsel %vm892, %v1007, %v1011
      %v1014 = vshrl.u32 %v836, 16
      %v1016 = vrot.slane %v1014, 4
      %v1017 = vshll.u32 %v836, 16
      %v1019 = vrot.slane %v1017, 5
      %v1020 = vor.u32 %v1016, %v1019
      %v1021 = vrot.slane %v1020, 4
      %v1023 = vshll.u32 %v837, 16
      %v1025 = vrot.slane %v1023, 5
      %v1026 = vsel %vm892, %v1021, %v1025
      %v1027 = vshrl.u32 %v837, 16
      %v1029 = vrot.slane %v1027, 4
      %v1030 = vor.u32 %v1029, %v1025
      %v1031 = vrot.slane %v1030, 4
      %v1033 = vshll.u32 %v879, 16
      %v1035 = vrot.slane %v1033, 5
      %v1036 = vsel %vm892, %v1031, %v1035
      %v1038 = vshrl.u32 %v838, 16
      %v1040 = vrot.slane %v1038, 4
      %v1041 = vshll.u32 %v838, 16
      %v1043 = vrot.slane %v1041, 5
      %v1044 = vor.u32 %v1040, %v1043
      %v1045 = vrot.slane %v1044, 4
      %v1047 = vshll.u32 %v839, 16
      %v1049 = vrot.slane %v1047, 5
      %v1050 = vsel %vm892, %v1045, %v1049
      %v1051 = vshrl.u32 %v839, 16
      %v1053 = vrot.slane %v1051, 4
      %v1054 = vor.u32 %v1053, %v1049
      %v1055 = vrot.slane %v1054, 4
      %v1057 = vshll.u32 %v880, 16
      %v1059 = vrot.slane %v1057, 5
      %v1060 = vsel %vm892, %v1055, %v1059
      %v1062 = vshrl.u32 %v840, 16
      %v1064 = vrot.slane %v1062, 4
      %v1065 = vshll.u32 %v840, 16
      %v1067 = vrot.slane %v1065, 5
      %v1068 = vor.u32 %v1064, %v1067
      %v1069 = vrot.slane %v1068, 4
      %v1071 = vshll.u32 %v841, 16
      %v1073 = vrot.slane %v1071, 5
      %v1074 = vsel %vm892, %v1069, %v1073
      %v1075 = vshrl.u32 %v841, 16
      %v1077 = vrot.slane %v1075, 4
      %v1078 = vor.u32 %v1077, %v1073
      %v1079 = vrot.slane %v1078, 4
      %v1081 = vshll.u32 %v881, 16
      %v1083 = vrot.slane %v1081, 5
      %v1084 = vsel %vm892, %v1079, %v1083
      %v1086 = vshrl.u32 %v842, 16
      %v1088 = vrot.slane %v1086, 4
      %v1089 = vshll.u32 %v842, 16
      %v1091 = vrot.slane %v1089, 5
      %v1092 = vor.u32 %v1088, %v1091
      %v1093 = vrot.slane %v1092, 4
      %v1095 = vshll.u32 %v843, 16
      %v1097 = vrot.slane %v1095, 5
      %v1098 = vsel %vm892, %v1093, %v1097
      %v1099 = vshrl.u32 %v843, 16
      %v1101 = vrot.slane %v1099, 4
      %v1102 = vor.u32 %v1101, %v1097
      %v1103 = vrot.slane %v1102, 4
      %v1105 = vshll.u32 %v882, 16
      %v1107 = vrot.slane %v1105, 5
      %v1108 = vsel %vm892, %v1103, %v1107
      %v1110 = vshrl.u32 %v844, 16
      %v1112 = vrot.slane %v1110, 4
      %v1113 = vshll.u32 %v844, 16
      %v1115 = vrot.slane %v1113, 5
      %v1116 = vor.u32 %v1112, %v1115
      %v1117 = vrot.slane %v1116, 4
      %v1119 = vshll.u32 %v845, 16
      %v1121 = vrot.slane %v1119, 5
      %v1122 = vsel %vm892, %v1117, %v1121
      %v1123 = vshrl.u32 %v845, 16
      %v1125 = vrot.slane %v1123, 4
      %v1126 = vor.u32 %v1125, %v1121
      %v1127 = vrot.slane %v1126, 4
      %v1129 = vshll.u32 %v883, 16
      %v1131 = vrot.slane %v1129, 5
      %v1132 = vsel %vm892, %v1127, %v1131
      %v1134 = vshrl.u32 %v846, 16
      %v1136 = vrot.slane %v1134, 4
      %v1137 = vshll.u32 %v846, 16
      %v1139 = vrot.slane %v1137, 5
      %v1140 = vor.u32 %v1136, %v1139
      %v1141 = vrot.slane %v1140, 4
      %v1143 = vshll.u32 %v847, 16
      %v1145 = vrot.slane %v1143, 5
      %v1146 = vsel %vm892, %v1141, %v1145
      %v1147 = vshrl.u32 %v847, 16
      %v1149 = vrot.slane %v1147, 4
      %v1150 = vor.u32 %v1149, %v1145
      %v1151 = vrot.slane %v1150, 4
      %v1153 = vshll.u32 %v884, 16
      %v1155 = vrot.slane %v1153, 5
      %v1156 = vsel %vm892, %v1151, %v1155
      %v1158 = vshrl.u32 %v848, 16
      %v1160 = vrot.slane %v1158, 4
      %v1161 = vshll.u32 %v848, 16
      %v1163 = vrot.slane %v1161, 5
      %v1164 = vor.u32 %v1160, %v1163
      %v1165 = vrot.slane %v1164, 4
      %v1167 = vshll.u32 %v849, 16
      %v1169 = vrot.slane %v1167, 5
      %v1170 = vsel %vm892, %v1165, %v1169
      %v1171 = vshrl.u32 %v849, 16
      %v1173 = vrot.slane %v1171, 4
      %v1174 = vor.u32 %v1173, %v1169
      %v1175 = vrot.slane %v1174, 4
      %v1177 = vshll.u32 %v885, 16
      %v1179 = vrot.slane %v1177, 5
      %v1180 = vsel %vm892, %v1175, %v1179
      %v1182 = vshrl.u32 %v850, 16
      %v1184 = vrot.slane %v1182, 4
      %v1185 = vshll.u32 %v850, 16
      %v1187 = vrot.slane %v1185, 5
      %v1188 = vor.u32 %v1184, %v1187
      %v1189 = vrot.slane %v1188, 4
      %v1191 = vshll.u32 %v851, 16
      %v1193 = vrot.slane %v1191, 5
      %v1194 = vsel %vm892, %v1189, %v1193
      %v1195 = vshrl.u32 %v851, 16
      %v1197 = vrot.slane %v1195, 4
      %v1198 = vor.u32 %v1197, %v1193
      %v1199 = vrot.slane %v1198, 4
      %v1201 = vshll.u32 %v886, 16
      %v1203 = vrot.slane %v1201, 5
      %v1204 = vsel %vm892, %v1199, %v1203
      %v1206 = vshrl.u32 %v852, 16
      %v1208 = vrot.slane %v1206, 4
      %v1209 = vshll.u32 %v852, 16
      %v1211 = vrot.slane %v1209, 5
      %v1212 = vor.u32 %v1208, %v1211
      %v1213 = vrot.slane %v1212, 4
      %v1215 = vshll.u32 %v853, 16
      %v1217 = vrot.slane %v1215, 5
      %v1218 = vsel %vm892, %v1213, %v1217
      %v1219 = vshrl.u32 %v853, 16
      %v1221 = vrot.slane %v1219, 4
      %v1222 = vor.u32 %v1221, %v1217
      %v1223 = vrot.slane %v1222, 4
      %v1225 = vshll.u32 %v887, 16
      %v1227 = vrot.slane %v1225, 5
      %v1228 = vsel %vm892, %v1223, %v1227
      %v1230 = vshrl.u32 %v854, 16
      %v1232 = vrot.slane %v1230, 4
      %v1233 = vshll.u32 %v854, 16
      %v1235 = vrot.slane %v1233, 5
      %v1236 = vor.u32 %v1232, %v1235
      %v1237 = vrot.slane %v1236, 4
      %v1239 = vshll.u32 %v855, 16
      %v1241 = vrot.slane %v1239, 5
      %v1242 = vsel %vm892, %v1237, %v1241
      %v1243 = vshrl.u32 %v855, 16
      %v1245 = vrot.slane %v1243, 4
      %v1246 = vor.u32 %v1245, %v1241
      %v1247 = vrot.slane %v1246, 4
      %v1249 = vshll.u32 %v888, 16
      %v1251 = vrot.slane %v1249, 5
      %v1252 = vsel %vm892, %v1247, %v1251
      %v1254 = vshrl.u32 %v856, 16
      %v1256 = vrot.slane %v1254, 4
      %v1257 = vshll.u32 %v856, 16
      %v1259 = vrot.slane %v1257, 5
      %v1260 = vor.u32 %v1256, %v1259
      %v1261 = vrot.slane %v1260, 4
      %v1263 = vshll.u32 %v857, 16
      %v1265 = vrot.slane %v1263, 5
      %v1266 = vsel %vm892, %v1261, %v1265
      %v1267 = vshrl.u32 %v857, 16
      %v1269 = vrot.slane %v1267, 4
      %v1270 = vor.u32 %v1269, %v1265
      %v1271 = vrot.slane %v1270, 4
      %v1273 = vshll.u32 %v889, 16
      %v1275 = vrot.slane %v1273, 5
      %v1276 = vsel %vm892, %v1271, %v1275
      %s1277 = scalar_lea.vmem %s1, 64
      %v1278 = vld [vmem:[%s1277] sm:$0xf]
      %v1279 = vld [vmem:[%s1277 + $0x4] sm:$0xf]
      %v1280 = vld [vmem:[%s1277 + $0x8] sm:$0xf]
      %v1281 = vld [vmem:[%s1277 + $0xc] sm:$0xf]
      %v1282 = vld [vmem:[%s1277 + $0x10] sm:$0xf]
      %v1283 = vld [vmem:[%s1277 + $0x14] sm:$0xf]
      %v1284 = vld [vmem:[%s1277 + $0x18] sm:$0xf]
      %v1285 = vld [vmem:[%s1277 + $0x1c] sm:$0xf]
      %v1286 = vld [vmem:[%s1277 + $0x20] sm:$0xf]
      %v1287 = vld [vmem:[%s1277 + $0x24] sm:$0xf]
      %v1288 = vld [vmem:[%s1277 + $0x28] sm:$0xf]
      %v1289 = vld [vmem:[%s1277 + $0x2c] sm:$0xf]
      %v1290 = vld [vmem:[%s1277 + $0x30] sm:$0xf]
      %v1291 = vld [vmem:[%s1277 + $0x34] sm:$0xf]
      %v1292 = vld [vmem:[%s1277 + $0x38] sm:$0xf]
      %v1293 = vld [vmem:[%s1277 + $0x3c] sm:$0xf]
      %v1294 = vunpack.c.l.b16 %v906
      %v1295 = vunpack.c.l.b16 %v916
      %v1296 = vunpack.c.l.b16 %v930
      %v1297 = vunpack.c.l.b16 %v940
      %v1298 = vunpack.c.l.b16 %v954
      %v1299 = vunpack.c.l.b16 %v964
      %v1300 = vunpack.c.l.b16 %v978
      %v1301 = vunpack.c.l.b16 %v988
      %v1302 = vunpack.c.l.b16 %v1002
      %v1303 = vunpack.c.l.b16 %v1012
      %v1304 = vunpack.c.l.b16 %v1026
      %v1305 = vunpack.c.l.b16 %v1036
      %v1306 = vunpack.c.l.b16 %v1050
      %v1307 = vunpack.c.l.b16 %v1060
      %v1308 = vunpack.c.l.b16 %v1074
      %v1309 = vunpack.c.l.b16 %v1084
      %v1310 = vunpack.c.l.b16 %v1098
      %v1311 = vunpack.c.l.b16 %v1108
      %v1312 = vunpack.c.l.b16 %v1122
      %v1313 = vunpack.c.l.b16 %v1132
      %v1314 = vunpack.c.l.b16 %v1146
      %v1315 = vunpack.c.l.b16 %v1156
      %v1316 = vunpack.c.l.b16 %v1170
      %v1317 = vunpack.c.l.b16 %v1180
      %v1318 = vunpack.c.l.b16 %v1194
      %v1319 = vunpack.c.l.b16 %v1204
      %v1320 = vunpack.c.l.b16 %v1218
      %v1321 = vunpack.c.l.b16 %v1228
      %v1322 = vunpack.c.l.b16 %v1242
      %v1323 = vunpack.c.l.b16 %v1252
      %v1324 = vunpack.c.l.b16 %v1266
      %v1325 = vunpack.c.l.b16 %v1276
      %v1326 = vpack.c.b16 %v1295, %v1294
      %v1327 = vpack.c.b16 %v1297, %v1296
      %v1328 = vpack.c.b16 %v1299, %v1298
      %v1329 = vpack.c.b16 %v1301, %v1300
      %v1330 = vpack.c.b16 %v1303, %v1302
      %v1331 = vpack.c.b16 %v1305, %v1304
      %v1332 = vpack.c.b16 %v1307, %v1306
      %v1333 = vpack.c.b16 %v1309, %v1308
      %v1334 = vpack.c.b16 %v1311, %v1310
      %v1335 = vpack.c.b16 %v1313, %v1312
      %v1336 = vpack.c.b16 %v1315, %v1314
      %v1337 = vpack.c.b16 %v1317, %v1316
      %v1338 = vpack.c.b16 %v1319, %v1318
      %v1339 = vpack.c.b16 %v1321, %v1320
      %v1340 = vpack.c.b16 %v1323, %v1322
      %v1341 = vpack.c.b16 %v1325, %v1324
      %v1374 = vunpack.c.l.b16 %v1278
      %v1375 = vunpack.c.l.b16 %v1279
      %v1376 = vunpack.c.l.b16 %v1280
      %v1377 = vunpack.c.l.b16 %v1281
      %v1378 = vunpack.c.l.b16 %v1282
      %v1379 = vunpack.c.l.b16 %v1283
      %v1380 = vunpack.c.l.b16 %v1284
      %v1381 = vunpack.c.l.b16 %v1285
      %v1382 = vunpack.c.l.b16 %v1286
      %v1383 = vunpack.c.l.b16 %v1287
      %v1384 = vunpack.c.l.b16 %v1288
      %v1385 = vunpack.c.l.b16 %v1289
      %v1386 = vunpack.c.l.b16 %v1290
      %v1387 = vunpack.c.l.b16 %v1291
      %v1388 = vunpack.c.l.b16 %v1292
      %v1389 = vunpack.c.l.b16 %v1293
      %v1390 = vpack.c.b16 %v1375, %v1374
      %v1391 = vpack.c.b16 %v1377, %v1376
      %v1392 = vpack.c.b16 %v1379, %v1378
      %v1393 = vpack.c.b16 %v1381, %v1380
      %v1394 = vpack.c.b16 %v1383, %v1382
      %v1395 = vpack.c.b16 %v1385, %v1384
      %v1396 = vpack.c.b16 %v1387, %v1386
      %v1397 = vpack.c.b16 %v1389, %v1388
      %1406 = vmatprep.subr.bf16.mxu0 0
      %1407 = vmatpush1.bf16.msra.mxu0 %v1397
      %1408 = vmatprep.subr.bf16.mxu0 0
      %1409 = vmatpush1.bf16.msra.mxu0 %v1396
      %1410 = vmatprep.subr.bf16.mxu0 0
      %1411 = vmatpush1.bf16.msra.mxu0 %v1395
      %1412 = vmatprep.subr.bf16.mxu0 0
      %1413 = vmatpush1.bf16.msra.mxu0 %v1394
      %1414 = vmatprep.subr.bf16.mxu0 0
      %1415 = vmatpush1.bf16.msra.mxu0 %v1393
      %1416 = vmatprep.subr.bf16.mxu0 0
      %1417 = vmatpush1.bf16.msra.mxu0 %v1392
      %1418 = vmatprep.subr.bf16.mxu0 0
      %1419 = vmatpush1.bf16.msra.mxu0 %v1391
      %1420 = vmatprep.subr.bf16.mxu0 0
      %1421 = vmatpush1.bf16.msra.mxu0 %v1390
      %1422 = vmatprep.subr.bf16.mxu0 0
      %1423 = vmatpush2.bf16.msra.mxu0 0
      %1424 = vmatprep.subr.bf16.mxu0 0
      %1425 = vmatpush2.bf16.msra.mxu0 0
      %1426 = vmatprep.subr.bf16.mxu0 0
      %1427 = vmatpush2.bf16.msra.mxu0 0
      %1428 = vmatprep.subr.bf16.mxu0 0
      %1429 = vmatpush2.bf16.msra.mxu0 0
      %1430 = vmatprep.subr.bf16.mxu0 0
      %1431 = vmatpush2.bf16.msra.mxu0 0
      %1432 = vmatprep.subr.bf16.mxu0 0
      %1433 = vmatpush2.bf16.msra.mxu0 0
      %1434 = vmatprep.subr.bf16.mxu0 0
      %1435 = vmatpush2.bf16.msra.mxu0 0
      %1436 = vmatprep.subr.bf16.mxu0 0
      %1437 = vmatpush2.bf16.msra.mxu0 0
      %1438 = vmatprep.mubr.bf16.mxu0 0
      %1439 = vmatmul.mubr.bf16.gmra.mxu0 %v1326
      %v1440 = vpop.f32.mrf.mxu0
      %v1441 = vadd.f32 0.0, %v1440
      %v1442 = vpop.f32.mrf.mxu0
      %v1443 = vpop.f32.mrf.mxu0
      %v1444 = vadd.f32 0.0, %v1443
      %v1445 = vpop.f32.mrf.mxu0
      %1446 = vmatprep.mubr.bf16.mxu0 0
      %1447 = vmatmul.mubr.bf16.gmra.mxu0 %v1327
      %v1448 = vpop.f32.mrf.mxu0
      %v1449 = vadd.f32 0.0, %v1448
      %v1450 = vpop.f32.mrf.mxu0
      %v1451 = vpop.f32.mrf.mxu0
      %v1452 = vadd.f32 0.0, %v1451
      %v1453 = vpop.f32.mrf.mxu0
      %1454 = vmatprep.mubr.bf16.mxu0 0
      %1455 = vmatmul.mubr.bf16.gmra.mxu0 %v1328
      %v1456 = vpop.f32.mrf.mxu0
      %v1457 = vadd.f32 0.0, %v1456
      %v1458 = vpop.f32.mrf.mxu0
      %v1459 = vpop.f32.mrf.mxu0
      %v1460 = vadd.f32 0.0, %v1459
      %v1461 = vpop.f32.mrf.mxu0
      %1462 = vmatprep.mubr.bf16.mxu0 0
      %1463 = vmatmul.mubr.bf16.gmra.mxu0 %v1329
      %v1464 = vpop.f32.mrf.mxu0
      %v1465 = vadd.f32 0.0, %v1464
      %v1466 = vpop.f32.mrf.mxu0
      %v1467 = vpop.f32.mrf.mxu0
      %v1468 = vadd.f32 0.0, %v1467
      %v1469 = vpop.f32.mrf.mxu0
      %1470 = vmatprep.mubr.bf16.mxu0 0
      %1471 = vmatmul.mubr.bf16.gmra.mxu0 %v1330
      %v1472 = vpop.f32.mrf.mxu0
      %v1473 = vadd.f32 0.0, %v1472
      %v1474 = vpop.f32.mrf.mxu0
      %v1475 = vpop.f32.mrf.mxu0
      %v1476 = vadd.f32 0.0, %v1475
      %v1477 = vpop.f32.mrf.mxu0
      %1478 = vmatprep.mubr.bf16.mxu0 0
      %1479 = vmatmul.mubr.bf16.gmra.mxu0 %v1331
      %v1480 = vpop.f32.mrf.mxu0
      %v1481 = vadd.f32 0.0, %v1480
      %v1482 = vpop.f32.mrf.mxu0
      %v1483 = vpop.f32.mrf.mxu0
      %v1484 = vadd.f32 0.0, %v1483
      %v1485 = vpop.f32.mrf.mxu0
      %1486 = vmatprep.mubr.bf16.mxu0 0
      %1487 = vmatmul.mubr.bf16.gmra.mxu0 %v1332
      %v1488 = vpop.f32.mrf.mxu0
      %v1489 = vadd.f32 0.0, %v1488
      %v1490 = vpop.f32.mrf.mxu0
      %v1491 = vpop.f32.mrf.mxu0
      %v1492 = vadd.f32 0.0, %v1491
      %v1493 = vpop.f32.mrf.mxu0
      %1494 = vmatprep.mubr.bf16.mxu0 0
      %1495 = vmatmul.mubr.bf16.gmra.mxu0 %v1333
      %v1496 = vpop.f32.mrf.mxu0
      %v1497 = vadd.f32 0.0, %v1496
      %v1498 = vpop.f32.mrf.mxu0
      %v1499 = vpop.f32.mrf.mxu0
      %v1500 = vadd.f32 0.0, %v1499
      %v1501 = vpop.f32.mrf.mxu0
      %1502 = vmatprep.mubr.bf16.mxu0 0
      %1503 = vmatmul.mubr.bf16.gmra.mxu0 %v1334
      %v1504 = vpop.f32.mrf.mxu0
      %v1505 = vadd.f32 0.0, %v1504
      %v1506 = vpop.f32.mrf.mxu0
      %v1507 = vpop.f32.mrf.mxu0
      %v1508 = vadd.f32 0.0, %v1507
      %v1509 = vpop.f32.mrf.mxu0
      %1510 = vmatprep.mubr.bf16.mxu0 0
      %1511 = vmatmul.mubr.bf16.gmra.mxu0 %v1335
      %v1512 = vpop.f32.mrf.mxu0
      %v1513 = vadd.f32 0.0, %v1512
      %v1514 = vpop.f32.mrf.mxu0
      %v1515 = vpop.f32.mrf.mxu0
      %v1516 = vadd.f32 0.0, %v1515
      %v1517 = vpop.f32.mrf.mxu0
      %1518 = vmatprep.mubr.bf16.mxu0 0
      %1519 = vmatmul.mubr.bf16.gmra.mxu0 %v1336
      %v1520 = vpop.f32.mrf.mxu0
      %v1521 = vadd.f32 0.0, %v1520
      %v1522 = vpop.f32.mrf.mxu0
      %v1523 = vpop.f32.mrf.mxu0
      %v1524 = vadd.f32 0.0, %v1523
      %v1525 = vpop.f32.mrf.mxu0
      %1526 = vmatprep.mubr.bf16.mxu0 0
      %1527 = vmatmul.mubr.bf16.gmra.mxu0 %v1337
      %v1528 = vpop.f32.mrf.mxu0
      %v1529 = vadd.f32 0.0, %v1528
      %v1530 = vpop.f32.mrf.mxu0
      %v1531 = vpop.f32.mrf.mxu0
      %v1532 = vadd.f32 0.0, %v1531
      %v1533 = vpop.f32.mrf.mxu0
      %1534 = vmatprep.mubr.bf16.mxu0 0
      %1535 = vmatmul.mubr.bf16.gmra.mxu0 %v1338
      %v1536 = vpop.f32.mrf.mxu0
      %v1537 = vadd.f32 0.0, %v1536
      %v1538 = vpop.f32.mrf.mxu0
      %v1539 = vpop.f32.mrf.mxu0
      %v1540 = vadd.f32 0.0, %v1539
      %v1541 = vpop.f32.mrf.mxu0
      %1542 = vmatprep.mubr.bf16.mxu0 0
      %1543 = vmatmul.mubr.bf16.gmra.mxu0 %v1339
      %v1544 = vpop.f32.mrf.mxu0
      %v1545 = vadd.f32 0.0, %v1544
      %v1546 = vpop.f32.mrf.mxu0
      %v1547 = vpop.f32.mrf.mxu0
      %v1548 = vadd.f32 0.0, %v1547
      %v1549 = vpop.f32.mrf.mxu0
      %1550 = vmatprep.mubr.bf16.mxu0 0
      %1551 = vmatmul.mubr.bf16.gmra.mxu0 %v1340
      %v1552 = vpop.f32.mrf.mxu0
      %v1553 = vadd.f32 0.0, %v1552
      %v1554 = vpop.f32.mrf.mxu0
      %v1555 = vpop.f32.mrf.mxu0
      %v1556 = vadd.f32 0.0, %v1555
      %v1557 = vpop.f32.mrf.mxu0
      %1558 = vmatprep.mubr.bf16.mxu0 0
      %1559 = vmatmul.mubr.bf16.gmra.mxu0 %v1341
      %v1560 = vpop.f32.mrf.mxu0
      %v1561 = vadd.f32 0.0, %v1560
      %v1562 = vpop.f32.mrf.mxu0
      %v1563 = vpop.f32.mrf.mxu0
      %v1564 = vadd.f32 0.0, %v1563
      %v1565 = vpop.f32.mrf.mxu0
      %1566 = vdwg.mxu0
      %v1599 = vunpack.c.l.b16 %v826
      %v1600 = vunpack.c.l.b16 %v827
      %v1601 = vunpack.c.l.b16 %v828
      %v1602 = vunpack.c.l.b16 %v829
      %v1603 = vunpack.c.l.b16 %v830
      %v1604 = vunpack.c.l.b16 %v831
      %v1605 = vunpack.c.l.b16 %v832
      %v1606 = vunpack.c.l.b16 %v833
      %v1607 = vunpack.c.l.b16 %v834
      %v1608 = vunpack.c.l.b16 %v835
      %v1609 = vunpack.c.l.b16 %v836
      %v1610 = vunpack.c.l.b16 %v837
      %v1611 = vunpack.c.l.b16 %v838
      %v1612 = vunpack.c.l.b16 %v839
      %v1613 = vunpack.c.l.b16 %v840
      %v1614 = vunpack.c.l.b16 %v841
      %v1615 = vunpack.c.l.b16 %v842
      %v1616 = vunpack.c.l.b16 %v843
      %v1617 = vunpack.c.l.b16 %v844
      %v1618 = vunpack.c.l.b16 %v845
      %v1619 = vunpack.c.l.b16 %v846
      %v1620 = vunpack.c.l.b16 %v847
      %v1621 = vunpack.c.l.b16 %v848
      %v1622 = vunpack.c.l.b16 %v849
      %v1623 = vunpack.c.l.b16 %v850
      %v1624 = vunpack.c.l.b16 %v851
      %v1625 = vunpack.c.l.b16 %v852
      %v1626 = vunpack.c.l.b16 %v853
      %v1627 = vunpack.c.l.b16 %v854
      %v1628 = vunpack.c.l.b16 %v855
      %v1629 = vunpack.c.l.b16 %v856
      %v1630 = vunpack.c.l.b16 %v857
      %v1631 = vpack.c.b16 %v1600, %v1599
      %v1632 = vpack.c.b16 %v1602, %v1601
      %v1633 = vpack.c.b16 %v1604, %v1603
      %v1634 = vpack.c.b16 %v1606, %v1605
      %v1635 = vpack.c.b16 %v1608, %v1607
      %v1636 = vpack.c.b16 %v1610, %v1609
      %v1637 = vpack.c.b16 %v1612, %v1611
      %v1638 = vpack.c.b16 %v1614, %v1613
      %v1639 = vpack.c.b16 %v1616, %v1615
      %v1640 = vpack.c.b16 %v1618, %v1617
      %v1641 = vpack.c.b16 %v1620, %v1619
      %v1642 = vpack.c.b16 %v1622, %v1621
      %v1643 = vpack.c.b16 %v1624, %v1623
      %v1644 = vpack.c.b16 %v1626, %v1625
      %v1645 = vpack.c.b16 %v1628, %v1627
      %v1646 = vpack.c.b16 %v1630, %v1629
      %v1679 = vunpack.c.l.b16 %v858
      %v1680 = vunpack.c.l.b16 %v859
      %v1681 = vunpack.c.l.b16 %v860
      %v1682 = vunpack.c.l.b16 %v861
      %v1683 = vunpack.c.l.b16 %v862
      %v1684 = vunpack.c.l.b16 %v863
      %v1685 = vunpack.c.l.b16 %v864
      %v1686 = vunpack.c.l.b16 %v865
      %v1687 = vunpack.c.l.b16 %v866
      %v1688 = vunpack.c.l.b16 %v867
      %v1689 = vunpack.c.l.b16 %v868
      %v1690 = vunpack.c.l.b16 %v869
      %v1691 = vunpack.c.l.b16 %v870
      %v1692 = vunpack.c.l.b16 %v871
      %v1693 = vunpack.c.l.b16 %v872
      %v1694 = vunpack.c.l.b16 %v873
      %v1695 = vpack.c.b16 %v1680, %v1679
      %v1696 = vpack.c.b16 %v1682, %v1681
      %v1697 = vpack.c.b16 %v1684, %v1683
      %v1698 = vpack.c.b16 %v1686, %v1685
      %v1699 = vpack.c.b16 %v1688, %v1687
      %v1700 = vpack.c.b16 %v1690, %v1689
      %v1701 = vpack.c.b16 %v1692, %v1691
      %v1702 = vpack.c.b16 %v1694, %v1693
      %1711 = vmatprep.subr.bf16.mxu0 0
      %1712 = vmatpush1.bf16.msra.mxu0 %v1702
      %1713 = vmatprep.subr.bf16.mxu0 0
      %1714 = vmatpush1.bf16.msra.mxu0 %v1701
      %1715 = vmatprep.subr.bf16.mxu0 0
      %1716 = vmatpush1.bf16.msra.mxu0 %v1700
      %1717 = vmatprep.subr.bf16.mxu0 0
      %1718 = vmatpush1.bf16.msra.mxu0 %v1699
      %1719 = vmatprep.subr.bf16.mxu0 0
      %1720 = vmatpush1.bf16.msra.mxu0 %v1698
      %1721 = vmatprep.subr.bf16.mxu0 0
      %1722 = vmatpush1.bf16.msra.mxu0 %v1697
      %1723 = vmatprep.subr.bf16.mxu0 0
      %1724 = vmatpush1.bf16.msra.mxu0 %v1696
      %1725 = vmatprep.subr.bf16.mxu0 0
      %1726 = vmatpush1.bf16.msra.mxu0 %v1695
      %1727 = vmatprep.subr.bf16.mxu0 0
      %1728 = vmatpush2.bf16.msra.mxu0 0
      %1729 = vmatprep.subr.bf16.mxu0 0
      %1730 = vmatpush2.bf16.msra.mxu0 0
      %1731 = vmatprep.subr.bf16.mxu0 0
      %1732 = vmatpush2.bf16.msra.mxu0 0
      %1733 = vmatprep.subr.bf16.mxu0 0
      %1734 = vmatpush2.bf16.msra.mxu0 0
      %1735 = vmatprep.subr.bf16.mxu0 0
      %1736 = vmatpush2.bf16.msra.mxu0 0
      %1737 = vmatprep.subr.bf16.mxu0 0
      %1738 = vmatpush2.bf16.msra.mxu0 0
      %1739 = vmatprep.subr.bf16.mxu0 0
      %1740 = vmatpush2.bf16.msra.mxu0 0
      %1741 = vmatprep.subr.bf16.mxu0 0
      %1742 = vmatpush2.bf16.msra.mxu0 0
      %1743 = vmatprep.mubr.bf16.mxu0 0
      %1744 = vmatmul.mubr.bf16.gmra.mxu0 %v1631
      %v1745 = vpop.f32.mrf.mxu0
      %v1746 = vadd.f32 %v1441, %v1745
      %v1747 = vpop.f32.mrf.mxu0
      %v1748 = vpop.f32.mrf.mxu0
      %v1749 = vadd.f32 %v1444, %v1748
      %v1750 = vpop.f32.mrf.mxu0
      %1751 = vmatprep.mubr.bf16.mxu0 0
      %1752 = vmatmul.mubr.bf16.gmra.mxu0 %v1632
      %v1753 = vpop.f32.mrf.mxu0
      %v1754 = vadd.f32 %v1449, %v1753
      %v1755 = vpop.f32.mrf.mxu0
      %v1756 = vpop.f32.mrf.mxu0
      %v1757 = vadd.f32 %v1452, %v1756
      %v1758 = vpop.f32.mrf.mxu0
      %1759 = vmatprep.mubr.bf16.mxu0 0
      %1760 = vmatmul.mubr.bf16.gmra.mxu0 %v1633
      %v1761 = vpop.f32.mrf.mxu0
      %v1762 = vadd.f32 %v1457, %v1761
      %v1763 = vpop.f32.mrf.mxu0
      %v1764 = vpop.f32.mrf.mxu0
      %v1765 = vadd.f32 %v1460, %v1764
      %v1766 = vpop.f32.mrf.mxu0
      %1767 = vmatprep.mubr.bf16.mxu0 0
      %1768 = vmatmul.mubr.bf16.gmra.mxu0 %v1634
      %v1769 = vpop.f32.mrf.mxu0
      %v1770 = vadd.f32 %v1465, %v1769
      %v1771 = vpop.f32.mrf.mxu0
      %v1772 = vpop.f32.mrf.mxu0
      %v1773 = vadd.f32 %v1468, %v1772
      %v1774 = vpop.f32.mrf.mxu0
      %1775 = vmatprep.mubr.bf16.mxu0 0
      %1776 = vmatmul.mubr.bf16.gmra.mxu0 %v1635
      %v1777 = vpop.f32.mrf.mxu0
      %v1778 = vadd.f32 %v1473, %v1777
      %v1779 = vpop.f32.mrf.mxu0
      %v1780 = vpop.f32.mrf.mxu0
      %v1781 = vadd.f32 %v1476, %v1780
      %v1782 = vpop.f32.mrf.mxu0
      %1783 = vmatprep.mubr.bf16.mxu0 0
      %1784 = vmatmul.mubr.bf16.gmra.mxu0 %v1636
      %v1785 = vpop.f32.mrf.mxu0
      %v1786 = vadd.f32 %v1481, %v1785
      %v1787 = vpop.f32.mrf.mxu0
      %v1788 = vpop.f32.mrf.mxu0
      %v1789 = vadd.f32 %v1484, %v1788
      %v1790 = vpop.f32.mrf.mxu0
      %1791 = vmatprep.mubr.bf16.mxu0 0
      %1792 = vmatmul.mubr.bf16.gmra.mxu0 %v1637
      %v1793 = vpop.f32.mrf.mxu0
      %v1794 = vadd.f32 %v1489, %v1793
      %v1795 = vpop.f32.mrf.mxu0
      %v1796 = vpop.f32.mrf.mxu0
      %v1797 = vadd.f32 %v1492, %v1796
      %v1798 = vpop.f32.mrf.mxu0
      %1799 = vmatprep.mubr.bf16.mxu0 0
      %1800 = vmatmul.mubr.bf16.gmra.mxu0 %v1638
      %v1801 = vpop.f32.mrf.mxu0
      %v1802 = vadd.f32 %v1497, %v1801
      %v1803 = vpop.f32.mrf.mxu0
      %v1804 = vpop.f32.mrf.mxu0
      %v1805 = vadd.f32 %v1500, %v1804
      %v1806 = vpop.f32.mrf.mxu0
      %1807 = vmatprep.mubr.bf16.mxu0 0
      %1808 = vmatmul.mubr.bf16.gmra.mxu0 %v1639
      %v1809 = vpop.f32.mrf.mxu0
      %v1810 = vadd.f32 %v1505, %v1809
      %v1811 = vpop.f32.mrf.mxu0
      %v1812 = vpop.f32.mrf.mxu0
      %v1813 = vadd.f32 %v1508, %v1812
      %v1814 = vpop.f32.mrf.mxu0
      %1815 = vmatprep.mubr.bf16.mxu0 0
      %1816 = vmatmul.mubr.bf16.gmra.mxu0 %v1640
      %v1817 = vpop.f32.mrf.mxu0
      %v1818 = vadd.f32 %v1513, %v1817
      %v1819 = vpop.f32.mrf.mxu0
      %v1820 = vpop.f32.mrf.mxu0
      %v1821 = vadd.f32 %v1516, %v1820
      %v1822 = vpop.f32.mrf.mxu0
      %1823 = vmatprep.mubr.bf16.mxu0 0
      %1824 = vmatmul.mubr.bf16.gmra.mxu0 %v1641
      %v1825 = vpop.f32.mrf.mxu0
      %v1826 = vadd.f32 %v1521, %v1825
      %v1827 = vpop.f32.mrf.mxu0
      %v1828 = vpop.f32.mrf.mxu0
      %v1829 = vadd.f32 %v1524, %v1828
      %v1830 = vpop.f32.mrf.mxu0
      %1831 = vmatprep.mubr.bf16.mxu0 0
      %1832 = vmatmul.mubr.bf16.gmra.mxu0 %v1642
      %v1833 = vpop.f32.mrf.mxu0
      %v1834 = vadd.f32 %v1529, %v1833
      %v1835 = vpop.f32.mrf.mxu0
      %v1836 = vpop.f32.mrf.mxu0
      %v1837 = vadd.f32 %v1532, %v1836
      %v1838 = vpop.f32.mrf.mxu0
      %1839 = vmatprep.mubr.bf16.mxu0 0
      %1840 = vmatmul.mubr.bf16.gmra.mxu0 %v1643
      %v1841 = vpop.f32.mrf.mxu0
      %v1842 = vadd.f32 %v1537, %v1841
      %v1843 = vpop.f32.mrf.mxu0
      %v1844 = vpop.f32.mrf.mxu0
      %v1845 = vadd.f32 %v1540, %v1844
      %v1846 = vpop.f32.mrf.mxu0
      %1847 = vmatprep.mubr.bf16.mxu0 0
      %1848 = vmatmul.mubr.bf16.gmra.mxu0 %v1644
      %v1849 = vpop.f32.mrf.mxu0
      %v1850 = vadd.f32 %v1545, %v1849
      %v1851 = vpop.f32.mrf.mxu0
      %v1852 = vpop.f32.mrf.mxu0
      %v1853 = vadd.f32 %v1548, %v1852
      %v1854 = vpop.f32.mrf.mxu0
      %1855 = vmatprep.mubr.bf16.mxu0 0
      %1856 = vmatmul.mubr.bf16.gmra.mxu0 %v1645
      %v1857 = vpop.f32.mrf.mxu0
      %v1858 = vadd.f32 %v1553, %v1857
      %v1859 = vpop.f32.mrf.mxu0
      %v1860 = vpop.f32.mrf.mxu0
      %v1861 = vadd.f32 %v1556, %v1860
      %v1862 = vpop.f32.mrf.mxu0
      %1863 = vmatprep.mubr.bf16.mxu0 0
      %1864 = vmatmul.mubr.bf16.gmra.mxu0 %v1646
      %v1865 = vpop.f32.mrf.mxu0
      %v1866 = vadd.f32 %v1561, %v1865
      %v1867 = vpop.f32.mrf.mxu0
      %v1868 = vpop.f32.mrf.mxu0
      %v1869 = vadd.f32 %v1564, %v1868
      %v1870 = vpop.f32.mrf.mxu0
      %1871 = vdwg.mxu0
      %v1872 = vld [vmem:[#allocation2] sm:$0xe]
      %v1873 = vld [vmem:[#allocation2 + $0xc] sm:$0xe]
      %v1874 = vld [vmem:[#allocation2 + $0x18] sm:$0xe]
      %v1875 = vld [vmem:[#allocation2 + $0x24] sm:$0xe]
      %v1876 = vld [vmem:[#allocation2 + $0x30] sm:$0xe]
      %v1877 = vld [vmem:[#allocation2 + $0x3c] sm:$0xe]
      %v1878 = vld [vmem:[#allocation2 + $0x48] sm:$0xe]
      %v1879 = vld [vmem:[#allocation2 + $0x54] sm:$0xe]
      %v1880 = vld [vmem:[#allocation2 + $0x60] sm:$0xe]
      %v1881 = vld [vmem:[#allocation2 + $0x6c] sm:$0xe]
      %v1882 = vld [vmem:[#allocation2 + $0x78] sm:$0xe]
      %v1883 = vld [vmem:[#allocation2 + $0x84] sm:$0xe]
      %v1884 = vld [vmem:[#allocation2 + $0x90] sm:$0xe]
      %v1885 = vld [vmem:[#allocation2 + $0x9c] sm:$0xe]
      %v1886 = vld [vmem:[#allocation2 + $0xa8] sm:$0xe]
      %v1887 = vld [vmem:[#allocation2 + $0xb4] sm:$0xe]
      %vm1920 = vcmask 1042432
      %vm1921 = vcmask 1046532
      %vm1922 = vmor %vm1920, %vm1921
      %v1923 = vrot.slane %v1872, 5
      %v1924 = vrot.slane %v1923, 4
      %v1925 = vrot.slane %v827, 5
      %v1926 = vsel %vm1922, %v1924, %v1925
      %v1927 = vrot.slane %v1925, 4
      %v1928 = vrot.slane %v874, 5
      %v1929 = vsel %vm1922, %v1927, %v1928
      %v1930 = vrot.slane %v1873, 5
      %v1931 = vrot.slane %v1930, 4
      %v1932 = vrot.slane %v829, 5
      %v1933 = vsel %vm1922, %v1931, %v1932
      %v1934 = vrot.slane %v1932, 4
      %v1935 = vrot.slane %v875, 5
      %v1936 = vsel %vm1922, %v1934, %v1935
      %v1937 = vrot.slane %v1874, 5
      %v1938 = vrot.slane %v1937, 4
      %v1939 = vrot.slane %v831, 5
      %v1940 = vsel %vm1922, %v1938, %v1939
      %v1941 = vrot.slane %v1939, 4
      %v1942 = vrot.slane %v876, 5
      %v1943 = vsel %vm1922, %v1941, %v1942
      %v1944 = vrot.slane %v1875, 5
      %v1945 = vrot.slane %v1944, 4
      %v1946 = vrot.slane %v833, 5
      %v1947 = vsel %vm1922, %v1945, %v1946
      %v1948 = vrot.slane %v1946, 4
      %v1949 = vrot.slane %v877, 5
      %v1950 = vsel %vm1922, %v1948, %v1949
      %v1951 = vrot.slane %v1876, 5
      %v1952 = vrot.slane %v1951, 4
      %v1953 = vrot.slane %v835, 5
      %v1954 = vsel %vm1922, %v1952, %v1953
      %v1955 = vrot.slane %v1953, 4
      %v1956 = vrot.slane %v878, 5
      %v1957 = vsel %vm1922, %v1955, %v1956
      %v1958 = vrot.slane %v1877, 5
      %v1959 = vrot.slane %v1958, 4
      %v1960 = vrot.slane %v837, 5
      %v1961 = vsel %vm1922, %v1959, %v1960
      %v1962 = vrot.slane %v1960, 4
      %v1963 = vrot.slane %v879, 5
      %v1964 = vsel %vm1922, %v1962, %v1963
      %v1965 = vrot.slane %v1878, 5
      %v1966 = vrot.slane %v1965, 4
      %v1967 = vrot.slane %v839, 5
      %v1968 = vsel %vm1922, %v1966, %v1967
      %v1969 = vrot.slane %v1967, 4
      %v1970 = vrot.slane %v880, 5
      %v1971 = vsel %vm1922, %v1969, %v1970
      %v1972 = vrot.slane %v1879, 5
      %v1973 = vrot.slane %v1972, 4
      %v1974 = vrot.slane %v841, 5
      %v1975 = vsel %vm1922, %v1973, %v1974
      %v1976 = vrot.slane %v1974, 4
      %v1977 = vrot.slane %v881, 5
      %v1978 = vsel %vm1922, %v1976, %v1977
      %v1979 = vrot.slane %v1880, 5
      %v1980 = vrot.slane %v1979, 4
      %v1981 = vrot.slane %v843, 5
      %v1982 = vsel %vm1922, %v1980, %v1981
      %v1983 = vrot.slane %v1981, 4
      %v1984 = vrot.slane %v882, 5
      %v1985 = vsel %vm1922, %v1983, %v1984
      %v1986 = vrot.slane %v1881, 5
      %v1987 = vrot.slane %v1986, 4
      %v1988 = vrot.slane %v845, 5
      %v1989 = vsel %vm1922, %v1987, %v1988
      %v1990 = vrot.slane %v1988, 4
      %v1991 = vrot.slane %v883, 5
      %v1992 = vsel %vm1922, %v1990, %v1991
      %v1993 = vrot.slane %v1882, 5
      %v1994 = vrot.slane %v1993, 4
      %v1995 = vrot.slane %v847, 5
      %v1996 = vsel %vm1922, %v1994, %v1995
      %v1997 = vrot.slane %v1995, 4
      %v1998 = vrot.slane %v884, 5
      %v1999 = vsel %vm1922, %v1997, %v1998
      %v2000 = vrot.slane %v1883, 5
      %v2001 = vrot.slane %v2000, 4
      %v2002 = vrot.slane %v849, 5
      %v2003 = vsel %vm1922, %v2001, %v2002
      %v2004 = vrot.slane %v2002, 4
      %v2005 = vrot.slane %v885, 5
      %v2006 = vsel %vm1922, %v2004, %v2005
      %v2007 = vrot.slane %v1884, 5
      %v2008 = vrot.slane %v2007, 4
      %v2009 = vrot.slane %v851, 5
      %v2010 = vsel %vm1922, %v2008, %v2009
      %v2011 = vrot.slane %v2009, 4
      %v2012 = vrot.slane %v886, 5
      %v2013 = vsel %vm1922, %v2011, %v2012
      %v2014 = vrot.slane %v1885, 5
      %v2015 = vrot.slane %v2014, 4
      %v2016 = vrot.slane %v853, 5
      %v2017 = vsel %vm1922, %v2015, %v2016
      %v2018 = vrot.slane %v2016, 4
      %v2019 = vrot.slane %v887, 5
      %v2020 = vsel %vm1922, %v2018, %v2019
      %v2021 = vrot.slane %v1886, 5
      %v2022 = vrot.slane %v2021, 4
      %v2023 = vrot.slane %v855, 5
      %v2024 = vsel %vm1922, %v2022, %v2023
      %v2025 = vrot.slane %v2023, 4
      %v2026 = vrot.slane %v888, 5
      %v2027 = vsel %vm1922, %v2025, %v2026
      %v2028 = vrot.slane %v1887, 5
      %v2029 = vrot.slane %v2028, 4
      %v2030 = vrot.slane %v857, 5
      %v2031 = vsel %vm1922, %v2029, %v2030
      %v2032 = vrot.slane %v2030, 4
      %v2033 = vrot.slane %v889, 5
      %v2034 = vsel %vm1922, %v2032, %v2033
      %s2035 = scalar_lea.vmem %s1, 128
      %v2036 = vld [vmem:[%s2035] sm:$0xf]
      %v2037 = vld [vmem:[%s2035 + $0x4] sm:$0xf]
      %v2038 = vld [vmem:[%s2035 + $0x8] sm:$0xf]
      %v2039 = vld [vmem:[%s2035 + $0xc] sm:$0xf]
      %v2040 = vld [vmem:[%s2035 + $0x10] sm:$0xf]
      %v2041 = vld [vmem:[%s2035 + $0x14] sm:$0xf]
      %v2042 = vld [vmem:[%s2035 + $0x18] sm:$0xf]
      %v2043 = vld [vmem:[%s2035 + $0x1c] sm:$0xf]
      %v2044 = vld [vmem:[%s2035 + $0x20] sm:$0xf]
      %v2045 = vld [vmem:[%s2035 + $0x24] sm:$0xf]
      %v2046 = vld [vmem:[%s2035 + $0x28] sm:$0xf]
      %v2047 = vld [vmem:[%s2035 + $0x2c] sm:$0xf]
      %v2048 = vld [vmem:[%s2035 + $0x30] sm:$0xf]
      %v2049 = vld [vmem:[%s2035 + $0x34] sm:$0xf]
      %v2050 = vld [vmem:[%s2035 + $0x38] sm:$0xf]
      %v2051 = vld [vmem:[%s2035 + $0x3c] sm:$0xf]
      %v2052 = vunpack.c.l.b16 %v1926
      %v2053 = vunpack.c.l.b16 %v1929
      %v2054 = vunpack.c.l.b16 %v1933
      %v2055 = vunpack.c.l.b16 %v1936
      %v2056 = vunpack.c.l.b16 %v1940
      %v2057 = vunpack.c.l.b16 %v1943
      %v2058 = vunpack.c.l.b16 %v1947
      %v2059 = vunpack.c.l.b16 %v1950
      %v2060 = vunpack.c.l.b16 %v1954
      %v2061 = vunpack.c.l.b16 %v1957
      %v2062 = vunpack.c.l.b16 %v1961
      %v2063 = vunpack.c.l.b16 %v1964
      %v2064 = vunpack.c.l.b16 %v1968
      %v2065 = vunpack.c.l.b16 %v1971
      %v2066 = vunpack.c.l.b16 %v1975
      %v2067 = vunpack.c.l.b16 %v1978
      %v2068 = vunpack.c.l.b16 %v1982
      %v2069 = vunpack.c.l.b16 %v1985
      %v2070 = vunpack.c.l.b16 %v1989
      %v2071 = vunpack.c.l.b16 %v1992
      %v2072 = vunpack.c.l.b16 %v1996
      %v2073 = vunpack.c.l.b16 %v1999
      %v2074 = vunpack.c.l.b16 %v2003
      %v2075 = vunpack.c.l.b16 %v2006
      %v2076 = vunpack.c.l.b16 %v2010
      %v2077 = vunpack.c.l.b16 %v2013
      %v2078 = vunpack.c.l.b16 %v2017
      %v2079 = vunpack.c.l.b16 %v2020
      %v2080 = vunpack.c.l.b16 %v2024
      %v2081 = vunpack.c.l.b16 %v2027
      %v2082 = vunpack.c.l.b16 %v2031
      %v2083 = vunpack.c.l.b16 %v2034
      %v2084 = vpack.c.b16 %v2053, %v2052
      %v2085 = vpack.c.b16 %v2055, %v2054
      %v2086 = vpack.c.b16 %v2057, %v2056
      %v2087 = vpack.c.b16 %v2059, %v2058
      %v2088 = vpack.c.b16 %v2061, %v2060
      %v2089 = vpack.c.b16 %v2063, %v2062
      %v2090 = vpack.c.b16 %v2065, %v2064
      %v2091 = vpack.c.b16 %v2067, %v2066
      %v2092 = vpack.c.b16 %v2069, %v2068
      %v2093 = vpack.c.b16 %v2071, %v2070
      %v2094 = vpack.c.b16 %v2073, %v2072
      %v2095 = vpack.c.b16 %v2075, %v2074
      %v2096 = vpack.c.b16 %v2077, %v2076
      %v2097 = vpack.c.b16 %v2079, %v2078
      %v2098 = vpack.c.b16 %v2081, %v2080
      %v2099 = vpack.c.b16 %v2083, %v2082
      %v2132 = vunpack.c.l.b16 %v2036
      %v2133 = vunpack.c.l.b16 %v2037
      %v2134 = vunpack.c.l.b16 %v2038
      %v2135 = vunpack.c.l.b16 %v2039
      %v2136 = vunpack.c.l.b16 %v2040
      %v2137 = vunpack.c.l.b16 %v2041
      %v2138 = vunpack.c.l.b16 %v2042
      %v2139 = vunpack.c.l.b16 %v2043
      %v2140 = vunpack.c.l.b16 %v2044
      %v2141 = vunpack.c.l.b16 %v2045
      %v2142 = vunpack.c.l.b16 %v2046
      %v2143 = vunpack.c.l.b16 %v2047
      %v2144 = vunpack.c.l.b16 %v2048
      %v2145 = vunpack.c.l.b16 %v2049
      %v2146 = vunpack.c.l.b16 %v2050
      %v2147 = vunpack.c.l.b16 %v2051
      %v2148 = vpack.c.b16 %v2133, %v2132
      %v2149 = vpack.c.b16 %v2135, %v2134
      %v2150 = vpack.c.b16 %v2137, %v2136
      %v2151 = vpack.c.b16 %v2139, %v2138
      %v2152 = vpack.c.b16 %v2141, %v2140
      %v2153 = vpack.c.b16 %v2143, %v2142
      %v2154 = vpack.c.b16 %v2145, %v2144
      %v2155 = vpack.c.b16 %v2147, %v2146
      %2164 = vmatprep.subr.bf16.mxu0 0
      %2165 = vmatpush1.bf16.msra.mxu0 %v2155
      %2166 = vmatprep.subr.bf16.mxu0 0
      %2167 = vmatpush1.bf16.msra.mxu0 %v2154
      %2168 = vmatprep.subr.bf16.mxu0 0
      %2169 = vmatpush1.bf16.msra.mxu0 %v2153
      %2170 = vmatprep.subr.bf16.mxu0 0
      %2171 = vmatpush1.bf16.msra.mxu0 %v2152
      %2172 = vmatprep.subr.bf16.mxu0 0
      %2173 = vmatpush1.bf16.msra.mxu0 %v2151
      %2174 = vmatprep.subr.bf16.mxu0 0
      %2175 = vmatpush1.bf16.msra.mxu0 %v2150
      %2176 = vmatprep.subr.bf16.mxu0 0
      %2177 = vmatpush1.bf16.msra.mxu0 %v2149
      %2178 = vmatprep.subr.bf16.mxu0 0
      %2179 = vmatpush1.bf16.msra.mxu0 %v2148
      %2180 = vmatprep.subr.bf16.mxu0 0
      %2181 = vmatpush2.bf16.msra.mxu0 0
      %2182 = vmatprep.subr.bf16.mxu0 0
      %2183 = vmatpush2.bf16.msra.mxu0 0
      %2184 = vmatprep.subr.bf16.mxu0 0
      %2185 = vmatpush2.bf16.msra.mxu0 0
      %2186 = vmatprep.subr.bf16.mxu0 0
      %2187 = vmatpush2.bf16.msra.mxu0 0
      %2188 = vmatprep.subr.bf16.mxu0 0
      %2189 = vmatpush2.bf16.msra.mxu0 0
      %2190 = vmatprep.subr.bf16.mxu0 0
      %2191 = vmatpush2.bf16.msra.mxu0 0
      %2192 = vmatprep.subr.bf16.mxu0 0
      %2193 = vmatpush2.bf16.msra.mxu0 0
      %2194 = vmatprep.subr.bf16.mxu0 0
      %2195 = vmatpush2.bf16.msra.mxu0 0
      %2196 = vmatprep.mubr.bf16.mxu0 0
      %2197 = vmatmul.mubr.bf16.gmra.mxu0 %v2084
      %v2198 = vpop.f32.mrf.mxu0
      %v2199 = vadd.f32 0.0, %v2198
      %v2200 = vpop.f32.mrf.mxu0
      %v2201 = vpop.f32.mrf.mxu0
      %v2202 = vadd.f32 0.0, %v2201
      %v2203 = vpop.f32.mrf.mxu0
      %2204 = vmatprep.mubr.bf16.mxu0 0
      %2205 = vmatmul.mubr.bf16.gmra.mxu0 %v2085
      %v2206 = vpop.f32.mrf.mxu0
      %v2207 = vadd.f32 0.0, %v2206
      %v2208 = vpop.f32.mrf.mxu0
      %v2209 = vpop.f32.mrf.mxu0
      %v2210 = vadd.f32 0.0, %v2209
      %v2211 = vpop.f32.mrf.mxu0
      %2212 = vmatprep.mubr.bf16.mxu0 0
      %2213 = vmatmul.mubr.bf16.gmra.mxu0 %v2086
      %v2214 = vpop.f32.mrf.mxu0
      %v2215 = vadd.f32 0.0, %v2214
      %v2216 = vpop.f32.mrf.mxu0
      %v2217 = vpop.f32.mrf.mxu0
      %v2218 = vadd.f32 0.0, %v2217
      %v2219 = vpop.f32.mrf.mxu0
      %2220 = vmatprep.mubr.bf16.mxu0 0
      %2221 = vmatmul.mubr.bf16.gmra.mxu0 %v2087
      %v2222 = vpop.f32.mrf.mxu0
      %v2223 = vadd.f32 0.0, %v2222
      %v2224 = vpop.f32.mrf.mxu0
      %v2225 = vpop.f32.mrf.mxu0
      %v2226 = vadd.f32 0.0, %v2225
      %v2227 = vpop.f32.mrf.mxu0
      %2228 = vmatprep.mubr.bf16.mxu0 0
      %2229 = vmatmul.mubr.bf16.gmra.mxu0 %v2088
      %v2230 = vpop.f32.mrf.mxu0
      %v2231 = vadd.f32 0.0, %v2230
      %v2232 = vpop.f32.mrf.mxu0
      %v2233 = vpop.f32.mrf.mxu0
      %v2234 = vadd.f32 0.0, %v2233
      %v2235 = vpop.f32.mrf.mxu0
      %2236 = vmatprep.mubr.bf16.mxu0 0
      %2237 = vmatmul.mubr.bf16.gmra.mxu0 %v2089
      %v2238 = vpop.f32.mrf.mxu0
      %v2239 = vadd.f32 0.0, %v2238
      %v2240 = vpop.f32.mrf.mxu0
      %v2241 = vpop.f32.mrf.mxu0
      %v2242 = vadd.f32 0.0, %v2241
      %v2243 = vpop.f32.mrf.mxu0
      %2244 = vmatprep.mubr.bf16.mxu0 0
      %2245 = vmatmul.mubr.bf16.gmra.mxu0 %v2090
      %v2246 = vpop.f32.mrf.mxu0
      %v2247 = vadd.f32 0.0, %v2246
      %v2248 = vpop.f32.mrf.mxu0
      %v2249 = vpop.f32.mrf.mxu0
      %v2250 = vadd.f32 0.0, %v2249
      %v2251 = vpop.f32.mrf.mxu0
      %2252 = vmatprep.mubr.bf16.mxu0 0
      %2253 = vmatmul.mubr.bf16.gmra.mxu0 %v2091
      %v2254 = vpop.f32.mrf.mxu0
      %v2255 = vadd.f32 0.0, %v2254
      %v2256 = vpop.f32.mrf.mxu0
      %v2257 = vpop.f32.mrf.mxu0
      %v2258 = vadd.f32 0.0, %v2257
      %v2259 = vpop.f32.mrf.mxu0
      %2260 = vmatprep.mubr.bf16.mxu0 0
      %2261 = vmatmul.mubr.bf16.gmra.mxu0 %v2092
      %v2262 = vpop.f32.mrf.mxu0
      %v2263 = vadd.f32 0.0, %v2262
      %v2264 = vpop.f32.mrf.mxu0
      %v2265 = vpop.f32.mrf.mxu0
      %v2266 = vadd.f32 0.0, %v2265
      %v2267 = vpop.f32.mrf.mxu0
      %2268 = vmatprep.mubr.bf16.mxu0 0
      %2269 = vmatmul.mubr.bf16.gmra.mxu0 %v2093
      %v2270 = vpop.f32.mrf.mxu0
      %v2271 = vadd.f32 0.0, %v2270
      %v2272 = vpop.f32.mrf.mxu0
      %v2273 = vpop.f32.mrf.mxu0
      %v2274 = vadd.f32 0.0, %v2273
      %v2275 = vpop.f32.mrf.mxu0
      %2276 = vmatprep.mubr.bf16.mxu0 0
      %2277 = vmatmul.mubr.bf16.gmra.mxu0 %v2094
      %v2278 = vpop.f32.mrf.mxu0
      %v2279 = vadd.f32 0.0, %v2278
      %v2280 = vpop.f32.mrf.mxu0
      %v2281 = vpop.f32.mrf.mxu0
      %v2282 = vadd.f32 0.0, %v2281
      %v2283 = vpop.f32.mrf.mxu0
      %2284 = vmatprep.mubr.bf16.mxu0 0
      %2285 = vmatmul.mubr.bf16.gmra.mxu0 %v2095
      %v2286 = vpop.f32.mrf.mxu0
      %v2287 = vadd.f32 0.0, %v2286
      %v2288 = vpop.f32.mrf.mxu0
      %v2289 = vpop.f32.mrf.mxu0
      %v2290 = vadd.f32 0.0, %v2289
      %v2291 = vpop.f32.mrf.mxu0
      %2292 = vmatprep.mubr.bf16.mxu0 0
      %2293 = vmatmul.mubr.bf16.gmra.mxu0 %v2096
      %v2294 = vpop.f32.mrf.mxu0
      %v2295 = vadd.f32 0.0, %v2294
      %v2296 = vpop.f32.mrf.mxu0
      %v2297 = vpop.f32.mrf.mxu0
      %v2298 = vadd.f32 0.0, %v2297
      %v2299 = vpop.f32.mrf.mxu0
      %2300 = vmatprep.mubr.bf16.mxu0 0
      %2301 = vmatmul.mubr.bf16.gmra.mxu0 %v2097
      %v2302 = vpop.f32.mrf.mxu0
      %v2303 = vadd.f32 0.0, %v2302
      %v2304 = vpop.f32.mrf.mxu0
      %v2305 = vpop.f32.mrf.mxu0
      %v2306 = vadd.f32 0.0, %v2305
      %v2307 = vpop.f32.mrf.mxu0
      %2308 = vmatprep.mubr.bf16.mxu0 0
      %2309 = vmatmul.mubr.bf16.gmra.mxu0 %v2098
      %v2310 = vpop.f32.mrf.mxu0
      %v2311 = vadd.f32 0.0, %v2310
      %v2312 = vpop.f32.mrf.mxu0
      %v2313 = vpop.f32.mrf.mxu0
      %v2314 = vadd.f32 0.0, %v2313
      %v2315 = vpop.f32.mrf.mxu0
      %2316 = vmatprep.mubr.bf16.mxu0 0
      %2317 = vmatmul.mubr.bf16.gmra.mxu0 %v2099
      %v2318 = vpop.f32.mrf.mxu0
      %v2319 = vadd.f32 0.0, %v2318
      %v2320 = vpop.f32.mrf.mxu0
      %v2321 = vpop.f32.mrf.mxu0
      %v2322 = vadd.f32 0.0, %v2321
      %v2323 = vpop.f32.mrf.mxu0
      %2324 = vdwg.mxu0
      %v2325 = vadd.f32 %v1746, %v2199
      %v2326 = vadd.f32 %v1749, %v2202
      %v2327 = vadd.f32 %v1754, %v2207
      %v2328 = vadd.f32 %v1757, %v2210
      %v2329 = vadd.f32 %v1762, %v2215
      %v2330 = vadd.f32 %v1765, %v2218
      %v2331 = vadd.f32 %v1770, %v2223
      %v2332 = vadd.f32 %v1773, %v2226
      %v2333 = vadd.f32 %v1778, %v2231
      %v2334 = vadd.f32 %v1781, %v2234
      %v2335 = vadd.f32 %v1786, %v2239
      %v2336 = vadd.f32 %v1789, %v2242
      %v2337 = vadd.f32 %v1794, %v2247
      %v2338 = vadd.f32 %v1797, %v2250
      %v2339 = vadd.f32 %v1802, %v2255
      %v2340 = vadd.f32 %v1805, %v2258
      %v2341 = vadd.f32 %v1810, %v2263
      %v2342 = vadd.f32 %v1813, %v2266
      %v2343 = vadd.f32 %v1818, %v2271
      %v2344 = vadd.f32 %v1821, %v2274
      %v2345 = vadd.f32 %v1826, %v2279
      %v2346 = vadd.f32 %v1829, %v2282
      %v2347 = vadd.f32 %v1834, %v2287
      %v2348 = vadd.f32 %v1837, %v2290
      %v2349 = vadd.f32 %v1842, %v2295
      %v2350 = vadd.f32 %v1845, %v2298
      %v2351 = vadd.f32 %v1850, %v2303
      %v2352 = vadd.f32 %v1853, %v2306
      %v2353 = vadd.f32 %v1858, %v2311
      %v2354 = vadd.f32 %v1861, %v2314
      %v2355 = vadd.f32 %v1866, %v2319
      %v2356 = vadd.f32 %v1869, %v2322
      %v2357 = vld [vmem:[%s711] sm:$0xf]
      %v2358 = vld [vmem:[%s711 + $0x4] sm:$0xf]
      %v2359 = vld [vmem:[%s711 + $0xc] sm:$0xf]
      %v2360 = vld [vmem:[%s711 + $0x10] sm:$0xf]
      %v2361 = vld [vmem:[%s711 + $0x18] sm:$0xf]
      %v2362 = vld [vmem:[%s711 + $0x1c] sm:$0xf]
      %v2363 = vld [vmem:[%s711 + $0x24] sm:$0xf]
      %v2364 = vld [vmem:[%s711 + $0x28] sm:$0xf]
      %v2365 = vld [vmem:[%s711 + $0x30] sm:$0xf]
      %v2366 = vld [vmem:[%s711 + $0x34] sm:$0xf]
      %v2367 = vld [vmem:[%s711 + $0x3c] sm:$0xf]
      %v2368 = vld [vmem:[%s711 + $0x40] sm:$0xf]
      %v2369 = vld [vmem:[%s711 + $0x48] sm:$0xf]
      %v2370 = vld [vmem:[%s711 + $0x4c] sm:$0xf]
      %v2371 = vld [vmem:[%s711 + $0x54] sm:$0xf]
      %v2372 = vld [vmem:[%s711 + $0x58] sm:$0xf]
      %v2373 = vld [vmem:[%s711 + $0x60] sm:$0xf]
      %v2374 = vld [vmem:[%s711 + $0x64] sm:$0xf]
      %v2375 = vld [vmem:[%s711 + $0x6c] sm:$0xf]
      %v2376 = vld [vmem:[%s711 + $0x70] sm:$0xf]
      %v2377 = vld [vmem:[%s711 + $0x78] sm:$0xf]
      %v2378 = vld [vmem:[%s711 + $0x7c] sm:$0xf]
      %v2379 = vld [vmem:[%s711 + $0x84] sm:$0xf]
      %v2380 = vld [vmem:[%s711 + $0x88] sm:$0xf]
      %v2381 = vld [vmem:[%s711 + $0x90] sm:$0xf]
      %v2382 = vld [vmem:[%s711 + $0x94] sm:$0xf]
      %v2383 = vld [vmem:[%s711 + $0x9c] sm:$0xf]
      %v2384 = vld [vmem:[%s711 + $0xa0] sm:$0xf]
      %v2385 = vld [vmem:[%s711 + $0xa8] sm:$0xf]
      %v2386 = vld [vmem:[%s711 + $0xac] sm:$0xf]
      %v2387 = vld [vmem:[%s711 + $0xb4] sm:$0xf]
      %v2388 = vld [vmem:[%s711 + $0xb8] sm:$0xf]
      %s2389 = scalar_lea.vmem %s1, 192
      %v2390 = vld [vmem:[%s2389] sm:$0xf]
      %v2391 = vld [vmem:[%s2389 + $0x4] sm:$0xf]
      %v2392 = vld [vmem:[%s2389 + $0x8] sm:$0xf]
      %v2393 = vld [vmem:[%s2389 + $0xc] sm:$0xf]
      %v2394 = vld [vmem:[%s2389 + $0x10] sm:$0xf]
      %v2395 = vld [vmem:[%s2389 + $0x14] sm:$0xf]
      %v2396 = vld [vmem:[%s2389 + $0x18] sm:$0xf]
      %v2397 = vld [vmem:[%s2389 + $0x1c] sm:$0xf]
      %v2398 = vld [vmem:[%s2389 + $0x20] sm:$0xf]
      %v2399 = vld [vmem:[%s2389 + $0x24] sm:$0xf]
      %v2400 = vld [vmem:[%s2389 + $0x28] sm:$0xf]
      %v2401 = vld [vmem:[%s2389 + $0x2c] sm:$0xf]
      %v2402 = vld [vmem:[%s2389 + $0x30] sm:$0xf]
      %v2403 = vld [vmem:[%s2389 + $0x34] sm:$0xf]
      %v2404 = vld [vmem:[%s2389 + $0x38] sm:$0xf]
      %v2405 = vld [vmem:[%s2389 + $0x3c] sm:$0xf]
      %v2438 = vunpack.c.l.b16 %v2357
      %v2439 = vunpack.c.l.b16 %v2358
      %v2440 = vunpack.c.l.b16 %v2359
      %v2441 = vunpack.c.l.b16 %v2360
      %v2442 = vunpack.c.l.b16 %v2361
      %v2443 = vunpack.c.l.b16 %v2362
      %v2444 = vunpack.c.l.b16 %v2363
      %v2445 = vunpack.c.l.b16 %v2364
      %v2446 = vunpack.c.l.b16 %v2365
      %v2447 = vunpack.c.l.b16 %v2366
      %v2448 = vunpack.c.l.b16 %v2367
      %v2449 = vunpack.c.l.b16 %v2368
      %v2450 = vunpack.c.l.b16 %v2369
      %v2451 = vunpack.c.l.b16 %v2370
      %v2452 = vunpack.c.l.b16 %v2371
      %v2453 = vunpack.c.l.b16 %v2372
      %v2454 = vunpack.c.l.b16 %v2373
      %v2455 = vunpack.c.l.b16 %v2374
      %v2456 = vunpack.c.l.b16 %v2375
      %v2457 = vunpack.c.l.b16 %v2376
      %v2458 = vunpack.c.l.b16 %v2377
      %v2459 = vunpack.c.l.b16 %v2378
      %v2460 = vunpack.c.l.b16 %v2379
      %v2461 = vunpack.c.l.b16 %v2380
      %v2462 = vunpack.c.l.b16 %v2381
      %v2463 = vunpack.c.l.b16 %v2382
      %v2464 = vunpack.c.l.b16 %v2383
      %v2465 = vunpack.c.l.b16 %v2384
      %v2466 = vunpack.c.l.b16 %v2385
      %v2467 = vunpack.c.l.b16 %v2386
      %v2468 = vunpack.c.l.b16 %v2387
      %v2469 = vunpack.c.l.b16 %v2388
      %v2470 = vpack.c.b16 %v2439, %v2438
      %v2471 = vpack.c.b16 %v2441, %v2440
      %v2472 = vpack.c.b16 %v2443, %v2442
      %v2473 = vpack.c.b16 %v2445, %v2444
      %v2474 = vpack.c.b16 %v2447, %v2446
      %v2475 = vpack.c.b16 %v2449, %v2448
      %v2476 = vpack.c.b16 %v2451, %v2450
      %v2477 = vpack.c.b16 %v2453, %v2452
      %v2478 = vpack.c.b16 %v2455, %v2454
      %v2479 = vpack.c.b16 %v2457, %v2456
      %v2480 = vpack.c.b16 %v2459, %v2458
      %v2481 = vpack.c.b16 %v2461, %v2460
      %v2482 = vpack.c.b16 %v2463, %v2462
      %v2483 = vpack.c.b16 %v2465, %v2464
      %v2484 = vpack.c.b16 %v2467, %v2466
      %v2485 = vpack.c.b16 %v2469, %v2468
      %v2518 = vunpack.c.l.b16 %v2390
      %v2519 = vunpack.c.l.b16 %v2391
      %v2520 = vunpack.c.l.b16 %v2392
      %v2521 = vunpack.c.l.b16 %v2393
      %v2522 = vunpack.c.l.b16 %v2394
      %v2523 = vunpack.c.l.b16 %v2395
      %v2524 = vunpack.c.l.b16 %v2396
      %v2525 = vunpack.c.l.b16 %v2397
      %v2526 = vunpack.c.l.b16 %v2398
      %v2527 = vunpack.c.l.b16 %v2399
      %v2528 = vunpack.c.l.b16 %v2400
      %v2529 = vunpack.c.l.b16 %v2401
      %v2530 = vunpack.c.l.b16 %v2402
      %v2531 = vunpack.c.l.b16 %v2403
      %v2532 = vunpack.c.l.b16 %v2404
      %v2533 = vunpack.c.l.b16 %v2405
      %v2534 = vpack.c.b16 %v2519, %v2518
      %v2535 = vpack.c.b16 %v2521, %v2520
      %v2536 = vpack.c.b16 %v2523, %v2522
      %v2537 = vpack.c.b16 %v2525, %v2524
      %v2538 = vpack.c.b16 %v2527, %v2526
      %v2539 = vpack.c.b16 %v2529, %v2528
      %v2540 = vpack.c.b16 %v2531, %v2530
      %v2541 = vpack.c.b16 %v2533, %v2532
      %2550 = vmatprep.subr.bf16.mxu0 0
      %2551 = vmatpush1.bf16.msra.mxu0 %v2541
      %2552 = vmatprep.subr.bf16.mxu0 0
      %2553 = vmatpush1.bf16.msra.mxu0 %v2540
      %2554 = vmatprep.subr.bf16.mxu0 0
      %2555 = vmatpush1.bf16.msra.mxu0 %v2539
      %2556 = vmatprep.subr.bf16.mxu0 0
      %2557 = vmatpush1.bf16.msra.mxu0 %v2538
      %2558 = vmatprep.subr.bf16.mxu0 0
      %2559 = vmatpush1.bf16.msra.mxu0 %v2537
      %2560 = vmatprep.subr.bf16.mxu0 0
      %2561 = vmatpush1.bf16.msra.mxu0 %v2536
      %2562 = vmatprep.subr.bf16.mxu0 0
      %2563 = vmatpush1.bf16.msra.mxu0 %v2535
      %2564 = vmatprep.subr.bf16.mxu0 0
      %2565 = vmatpush1.bf16.msra.mxu0 %v2534
      %2566 = vmatprep.subr.bf16.mxu0 0
      %2567 = vmatpush2.bf16.msra.mxu0 0
      %2568 = vmatprep.subr.bf16.mxu0 0
      %2569 = vmatpush2.bf16.msra.mxu0 0
      %2570 = vmatprep.subr.bf16.mxu0 0
      %2571 = vmatpush2.bf16.msra.mxu0 0
      %2572 = vmatprep.subr.bf16.mxu0 0
      %2573 = vmatpush2.bf16.msra.mxu0 0
      %2574 = vmatprep.subr.bf16.mxu0 0
      %2575 = vmatpush2.bf16.msra.mxu0 0
      %2576 = vmatprep.subr.bf16.mxu0 0
      %2577 = vmatpush2.bf16.msra.mxu0 0
      %2578 = vmatprep.subr.bf16.mxu0 0
      %2579 = vmatpush2.bf16.msra.mxu0 0
      %2580 = vmatprep.subr.bf16.mxu0 0
      %2581 = vmatpush2.bf16.msra.mxu0 0
      %2582 = vmatprep.mubr.bf16.mxu0 0
      %2583 = vmatmul.mubr.bf16.gmra.mxu0 %v2470
      %v2584 = vpop.f32.mrf.mxu0
      %v2585 = vadd.f32 0.0, %v2584
      %v2586 = vpop.f32.mrf.mxu0
      %v2587 = vpop.f32.mrf.mxu0
      %v2588 = vadd.f32 0.0, %v2587
      %v2589 = vpop.f32.mrf.mxu0
      %2590 = vmatprep.mubr.bf16.mxu0 0
      %2591 = vmatmul.mubr.bf16.gmra.mxu0 %v2471
      %v2592 = vpop.f32.mrf.mxu0
      %v2593 = vadd.f32 0.0, %v2592
      %v2594 = vpop.f32.mrf.mxu0
      %v2595 = vpop.f32.mrf.mxu0
      %v2596 = vadd.f32 0.0, %v2595
      %v2597 = vpop.f32.mrf.mxu0
      %2598 = vmatprep.mubr.bf16.mxu0 0
      %2599 = vmatmul.mubr.bf16.gmra.mxu0 %v2472
      %v2600 = vpop.f32.mrf.mxu0
      %v2601 = vadd.f32 0.0, %v2600
      %v2602 = vpop.f32.mrf.mxu0
      %v2603 = vpop.f32.mrf.mxu0
      %v2604 = vadd.f32 0.0, %v2603
      %v2605 = vpop.f32.mrf.mxu0
      %2606 = vmatprep.mubr.bf16.mxu0 0
      %2607 = vmatmul.mubr.bf16.gmra.mxu0 %v2473
      %v2608 = vpop.f32.mrf.mxu0
      %v2609 = vadd.f32 0.0, %v2608
      %v2610 = vpop.f32.mrf.mxu0
      %v2611 = vpop.f32.mrf.mxu0
      %v2612 = vadd.f32 0.0, %v2611
      %v2613 = vpop.f32.mrf.mxu0
      %2614 = vmatprep.mubr.bf16.mxu0 0
      %2615 = vmatmul.mubr.bf16.gmra.mxu0 %v2474
      %v2616 = vpop.f32.mrf.mxu0
      %v2617 = vadd.f32 0.0, %v2616
      %v2618 = vpop.f32.mrf.mxu0
      %v2619 = vpop.f32.mrf.mxu0
      %v2620 = vadd.f32 0.0, %v2619
      %v2621 = vpop.f32.mrf.mxu0
      %2622 = vmatprep.mubr.bf16.mxu0 0
      %2623 = vmatmul.mubr.bf16.gmra.mxu0 %v2475
      %v2624 = vpop.f32.mrf.mxu0
      %v2625 = vadd.f32 0.0, %v2624
      %v2626 = vpop.f32.mrf.mxu0
      %v2627 = vpop.f32.mrf.mxu0
      %v2628 = vadd.f32 0.0, %v2627
      %v2629 = vpop.f32.mrf.mxu0
      %2630 = vmatprep.mubr.bf16.mxu0 0
      %2631 = vmatmul.mubr.bf16.gmra.mxu0 %v2476
      %v2632 = vpop.f32.mrf.mxu0
      %v2633 = vadd.f32 0.0, %v2632
      %v2634 = vpop.f32.mrf.mxu0
      %v2635 = vpop.f32.mrf.mxu0
      %v2636 = vadd.f32 0.0, %v2635
      %v2637 = vpop.f32.mrf.mxu0
      %2638 = vmatprep.mubr.bf16.mxu0 0
      %2639 = vmatmul.mubr.bf16.gmra.mxu0 %v2477
      %v2640 = vpop.f32.mrf.mxu0
      %v2641 = vadd.f32 0.0, %v2640
      %v2642 = vpop.f32.mrf.mxu0
      %v2643 = vpop.f32.mrf.mxu0
      %v2644 = vadd.f32 0.0, %v2643
      %v2645 = vpop.f32.mrf.mxu0
      %2646 = vmatprep.mubr.bf16.mxu0 0
      %2647 = vmatmul.mubr.bf16.gmra.mxu0 %v2478
      %v2648 = vpop.f32.mrf.mxu0
      %v2649 = vadd.f32 0.0, %v2648
      %v2650 = vpop.f32.mrf.mxu0
      %v2651 = vpop.f32.mrf.mxu0
      %v2652 = vadd.f32 0.0, %v2651
      %v2653 = vpop.f32.mrf.mxu0
      %2654 = vmatprep.mubr.bf16.mxu0 0
      %2655 = vmatmul.mubr.bf16.gmra.mxu0 %v2479
      %v2656 = vpop.f32.mrf.mxu0
      %v2657 = vadd.f32 0.0, %v2656
      %v2658 = vpop.f32.mrf.mxu0
      %v2659 = vpop.f32.mrf.mxu0
      %v2660 = vadd.f32 0.0, %v2659
      %v2661 = vpop.f32.mrf.mxu0
      %2662 = vmatprep.mubr.bf16.mxu0 0
      %2663 = vmatmul.mubr.bf16.gmra.mxu0 %v2480
      %v2664 = vpop.f32.mrf.mxu0
      %v2665 = vadd.f32 0.0, %v2664
      %v2666 = vpop.f32.mrf.mxu0
      %v2667 = vpop.f32.mrf.mxu0
      %v2668 = vadd.f32 0.0, %v2667
      %v2669 = vpop.f32.mrf.mxu0
      %2670 = vmatprep.mubr.bf16.mxu0 0
      %2671 = vmatmul.mubr.bf16.gmra.mxu0 %v2481
      %v2672 = vpop.f32.mrf.mxu0
      %v2673 = vadd.f32 0.0, %v2672
      %v2674 = vpop.f32.mrf.mxu0
      %v2675 = vpop.f32.mrf.mxu0
      %v2676 = vadd.f32 0.0, %v2675
      %v2677 = vpop.f32.mrf.mxu0
      %2678 = vmatprep.mubr.bf16.mxu0 0
      %2679 = vmatmul.mubr.bf16.gmra.mxu0 %v2482
      %v2680 = vpop.f32.mrf.mxu0
      %v2681 = vadd.f32 0.0, %v2680
      %v2682 = vpop.f32.mrf.mxu0
      %v2683 = vpop.f32.mrf.mxu0
      %v2684 = vadd.f32 0.0, %v2683
      %v2685 = vpop.f32.mrf.mxu0
      %2686 = vmatprep.mubr.bf16.mxu0 0
      %2687 = vmatmul.mubr.bf16.gmra.mxu0 %v2483
      %v2688 = vpop.f32.mrf.mxu0
      %v2689 = vadd.f32 0.0, %v2688
      %v2690 = vpop.f32.mrf.mxu0
      %v2691 = vpop.f32.mrf.mxu0
      %v2692 = vadd.f32 0.0, %v2691
      %v2693 = vpop.f32.mrf.mxu0
      %2694 = vmatprep.mubr.bf16.mxu0 0
      %2695 = vmatmul.mubr.bf16.gmra.mxu0 %v2484
      %v2696 = vpop.f32.mrf.mxu0
      %v2697 = vadd.f32 0.0, %v2696
      %v2698 = vpop.f32.mrf.mxu0
      %v2699 = vpop.f32.mrf.mxu0
      %v2700 = vadd.f32 0.0, %v2699
      %v2701 = vpop.f32.mrf.mxu0
      %2702 = vmatprep.mubr.bf16.mxu0 0
      %2703 = vmatmul.mubr.bf16.gmra.mxu0 %v2485
      %v2704 = vpop.f32.mrf.mxu0
      %v2705 = vadd.f32 0.0, %v2704
      %v2706 = vpop.f32.mrf.mxu0
      %v2707 = vpop.f32.mrf.mxu0
      %v2708 = vadd.f32 0.0, %v2707
      %v2709 = vpop.f32.mrf.mxu0
      %2710 = vdwg.mxu0
      %v2711 = vadd.f32 %v2325, %v2585
      %v2712 = vadd.f32 %v2326, %v2588
      %v2713 = vadd.f32 %v2327, %v2593
      %v2714 = vadd.f32 %v2328, %v2596
      %v2715 = vadd.f32 %v2329, %v2601
      %v2716 = vadd.f32 %v2330, %v2604
      %v2717 = vadd.f32 %v2331, %v2609
      %v2718 = vadd.f32 %v2332, %v2612
      %v2719 = vadd.f32 %v2333, %v2617
      %v2720 = vadd.f32 %v2334, %v2620
      %v2721 = vadd.f32 %v2335, %v2625
      %v2722 = vadd.f32 %v2336, %v2628
      %v2723 = vadd.f32 %v2337, %v2633
      %v2724 = vadd.f32 %v2338, %v2636
      %v2725 = vadd.f32 %v2339, %v2641
      %v2726 = vadd.f32 %v2340, %v2644
      %v2727 = vadd.f32 %v2341, %v2649
      %v2728 = vadd.f32 %v2342, %v2652
      %v2729 = vadd.f32 %v2343, %v2657
      %v2730 = vadd.f32 %v2344, %v2660
      %v2731 = vadd.f32 %v2345, %v2665
      %v2732 = vadd.f32 %v2346, %v2668
      %v2733 = vadd.f32 %v2347, %v2673
      %v2734 = vadd.f32 %v2348, %v2676
      %v2735 = vadd.f32 %v2349, %v2681
      %v2736 = vadd.f32 %v2350, %v2684
      %v2737 = vadd.f32 %v2351, %v2689
      %v2738 = vadd.f32 %v2352, %v2692
      %v2739 = vadd.f32 %v2353, %v2697
      %v2740 = vadd.f32 %v2354, %v2700
      %v2741 = vadd.f32 %v2355, %v2705
      %v2742 = vadd.f32 %v2356, %v2708
      %v2743 = vld [vmem:[%s711] sm:$0xf]
      %v2744 = vld [vmem:[%s711 + $0x4] sm:$0xf]
      %v2745 = vld [vmem:[%s711 + $0x8] sm:$0x1]
      %v2746 = vld [vmem:[%s711 + $0xc] sm:$0xf]
      %v2747 = vld [vmem:[%s711 + $0x10] sm:$0xf]
      %v2748 = vld [vmem:[%s711 + $0x14] sm:$0x1]
      %v2749 = vld [vmem:[%s711 + $0x18] sm:$0xf]
      %v2750 = vld [vmem:[%s711 + $0x1c] sm:$0xf]
      %v2751 = vld [vmem:[%s711 + $0x20] sm:$0x1]
      %v2752 = vld [vmem:[%s711 + $0x24] sm:$0xf]
      %v2753 = vld [vmem:[%s711 + $0x28] sm:$0xf]
      %v2754 = vld [vmem:[%s711 + $0x2c] sm:$0x1]
      %v2755 = vld [vmem:[%s711 + $0x30] sm:$0xf]
      %v2756 = vld [vmem:[%s711 + $0x34] sm:$0xf]
      %v2757 = vld [vmem:[%s711 + $0x38] sm:$0x1]
      %v2758 = vld [vmem:[%s711 + $0x3c] sm:$0xf]
      %v2759 = vld [vmem:[%s711 + $0x40] sm:$0xf]
      %v2760 = vld [vmem:[%s711 + $0x44] sm:$0x1]
      %v2761 = vld [vmem:[%s711 + $0x48] sm:$0xf]
      %v2762 = vld [vmem:[%s711 + $0x4c] sm:$0xf]
      %v2763 = vld [vmem:[%s711 + $0x50] sm:$0x1]
      %v2764 = vld [vmem:[%s711 + $0x54] sm:$0xf]
      %v2765 = vld [vmem:[%s711 + $0x58] sm:$0xf]
      %v2766 = vld [vmem:[%s711 + $0x5c] sm:$0x1]
      %v2767 = vld [vmem:[%s711 + $0x60] sm:$0xf]
      %v2768 = vld [vmem:[%s711 + $0x64] sm:$0xf]
      %v2769 = vld [vmem:[%s711 + $0x68] sm:$0x1]
      %v2770 = vld [vmem:[%s711 + $0x6c] sm:$0xf]
      %v2771 = vld [vmem:[%s711 + $0x70] sm:$0xf]
      %v2772 = vld [vmem:[%s711 + $0x74] sm:$0x1]
      %v2773 = vld [vmem:[%s711 + $0x78] sm:$0xf]
      %v2774 = vld [vmem:[%s711 + $0x7c] sm:$0xf]
      %v2775 = vld [vmem:[%s711 + $0x80] sm:$0x1]
      %v2776 = vld [vmem:[%s711 + $0x84] sm:$0xf]
      %v2777 = vld [vmem:[%s711 + $0x88] sm:$0xf]
      %v2778 = vld [vmem:[%s711 + $0x8c] sm:$0x1]
      %v2779 = vld [vmem:[%s711 + $0x90] sm:$0xf]
      %v2780 = vld [vmem:[%s711 + $0x94] sm:$0xf]
      %v2781 = vld [vmem:[%s711 + $0x98] sm:$0x1]
      %v2782 = vld [vmem:[%s711 + $0x9c] sm:$0xf]
      %v2783 = vld [vmem:[%s711 + $0xa0] sm:$0xf]
      %v2784 = vld [vmem:[%s711 + $0xa4] sm:$0x1]
      %v2785 = vld [vmem:[%s711 + $0xa8] sm:$0xf]
      %v2786 = vld [vmem:[%s711 + $0xac] sm:$0xf]
      %v2787 = vld [vmem:[%s711 + $0xb0] sm:$0x1]
      %v2788 = vld [vmem:[%s711 + $0xb4] sm:$0xf]
      %v2789 = vld [vmem:[%s711 + $0xb8] sm:$0xf]
      %v2790 = vld [vmem:[%s711 + $0xbc] sm:$0x1]
      %v2792 = vshrl.u32 %v2743, 16
      %v2794 = vrot.slane %v2792, 4
      %v2795 = vshll.u32 %v2743, 16
      %v2797 = vrot.slane %v2795, 5
      %v2798 = vor.u32 %v2794, %v2797
      %v2799 = vrot.slane %v2798, 4
      %v2801 = vshll.u32 %v2744, 16
      %v2803 = vrot.slane %v2801, 5
      %v2804 = vsel %vm892, %v2799, %v2803
      %v2805 = vshrl.u32 %v2744, 16
      %v2807 = vrot.slane %v2805, 4
      %v2808 = vor.u32 %v2807, %v2803
      %v2809 = vrot.slane %v2808, 4
      %v2811 = vshll.u32 %v2745, 16
      %v2813 = vrot.slane %v2811, 5
      %v2814 = vsel %vm892, %v2809, %v2813
      %v2816 = vshrl.u32 %v2746, 16
      %v2818 = vrot.slane %v2816, 4
      %v2819 = vshll.u32 %v2746, 16
      %v2821 = vrot.slane %v2819, 5
      %v2822 = vor.u32 %v2818, %v2821
      %v2823 = vrot.slane %v2822, 4
      %v2825 = vshll.u32 %v2747, 16
      %v2827 = vrot.slane %v2825, 5
      %v2828 = vsel %vm892, %v2823, %v2827
      %v2829 = vshrl.u32 %v2747, 16
      %v2831 = vrot.slane %v2829, 4
      %v2832 = vor.u32 %v2831, %v2827
      %v2833 = vrot.slane %v2832, 4
      %v2835 = vshll.u32 %v2748, 16
      %v2837 = vrot.slane %v2835, 5
      %v2838 = vsel %vm892, %v2833, %v2837
      %v2840 = vshrl.u32 %v2749, 16
      %v2842 = vrot.slane %v2840, 4
      %v2843 = vshll.u32 %v2749, 16
      %v2845 = vrot.slane %v2843, 5
      %v2846 = vor.u32 %v2842, %v2845
      %v2847 = vrot.slane %v2846, 4
      %v2849 = vshll.u32 %v2750, 16
      %v2851 = vrot.slane %v2849, 5
      %v2852 = vsel %vm892, %v2847, %v2851
      %v2853 = vshrl.u32 %v2750, 16
      %v2855 = vrot.slane %v2853, 4
      %v2856 = vor.u32 %v2855, %v2851
      %v2857 = vrot.slane %v2856, 4
      %v2859 = vshll.u32 %v2751, 16
      %v2861 = vrot.slane %v2859, 5
      %v2862 = vsel %vm892, %v2857, %v2861
      %v2864 = vshrl.u32 %v2752, 16
      %v2866 = vrot.slane %v2864, 4
      %v2867 = vshll.u32 %v2752, 16
      %v2869 = vrot.slane %v2867, 5
      %v2870 = vor.u32 %v2866, %v2869
      %v2871 = vrot.slane %v2870, 4
      %v2873 = vshll.u32 %v2753, 16
      %v2875 = vrot.slane %v2873, 5
      %v2876 = vsel %vm892, %v2871, %v2875
      %v2877 = vshrl.u32 %v2753, 16
      %v2879 = vrot.slane %v2877, 4
      %v2880 = vor.u32 %v2879, %v2875
      %v2881 = vrot.slane %v2880, 4
      %v2883 = vshll.u32 %v2754, 16
      %v2885 = vrot.slane %v2883, 5
      %v2886 = vsel %vm892, %v2881, %v2885
      %v2888 = vshrl.u32 %v2755, 16
      %v2890 = vrot.slane %v2888, 4
      %v2891 = vshll.u32 %v2755, 16
      %v2893 = vrot.slane %v2891, 5
      %v2894 = vor.u32 %v2890, %v2893
      %v2895 = vrot.slane %v2894, 4
      %v2897 = vshll.u32 %v2756, 16
      %v2899 = vrot.slane %v2897, 5
      %v2900 = vsel %vm892, %v2895, %v2899
      %v2901 = vshrl.u32 %v2756, 16
      %v2903 = vrot.slane %v2901, 4
      %v2904 = vor.u32 %v2903, %v2899
      %v2905 = vrot.slane %v2904, 4
      %v2907 = vshll.u32 %v2757, 16
      %v2909 = vrot.slane %v2907, 5
      %v2910 = vsel %vm892, %v2905, %v2909
      %v2912 = vshrl.u32 %v2758, 16
      %v2914 = vrot.slane %v2912, 4
      %v2915 = vshll.u32 %v2758, 16
      %v2917 = vrot.slane %v2915, 5
      %v2918 = vor.u32 %v2914, %v2917
      %v2919 = vrot.slane %v2918, 4
      %v2921 = vshll.u32 %v2759, 16
      %v2923 = vrot.slane %v2921, 5
      %v2924 = vsel %vm892, %v2919, %v2923
      %v2925 = vshrl.u32 %v2759, 16
      %v2927 = vrot.slane %v2925, 4
      %v2928 = vor.u32 %v2927, %v2923
      %v2929 = vrot.slane %v2928, 4
      %v2931 = vshll.u32 %v2760, 16
      %v2933 = vrot.slane %v2931, 5
      %v2934 = vsel %vm892, %v2929, %v2933
      %v2936 = vshrl.u32 %v2761, 16
      %v2938 = vrot.slane %v2936, 4
      %v2939 = vshll.u32 %v2761, 16
      %v2941 = vrot.slane %v2939, 5
      %v2942 = vor.u32 %v2938, %v2941
      %v2943 = vrot.slane %v2942, 4
      %v2945 = vshll.u32 %v2762, 16
      %v2947 = vrot.slane %v2945, 5
      %v2948 = vsel %vm892, %v2943, %v2947
      %v2949 = vshrl.u32 %v2762, 16
      %v2951 = vrot.slane %v2949, 4
      %v2952 = vor.u32 %v2951, %v2947
      %v2953 = vrot.slane %v2952, 4
      %v2955 = vshll.u32 %v2763, 16
      %v2957 = vrot.slane %v2955, 5
      %v2958 = vsel %vm892, %v2953, %v2957
      %v2960 = vshrl.u32 %v2764, 16
      %v2962 = vrot.slane %v2960, 4
      %v2963 = vshll.u32 %v2764, 16
      %v2965 = vrot.slane %v2963, 5
      %v2966 = vor.u32 %v2962, %v2965
      %v2967 = vrot.slane %v2966, 4
      %v2969 = vshll.u32 %v2765, 16
      %v2971 = vrot.slane %v2969, 5
      %v2972 = vsel %vm892, %v2967, %v2971
      %v2973 = vshrl.u32 %v2765, 16
      %v2975 = vrot.slane %v2973, 4
      %v2976 = vor.u32 %v2975, %v2971
      %v2977 = vrot.slane %v2976, 4
      %v2979 = vshll.u32 %v2766, 16
      %v2981 = vrot.slane %v2979, 5
      %v2982 = vsel %vm892, %v2977, %v2981
      %v2984 = vshrl.u32 %v2767, 16
      %v2986 = vrot.slane %v2984, 4
      %v2987 = vshll.u32 %v2767, 16
      %v2989 = vrot.slane %v2987, 5
      %v2990 = vor.u32 %v2986, %v2989
      %v2991 = vrot.slane %v2990, 4
      %v2993 = vshll.u32 %v2768, 16
      %v2995 = vrot.slane %v2993, 5
      %v2996 = vsel %vm892, %v2991, %v2995
      %v2997 = vshrl.u32 %v2768, 16
      %v2999 = vrot.slane %v2997, 4
      %v3000 = vor.u32 %v2999, %v2995
      %v3001 = vrot.slane %v3000, 4
      %v3003 = vshll.u32 %v2769, 16
      %v3005 = vrot.slane %v3003, 5
      %v3006 = vsel %vm892, %v3001, %v3005
      %v3008 = vshrl.u32 %v2770, 16
      %v3010 = vrot.slane %v3008, 4
      %v3011 = vshll.u32 %v2770, 16
      %v3013 = vrot.slane %v3011, 5
      %v3014 = vor.u32 %v3010, %v3013
      %v3015 = vrot.slane %v3014, 4
      %v3017 = vshll.u32 %v2771, 16
      %v3019 = vrot.slane %v3017, 5
      %v3020 = vsel %vm892, %v3015, %v3019
      %v3021 = vshrl.u32 %v2771, 16
      %v3023 = vrot.slane %v3021, 4
      %v3024 = vor.u32 %v3023, %v3019
      %v3025 = vrot.slane %v3024, 4
      %v3027 = vshll.u32 %v2772, 16
      %v3029 = vrot.slane %v3027, 5
      %v3030 = vsel %vm892, %v3025, %v3029
      %v3032 = vshrl.u32 %v2773, 16
      %v3034 = vrot.slane %v3032, 4
      %v3035 = vshll.u32 %v2773, 16
      %v3037 = vrot.slane %v3035, 5
      %v3038 = vor.u32 %v3034, %v3037
      %v3039 = vrot.slane %v3038, 4
      %v3041 = vshll.u32 %v2774, 16
      %v3043 = vrot.slane %v3041, 5
      %v3044 = vsel %vm892, %v3039, %v3043
      %v3045 = vshrl.u32 %v2774, 16
      %v3047 = vrot.slane %v3045, 4
      %v3048 = vor.u32 %v3047, %v3043
      %v3049 = vrot.slane %v3048, 4
      %v3051 = vshll.u32 %v2775, 16
      %v3053 = vrot.slane %v3051, 5
      %v3054 = vsel %vm892, %v3049, %v3053
      %v3056 = vshrl.u32 %v2776, 16
      %v3058 = vrot.slane %v3056, 4
      %v3059 = vshll.u32 %v2776, 16
      %v3061 = vrot.slane %v3059, 5
      %v3062 = vor.u32 %v3058, %v3061
      %v3063 = vrot.slane %v3062, 4
      %v3065 = vshll.u32 %v2777, 16
      %v3067 = vrot.slane %v3065, 5
      %v3068 = vsel %vm892, %v3063, %v3067
      %v3069 = vshrl.u32 %v2777, 16
      %v3071 = vrot.slane %v3069, 4
      %v3072 = vor.u32 %v3071, %v3067
      %v3073 = vrot.slane %v3072, 4
      %v3075 = vshll.u32 %v2778, 16
      %v3077 = vrot.slane %v3075, 5
      %v3078 = vsel %vm892, %v3073, %v3077
      %v3080 = vshrl.u32 %v2779, 16
      %v3082 = vrot.slane %v3080, 4
      %v3083 = vshll.u32 %v2779, 16
      %v3085 = vrot.slane %v3083, 5
      %v3086 = vor.u32 %v3082, %v3085
      %v3087 = vrot.slane %v3086, 4
      %v3089 = vshll.u32 %v2780, 16
      %v3091 = vrot.slane %v3089, 5
      %v3092 = vsel %vm892, %v3087, %v3091
      %v3093 = vshrl.u32 %v2780, 16
      %v3095 = vrot.slane %v3093, 4
      %v3096 = vor.u32 %v3095, %v3091
      %v3097 = vrot.slane %v3096, 4
      %v3099 = vshll.u32 %v2781, 16
      %v3101 = vrot.slane %v3099, 5
      %v3102 = vsel %vm892, %v3097, %v3101
      %v3104 = vshrl.u32 %v2782, 16
      %v3106 = vrot.slane %v3104, 4
      %v3107 = vshll.u32 %v2782, 16
      %v3109 = vrot.slane %v3107, 5
      %v3110 = vor.u32 %v3106, %v3109
      %v3111 = vrot.slane %v3110, 4
      %v3113 = vshll.u32 %v2783, 16
      %v3115 = vrot.slane %v3113, 5
      %v3116 = vsel %vm892, %v3111, %v3115
      %v3117 = vshrl.u32 %v2783, 16
      %v3119 = vrot.slane %v3117, 4
      %v3120 = vor.u32 %v3119, %v3115
      %v3121 = vrot.slane %v3120, 4
      %v3123 = vshll.u32 %v2784, 16
      %v3125 = vrot.slane %v3123, 5
      %v3126 = vsel %vm892, %v3121, %v3125
      %v3128 = vshrl.u32 %v2785, 16
      %v3130 = vrot.slane %v3128, 4
      %v3131 = vshll.u32 %v2785, 16
      %v3133 = vrot.slane %v3131, 5
      %v3134 = vor.u32 %v3130, %v3133
      %v3135 = vrot.slane %v3134, 4
      %v3137 = vshll.u32 %v2786, 16
      %v3139 = vrot.slane %v3137, 5
      %v3140 = vsel %vm892, %v3135, %v3139
      %v3141 = vshrl.u32 %v2786, 16
      %v3143 = vrot.slane %v3141, 4
      %v3144 = vor.u32 %v3143, %v3139
      %v3145 = vrot.slane %v3144, 4
      %v3147 = vshll.u32 %v2787, 16
      %v3149 = vrot.slane %v3147, 5
      %v3150 = vsel %vm892, %v3145, %v3149
      %v3152 = vshrl.u32 %v2788, 16
      %v3154 = vrot.slane %v3152, 4
      %v3155 = vshll.u32 %v2788, 16
      %v3157 = vrot.slane %v3155, 5
      %v3158 = vor.u32 %v3154, %v3157
      %v3159 = vrot.slane %v3158, 4
      %v3161 = vshll.u32 %v2789, 16
      %v3163 = vrot.slane %v3161, 5
      %v3164 = vsel %vm892, %v3159, %v3163
      %v3165 = vshrl.u32 %v2789, 16
      %v3167 = vrot.slane %v3165, 4
      %v3168 = vor.u32 %v3167, %v3163
      %v3169 = vrot.slane %v3168, 4
      %v3171 = vshll.u32 %v2790, 16
      %v3173 = vrot.slane %v3171, 5
      %v3174 = vsel %vm892, %v3169, %v3173
      %s3175 = scalar_lea.vmem %s1, 256
      %v3176 = vld [vmem:[%s3175] sm:$0xf]
      %v3177 = vld [vmem:[%s3175 + $0x4] sm:$0xf]
      %v3178 = vld [vmem:[%s3175 + $0x8] sm:$0xf]
      %v3179 = vld [vmem:[%s3175 + $0xc] sm:$0xf]
      %v3180 = vld [vmem:[%s3175 + $0x10] sm:$0xf]
      %v3181 = vld [vmem:[%s3175 + $0x14] sm:$0xf]
      %v3182 = vld [vmem:[%s3175 + $0x18] sm:$0xf]
      %v3183 = vld [vmem:[%s3175 + $0x1c] sm:$0xf]
      %v3184 = vld [vmem:[%s3175 + $0x20] sm:$0xf]
      %v3185 = vld [vmem:[%s3175 + $0x24] sm:$0xf]
      %v3186 = vld [vmem:[%s3175 + $0x28] sm:$0xf]
      %v3187 = vld [vmem:[%s3175 + $0x2c] sm:$0xf]
      %v3188 = vld [vmem:[%s3175 + $0x30] sm:$0xf]
      %v3189 = vld [vmem:[%s3175 + $0x34] sm:$0xf]
      %v3190 = vld [vmem:[%s3175 + $0x38] sm:$0xf]
      %v3191 = vld [vmem:[%s3175 + $0x3c] sm:$0xf]
      %v3192 = vunpack.c.l.b16 %v2804
      %v3193 = vunpack.c.l.b16 %v2814
      %v3194 = vunpack.c.l.b16 %v2828
      %v3195 = vunpack.c.l.b16 %v2838
      %v3196 = vunpack.c.l.b16 %v2852
      %v3197 = vunpack.c.l.b16 %v2862
      %v3198 = vunpack.c.l.b16 %v2876
      %v3199 = vunpack.c.l.b16 %v2886
      %v3200 = vunpack.c.l.b16 %v2900
      %v3201 = vunpack.c.l.b16 %v2910
      %v3202 = vunpack.c.l.b16 %v2924
      %v3203 = vunpack.c.l.b16 %v2934
      %v3204 = vunpack.c.l.b16 %v2948
      %v3205 = vunpack.c.l.b16 %v2958
      %v3206 = vunpack.c.l.b16 %v2972
      %v3207 = vunpack.c.l.b16 %v2982
      %v3208 = vunpack.c.l.b16 %v2996
      %v3209 = vunpack.c.l.b16 %v3006
      %v3210 = vunpack.c.l.b16 %v3020
      %v3211 = vunpack.c.l.b16 %v3030
      %v3212 = vunpack.c.l.b16 %v3044
      %v3213 = vunpack.c.l.b16 %v3054
      %v3214 = vunpack.c.l.b16 %v3068
      %v3215 = vunpack.c.l.b16 %v3078
      %v3216 = vunpack.c.l.b16 %v3092
      %v3217 = vunpack.c.l.b16 %v3102
      %v3218 = vunpack.c.l.b16 %v3116
      %v3219 = vunpack.c.l.b16 %v3126
      %v3220 = vunpack.c.l.b16 %v3140
      %v3221 = vunpack.c.l.b16 %v3150
      %v3222 = vunpack.c.l.b16 %v3164
      %v3223 = vunpack.c.l.b16 %v3174
      %v3224 = vpack.c.b16 %v3193, %v3192
      %v3225 = vpack.c.b16 %v3195, %v3194
      %v3226 = vpack.c.b16 %v3197, %v3196
      %v3227 = vpack.c.b16 %v3199, %v3198
      %v3228 = vpack.c.b16 %v3201, %v3200
      %v3229 = vpack.c.b16 %v3203, %v3202
      %v3230 = vpack.c.b16 %v3205, %v3204
      %v3231 = vpack.c.b16 %v3207, %v3206
      %v3232 = vpack.c.b16 %v3209, %v3208
      %v3233 = vpack.c.b16 %v3211, %v3210
      %v3234 = vpack.c.b16 %v3213, %v3212
      %v3235 = vpack.c.b16 %v3215, %v3214
      %v3236 = vpack.c.b16 %v3217, %v3216
      %v3237 = vpack.c.b16 %v3219, %v3218
      %v3238 = vpack.c.b16 %v3221, %v3220
      %v3239 = vpack.c.b16 %v3223, %v3222
      %v3272 = vunpack.c.l.b16 %v3176
      %v3273 = vunpack.c.l.b16 %v3177
      %v3274 = vunpack.c.l.b16 %v3178
      %v3275 = vunpack.c.l.b16 %v3179
      %v3276 = vunpack.c.l.b16 %v3180
      %v3277 = vunpack.c.l.b16 %v3181
      %v3278 = vunpack.c.l.b16 %v3182
      %v3279 = vunpack.c.l.b16 %v3183
      %v3280 = vunpack.c.l.b16 %v3184
      %v3281 = vunpack.c.l.b16 %v3185
      %v3282 = vunpack.c.l.b16 %v3186
      %v3283 = vunpack.c.l.b16 %v3187
      %v3284 = vunpack.c.l.b16 %v3188
      %v3285 = vunpack.c.l.b16 %v3189
      %v3286 = vunpack.c.l.b16 %v3190
      %v3287 = vunpack.c.l.b16 %v3191
      %v3288 = vpack.c.b16 %v3273, %v3272
      %v3289 = vpack.c.b16 %v3275, %v3274
      %v3290 = vpack.c.b16 %v3277, %v3276
      %v3291 = vpack.c.b16 %v3279, %v3278
      %v3292 = vpack.c.b16 %v3281, %v3280
      %v3293 = vpack.c.b16 %v3283, %v3282
      %v3294 = vpack.c.b16 %v3285, %v3284
      %v3295 = vpack.c.b16 %v3287, %v3286
      %3304 = vmatprep.subr.bf16.mxu0 0
      %3305 = vmatpush1.bf16.msra.mxu0 %v3295
      %3306 = vmatprep.subr.bf16.mxu0 0
      %3307 = vmatpush1.bf16.msra.mxu0 %v3294
      %3308 = vmatprep.subr.bf16.mxu0 0
      %3309 = vmatpush1.bf16.msra.mxu0 %v3293
      %3310 = vmatprep.subr.bf16.mxu0 0
      %3311 = vmatpush1.bf16.msra.mxu0 %v3292
      %3312 = vmatprep.subr.bf16.mxu0 0
      %3313 = vmatpush1.bf16.msra.mxu0 %v3291
      %3314 = vmatprep.subr.bf16.mxu0 0
      %3315 = vmatpush1.bf16.msra.mxu0 %v3290
      %3316 = vmatprep.subr.bf16.mxu0 0
      %3317 = vmatpush1.bf16.msra.mxu0 %v3289
      %3318 = vmatprep.subr.bf16.mxu0 0
      %3319 = vmatpush1.bf16.msra.mxu0 %v3288
      %3320 = vmatprep.subr.bf16.mxu0 0
      %3321 = vmatpush2.bf16.msra.mxu0 0
      %3322 = vmatprep.subr.bf16.mxu0 0
      %3323 = vmatpush2.bf16.msra.mxu0 0
      %3324 = vmatprep.subr.bf16.mxu0 0
      %3325 = vmatpush2.bf16.msra.mxu0 0
      %3326 = vmatprep.subr.bf16.mxu0 0
      %3327 = vmatpush2.bf16.msra.mxu0 0
      %3328 = vmatprep.subr.bf16.mxu0 0
      %3329 = vmatpush2.bf16.msra.mxu0 0
      %3330 = vmatprep.subr.bf16.mxu0 0
      %3331 = vmatpush2.bf16.msra.mxu0 0
      %3332 = vmatprep.subr.bf16.mxu0 0
      %3333 = vmatpush2.bf16.msra.mxu0 0
      %3334 = vmatprep.subr.bf16.mxu0 0
      %3335 = vmatpush2.bf16.msra.mxu0 0
      %3336 = vmatprep.mubr.bf16.mxu0 0
      %3337 = vmatmul.mubr.bf16.gmra.mxu0 %v3224
      %v3338 = vpop.f32.mrf.mxu0
      %v3339 = vadd.f32 0.0, %v3338
      %v3340 = vpop.f32.mrf.mxu0
      %v3341 = vpop.f32.mrf.mxu0
      %v3342 = vadd.f32 0.0, %v3341
      %v3343 = vpop.f32.mrf.mxu0
      %3344 = vmatprep.mubr.bf16.mxu0 0
      %3345 = vmatmul.mubr.bf16.gmra.mxu0 %v3225
      %v3346 = vpop.f32.mrf.mxu0
      %v3347 = vadd.f32 0.0, %v3346
      %v3348 = vpop.f32.mrf.mxu0
      %v3349 = vpop.f32.mrf.mxu0
      %v3350 = vadd.f32 0.0, %v3349
      %v3351 = vpop.f32.mrf.mxu0
      %3352 = vmatprep.mubr.bf16.mxu0 0
      %3353 = vmatmul.mubr.bf16.gmra.mxu0 %v3226
      %v3354 = vpop.f32.mrf.mxu0
      %v3355 = vadd.f32 0.0, %v3354
      %v3356 = vpop.f32.mrf.mxu0
      %v3357 = vpop.f32.mrf.mxu0
      %v3358 = vadd.f32 0.0, %v3357
      %v3359 = vpop.f32.mrf.mxu0
      %3360 = vmatprep.mubr.bf16.mxu0 0
      %3361 = vmatmul.mubr.bf16.gmra.mxu0 %v3227
      %v3362 = vpop.f32.mrf.mxu0
      %v3363 = vadd.f32 0.0, %v3362
      %v3364 = vpop.f32.mrf.mxu0
      %v3365 = vpop.f32.mrf.mxu0
      %v3366 = vadd.f32 0.0, %v3365
      %v3367 = vpop.f32.mrf.mxu0
      %3368 = vmatprep.mubr.bf16.mxu0 0
      %3369 = vmatmul.mubr.bf16.gmra.mxu0 %v3228
      %v3370 = vpop.f32.mrf.mxu0
      %v3371 = vadd.f32 0.0, %v3370
      %v3372 = vpop.f32.mrf.mxu0
      %v3373 = vpop.f32.mrf.mxu0
      %v3374 = vadd.f32 0.0, %v3373
      %v3375 = vpop.f32.mrf.mxu0
      %3376 = vmatprep.mubr.bf16.mxu0 0
      %3377 = vmatmul.mubr.bf16.gmra.mxu0 %v3229
      %v3378 = vpop.f32.mrf.mxu0
      %v3379 = vadd.f32 0.0, %v3378
      %v3380 = vpop.f32.mrf.mxu0
      %v3381 = vpop.f32.mrf.mxu0
      %v3382 = vadd.f32 0.0, %v3381
      %v3383 = vpop.f32.mrf.mxu0
      %3384 = vmatprep.mubr.bf16.mxu0 0
      %3385 = vmatmul.mubr.bf16.gmra.mxu0 %v3230
      %v3386 = vpop.f32.mrf.mxu0
      %v3387 = vadd.f32 0.0, %v3386
      %v3388 = vpop.f32.mrf.mxu0
      %v3389 = vpop.f32.mrf.mxu0
      %v3390 = vadd.f32 0.0, %v3389
      %v3391 = vpop.f32.mrf.mxu0
      %3392 = vmatprep.mubr.bf16.mxu0 0
      %3393 = vmatmul.mubr.bf16.gmra.mxu0 %v3231
      %v3394 = vpop.f32.mrf.mxu0
      %v3395 = vadd.f32 0.0, %v3394
      %v3396 = vpop.f32.mrf.mxu0
      %v3397 = vpop.f32.mrf.mxu0
      %v3398 = vadd.f32 0.0, %v3397
      %v3399 = vpop.f32.mrf.mxu0
      %3400 = vmatprep.mubr.bf16.mxu0 0
      %3401 = vmatmul.mubr.bf16.gmra.mxu0 %v3232
      %v3402 = vpop.f32.mrf.mxu0
      %v3403 = vadd.f32 0.0, %v3402
      %v3404 = vpop.f32.mrf.mxu0
      %v3405 = vpop.f32.mrf.mxu0
      %v3406 = vadd.f32 0.0, %v3405
      %v3407 = vpop.f32.mrf.mxu0
      %3408 = vmatprep.mubr.bf16.mxu0 0
      %3409 = vmatmul.mubr.bf16.gmra.mxu0 %v3233
      %v3410 = vpop.f32.mrf.mxu0
      %v3411 = vadd.f32 0.0, %v3410
      %v3412 = vpop.f32.mrf.mxu0
      %v3413 = vpop.f32.mrf.mxu0
      %v3414 = vadd.f32 0.0, %v3413
      %v3415 = vpop.f32.mrf.mxu0
      %3416 = vmatprep.mubr.bf16.mxu0 0
      %3417 = vmatmul.mubr.bf16.gmra.mxu0 %v3234
      %v3418 = vpop.f32.mrf.mxu0
      %v3419 = vadd.f32 0.0, %v3418
      %v3420 = vpop.f32.mrf.mxu0
      %v3421 = vpop.f32.mrf.mxu0
      %v3422 = vadd.f32 0.0, %v3421
      %v3423 = vpop.f32.mrf.mxu0
      %3424 = vmatprep.mubr.bf16.mxu0 0
      %3425 = vmatmul.mubr.bf16.gmra.mxu0 %v3235
      %v3426 = vpop.f32.mrf.mxu0
      %v3427 = vadd.f32 0.0, %v3426
      %v3428 = vpop.f32.mrf.mxu0
      %v3429 = vpop.f32.mrf.mxu0
      %v3430 = vadd.f32 0.0, %v3429
      %v3431 = vpop.f32.mrf.mxu0
      %3432 = vmatprep.mubr.bf16.mxu0 0
      %3433 = vmatmul.mubr.bf16.gmra.mxu0 %v3236
      %v3434 = vpop.f32.mrf.mxu0
      %v3435 = vadd.f32 0.0, %v3434
      %v3436 = vpop.f32.mrf.mxu0
      %v3437 = vpop.f32.mrf.mxu0
      %v3438 = vadd.f32 0.0, %v3437
      %v3439 = vpop.f32.mrf.mxu0
      %3440 = vmatprep.mubr.bf16.mxu0 0
      %3441 = vmatmul.mubr.bf16.gmra.mxu0 %v3237
      %v3442 = vpop.f32.mrf.mxu0
      %v3443 = vadd.f32 0.0, %v3442
      %v3444 = vpop.f32.mrf.mxu0
      %v3445 = vpop.f32.mrf.mxu0
      %v3446 = vadd.f32 0.0, %v3445
      %v3447 = vpop.f32.mrf.mxu0
      %3448 = vmatprep.mubr.bf16.mxu0 0
      %3449 = vmatmul.mubr.bf16.gmra.mxu0 %v3238
      %v3450 = vpop.f32.mrf.mxu0
      %v3451 = vadd.f32 0.0, %v3450
      %v3452 = vpop.f32.mrf.mxu0
      %v3453 = vpop.f32.mrf.mxu0
      %v3454 = vadd.f32 0.0, %v3453
      %v3455 = vpop.f32.mrf.mxu0
      %3456 = vmatprep.mubr.bf16.mxu0 0
      %3457 = vmatmul.mubr.bf16.gmra.mxu0 %v3239
      %v3458 = vpop.f32.mrf.mxu0
      %v3459 = vadd.f32 0.0, %v3458
      %v3460 = vpop.f32.mrf.mxu0
      %v3461 = vpop.f32.mrf.mxu0
      %v3462 = vadd.f32 0.0, %v3461
      %v3463 = vpop.f32.mrf.mxu0
      %3464 = vdwg.mxu0
      %v3465 = vadd.f32 %v2711, %v3339
      %v3466 = vadd.f32 %v2712, %v3342
      %v3467 = vadd.f32 %v2713, %v3347
      %v3468 = vadd.f32 %v2714, %v3350
      %v3469 = vadd.f32 %v2715, %v3355
      %v3470 = vadd.f32 %v2716, %v3358
      %v3471 = vadd.f32 %v2717, %v3363
      %v3472 = vadd.f32 %v2718, %v3366
      %v3473 = vadd.f32 %v2719, %v3371
      %v3474 = vadd.f32 %v2720, %v3374
      %v3475 = vadd.f32 %v2721, %v3379
      %v3476 = vadd.f32 %v2722, %v3382
      %v3477 = vadd.f32 %v2723, %v3387
      %v3478 = vadd.f32 %v2724, %v3390
      %v3479 = vadd.f32 %v2725, %v3395
      %v3480 = vadd.f32 %v2726, %v3398
      %v3481 = vadd.f32 %v2727, %v3403
      %v3482 = vadd.f32 %v2728, %v3406
      %v3483 = vadd.f32 %v2729, %v3411
      %v3484 = vadd.f32 %v2730, %v3414
      %v3485 = vadd.f32 %v2731, %v3419
      %v3486 = vadd.f32 %v2732, %v3422
      %v3487 = vadd.f32 %v2733, %v3427
      %v3488 = vadd.f32 %v2734, %v3430
      %v3489 = vadd.f32 %v2735, %v3435
      %v3490 = vadd.f32 %v2736, %v3438
      %v3491 = vadd.f32 %v2737, %v3443
      %v3492 = vadd.f32 %v2738, %v3446
      %v3493 = vadd.f32 %v2739, %v3451
      %v3494 = vadd.f32 %v2740, %v3454
      %v3495 = vadd.f32 %v2741, %v3459
      %v3496 = vadd.f32 %v2742, %v3462
      %v3497 = vld [vmem:[%s711] sm:$0xe]
      %v3498 = vld [vmem:[%s711 + $0xc] sm:$0xe]
      %v3499 = vld [vmem:[%s711 + $0x18] sm:$0xe]
      %v3500 = vld [vmem:[%s711 + $0x24] sm:$0xe]
      %v3501 = vld [vmem:[%s711 + $0x30] sm:$0xe]
      %v3502 = vld [vmem:[%s711 + $0x3c] sm:$0xe]
      %v3503 = vld [vmem:[%s711 + $0x48] sm:$0xe]
      %v3504 = vld [vmem:[%s711 + $0x54] sm:$0xe]
      %v3505 = vld [vmem:[%s711 + $0x60] sm:$0xe]
      %v3506 = vld [vmem:[%s711 + $0x6c] sm:$0xe]
      %v3507 = vld [vmem:[%s711 + $0x78] sm:$0xe]
      %v3508 = vld [vmem:[%s711 + $0x84] sm:$0xe]
      %v3509 = vld [vmem:[%s711 + $0x90] sm:$0xe]
      %v3510 = vld [vmem:[%s711 + $0x9c] sm:$0xe]
      %v3511 = vld [vmem:[%s711 + $0xa8] sm:$0xe]
      %v3512 = vld [vmem:[%s711 + $0xb4] sm:$0xe]
      %v3561 = vrot.slane %v3497, 5
      %v3562 = vrot.slane %v3561, 4
      %v3563 = vrot.slane %v2744, 5
      %v3564 = vsel %vm1922, %v3562, %v3563
      %v3565 = vrot.slane %v3563, 4
      %v3566 = vrot.slane %v2745, 5
      %v3567 = vsel %vm1922, %v3565, %v3566
      %v3568 = vrot.slane %v3498, 5
      %v3569 = vrot.slane %v3568, 4
      %v3570 = vrot.slane %v2747, 5
      %v3571 = vsel %vm1922, %v3569, %v3570
      %v3572 = vrot.slane %v3570, 4
      %v3573 = vrot.slane %v2748, 5
      %v3574 = vsel %vm1922, %v3572, %v3573
      %v3575 = vrot.slane %v3499, 5
      %v3576 = vrot.slane %v3575, 4
      %v3577 = vrot.slane %v2750, 5
      %v3578 = vsel %vm1922, %v3576, %v3577
      %v3579 = vrot.slane %v3577, 4
      %v3580 = vrot.slane %v2751, 5
      %v3581 = vsel %vm1922, %v3579, %v3580
      %v3582 = vrot.slane %v3500, 5
      %v3583 = vrot.slane %v3582, 4
      %v3584 = vrot.slane %v2753, 5
      %v3585 = vsel %vm1922, %v3583, %v3584
      %v3586 = vrot.slane %v3584, 4
      %v3587 = vrot.slane %v2754, 5
      %v3588 = vsel %vm1922, %v3586, %v3587
      %v3589 = vrot.slane %v3501, 5
      %v3590 = vrot.slane %v3589, 4
      %v3591 = vrot.slane %v2756, 5
      %v3592 = vsel %vm1922, %v3590, %v3591
      %v3593 = vrot.slane %v3591, 4
      %v3594 = vrot.slane %v2757, 5
      %v3595 = vsel %vm1922, %v3593, %v3594
      %v3596 = vrot.slane %v3502, 5
      %v3597 = vrot.slane %v3596, 4
      %v3598 = vrot.slane %v2759, 5
      %v3599 = vsel %vm1922, %v3597, %v3598
      %v3600 = vrot.slane %v3598, 4
      %v3601 = vrot.slane %v2760, 5
      %v3602 = vsel %vm1922, %v3600, %v3601
      %v3603 = vrot.slane %v3503, 5
      %v3604 = vrot.slane %v3603, 4
      %v3605 = vrot.slane %v2762, 5
      %v3606 = vsel %vm1922, %v3604, %v3605
      %v3607 = vrot.slane %v3605, 4
      %v3608 = vrot.slane %v2763, 5
      %v3609 = vsel %vm1922, %v3607, %v3608
      %v3610 = vrot.slane %v3504, 5
      %v3611 = vrot.slane %v3610, 4
      %v3612 = vrot.slane %v2765, 5
      %v3613 = vsel %vm1922, %v3611, %v3612
      %v3614 = vrot.slane %v3612, 4
      %v3615 = vrot.slane %v2766, 5
      %v3616 = vsel %vm1922, %v3614, %v3615
      %v3617 = vrot.slane %v3505, 5
      %v3618 = vrot.slane %v3617, 4
      %v3619 = vrot.slane %v2768, 5
      %v3620 = vsel %vm1922, %v3618, %v3619
      %v3621 = vrot.slane %v3619, 4
      %v3622 = vrot.slane %v2769, 5
      %v3623 = vsel %vm1922, %v3621, %v3622
      %v3624 = vrot.slane %v3506, 5
      %v3625 = vrot.slane %v3624, 4
      %v3626 = vrot.slane %v2771, 5
      %v3627 = vsel %vm1922, %v3625, %v3626
      %v3628 = vrot.slane %v3626, 4
      %v3629 = vrot.slane %v2772, 5
      %v3630 = vsel %vm1922, %v3628, %v3629
      %v3631 = vrot.slane %v3507, 5
      %v3632 = vrot.slane %v3631, 4
      %v3633 = vrot.slane %v2774, 5
      %v3634 = vsel %vm1922, %v3632, %v3633
      %v3635 = vrot.slane %v3633, 4
      %v3636 = vrot.slane %v2775, 5
      %v3637 = vsel %vm1922, %v3635, %v3636
      %v3638 = vrot.slane %v3508, 5
      %v3639 = vrot.slane %v3638, 4
      %v3640 = vrot.slane %v2777, 5
      %v3641 = vsel %vm1922, %v3639, %v3640
      %v3642 = vrot.slane %v3640, 4
      %v3643 = vrot.slane %v2778, 5
      %v3644 = vsel %vm1922, %v3642, %v3643
      %v3645 = vrot.slane %v3509, 5
      %v3646 = vrot.slane %v3645, 4
      %v3647 = vrot.slane %v2780, 5
      %v3648 = vsel %vm1922, %v3646, %v3647
      %v3649 = vrot.slane %v3647, 4
      %v3650 = vrot.slane %v2781, 5
      %v3651 = vsel %vm1922, %v3649, %v3650
      %v3652 = vrot.slane %v3510, 5
      %v3653 = vrot.slane %v3652, 4
      %v3654 = vrot.slane %v2783, 5
      %v3655 = vsel %vm1922, %v3653, %v3654
      %v3656 = vrot.slane %v3654, 4
      %v3657 = vrot.slane %v2784, 5
      %v3658 = vsel %vm1922, %v3656, %v3657
      %v3659 = vrot.slane %v3511, 5
      %v3660 = vrot.slane %v3659, 4
      %v3661 = vrot.slane %v2786, 5
      %v3662 = vsel %vm1922, %v3660, %v3661
      %v3663 = vrot.slane %v3661, 4
      %v3664 = vrot.slane %v2787, 5
      %v3665 = vsel %vm1922, %v3663, %v3664
      %v3666 = vrot.slane %v3512, 5
      %v3667 = vrot.slane %v3666, 4
      %v3668 = vrot.slane %v2789, 5
      %v3669 = vsel %vm1922, %v3667, %v3668
      %v3670 = vrot.slane %v3668, 4
      %v3671 = vrot.slane %v2790, 5
      %v3672 = vsel %vm1922, %v3670, %v3671
      %s3673 = scalar_lea.vmem %s1, 320
      %v3674 = vld [vmem:[%s3673] sm:$0xf]
      %v3675 = vld [vmem:[%s3673 + $0x4] sm:$0xf]
      %v3676 = vld [vmem:[%s3673 + $0x8] sm:$0xf]
      %v3677 = vld [vmem:[%s3673 + $0xc] sm:$0xf]
      %v3678 = vld [vmem:[%s3673 + $0x10] sm:$0xf]
      %v3679 = vld [vmem:[%s3673 + $0x14] sm:$0xf]
      %v3680 = vld [vmem:[%s3673 + $0x18] sm:$0xf]
      %v3681 = vld [vmem:[%s3673 + $0x1c] sm:$0xf]
      %v3682 = vld [vmem:[%s3673 + $0x20] sm:$0xf]
      %v3683 = vld [vmem:[%s3673 + $0x24] sm:$0xf]
      %v3684 = vld [vmem:[%s3673 + $0x28] sm:$0xf]
      %v3685 = vld [vmem:[%s3673 + $0x2c] sm:$0xf]
      %v3686 = vld [vmem:[%s3673 + $0x30] sm:$0xf]
      %v3687 = vld [vmem:[%s3673 + $0x34] sm:$0xf]
      %v3688 = vld [vmem:[%s3673 + $0x38] sm:$0xf]
      %v3689 = vld [vmem:[%s3673 + $0x3c] sm:$0xf]
      %v3690 = vunpack.c.l.b16 %v3564
      %v3691 = vunpack.c.l.b16 %v3567
      %v3692 = vunpack.c.l.b16 %v3571
      %v3693 = vunpack.c.l.b16 %v3574
      %v3694 = vunpack.c.l.b16 %v3578
      %v3695 = vunpack.c.l.b16 %v3581
      %v3696 = vunpack.c.l.b16 %v3585
      %v3697 = vunpack.c.l.b16 %v3588
      %v3698 = vunpack.c.l.b16 %v3592
      %v3699 = vunpack.c.l.b16 %v3595
      %v3700 = vunpack.c.l.b16 %v3599
      %v3701 = vunpack.c.l.b16 %v3602
      %v3702 = vunpack.c.l.b16 %v3606
      %v3703 = vunpack.c.l.b16 %v3609
      %v3704 = vunpack.c.l.b16 %v3613
      %v3705 = vunpack.c.l.b16 %v3616
      %v3706 = vunpack.c.l.b16 %v3620
      %v3707 = vunpack.c.l.b16 %v3623
      %v3708 = vunpack.c.l.b16 %v3627
      %v3709 = vunpack.c.l.b16 %v3630
      %v3710 = vunpack.c.l.b16 %v3634
      %v3711 = vunpack.c.l.b16 %v3637
      %v3712 = vunpack.c.l.b16 %v3641
      %v3713 = vunpack.c.l.b16 %v3644
      %v3714 = vunpack.c.l.b16 %v3648
      %v3715 = vunpack.c.l.b16 %v3651
      %v3716 = vunpack.c.l.b16 %v3655
      %v3717 = vunpack.c.l.b16 %v3658
      %v3718 = vunpack.c.l.b16 %v3662
      %v3719 = vunpack.c.l.b16 %v3665
      %v3720 = vunpack.c.l.b16 %v3669
      %v3721 = vunpack.c.l.b16 %v3672
      %v3722 = vpack.c.b16 %v3691, %v3690
      %v3723 = vpack.c.b16 %v3693, %v3692
      %v3724 = vpack.c.b16 %v3695, %v3694
      %v3725 = vpack.c.b16 %v3697, %v3696
      %v3726 = vpack.c.b16 %v3699, %v3698
      %v3727 = vpack.c.b16 %v3701, %v3700
      %v3728 = vpack.c.b16 %v3703, %v3702
      %v3729 = vpack.c.b16 %v3705, %v3704
      %v3730 = vpack.c.b16 %v3707, %v3706
      %v3731 = vpack.c.b16 %v3709, %v3708
      %v3732 = vpack.c.b16 %v3711, %v3710
      %v3733 = vpack.c.b16 %v3713, %v3712
      %v3734 = vpack.c.b16 %v3715, %v3714
      %v3735 = vpack.c.b16 %v3717, %v3716
      %v3736 = vpack.c.b16 %v3719, %v3718
      %v3737 = vpack.c.b16 %v3721, %v3720
      %v3770 = vunpack.c.l.b16 %v3674
      %v3771 = vunpack.c.l.b16 %v3675
      %v3772 = vunpack.c.l.b16 %v3676
      %v3773 = vunpack.c.l.b16 %v3677
      %v3774 = vunpack.c.l.b16 %v3678
      %v3775 = vunpack.c.l.b16 %v3679
      %v3776 = vunpack.c.l.b16 %v3680
      %v3777 = vunpack.c.l.b16 %v3681
      %v3778 = vunpack.c.l.b16 %v3682
      %v3779 = vunpack.c.l.b16 %v3683
      %v3780 = vunpack.c.l.b16 %v3684
      %v3781 = vunpack.c.l.b16 %v3685
      %v3782 = vunpack.c.l.b16 %v3686
      %v3783 = vunpack.c.l.b16 %v3687
      %v3784 = vunpack.c.l.b16 %v3688
      %v3785 = vunpack.c.l.b16 %v3689
      %v3786 = vpack.c.b16 %v3771, %v3770
      %v3787 = vpack.c.b16 %v3773, %v3772
      %v3788 = vpack.c.b16 %v3775, %v3774
      %v3789 = vpack.c.b16 %v3777, %v3776
      %v3790 = vpack.c.b16 %v3779, %v3778
      %v3791 = vpack.c.b16 %v3781, %v3780
      %v3792 = vpack.c.b16 %v3783, %v3782
      %v3793 = vpack.c.b16 %v3785, %v3784
      %3802 = vmatprep.subr.bf16.mxu0 0
      %3803 = vmatpush1.bf16.msra.mxu0 %v3793
      %3804 = vmatprep.subr.bf16.mxu0 0
      %3805 = vmatpush1.bf16.msra.mxu0 %v3792
      %3806 = vmatprep.subr.bf16.mxu0 0
      %3807 = vmatpush1.bf16.msra.mxu0 %v3791
      %3808 = vmatprep.subr.bf16.mxu0 0
      %3809 = vmatpush1.bf16.msra.mxu0 %v3790
      %3810 = vmatprep.subr.bf16.mxu0 0
      %3811 = vmatpush1.bf16.msra.mxu0 %v3789
      %3812 = vmatprep.subr.bf16.mxu0 0
      %3813 = vmatpush1.bf16.msra.mxu0 %v3788
      %3814 = vmatprep.subr.bf16.mxu0 0
      %3815 = vmatpush1.bf16.msra.mxu0 %v3787
      %3816 = vmatprep.subr.bf16.mxu0 0
      %3817 = vmatpush1.bf16.msra.mxu0 %v3786
      %3818 = vmatprep.subr.bf16.mxu0 0
      %3819 = vmatpush2.bf16.msra.mxu0 0
      %3820 = vmatprep.subr.bf16.mxu0 0
      %3821 = vmatpush2.bf16.msra.mxu0 0
      %3822 = vmatprep.subr.bf16.mxu0 0
      %3823 = vmatpush2.bf16.msra.mxu0 0
      %3824 = vmatprep.subr.bf16.mxu0 0
      %3825 = vmatpush2.bf16.msra.mxu0 0
      %3826 = vmatprep.subr.bf16.mxu0 0
      %3827 = vmatpush2.bf16.msra.mxu0 0
      %3828 = vmatprep.subr.bf16.mxu0 0
      %3829 = vmatpush2.bf16.msra.mxu0 0
      %3830 = vmatprep.subr.bf16.mxu0 0
      %3831 = vmatpush2.bf16.msra.mxu0 0
      %3832 = vmatprep.subr.bf16.mxu0 0
      %3833 = vmatpush2.bf16.msra.mxu0 0
      %3834 = vmatprep.mubr.bf16.mxu0 0
      %3835 = vmatmul.mubr.bf16.gmra.mxu0 %v3722
      %v3836 = vpop.f32.mrf.mxu0
      %v3837 = vadd.f32 0.0, %v3836
      %v3838 = vpop.f32.mrf.mxu0
      %v3839 = vpop.f32.mrf.mxu0
      %v3840 = vadd.f32 0.0, %v3839
      %v3841 = vpop.f32.mrf.mxu0
      %3842 = vmatprep.mubr.bf16.mxu0 0
      %3843 = vmatmul.mubr.bf16.gmra.mxu0 %v3723
      %v3844 = vpop.f32.mrf.mxu0
      %v3845 = vadd.f32 0.0, %v3844
      %v3846 = vpop.f32.mrf.mxu0
      %v3847 = vpop.f32.mrf.mxu0
      %v3848 = vadd.f32 0.0, %v3847
      %v3849 = vpop.f32.mrf.mxu0
      %3850 = vmatprep.mubr.bf16.mxu0 0
      %3851 = vmatmul.mubr.bf16.gmra.mxu0 %v3724
      %v3852 = vpop.f32.mrf.mxu0
      %v3853 = vadd.f32 0.0, %v3852
      %v3854 = vpop.f32.mrf.mxu0
      %v3855 = vpop.f32.mrf.mxu0
      %v3856 = vadd.f32 0.0, %v3855
      %v3857 = vpop.f32.mrf.mxu0
      %3858 = vmatprep.mubr.bf16.mxu0 0
      %3859 = vmatmul.mubr.bf16.gmra.mxu0 %v3725
      %v3860 = vpop.f32.mrf.mxu0
      %v3861 = vadd.f32 0.0, %v3860
      %v3862 = vpop.f32.mrf.mxu0
      %v3863 = vpop.f32.mrf.mxu0
      %v3864 = vadd.f32 0.0, %v3863
      %v3865 = vpop.f32.mrf.mxu0
      %3866 = vmatprep.mubr.bf16.mxu0 0
      %3867 = vmatmul.mubr.bf16.gmra.mxu0 %v3726
      %v3868 = vpop.f32.mrf.mxu0
      %v3869 = vadd.f32 0.0, %v3868
      %v3870 = vpop.f32.mrf.mxu0
      %v3871 = vpop.f32.mrf.mxu0
      %v3872 = vadd.f32 0.0, %v3871
      %v3873 = vpop.f32.mrf.mxu0
      %3874 = vmatprep.mubr.bf16.mxu0 0
      %3875 = vmatmul.mubr.bf16.gmra.mxu0 %v3727
      %v3876 = vpop.f32.mrf.mxu0
      %v3877 = vadd.f32 0.0, %v3876
      %v3878 = vpop.f32.mrf.mxu0
      %v3879 = vpop.f32.mrf.mxu0
      %v3880 = vadd.f32 0.0, %v3879
      %v3881 = vpop.f32.mrf.mxu0
      %3882 = vmatprep.mubr.bf16.mxu0 0
      %3883 = vmatmul.mubr.bf16.gmra.mxu0 %v3728
      %v3884 = vpop.f32.mrf.mxu0
      %v3885 = vadd.f32 0.0, %v3884
      %v3886 = vpop.f32.mrf.mxu0
      %v3887 = vpop.f32.mrf.mxu0
      %v3888 = vadd.f32 0.0, %v3887
      %v3889 = vpop.f32.mrf.mxu0
      %3890 = vmatprep.mubr.bf16.mxu0 0
      %3891 = vmatmul.mubr.bf16.gmra.mxu0 %v3729
      %v3892 = vpop.f32.mrf.mxu0
      %v3893 = vadd.f32 0.0, %v3892
      %v3894 = vpop.f32.mrf.mxu0
      %v3895 = vpop.f32.mrf.mxu0
      %v3896 = vadd.f32 0.0, %v3895
      %v3897 = vpop.f32.mrf.mxu0
      %3898 = vmatprep.mubr.bf16.mxu0 0
      %3899 = vmatmul.mubr.bf16.gmra.mxu0 %v3730
      %v3900 = vpop.f32.mrf.mxu0
      %v3901 = vadd.f32 0.0, %v3900
      %v3902 = vpop.f32.mrf.mxu0
      %v3903 = vpop.f32.mrf.mxu0
      %v3904 = vadd.f32 0.0, %v3903
      %v3905 = vpop.f32.mrf.mxu0
      %3906 = vmatprep.mubr.bf16.mxu0 0
      %3907 = vmatmul.mubr.bf16.gmra.mxu0 %v3731
      %v3908 = vpop.f32.mrf.mxu0
      %v3909 = vadd.f32 0.0, %v3908
      %v3910 = vpop.f32.mrf.mxu0
      %v3911 = vpop.f32.mrf.mxu0
      %v3912 = vadd.f32 0.0, %v3911
      %v3913 = vpop.f32.mrf.mxu0
      %3914 = vmatprep.mubr.bf16.mxu0 0
      %3915 = vmatmul.mubr.bf16.gmra.mxu0 %v3732
      %v3916 = vpop.f32.mrf.mxu0
      %v3917 = vadd.f32 0.0, %v3916
      %v3918 = vpop.f32.mrf.mxu0
      %v3919 = vpop.f32.mrf.mxu0
      %v3920 = vadd.f32 0.0, %v3919
      %v3921 = vpop.f32.mrf.mxu0
      %3922 = vmatprep.mubr.bf16.mxu0 0
      %3923 = vmatmul.mubr.bf16.gmra.mxu0 %v3733
      %v3924 = vpop.f32.mrf.mxu0
      %v3925 = vadd.f32 0.0, %v3924
      %v3926 = vpop.f32.mrf.mxu0
      %v3927 = vpop.f32.mrf.mxu0
      %v3928 = vadd.f32 0.0, %v3927
      %v3929 = vpop.f32.mrf.mxu0
      %3930 = vmatprep.mubr.bf16.mxu0 0
      %3931 = vmatmul.mubr.bf16.gmra.mxu0 %v3734
      %v3932 = vpop.f32.mrf.mxu0
      %v3933 = vadd.f32 0.0, %v3932
      %v3934 = vpop.f32.mrf.mxu0
      %v3935 = vpop.f32.mrf.mxu0
      %v3936 = vadd.f32 0.0, %v3935
      %v3937 = vpop.f32.mrf.mxu0
      %3938 = vmatprep.mubr.bf16.mxu0 0
      %3939 = vmatmul.mubr.bf16.gmra.mxu0 %v3735
      %v3940 = vpop.f32.mrf.mxu0
      %v3941 = vadd.f32 0.0, %v3940
      %v3942 = vpop.f32.mrf.mxu0
      %v3943 = vpop.f32.mrf.mxu0
      %v3944 = vadd.f32 0.0, %v3943
      %v3945 = vpop.f32.mrf.mxu0
      %3946 = vmatprep.mubr.bf16.mxu0 0
      %3947 = vmatmul.mubr.bf16.gmra.mxu0 %v3736
      %v3948 = vpop.f32.mrf.mxu0
      %v3949 = vadd.f32 0.0, %v3948
      %v3950 = vpop.f32.mrf.mxu0
      %v3951 = vpop.f32.mrf.mxu0
      %v3952 = vadd.f32 0.0, %v3951
      %v3953 = vpop.f32.mrf.mxu0
      %3954 = vmatprep.mubr.bf16.mxu0 0
      %3955 = vmatmul.mubr.bf16.gmra.mxu0 %v3737
      %v3956 = vpop.f32.mrf.mxu0
      %v3957 = vadd.f32 0.0, %v3956
      %v3958 = vpop.f32.mrf.mxu0
      %v3959 = vpop.f32.mrf.mxu0
      %v3960 = vadd.f32 0.0, %v3959
      %v3961 = vpop.f32.mrf.mxu0
      %3962 = vdwg.mxu0
      %v3963 = vadd.f32 %v3465, %v3837
      %v3964 = vadd.f32 %v3466, %v3840
      %v3965 = vadd.f32 %v3467, %v3845
      %v3966 = vadd.f32 %v3468, %v3848
      %v3967 = vadd.f32 %v3469, %v3853
      %v3968 = vadd.f32 %v3470, %v3856
      %v3969 = vadd.f32 %v3471, %v3861
      %v3970 = vadd.f32 %v3472, %v3864
      %v3971 = vadd.f32 %v3473, %v3869
      %v3972 = vadd.f32 %v3474, %v3872
      %v3973 = vadd.f32 %v3475, %v3877
      %v3974 = vadd.f32 %v3476, %v3880
      %v3975 = vadd.f32 %v3477, %v3885
      %v3976 = vadd.f32 %v3478, %v3888
      %v3977 = vadd.f32 %v3479, %v3893
      %v3978 = vadd.f32 %v3480, %v3896
      %v3979 = vadd.f32 %v3481, %v3901
      %v3980 = vadd.f32 %v3482, %v3904
      %v3981 = vadd.f32 %v3483, %v3909
      %v3982 = vadd.f32 %v3484, %v3912
      %v3983 = vadd.f32 %v3485, %v3917
      %v3984 = vadd.f32 %v3486, %v3920
      %v3985 = vadd.f32 %v3487, %v3925
      %v3986 = vadd.f32 %v3488, %v3928
      %v3987 = vadd.f32 %v3489, %v3933
      %v3988 = vadd.f32 %v3490, %v3936
      %v3989 = vadd.f32 %v3491, %v3941
      %v3990 = vadd.f32 %v3492, %v3944
      %v3991 = vadd.f32 %v3493, %v3949
      %v3992 = vadd.f32 %v3494, %v3952
      %v3993 = vadd.f32 %v3495, %v3957
      %v3994 = vadd.f32 %v3496, %v3960
      %s3995 = scalar_lea.vmem [#allocation2], 24
      %v3996 = vld [vmem:[%s3995] sm:$0xf]
      %v3997 = vld [vmem:[%s3995 + $0x4] sm:$0xf]
      %v3998 = vld [vmem:[%s3995 + $0xc] sm:$0xf]
      %v3999 = vld [vmem:[%s3995 + $0x10] sm:$0xf]
      %v4000 = vld [vmem:[%s3995 + $0x18] sm:$0xf]
      %v4001 = vld [vmem:[%s3995 + $0x1c] sm:$0xf]
      %v4002 = vld [vmem:[%s3995 + $0x24] sm:$0xf]
      %v4003 = vld [vmem:[%s3995 + $0x28] sm:$0xf]
      %v4004 = vld [vmem:[%s3995 + $0x30] sm:$0xf]
      %v4005 = vld [vmem:[%s3995 + $0x34] sm:$0xf]
      %v4006 = vld [vmem:[%s3995 + $0x3c] sm:$0xf]
      %v4007 = vld [vmem:[%s3995 + $0x40] sm:$0xf]
      %v4008 = vld [vmem:[%s3995 + $0x48] sm:$0xf]
      %v4009 = vld [vmem:[%s3995 + $0x4c] sm:$0xf]
      %v4010 = vld [vmem:[%s3995 + $0x54] sm:$0xf]
      %v4011 = vld [vmem:[%s3995 + $0x58] sm:$0xf]
      %v4012 = vld [vmem:[%s3995 + $0x60] sm:$0xf]
      %v4013 = vld [vmem:[%s3995 + $0x64] sm:$0xf]
      %v4014 = vld [vmem:[%s3995 + $0x6c] sm:$0xf]
      %v4015 = vld [vmem:[%s3995 + $0x70] sm:$0xf]
      %v4016 = vld [vmem:[%s3995 + $0x78] sm:$0xf]
      %v4017 = vld [vmem:[%s3995 + $0x7c] sm:$0xf]
      %v4018 = vld [vmem:[%s3995 + $0x84] sm:$0xf]
      %v4019 = vld [vmem:[%s3995 + $0x88] sm:$0xf]
      %v4020 = vld [vmem:[%s3995 + $0x90] sm:$0xf]
      %v4021 = vld [vmem:[%s3995 + $0x94] sm:$0xf]
      %v4022 = vld [vmem:[%s3995 + $0x9c] sm:$0xf]
      %v4023 = vld [vmem:[%s3995 + $0xa0] sm:$0xf]
      %v4024 = vld [vmem:[%s3995 + $0xa8] sm:$0xf]
      %v4025 = vld [vmem:[%s3995 + $0xac] sm:$0xf]
      %v4026 = vld [vmem:[%s3995 + $0xb4] sm:$0xf]
      %v4027 = vld [vmem:[%s3995 + $0xb8] sm:$0xf]
      %s4028 = scalar_lea.vmem %s1, 384
      %v4029 = vld [vmem:[%s4028] sm:$0xf]
      %v4030 = vld [vmem:[%s4028 + $0x4] sm:$0xf]
      %v4031 = vld [vmem:[%s4028 + $0x8] sm:$0xf]
      %v4032 = vld [vmem:[%s4028 + $0xc] sm:$0xf]
      %v4033 = vld [vmem:[%s4028 + $0x10] sm:$0xf]
      %v4034 = vld [vmem:[%s4028 + $0x14] sm:$0xf]
      %v4035 = vld [vmem:[%s4028 + $0x18] sm:$0xf]
      %v4036 = vld [vmem:[%s4028 + $0x1c] sm:$0xf]
      %v4037 = vld [vmem:[%s4028 + $0x20] sm:$0xf]
      %v4038 = vld [vmem:[%s4028 + $0x24] sm:$0xf]
      %v4039 = vld [vmem:[%s4028 + $0x28] sm:$0xf]
      %v4040 = vld [vmem:[%s4028 + $0x2c] sm:$0xf]
      %v4041 = vld [vmem:[%s4028 + $0x30] sm:$0xf]
      %v4042 = vld [vmem:[%s4028 + $0x34] sm:$0xf]
      %v4043 = vld [vmem:[%s4028 + $0x38] sm:$0xf]
      %v4044 = vld [vmem:[%s4028 + $0x3c] sm:$0xf]
      %v4077 = vunpack.c.l.b16 %v3996
      %v4078 = vunpack.c.l.b16 %v3997
      %v4079 = vunpack.c.l.b16 %v3998
      %v4080 = vunpack.c.l.b16 %v3999
      %v4081 = vunpack.c.l.b16 %v4000
      %v4082 = vunpack.c.l.b16 %v4001
      %v4083 = vunpack.c.l.b16 %v4002
      %v4084 = vunpack.c.l.b16 %v4003
      %v4085 = vunpack.c.l.b16 %v4004
      %v4086 = vunpack.c.l.b16 %v4005
      %v4087 = vunpack.c.l.b16 %v4006
      %v4088 = vunpack.c.l.b16 %v4007
      %v4089 = vunpack.c.l.b16 %v4008
      %v4090 = vunpack.c.l.b16 %v4009
      %v4091 = vunpack.c.l.b16 %v4010
      %v4092 = vunpack.c.l.b16 %v4011
      %v4093 = vunpack.c.l.b16 %v4012
      %v4094 = vunpack.c.l.b16 %v4013
      %v4095 = vunpack.c.l.b16 %v4014
      %v4096 = vunpack.c.l.b16 %v4015
      %v4097 = vunpack.c.l.b16 %v4016
      %v4098 = vunpack.c.l.b16 %v4017
      %v4099 = vunpack.c.l.b16 %v4018
      %v4100 = vunpack.c.l.b16 %v4019
      %v4101 = vunpack.c.l.b16 %v4020
      %v4102 = vunpack.c.l.b16 %v4021
      %v4103 = vunpack.c.l.b16 %v4022
      %v4104 = vunpack.c.l.b16 %v4023
      %v4105 = vunpack.c.l.b16 %v4024
      %v4106 = vunpack.c.l.b16 %v4025
      %v4107 = vunpack.c.l.b16 %v4026
      %v4108 = vunpack.c.l.b16 %v4027
      %v4109 = vpack.c.b16 %v4078, %v4077
      %v4110 = vpack.c.b16 %v4080, %v4079
      %v4111 = vpack.c.b16 %v4082, %v4081
      %v4112 = vpack.c.b16 %v4084, %v4083
      %v4113 = vpack.c.b16 %v4086, %v4085
      %v4114 = vpack.c.b16 %v4088, %v4087
      %v4115 = vpack.c.b16 %v4090, %v4089
      %v4116 = vpack.c.b16 %v4092, %v4091
      %v4117 = vpack.c.b16 %v4094, %v4093
      %v4118 = vpack.c.b16 %v4096, %v4095
      %v4119 = vpack.c.b16 %v4098, %v4097
      %v4120 = vpack.c.b16 %v4100, %v4099
      %v4121 = vpack.c.b16 %v4102, %v4101
      %v4122 = vpack.c.b16 %v4104, %v4103
      %v4123 = vpack.c.b16 %v4106, %v4105
      %v4124 = vpack.c.b16 %v4108, %v4107
      %v4157 = vunpack.c.l.b16 %v4029
      %v4158 = vunpack.c.l.b16 %v4030
      %v4159 = vunpack.c.l.b16 %v4031
      %v4160 = vunpack.c.l.b16 %v4032
      %v4161 = vunpack.c.l.b16 %v4033
      %v4162 = vunpack.c.l.b16 %v4034
      %v4163 = vunpack.c.l.b16 %v4035
      %v4164 = vunpack.c.l.b16 %v4036
      %v4165 = vunpack.c.l.b16 %v4037
      %v4166 = vunpack.c.l.b16 %v4038
      %v4167 = vunpack.c.l.b16 %v4039
      %v4168 = vunpack.c.l.b16 %v4040
      %v4169 = vunpack.c.l.b16 %v4041
      %v4170 = vunpack.c.l.b16 %v4042
      %v4171 = vunpack.c.l.b16 %v4043
      %v4172 = vunpack.c.l.b16 %v4044
      %v4173 = vpack.c.b16 %v4158, %v4157
      %v4174 = vpack.c.b16 %v4160, %v4159
      %v4175 = vpack.c.b16 %v4162, %v4161
      %v4176 = vpack.c.b16 %v4164, %v4163
      %v4177 = vpack.c.b16 %v4166, %v4165
      %v4178 = vpack.c.b16 %v4168, %v4167
      %v4179 = vpack.c.b16 %v4170, %v4169
      %v4180 = vpack.c.b16 %v4172, %v4171
      %4189 = vmatprep.subr.bf16.mxu0 0
      %4190 = vmatpush1.bf16.msra.mxu0 %v4180
      %4191 = vmatprep.subr.bf16.mxu0 0
      %4192 = vmatpush1.bf16.msra.mxu0 %v4179
      %4193 = vmatprep.subr.bf16.mxu0 0
      %4194 = vmatpush1.bf16.msra.mxu0 %v4178
      %4195 = vmatprep.subr.bf16.mxu0 0
      %4196 = vmatpush1.bf16.msra.mxu0 %v4177
      %4197 = vmatprep.subr.bf16.mxu0 0
      %4198 = vmatpush1.bf16.msra.mxu0 %v4176
      %4199 = vmatprep.subr.bf16.mxu0 0
      %4200 = vmatpush1.bf16.msra.mxu0 %v4175
      %4201 = vmatprep.subr.bf16.mxu0 0
      %4202 = vmatpush1.bf16.msra.mxu0 %v4174
      %4203 = vmatprep.subr.bf16.mxu0 0
      %4204 = vmatpush1.bf16.msra.mxu0 %v4173
      %4205 = vmatprep.subr.bf16.mxu0 0
      %4206 = vmatpush2.bf16.msra.mxu0 0
      %4207 = vmatprep.subr.bf16.mxu0 0
      %4208 = vmatpush2.bf16.msra.mxu0 0
      %4209 = vmatprep.subr.bf16.mxu0 0
      %4210 = vmatpush2.bf16.msra.mxu0 0
      %4211 = vmatprep.subr.bf16.mxu0 0
      %4212 = vmatpush2.bf16.msra.mxu0 0
      %4213 = vmatprep.subr.bf16.mxu0 0
      %4214 = vmatpush2.bf16.msra.mxu0 0
      %4215 = vmatprep.subr.bf16.mxu0 0
      %4216 = vmatpush2.bf16.msra.mxu0 0
      %4217 = vmatprep.subr.bf16.mxu0 0
      %4218 = vmatpush2.bf16.msra.mxu0 0
      %4219 = vmatprep.subr.bf16.mxu0 0
      %4220 = vmatpush2.bf16.msra.mxu0 0
      %4221 = vmatprep.mubr.bf16.mxu0 0
      %4222 = vmatmul.mubr.bf16.gmra.mxu0 %v4109
      %v4223 = vpop.f32.mrf.mxu0
      %v4224 = vadd.f32 0.0, %v4223
      %v4225 = vpop.f32.mrf.mxu0
      %v4226 = vpop.f32.mrf.mxu0
      %v4227 = vadd.f32 0.0, %v4226
      %v4228 = vpop.f32.mrf.mxu0
      %4229 = vmatprep.mubr.bf16.mxu0 0
      %4230 = vmatmul.mubr.bf16.gmra.mxu0 %v4110
      %v4231 = vpop.f32.mrf.mxu0
      %v4232 = vadd.f32 0.0, %v4231
      %v4233 = vpop.f32.mrf.mxu0
      %v4234 = vpop.f32.mrf.mxu0
      %v4235 = vadd.f32 0.0, %v4234
      %v4236 = vpop.f32.mrf.mxu0
      %4237 = vmatprep.mubr.bf16.mxu0 0
      %4238 = vmatmul.mubr.bf16.gmra.mxu0 %v4111
      %v4239 = vpop.f32.mrf.mxu0
      %v4240 = vadd.f32 0.0, %v4239
      %v4241 = vpop.f32.mrf.mxu0
      %v4242 = vpop.f32.mrf.mxu0
      %v4243 = vadd.f32 0.0, %v4242
      %v4244 = vpop.f32.mrf.mxu0
      %4245 = vmatprep.mubr.bf16.mxu0 0
      %4246 = vmatmul.mubr.bf16.gmra.mxu0 %v4112
      %v4247 = vpop.f32.mrf.mxu0
      %v4248 = vadd.f32 0.0, %v4247
      %v4249 = vpop.f32.mrf.mxu0
      %v4250 = vpop.f32.mrf.mxu0
      %v4251 = vadd.f32 0.0, %v4250
      %v4252 = vpop.f32.mrf.mxu0
      %4253 = vmatprep.mubr.bf16.mxu0 0
      %4254 = vmatmul.mubr.bf16.gmra.mxu0 %v4113
      %v4255 = vpop.f32.mrf.mxu0
      %v4256 = vadd.f32 0.0, %v4255
      %v4257 = vpop.f32.mrf.mxu0
      %v4258 = vpop.f32.mrf.mxu0
      %v4259 = vadd.f32 0.0, %v4258
      %v4260 = vpop.f32.mrf.mxu0
      %4261 = vmatprep.mubr.bf16.mxu0 0
      %4262 = vmatmul.mubr.bf16.gmra.mxu0 %v4114
      %v4263 = vpop.f32.mrf.mxu0
      %v4264 = vadd.f32 0.0, %v4263
      %v4265 = vpop.f32.mrf.mxu0
      %v4266 = vpop.f32.mrf.mxu0
      %v4267 = vadd.f32 0.0, %v4266
      %v4268 = vpop.f32.mrf.mxu0
      %4269 = vmatprep.mubr.bf16.mxu0 0
      %4270 = vmatmul.mubr.bf16.gmra.mxu0 %v4115
      %v4271 = vpop.f32.mrf.mxu0
      %v4272 = vadd.f32 0.0, %v4271
      %v4273 = vpop.f32.mrf.mxu0
      %v4274 = vpop.f32.mrf.mxu0
      %v4275 = vadd.f32 0.0, %v4274
      %v4276 = vpop.f32.mrf.mxu0
      %4277 = vmatprep.mubr.bf16.mxu0 0
      %4278 = vmatmul.mubr.bf16.gmra.mxu0 %v4116
      %v4279 = vpop.f32.mrf.mxu0
      %v4280 = vadd.f32 0.0, %v4279
      %v4281 = vpop.f32.mrf.mxu0
      %v4282 = vpop.f32.mrf.mxu0
      %v4283 = vadd.f32 0.0, %v4282
      %v4284 = vpop.f32.mrf.mxu0
      %4285 = vmatprep.mubr.bf16.mxu0 0
      %4286 = vmatmul.mubr.bf16.gmra.mxu0 %v4117
      %v4287 = vpop.f32.mrf.mxu0
      %v4288 = vadd.f32 0.0, %v4287
      %v4289 = vpop.f32.mrf.mxu0
      %v4290 = vpop.f32.mrf.mxu0
      %v4291 = vadd.f32 0.0, %v4290
      %v4292 = vpop.f32.mrf.mxu0
      %4293 = vmatprep.mubr.bf16.mxu0 0
      %4294 = vmatmul.mubr.bf16.gmra.mxu0 %v4118
      %v4295 = vpop.f32.mrf.mxu0
      %v4296 = vadd.f32 0.0, %v4295
      %v4297 = vpop.f32.mrf.mxu0
      %v4298 = vpop.f32.mrf.mxu0
      %v4299 = vadd.f32 0.0, %v4298
      %v4300 = vpop.f32.mrf.mxu0
      %4301 = vmatprep.mubr.bf16.mxu0 0
      %4302 = vmatmul.mubr.bf16.gmra.mxu0 %v4119
      %v4303 = vpop.f32.mrf.mxu0
      %v4304 = vadd.f32 0.0, %v4303
      %v4305 = vpop.f32.mrf.mxu0
      %v4306 = vpop.f32.mrf.mxu0
      %v4307 = vadd.f32 0.0, %v4306
      %v4308 = vpop.f32.mrf.mxu0
      %4309 = vmatprep.mubr.bf16.mxu0 0
      %4310 = vmatmul.mubr.bf16.gmra.mxu0 %v4120
      %v4311 = vpop.f32.mrf.mxu0
      %v4312 = vadd.f32 0.0, %v4311
      %v4313 = vpop.f32.mrf.mxu0
      %v4314 = vpop.f32.mrf.mxu0
      %v4315 = vadd.f32 0.0, %v4314
      %v4316 = vpop.f32.mrf.mxu0
      %4317 = vmatprep.mubr.bf16.mxu0 0
      %4318 = vmatmul.mubr.bf16.gmra.mxu0 %v4121
      %v4319 = vpop.f32.mrf.mxu0
      %v4320 = vadd.f32 0.0, %v4319
      %v4321 = vpop.f32.mrf.mxu0
      %v4322 = vpop.f32.mrf.mxu0
      %v4323 = vadd.f32 0.0, %v4322
      %v4324 = vpop.f32.mrf.mxu0
      %4325 = vmatprep.mubr.bf16.mxu0 0
      %4326 = vmatmul.mubr.bf16.gmra.mxu0 %v4122
      %v4327 = vpop.f32.mrf.mxu0
      %v4328 = vadd.f32 0.0, %v4327
      %v4329 = vpop.f32.mrf.mxu0
      %v4330 = vpop.f32.mrf.mxu0
      %v4331 = vadd.f32 0.0, %v4330
      %v4332 = vpop.f32.mrf.mxu0
      %4333 = vmatprep.mubr.bf16.mxu0 0
      %4334 = vmatmul.mubr.bf16.gmra.mxu0 %v4123
      %v4335 = vpop.f32.mrf.mxu0
      %v4336 = vadd.f32 0.0, %v4335
      %v4337 = vpop.f32.mrf.mxu0
      %v4338 = vpop.f32.mrf.mxu0
      %v4339 = vadd.f32 0.0, %v4338
      %v4340 = vpop.f32.mrf.mxu0
      %4341 = vmatprep.mubr.bf16.mxu0 0
      %4342 = vmatmul.mubr.bf16.gmra.mxu0 %v4124
      %v4343 = vpop.f32.mrf.mxu0
      %v4344 = vadd.f32 0.0, %v4343
      %v4345 = vpop.f32.mrf.mxu0
      %v4346 = vpop.f32.mrf.mxu0
      %v4347 = vadd.f32 0.0, %v4346
      %v4348 = vpop.f32.mrf.mxu0
      %4349 = vdwg.mxu0
      %v4350 = vadd.f32 %v3963, %v4224
      %v4351 = vadd.f32 %v3964, %v4227
      %v4352 = vadd.f32 %v3965, %v4232
      %v4353 = vadd.f32 %v3966, %v4235
      %v4354 = vadd.f32 %v3967, %v4240
      %v4355 = vadd.f32 %v3968, %v4243
      %v4356 = vadd.f32 %v3969, %v4248
      %v4357 = vadd.f32 %v3970, %v4251
      %v4358 = vadd.f32 %v3971, %v4256
      %v4359 = vadd.f32 %v3972, %v4259
      %v4360 = vadd.f32 %v3973, %v4264
      %v4361 = vadd.f32 %v3974, %v4267
      %v4362 = vadd.f32 %v3975, %v4272
      %v4363 = vadd.f32 %v3976, %v4275
      %v4364 = vadd.f32 %v3977, %v4280
      %v4365 = vadd.f32 %v3978, %v4283
      %v4366 = vadd.f32 %v3979, %v4288
      %v4367 = vadd.f32 %v3980, %v4291
      %v4368 = vadd.f32 %v3981, %v4296
      %v4369 = vadd.f32 %v3982, %v4299
      %v4370 = vadd.f32 %v3983, %v4304
      %v4371 = vadd.f32 %v3984, %v4307
      %v4372 = vadd.f32 %v3985, %v4312
      %v4373 = vadd.f32 %v3986, %v4315
      %v4374 = vadd.f32 %v3987, %v4320
      %v4375 = vadd.f32 %v3988, %v4323
      %v4376 = vadd.f32 %v3989, %v4328
      %v4377 = vadd.f32 %v3990, %v4331
      %v4378 = vadd.f32 %v3991, %v4336
      %v4379 = vadd.f32 %v3992, %v4339
      %v4380 = vadd.f32 %v3993, %v4344
      %v4381 = vadd.f32 %v3994, %v4347
      %v4382 = vld [vmem:[%s3995] sm:$0xf]
      %v4383 = vld [vmem:[%s3995 + $0x4] sm:$0xf]
      %v4384 = vld [vmem:[%s3995 + $0x8] sm:$0x1]
      %v4385 = vld [vmem:[%s3995 + $0xc] sm:$0xf]
      %v4386 = vld [vmem:[%s3995 + $0x10] sm:$0xf]
      %v4387 = vld [vmem:[%s3995 + $0x14] sm:$0x1]
      %v4388 = vld [vmem:[%s3995 + $0x18] sm:$0xf]
      %v4389 = vld [vmem:[%s3995 + $0x1c] sm:$0xf]
      %v4390 = vld [vmem:[%s3995 + $0x20] sm:$0x1]
      %v4391 = vld [vmem:[%s3995 + $0x24] sm:$0xf]
      %v4392 = vld [vmem:[%s3995 + $0x28] sm:$0xf]
      %v4393 = vld [vmem:[%s3995 + $0x2c] sm:$0x1]
      %v4394 = vld [vmem:[%s3995 + $0x30] sm:$0xf]
      %v4395 = vld [vmem:[%s3995 + $0x34] sm:$0xf]
      %v4396 = vld [vmem:[%s3995 + $0x38] sm:$0x1]
      %v4397 = vld [vmem:[%s3995 + $0x3c] sm:$0xf]
      %v4398 = vld [vmem:[%s3995 + $0x40] sm:$0xf]
      %v4399 = vld [vmem:[%s3995 + $0x44] sm:$0x1]
      %v4400 = vld [vmem:[%s3995 + $0x48] sm:$0xf]
      %v4401 = vld [vmem:[%s3995 + $0x4c] sm:$0xf]
      %v4402 = vld [vmem:[%s3995 + $0x50] sm:$0x1]
      %v4403 = vld [vmem:[%s3995 + $0x54] sm:$0xf]
      %v4404 = vld [vmem:[%s3995 + $0x58] sm:$0xf]
      %v4405 = vld [vmem:[%s3995 + $0x5c] sm:$0x1]
      %v4406 = vld [vmem:[%s3995 + $0x60] sm:$0xf]
      %v4407 = vld [vmem:[%s3995 + $0x64] sm:$0xf]
      %v4408 = vld [vmem:[%s3995 + $0x68] sm:$0x1]
      %v4409 = vld [vmem:[%s3995 + $0x6c] sm:$0xf]
      %v4410 = vld [vmem:[%s3995 + $0x70] sm:$0xf]
      %v4411 = vld [vmem:[%s3995 + $0x74] sm:$0x1]
      %v4412 = vld [vmem:[%s3995 + $0x78] sm:$0xf]
      %v4413 = vld [vmem:[%s3995 + $0x7c] sm:$0xf]
      %v4414 = vld [vmem:[%s3995 + $0x80] sm:$0x1]
      %v4415 = vld [vmem:[%s3995 + $0x84] sm:$0xf]
      %v4416 = vld [vmem:[%s3995 + $0x88] sm:$0xf]
      %v4417 = vld [vmem:[%s3995 + $0x8c] sm:$0x1]
      %v4418 = vld [vmem:[%s3995 + $0x90] sm:$0xf]
      %v4419 = vld [vmem:[%s3995 + $0x94] sm:$0xf]
      %v4420 = vld [vmem:[%s3995 + $0x98] sm:$0x1]
      %v4421 = vld [vmem:[%s3995 + $0x9c] sm:$0xf]
      %v4422 = vld [vmem:[%s3995 + $0xa0] sm:$0xf]
      %v4423 = vld [vmem:[%s3995 + $0xa4] sm:$0x1]
      %v4424 = vld [vmem:[%s3995 + $0xa8] sm:$0xf]
      %v4425 = vld [vmem:[%s3995 + $0xac] sm:$0xf]
      %v4426 = vld [vmem:[%s3995 + $0xb0] sm:$0x1]
      %v4427 = vld [vmem:[%s3995 + $0xb4] sm:$0xf]
      %v4428 = vld [vmem:[%s3995 + $0xb8] sm:$0xf]
      %v4429 = vld [vmem:[%s3995 + $0xbc] sm:$0x1]
      %v4431 = vshrl.u32 %v4382, 16
      %v4433 = vrot.slane %v4431, 4
      %v4434 = vshll.u32 %v4382, 16
      %v4436 = vrot.slane %v4434, 5
      %v4437 = vor.u32 %v4433, %v4436
      %v4438 = vrot.slane %v4437, 4
      %v4440 = vshll.u32 %v4383, 16
      %v4442 = vrot.slane %v4440, 5
      %v4443 = vsel %vm892, %v4438, %v4442
      %v4444 = vshrl.u32 %v4383, 16
      %v4446 = vrot.slane %v4444, 4
      %v4447 = vor.u32 %v4446, %v4442
      %v4448 = vrot.slane %v4447, 4
      %v4450 = vshll.u32 %v4384, 16
      %v4452 = vrot.slane %v4450, 5
      %v4453 = vsel %vm892, %v4448, %v4452
      %v4455 = vshrl.u32 %v4385, 16
      %v4457 = vrot.slane %v4455, 4
      %v4458 = vshll.u32 %v4385, 16
      %v4460 = vrot.slane %v4458, 5
      %v4461 = vor.u32 %v4457, %v4460
      %v4462 = vrot.slane %v4461, 4
      %v4464 = vshll.u32 %v4386, 16
      %v4466 = vrot.slane %v4464, 5
      %v4467 = vsel %vm892, %v4462, %v4466
      %v4468 = vshrl.u32 %v4386, 16
      %v4470 = vrot.slane %v4468, 4
      %v4471 = vor.u32 %v4470, %v4466
      %v4472 = vrot.slane %v4471, 4
      %v4474 = vshll.u32 %v4387, 16
      %v4476 = vrot.slane %v4474, 5
      %v4477 = vsel %vm892, %v4472, %v4476
      %v4479 = vshrl.u32 %v4388, 16
      %v4481 = vrot.slane %v4479, 4
      %v4482 = vshll.u32 %v4388, 16
      %v4484 = vrot.slane %v4482, 5
      %v4485 = vor.u32 %v4481, %v4484
      %v4486 = vrot.slane %v4485, 4
      %v4488 = vshll.u32 %v4389, 16
      %v4490 = vrot.slane %v4488, 5
      %v4491 = vsel %vm892, %v4486, %v4490
      %v4492 = vshrl.u32 %v4389, 16
      %v4494 = vrot.slane %v4492, 4
      %v4495 = vor.u32 %v4494, %v4490
      %v4496 = vrot.slane %v4495, 4
      %v4498 = vshll.u32 %v4390, 16
      %v4500 = vrot.slane %v4498, 5
      %v4501 = vsel %vm892, %v4496, %v4500
      %v4503 = vshrl.u32 %v4391, 16
      %v4505 = vrot.slane %v4503, 4
      %v4506 = vshll.u32 %v4391, 16
      %v4508 = vrot.slane %v4506, 5
      %v4509 = vor.u32 %v4505, %v4508
      %v4510 = vrot.slane %v4509, 4
      %v4512 = vshll.u32 %v4392, 16
      %v4514 = vrot.slane %v4512, 5
      %v4515 = vsel %vm892, %v4510, %v4514
      %v4516 = vshrl.u32 %v4392, 16
      %v4518 = vrot.slane %v4516, 4
      %v4519 = vor.u32 %v4518, %v4514
      %v4520 = vrot.slane %v4519, 4
      %v4522 = vshll.u32 %v4393, 16
      %v4524 = vrot.slane %v4522, 5
      %v4525 = vsel %vm892, %v4520, %v4524
      %v4527 = vshrl.u32 %v4394, 16
      %v4529 = vrot.slane %v4527, 4
      %v4530 = vshll.u32 %v4394, 16
      %v4532 = vrot.slane %v4530, 5
      %v4533 = vor.u32 %v4529, %v4532
      %v4534 = vrot.slane %v4533, 4
      %v4536 = vshll.u32 %v4395, 16
      %v4538 = vrot.slane %v4536, 5
      %v4539 = vsel %vm892, %v4534, %v4538
      %v4540 = vshrl.u32 %v4395, 16
      %v4542 = vrot.slane %v4540, 4
      %v4543 = vor.u32 %v4542, %v4538
      %v4544 = vrot.slane %v4543, 4
      %v4546 = vshll.u32 %v4396, 16
      %v4548 = vrot.slane %v4546, 5
      %v4549 = vsel %vm892, %v4544, %v4548
      %v4551 = vshrl.u32 %v4397, 16
      %v4553 = vrot.slane %v4551, 4
      %v4554 = vshll.u32 %v4397, 16
      %v4556 = vrot.slane %v4554, 5
      %v4557 = vor.u32 %v4553, %v4556
      %v4558 = vrot.slane %v4557, 4
      %v4560 = vshll.u32 %v4398, 16
      %v4562 = vrot.slane %v4560, 5
      %v4563 = vsel %vm892, %v4558, %v4562
      %v4564 = vshrl.u32 %v4398, 16
      %v4566 = vrot.slane %v4564, 4
      %v4567 = vor.u32 %v4566, %v4562
      %v4568 = vrot.slane %v4567, 4
      %v4570 = vshll.u32 %v4399, 16
      %v4572 = vrot.slane %v4570, 5
      %v4573 = vsel %vm892, %v4568, %v4572
      %v4575 = vshrl.u32 %v4400, 16
      %v4577 = vrot.slane %v4575, 4
      %v4578 = vshll.u32 %v4400, 16
      %v4580 = vrot.slane %v4578, 5
      %v4581 = vor.u32 %v4577, %v4580
      %v4582 = vrot.slane %v4581, 4
      %v4584 = vshll.u32 %v4401, 16
      %v4586 = vrot.slane %v4584, 5
      %v4587 = vsel %vm892, %v4582, %v4586
      %v4588 = vshrl.u32 %v4401, 16
      %v4590 = vrot.slane %v4588, 4
      %v4591 = vor.u32 %v4590, %v4586
      %v4592 = vrot.slane %v4591, 4
      %v4594 = vshll.u32 %v4402, 16
      %v4596 = vrot.slane %v4594, 5
      %v4597 = vsel %vm892, %v4592, %v4596
      %v4599 = vshrl.u32 %v4403, 16
      %v4601 = vrot.slane %v4599, 4
      %v4602 = vshll.u32 %v4403, 16
      %v4604 = vrot.slane %v4602, 5
      %v4605 = vor.u32 %v4601, %v4604
      %v4606 = vrot.slane %v4605, 4
      %v4608 = vshll.u32 %v4404, 16
      %v4610 = vrot.slane %v4608, 5
      %v4611 = vsel %vm892, %v4606, %v4610
      %v4612 = vshrl.u32 %v4404, 16
      %v4614 = vrot.slane %v4612, 4
      %v4615 = vor.u32 %v4614, %v4610
      %v4616 = vrot.slane %v4615, 4
      %v4618 = vshll.u32 %v4405, 16
      %v4620 = vrot.slane %v4618, 5
      %v4621 = vsel %vm892, %v4616, %v4620
      %v4623 = vshrl.u32 %v4406, 16
      %v4625 = vrot.slane %v4623, 4
      %v4626 = vshll.u32 %v4406, 16
      %v4628 = vrot.slane %v4626, 5
      %v4629 = vor.u32 %v4625, %v4628
      %v4630 = vrot.slane %v4629, 4
      %v4632 = vshll.u32 %v4407, 16
      %v4634 = vrot.slane %v4632, 5
      %v4635 = vsel %vm892, %v4630, %v4634
      %v4636 = vshrl.u32 %v4407, 16
      %v4638 = vrot.slane %v4636, 4
      %v4639 = vor.u32 %v4638, %v4634
      %v4640 = vrot.slane %v4639, 4
      %v4642 = vshll.u32 %v4408, 16
      %v4644 = vrot.slane %v4642, 5
      %v4645 = vsel %vm892, %v4640, %v4644
      %v4647 = vshrl.u32 %v4409, 16
      %v4649 = vrot.slane %v4647, 4
      %v4650 = vshll.u32 %v4409, 16
      %v4652 = vrot.slane %v4650, 5
      %v4653 = vor.u32 %v4649, %v4652
      %v4654 = vrot.slane %v4653, 4
      %v4656 = vshll.u32 %v4410, 16
      %v4658 = vrot.slane %v4656, 5
      %v4659 = vsel %vm892, %v4654, %v4658
      %v4660 = vshrl.u32 %v4410, 16
      %v4662 = vrot.slane %v4660, 4
      %v4663 = vor.u32 %v4662, %v4658
      %v4664 = vrot.slane %v4663, 4
      %v4666 = vshll.u32 %v4411, 16
      %v4668 = vrot.slane %v4666, 5
      %v4669 = vsel %vm892, %v4664, %v4668
      %v4671 = vshrl.u32 %v4412, 16
      %v4673 = vrot.slane %v4671, 4
      %v4674 = vshll.u32 %v4412, 16
      %v4676 = vrot.slane %v4674, 5
      %v4677 = vor.u32 %v4673, %v4676
      %v4678 = vrot.slane %v4677, 4
      %v4680 = vshll.u32 %v4413, 16
      %v4682 = vrot.slane %v4680, 5
      %v4683 = vsel %vm892, %v4678, %v4682
      %v4684 = vshrl.u32 %v4413, 16
      %v4686 = vrot.slane %v4684, 4
      %v4687 = vor.u32 %v4686, %v4682
      %v4688 = vrot.slane %v4687, 4
      %v4690 = vshll.u32 %v4414, 16
      %v4692 = vrot.slane %v4690, 5
      %v4693 = vsel %vm892, %v4688, %v4692
      %v4695 = vshrl.u32 %v4415, 16
      %v4697 = vrot.slane %v4695, 4
      %v4698 = vshll.u32 %v4415, 16
      %v4700 = vrot.slane %v4698, 5
      %v4701 = vor.u32 %v4697, %v4700
      %v4702 = vrot.slane %v4701, 4
      %v4704 = vshll.u32 %v4416, 16
      %v4706 = vrot.slane %v4704, 5
      %v4707 = vsel %vm892, %v4702, %v4706
      %v4708 = vshrl.u32 %v4416, 16
      %v4710 = vrot.slane %v4708, 4
      %v4711 = vor.u32 %v4710, %v4706
      %v4712 = vrot.slane %v4711, 4
      %v4714 = vshll.u32 %v4417, 16
      %v4716 = vrot.slane %v4714, 5
      %v4717 = vsel %vm892, %v4712, %v4716
      %v4719 = vshrl.u32 %v4418, 16
      %v4721 = vrot.slane %v4719, 4
      %v4722 = vshll.u32 %v4418, 16
      %v4724 = vrot.slane %v4722, 5
      %v4725 = vor.u32 %v4721, %v4724
      %v4726 = vrot.slane %v4725, 4
      %v4728 = vshll.u32 %v4419, 16
      %v4730 = vrot.slane %v4728, 5
      %v4731 = vsel %vm892, %v4726, %v4730
      %v4732 = vshrl.u32 %v4419, 16
      %v4734 = vrot.slane %v4732, 4
      %v4735 = vor.u32 %v4734, %v4730
      %v4736 = vrot.slane %v4735, 4
      %v4738 = vshll.u32 %v4420, 16
      %v4740 = vrot.slane %v4738, 5
      %v4741 = vsel %vm892, %v4736, %v4740
      %v4743 = vshrl.u32 %v4421, 16
      %v4745 = vrot.slane %v4743, 4
      %v4746 = vshll.u32 %v4421, 16
      %v4748 = vrot.slane %v4746, 5
      %v4749 = vor.u32 %v4745, %v4748
      %v4750 = vrot.slane %v4749, 4
      %v4752 = vshll.u32 %v4422, 16
      %v4754 = vrot.slane %v4752, 5
      %v4755 = vsel %vm892, %v4750, %v4754
      %v4756 = vshrl.u32 %v4422, 16
      %v4758 = vrot.slane %v4756, 4
      %v4759 = vor.u32 %v4758, %v4754
      %v4760 = vrot.slane %v4759, 4
      %v4762 = vshll.u32 %v4423, 16
      %v4764 = vrot.slane %v4762, 5
      %v4765 = vsel %vm892, %v4760, %v4764
      %v4767 = vshrl.u32 %v4424, 16
      %v4769 = vrot.slane %v4767, 4
      %v4770 = vshll.u32 %v4424, 16
      %v4772 = vrot.slane %v4770, 5
      %v4773 = vor.u32 %v4769, %v4772
      %v4774 = vrot.slane %v4773, 4
      %v4776 = vshll.u32 %v4425, 16
      %v4778 = vrot.slane %v4776, 5
      %v4779 = vsel %vm892, %v4774, %v4778
      %v4780 = vshrl.u32 %v4425, 16
      %v4782 = vrot.slane %v4780, 4
      %v4783 = vor.u32 %v4782, %v4778
      %v4784 = vrot.slane %v4783, 4
      %v4786 = vshll.u32 %v4426, 16
      %v4788 = vrot.slane %v4786, 5
      %v4789 = vsel %vm892, %v4784, %v4788
      %v4791 = vshrl.u32 %v4427, 16
      %v4793 = vrot.slane %v4791, 4
      %v4794 = vshll.u32 %v4427, 16
      %v4796 = vrot.slane %v4794, 5
      %v4797 = vor.u32 %v4793, %v4796
      %v4798 = vrot.slane %v4797, 4
      %v4800 = vshll.u32 %v4428, 16
      %v4802 = vrot.slane %v4800, 5
      %v4803 = vsel %vm892, %v4798, %v4802
      %v4804 = vshrl.u32 %v4428, 16
      %v4806 = vrot.slane %v4804, 4
      %v4807 = vor.u32 %v4806, %v4802
      %v4808 = vrot.slane %v4807, 4
      %v4810 = vshll.u32 %v4429, 16
      %v4812 = vrot.slane %v4810, 5
      %v4813 = vsel %vm892, %v4808, %v4812
      %s4814 = scalar_lea.vmem %s1, 448
      %v4815 = vld [vmem:[%s4814] sm:$0xf]
      %v4816 = vld [vmem:[%s4814 + $0x4] sm:$0xf]
      %v4817 = vld [vmem:[%s4814 + $0x8] sm:$0xf]
      %v4818 = vld [vmem:[%s4814 + $0xc] sm:$0xf]
      %v4819 = vld [vmem:[%s4814 + $0x10] sm:$0xf]
      %v4820 = vld [vmem:[%s4814 + $0x14] sm:$0xf]
      %v4821 = vld [vmem:[%s4814 + $0x18] sm:$0xf]
      %v4822 = vld [vmem:[%s4814 + $0x1c] sm:$0xf]
      %v4823 = vld [vmem:[%s4814 + $0x20] sm:$0xf]
      %v4824 = vld [vmem:[%s4814 + $0x24] sm:$0xf]
      %v4825 = vld [vmem:[%s4814 + $0x28] sm:$0xf]
      %v4826 = vld [vmem:[%s4814 + $0x2c] sm:$0xf]
      %v4827 = vld [vmem:[%s4814 + $0x30] sm:$0xf]
      %v4828 = vld [vmem:[%s4814 + $0x34] sm:$0xf]
      %v4829 = vld [vmem:[%s4814 + $0x38] sm:$0xf]
      %v4830 = vld [vmem:[%s4814 + $0x3c] sm:$0xf]
      %v4831 = vunpack.c.l.b16 %v4443
      %v4832 = vunpack.c.l.b16 %v4453
      %v4833 = vunpack.c.l.b16 %v4467
      %v4834 = vunpack.c.l.b16 %v4477
      %v4835 = vunpack.c.l.b16 %v4491
      %v4836 = vunpack.c.l.b16 %v4501
      %v4837 = vunpack.c.l.b16 %v4515
      %v4838 = vunpack.c.l.b16 %v4525
      %v4839 = vunpack.c.l.b16 %v4539
      %v4840 = vunpack.c.l.b16 %v4549
      %v4841 = vunpack.c.l.b16 %v4563
      %v4842 = vunpack.c.l.b16 %v4573
      %v4843 = vunpack.c.l.b16 %v4587
      %v4844 = vunpack.c.l.b16 %v4597
      %v4845 = vunpack.c.l.b16 %v4611
      %v4846 = vunpack.c.l.b16 %v4621
      %v4847 = vunpack.c.l.b16 %v4635
      %v4848 = vunpack.c.l.b16 %v4645
      %v4849 = vunpack.c.l.b16 %v4659
      %v4850 = vunpack.c.l.b16 %v4669
      %v4851 = vunpack.c.l.b16 %v4683
      %v4852 = vunpack.c.l.b16 %v4693
      %v4853 = vunpack.c.l.b16 %v4707
      %v4854 = vunpack.c.l.b16 %v4717
      %v4855 = vunpack.c.l.b16 %v4731
      %v4856 = vunpack.c.l.b16 %v4741
      %v4857 = vunpack.c.l.b16 %v4755
      %v4858 = vunpack.c.l.b16 %v4765
      %v4859 = vunpack.c.l.b16 %v4779
      %v4860 = vunpack.c.l.b16 %v4789
      %v4861 = vunpack.c.l.b16 %v4803
      %v4862 = vunpack.c.l.b16 %v4813
      %v4863 = vpack.c.b16 %v4832, %v4831
      %v4864 = vpack.c.b16 %v4834, %v4833
      %v4865 = vpack.c.b16 %v4836, %v4835
      %v4866 = vpack.c.b16 %v4838, %v4837
      %v4867 = vpack.c.b16 %v4840, %v4839
      %v4868 = vpack.c.b16 %v4842, %v4841
      %v4869 = vpack.c.b16 %v4844, %v4843
      %v4870 = vpack.c.b16 %v4846, %v4845
      %v4871 = vpack.c.b16 %v4848, %v4847
      %v4872 = vpack.c.b16 %v4850, %v4849
      %v4873 = vpack.c.b16 %v4852, %v4851
      %v4874 = vpack.c.b16 %v4854, %v4853
      %v4875 = vpack.c.b16 %v4856, %v4855
      %v4876 = vpack.c.b16 %v4858, %v4857
      %v4877 = vpack.c.b16 %v4860, %v4859
      %v4878 = vpack.c.b16 %v4862, %v4861
      %v4911 = vunpack.c.l.b16 %v4815
      %v4912 = vunpack.c.l.b16 %v4816
      %v4913 = vunpack.c.l.b16 %v4817
      %v4914 = vunpack.c.l.b16 %v4818
      %v4915 = vunpack.c.l.b16 %v4819
      %v4916 = vunpack.c.l.b16 %v4820
      %v4917 = vunpack.c.l.b16 %v4821
      %v4918 = vunpack.c.l.b16 %v4822
      %v4919 = vunpack.c.l.b16 %v4823
      %v4920 = vunpack.c.l.b16 %v4824
      %v4921 = vunpack.c.l.b16 %v4825
      %v4922 = vunpack.c.l.b16 %v4826
      %v4923 = vunpack.c.l.b16 %v4827
      %v4924 = vunpack.c.l.b16 %v4828
      %v4925 = vunpack.c.l.b16 %v4829
      %v4926 = vunpack.c.l.b16 %v4830
      %v4927 = vpack.c.b16 %v4912, %v4911
      %v4928 = vpack.c.b16 %v4914, %v4913
      %v4929 = vpack.c.b16 %v4916, %v4915
      %v4930 = vpack.c.b16 %v4918, %v4917
      %v4931 = vpack.c.b16 %v4920, %v4919
      %v4932 = vpack.c.b16 %v4922, %v4921
      %v4933 = vpack.c.b16 %v4924, %v4923
      %v4934 = vpack.c.b16 %v4926, %v4925
      %4943 = vmatprep.subr.bf16.mxu0 0
      %4944 = vmatpush1.bf16.msra.mxu0 %v4934
      %4945 = vmatprep.subr.bf16.mxu0 0
      %4946 = vmatpush1.bf16.msra.mxu0 %v4933
      %4947 = vmatprep.subr.bf16.mxu0 0
      %4948 = vmatpush1.bf16.msra.mxu0 %v4932
      %4949 = vmatprep.subr.bf16.mxu0 0
      %4950 = vmatpush1.bf16.msra.mxu0 %v4931
      %4951 = vmatprep.subr.bf16.mxu0 0
      %4952 = vmatpush1.bf16.msra.mxu0 %v4930
      %4953 = vmatprep.subr.bf16.mxu0 0
      %4954 = vmatpush1.bf16.msra.mxu0 %v4929
      %4955 = vmatprep.subr.bf16.mxu0 0
      %4956 = vmatpush1.bf16.msra.mxu0 %v4928
      %4957 = vmatprep.subr.bf16.mxu0 0
      %4958 = vmatpush1.bf16.msra.mxu0 %v4927
      %4959 = vmatprep.subr.bf16.mxu0 0
      %4960 = vmatpush2.bf16.msra.mxu0 0
      %4961 = vmatprep.subr.bf16.mxu0 0
      %4962 = vmatpush2.bf16.msra.mxu0 0
      %4963 = vmatprep.subr.bf16.mxu0 0
      %4964 = vmatpush2.bf16.msra.mxu0 0
      %4965 = vmatprep.subr.bf16.mxu0 0
      %4966 = vmatpush2.bf16.msra.mxu0 0
      %4967 = vmatprep.subr.bf16.mxu0 0
      %4968 = vmatpush2.bf16.msra.mxu0 0
      %4969 = vmatprep.subr.bf16.mxu0 0
      %4970 = vmatpush2.bf16.msra.mxu0 0
      %4971 = vmatprep.subr.bf16.mxu0 0
      %4972 = vmatpush2.bf16.msra.mxu0 0
      %4973 = vmatprep.subr.bf16.mxu0 0
      %4974 = vmatpush2.bf16.msra.mxu0 0
      %4975 = vmatprep.mubr.bf16.mxu0 0
      %4976 = vmatmul.mubr.bf16.gmra.mxu0 %v4863
      %v4977 = vpop.f32.mrf.mxu0
      %v4978 = vadd.f32 0.0, %v4977
      %v4979 = vpop.f32.mrf.mxu0
      %v4980 = vpop.f32.mrf.mxu0
      %v4981 = vadd.f32 0.0, %v4980
      %v4982 = vpop.f32.mrf.mxu0
      %4983 = vmatprep.mubr.bf16.mxu0 0
      %4984 = vmatmul.mubr.bf16.gmra.mxu0 %v4864
      %v4985 = vpop.f32.mrf.mxu0
      %v4986 = vadd.f32 0.0, %v4985
      %v4987 = vpop.f32.mrf.mxu0
      %v4988 = vpop.f32.mrf.mxu0
      %v4989 = vadd.f32 0.0, %v4988
      %v4990 = vpop.f32.mrf.mxu0
      %4991 = vmatprep.mubr.bf16.mxu0 0
      %4992 = vmatmul.mubr.bf16.gmra.mxu0 %v4865
      %v4993 = vpop.f32.mrf.mxu0
      %v4994 = vadd.f32 0.0, %v4993
      %v4995 = vpop.f32.mrf.mxu0
      %v4996 = vpop.f32.mrf.mxu0
      %v4997 = vadd.f32 0.0, %v4996
      %v4998 = vpop.f32.mrf.mxu0
      %4999 = vmatprep.mubr.bf16.mxu0 0
      %5000 = vmatmul.mubr.bf16.gmra.mxu0 %v4866
      %v5001 = vpop.f32.mrf.mxu0
      %v5002 = vadd.f32 0.0, %v5001
      %v5003 = vpop.f32.mrf.mxu0
      %v5004 = vpop.f32.mrf.mxu0
      %v5005 = vadd.f32 0.0, %v5004
      %v5006 = vpop.f32.mrf.mxu0
      %5007 = vmatprep.mubr.bf16.mxu0 0
      %5008 = vmatmul.mubr.bf16.gmra.mxu0 %v4867
      %v5009 = vpop.f32.mrf.mxu0
      %v5010 = vadd.f32 0.0, %v5009
      %v5011 = vpop.f32.mrf.mxu0
      %v5012 = vpop.f32.mrf.mxu0
      %v5013 = vadd.f32 0.0, %v5012
      %v5014 = vpop.f32.mrf.mxu0
      %5015 = vmatprep.mubr.bf16.mxu0 0
      %5016 = vmatmul.mubr.bf16.gmra.mxu0 %v4868
      %v5017 = vpop.f32.mrf.mxu0
      %v5018 = vadd.f32 0.0, %v5017
      %v5019 = vpop.f32.mrf.mxu0
      %v5020 = vpop.f32.mrf.mxu0
      %v5021 = vadd.f32 0.0, %v5020
      %v5022 = vpop.f32.mrf.mxu0
      %5023 = vmatprep.mubr.bf16.mxu0 0
      %5024 = vmatmul.mubr.bf16.gmra.mxu0 %v4869
      %v5025 = vpop.f32.mrf.mxu0
      %v5026 = vadd.f32 0.0, %v5025
      %v5027 = vpop.f32.mrf.mxu0
      %v5028 = vpop.f32.mrf.mxu0
      %v5029 = vadd.f32 0.0, %v5028
      %v5030 = vpop.f32.mrf.mxu0
      %5031 = vmatprep.mubr.bf16.mxu0 0
      %5032 = vmatmul.mubr.bf16.gmra.mxu0 %v4870
      %v5033 = vpop.f32.mrf.mxu0
      %v5034 = vadd.f32 0.0, %v5033
      %v5035 = vpop.f32.mrf.mxu0
      %v5036 = vpop.f32.mrf.mxu0
      %v5037 = vadd.f32 0.0, %v5036
      %v5038 = vpop.f32.mrf.mxu0
      %5039 = vmatprep.mubr.bf16.mxu0 0
      %5040 = vmatmul.mubr.bf16.gmra.mxu0 %v4871
      %v5041 = vpop.f32.mrf.mxu0
      %v5042 = vadd.f32 0.0, %v5041
      %v5043 = vpop.f32.mrf.mxu0
      %v5044 = vpop.f32.mrf.mxu0
      %v5045 = vadd.f32 0.0, %v5044
      %v5046 = vpop.f32.mrf.mxu0
      %5047 = vmatprep.mubr.bf16.mxu0 0
      %5048 = vmatmul.mubr.bf16.gmra.mxu0 %v4872
      %v5049 = vpop.f32.mrf.mxu0
      %v5050 = vadd.f32 0.0, %v5049
      %v5051 = vpop.f32.mrf.mxu0
      %v5052 = vpop.f32.mrf.mxu0
      %v5053 = vadd.f32 0.0, %v5052
      %v5054 = vpop.f32.mrf.mxu0
      %5055 = vmatprep.mubr.bf16.mxu0 0
      %5056 = vmatmul.mubr.bf16.gmra.mxu0 %v4873
      %v5057 = vpop.f32.mrf.mxu0
      %v5058 = vadd.f32 0.0, %v5057
      %v5059 = vpop.f32.mrf.mxu0
      %v5060 = vpop.f32.mrf.mxu0
      %v5061 = vadd.f32 0.0, %v5060
      %v5062 = vpop.f32.mrf.mxu0
      %5063 = vmatprep.mubr.bf16.mxu0 0
      %5064 = vmatmul.mubr.bf16.gmra.mxu0 %v4874
      %v5065 = vpop.f32.mrf.mxu0
      %v5066 = vadd.f32 0.0, %v5065
      %v5067 = vpop.f32.mrf.mxu0
      %v5068 = vpop.f32.mrf.mxu0
      %v5069 = vadd.f32 0.0, %v5068
      %v5070 = vpop.f32.mrf.mxu0
      %5071 = vmatprep.mubr.bf16.mxu0 0
      %5072 = vmatmul.mubr.bf16.gmra.mxu0 %v4875
      %v5073 = vpop.f32.mrf.mxu0
      %v5074 = vadd.f32 0.0, %v5073
      %v5075 = vpop.f32.mrf.mxu0
      %v5076 = vpop.f32.mrf.mxu0
      %v5077 = vadd.f32 0.0, %v5076
      %v5078 = vpop.f32.mrf.mxu0
      %5079 = vmatprep.mubr.bf16.mxu0 0
      %5080 = vmatmul.mubr.bf16.gmra.mxu0 %v4876
      %v5081 = vpop.f32.mrf.mxu0
      %v5082 = vadd.f32 0.0, %v5081
      %v5083 = vpop.f32.mrf.mxu0
      %v5084 = vpop.f32.mrf.mxu0
      %v5085 = vadd.f32 0.0, %v5084
      %v5086 = vpop.f32.mrf.mxu0
      %5087 = vmatprep.mubr.bf16.mxu0 0
      %5088 = vmatmul.mubr.bf16.gmra.mxu0 %v4877
      %v5089 = vpop.f32.mrf.mxu0
      %v5090 = vadd.f32 0.0, %v5089
      %v5091 = vpop.f32.mrf.mxu0
      %v5092 = vpop.f32.mrf.mxu0
      %v5093 = vadd.f32 0.0, %v5092
      %v5094 = vpop.f32.mrf.mxu0
      %5095 = vmatprep.mubr.bf16.mxu0 0
      %5096 = vmatmul.mubr.bf16.gmra.mxu0 %v4878
      %v5097 = vpop.f32.mrf.mxu0
      %v5098 = vadd.f32 0.0, %v5097
      %v5099 = vpop.f32.mrf.mxu0
      %v5100 = vpop.f32.mrf.mxu0
      %v5101 = vadd.f32 0.0, %v5100
      %v5102 = vpop.f32.mrf.mxu0
      %5103 = vdwg.mxu0
      %v5104 = vadd.f32 %v4350, %v4978
      %v5105 = vadd.f32 %v4351, %v4981
      %v5106 = vadd.f32 %v4352, %v4986
      %v5107 = vadd.f32 %v4353, %v4989
      %v5108 = vadd.f32 %v4354, %v4994
      %v5109 = vadd.f32 %v4355, %v4997
      %v5110 = vadd.f32 %v4356, %v5002
      %v5111 = vadd.f32 %v4357, %v5005
      %v5112 = vadd.f32 %v4358, %v5010
      %v5113 = vadd.f32 %v4359, %v5013
      %v5114 = vadd.f32 %v4360, %v5018
      %v5115 = vadd.f32 %v4361, %v5021
      %v5116 = vadd.f32 %v4362, %v5026
      %v5117 = vadd.f32 %v4363, %v5029
      %v5118 = vadd.f32 %v4364, %v5034
      %v5119 = vadd.f32 %v4365, %v5037
      %v5120 = vadd.f32 %v4366, %v5042
      %v5121 = vadd.f32 %v4367, %v5045
      %v5122 = vadd.f32 %v4368, %v5050
      %v5123 = vadd.f32 %v4369, %v5053
      %v5124 = vadd.f32 %v4370, %v5058
      %v5125 = vadd.f32 %v4371, %v5061
      %v5126 = vadd.f32 %v4372, %v5066
      %v5127 = vadd.f32 %v4373, %v5069
      %v5128 = vadd.f32 %v4374, %v5074
      %v5129 = vadd.f32 %v4375, %v5077
      %v5130 = vadd.f32 %v4376, %v5082
      %v5131 = vadd.f32 %v4377, %v5085
      %v5132 = vadd.f32 %v4378, %v5090
      %v5133 = vadd.f32 %v4379, %v5093
      %v5134 = vadd.f32 %v4380, %v5098
      %v5135 = vadd.f32 %v4381, %v5101
      %v5136 = vld [vmem:[%s3995] sm:$0xe]
      %v5137 = vld [vmem:[%s3995 + $0xc] sm:$0xe]
      %v5138 = vld [vmem:[%s3995 + $0x18] sm:$0xe]
      %v5139 = vld [vmem:[%s3995 + $0x24] sm:$0xe]
      %v5140 = vld [vmem:[%s3995 + $0x30] sm:$0xe]
      %v5141 = vld [vmem:[%s3995 + $0x3c] sm:$0xe]
      %v5142 = vld [vmem:[%s3995 + $0x48] sm:$0xe]
      %v5143 = vld [vmem:[%s3995 + $0x54] sm:$0xe]
      %v5144 = vld [vmem:[%s3995 + $0x60] sm:$0xe]
      %v5145 = vld [vmem:[%s3995 + $0x6c] sm:$0xe]
      %v5146 = vld [vmem:[%s3995 + $0x78] sm:$0xe]
      %v5147 = vld [vmem:[%s3995 + $0x84] sm:$0xe]
      %v5148 = vld [vmem:[%s3995 + $0x90] sm:$0xe]
      %v5149 = vld [vmem:[%s3995 + $0x9c] sm:$0xe]
      %v5150 = vld [vmem:[%s3995 + $0xa8] sm:$0xe]
      %v5151 = vld [vmem:[%s3995 + $0xb4] sm:$0xe]
      %v5200 = vrot.slane %v5136, 5
      %v5201 = vrot.slane %v5200, 4
      %v5202 = vrot.slane %v4383, 5
      %v5203 = vsel %vm1922, %v5201, %v5202
      %v5204 = vrot.slane %v5202, 4
      %v5205 = vrot.slane %v4384, 5
      %v5206 = vsel %vm1922, %v5204, %v5205
      %v5207 = vrot.slane %v5137, 5
      %v5208 = vrot.slane %v5207, 4
      %v5209 = vrot.slane %v4386, 5
      %v5210 = vsel %vm1922, %v5208, %v5209
      %v5211 = vrot.slane %v5209, 4
      %v5212 = vrot.slane %v4387, 5
      %v5213 = vsel %vm1922, %v5211, %v5212
      %v5214 = vrot.slane %v5138, 5
      %v5215 = vrot.slane %v5214, 4
      %v5216 = vrot.slane %v4389, 5
      %v5217 = vsel %vm1922, %v5215, %v5216
      %v5218 = vrot.slane %v5216, 4
      %v5219 = vrot.slane %v4390, 5
      %v5220 = vsel %vm1922, %v5218, %v5219
      %v5221 = vrot.slane %v5139, 5
      %v5222 = vrot.slane %v5221, 4
      %v5223 = vrot.slane %v4392, 5
      %v5224 = vsel %vm1922, %v5222, %v5223
      %v5225 = vrot.slane %v5223, 4
      %v5226 = vrot.slane %v4393, 5
      %v5227 = vsel %vm1922, %v5225, %v5226
      %v5228 = vrot.slane %v5140, 5
      %v5229 = vrot.slane %v5228, 4
      %v5230 = vrot.slane %v4395, 5
      %v5231 = vsel %vm1922, %v5229, %v5230
      %v5232 = vrot.slane %v5230, 4
      %v5233 = vrot.slane %v4396, 5
      %v5234 = vsel %vm1922, %v5232, %v5233
      %v5235 = vrot.slane %v5141, 5
      %v5236 = vrot.slane %v5235, 4
      %v5237 = vrot.slane %v4398, 5
      %v5238 = vsel %vm1922, %v5236, %v5237
      %v5239 = vrot.slane %v5237, 4
      %v5240 = vrot.slane %v4399, 5
      %v5241 = vsel %vm1922, %v5239, %v5240
      %v5242 = vrot.slane %v5142, 5
      %v5243 = vrot.slane %v5242, 4
      %v5244 = vrot.slane %v4401, 5
      %v5245 = vsel %vm1922, %v5243, %v5244
      %v5246 = vrot.slane %v5244, 4
      %v5247 = vrot.slane %v4402, 5
      %v5248 = vsel %vm1922, %v5246, %v5247
      %v5249 = vrot.slane %v5143, 5
      %v5250 = vrot.slane %v5249, 4
      %v5251 = vrot.slane %v4404, 5
      %v5252 = vsel %vm1922, %v5250, %v5251
      %v5253 = vrot.slane %v5251, 4
      %v5254 = vrot.slane %v4405, 5
      %v5255 = vsel %vm1922, %v5253, %v5254
      %v5256 = vrot.slane %v5144, 5
      %v5257 = vrot.slane %v5256, 4
      %v5258 = vrot.slane %v4407, 5
      %v5259 = vsel %vm1922, %v5257, %v5258
      %v5260 = vrot.slane %v5258, 4
      %v5261 = vrot.slane %v4408, 5
      %v5262 = vsel %vm1922, %v5260, %v5261
      %v5263 = vrot.slane %v5145, 5
      %v5264 = vrot.slane %v5263, 4
      %v5265 = vrot.slane %v4410, 5
      %v5266 = vsel %vm1922, %v5264, %v5265
      %v5267 = vrot.slane %v5265, 4
      %v5268 = vrot.slane %v4411, 5
      %v5269 = vsel %vm1922, %v5267, %v5268
      %v5270 = vrot.slane %v5146, 5
      %v5271 = vrot.slane %v5270, 4
      %v5272 = vrot.slane %v4413, 5
      %v5273 = vsel %vm1922, %v5271, %v5272
      %v5274 = vrot.slane %v5272, 4
      %v5275 = vrot.slane %v4414, 5
      %v5276 = vsel %vm1922, %v5274, %v5275
      %v5277 = vrot.slane %v5147, 5
      %v5278 = vrot.slane %v5277, 4
      %v5279 = vrot.slane %v4416, 5
      %v5280 = vsel %vm1922, %v5278, %v5279
      %v5281 = vrot.slane %v5279, 4
      %v5282 = vrot.slane %v4417, 5
      %v5283 = vsel %vm1922, %v5281, %v5282
      %v5284 = vrot.slane %v5148, 5
      %v5285 = vrot.slane %v5284, 4
      %v5286 = vrot.slane %v4419, 5
      %v5287 = vsel %vm1922, %v5285, %v5286
      %v5288 = vrot.slane %v5286, 4
      %v5289 = vrot.slane %v4420, 5
      %v5290 = vsel %vm1922, %v5288, %v5289
      %v5291 = vrot.slane %v5149, 5
      %v5292 = vrot.slane %v5291, 4
      %v5293 = vrot.slane %v4422, 5
      %v5294 = vsel %vm1922, %v5292, %v5293
      %v5295 = vrot.slane %v5293, 4
      %v5296 = vrot.slane %v4423, 5
      %v5297 = vsel %vm1922, %v5295, %v5296
      %v5298 = vrot.slane %v5150, 5
      %v5299 = vrot.slane %v5298, 4
      %v5300 = vrot.slane %v4425, 5
      %v5301 = vsel %vm1922, %v5299, %v5300
      %v5302 = vrot.slane %v5300, 4
      %v5303 = vrot.slane %v4426, 5
      %v5304 = vsel %vm1922, %v5302, %v5303
      %v5305 = vrot.slane %v5151, 5
      %v5306 = vrot.slane %v5305, 4
      %v5307 = vrot.slane %v4428, 5
      %v5308 = vsel %vm1922, %v5306, %v5307
      %v5309 = vrot.slane %v5307, 4
      %v5310 = vrot.slane %v4429, 5
      %v5311 = vsel %vm1922, %v5309, %v5310
      %s5312 = scalar_lea.vmem %s1, 512
      %v5313 = vld [vmem:[%s5312] sm:$0xf]
      %v5314 = vld [vmem:[%s5312 + $0x4] sm:$0xf]
      %v5315 = vld [vmem:[%s5312 + $0x8] sm:$0xf]
      %v5316 = vld [vmem:[%s5312 + $0xc] sm:$0xf]
      %v5317 = vld [vmem:[%s5312 + $0x10] sm:$0xf]
      %v5318 = vld [vmem:[%s5312 + $0x14] sm:$0xf]
      %v5319 = vld [vmem:[%s5312 + $0x18] sm:$0xf]
      %v5320 = vld [vmem:[%s5312 + $0x1c] sm:$0xf]
      %v5321 = vld [vmem:[%s5312 + $0x20] sm:$0xf]
      %v5322 = vld [vmem:[%s5312 + $0x24] sm:$0xf]
      %v5323 = vld [vmem:[%s5312 + $0x28] sm:$0xf]
      %v5324 = vld [vmem:[%s5312 + $0x2c] sm:$0xf]
      %v5325 = vld [vmem:[%s5312 + $0x30] sm:$0xf]
      %v5326 = vld [vmem:[%s5312 + $0x34] sm:$0xf]
      %v5327 = vld [vmem:[%s5312 + $0x38] sm:$0xf]
      %v5328 = vld [vmem:[%s5312 + $0x3c] sm:$0xf]
      %v5329 = vunpack.c.l.b16 %v5203
      %v5330 = vunpack.c.l.b16 %v5206
      %v5331 = vunpack.c.l.b16 %v5210
      %v5332 = vunpack.c.l.b16 %v5213
      %v5333 = vunpack.c.l.b16 %v5217
      %v5334 = vunpack.c.l.b16 %v5220
      %v5335 = vunpack.c.l.b16 %v5224
      %v5336 = vunpack.c.l.b16 %v5227
      %v5337 = vunpack.c.l.b16 %v5231
      %v5338 = vunpack.c.l.b16 %v5234
      %v5339 = vunpack.c.l.b16 %v5238
      %v5340 = vunpack.c.l.b16 %v5241
      %v5341 = vunpack.c.l.b16 %v5245
      %v5342 = vunpack.c.l.b16 %v5248
      %v5343 = vunpack.c.l.b16 %v5252
      %v5344 = vunpack.c.l.b16 %v5255
      %v5345 = vunpack.c.l.b16 %v5259
      %v5346 = vunpack.c.l.b16 %v5262
      %v5347 = vunpack.c.l.b16 %v5266
      %v5348 = vunpack.c.l.b16 %v5269
      %v5349 = vunpack.c.l.b16 %v5273
      %v5350 = vunpack.c.l.b16 %v5276
      %v5351 = vunpack.c.l.b16 %v5280
      %v5352 = vunpack.c.l.b16 %v5283
      %v5353 = vunpack.c.l.b16 %v5287
      %v5354 = vunpack.c.l.b16 %v5290
      %v5355 = vunpack.c.l.b16 %v5294
      %v5356 = vunpack.c.l.b16 %v5297
      %v5357 = vunpack.c.l.b16 %v5301
      %v5358 = vunpack.c.l.b16 %v5304
      %v5359 = vunpack.c.l.b16 %v5308
      %v5360 = vunpack.c.l.b16 %v5311
      %v5361 = vpack.c.b16 %v5330, %v5329
      %v5362 = vpack.c.b16 %v5332, %v5331
      %v5363 = vpack.c.b16 %v5334, %v5333
      %v5364 = vpack.c.b16 %v5336, %v5335
      %v5365 = vpack.c.b16 %v5338, %v5337
      %v5366 = vpack.c.b16 %v5340, %v5339
      %v5367 = vpack.c.b16 %v5342, %v5341
      %v5368 = vpack.c.b16 %v5344, %v5343
      %v5369 = vpack.c.b16 %v5346, %v5345
      %v5370 = vpack.c.b16 %v5348, %v5347
      %v5371 = vpack.c.b16 %v5350, %v5349
      %v5372 = vpack.c.b16 %v5352, %v5351
      %v5373 = vpack.c.b16 %v5354, %v5353
      %v5374 = vpack.c.b16 %v5356, %v5355
      %v5375 = vpack.c.b16 %v5358, %v5357
      %v5376 = vpack.c.b16 %v5360, %v5359
      %v5409 = vunpack.c.l.b16 %v5313
      %v5410 = vunpack.c.l.b16 %v5314
      %v5411 = vunpack.c.l.b16 %v5315
      %v5412 = vunpack.c.l.b16 %v5316
      %v5413 = vunpack.c.l.b16 %v5317
      %v5414 = vunpack.c.l.b16 %v5318
      %v5415 = vunpack.c.l.b16 %v5319
      %v5416 = vunpack.c.l.b16 %v5320
      %v5417 = vunpack.c.l.b16 %v5321
      %v5418 = vunpack.c.l.b16 %v5322
      %v5419 = vunpack.c.l.b16 %v5323
      %v5420 = vunpack.c.l.b16 %v5324
      %v5421 = vunpack.c.l.b16 %v5325
      %v5422 = vunpack.c.l.b16 %v5326
      %v5423 = vunpack.c.l.b16 %v5327
      %v5424 = vunpack.c.l.b16 %v5328
      %v5425 = vpack.c.b16 %v5410, %v5409
      %v5426 = vpack.c.b16 %v5412, %v5411
      %v5427 = vpack.c.b16 %v5414, %v5413
      %v5428 = vpack.c.b16 %v5416, %v5415
      %v5429 = vpack.c.b16 %v5418, %v5417
      %v5430 = vpack.c.b16 %v5420, %v5419
      %v5431 = vpack.c.b16 %v5422, %v5421
      %v5432 = vpack.c.b16 %v5424, %v5423
      %5441 = vmatprep.subr.bf16.mxu0 0
      %5442 = vmatpush1.bf16.msra.mxu0 %v5432
      %5443 = vmatprep.subr.bf16.mxu0 0
      %5444 = vmatpush1.bf16.msra.mxu0 %v5431
      %5445 = vmatprep.subr.bf16.mxu0 0
      %5446 = vmatpush1.bf16.msra.mxu0 %v5430
      %5447 = vmatprep.subr.bf16.mxu0 0
      %5448 = vmatpush1.bf16.msra.mxu0 %v5429
      %5449 = vmatprep.subr.bf16.mxu0 0
      %5450 = vmatpush1.bf16.msra.mxu0 %v5428
      %5451 = vmatprep.subr.bf16.mxu0 0
      %5452 = vmatpush1.bf16.msra.mxu0 %v5427
      %5453 = vmatprep.subr.bf16.mxu0 0
      %5454 = vmatpush1.bf16.msra.mxu0 %v5426
      %5455 = vmatprep.subr.bf16.mxu0 0
      %5456 = vmatpush1.bf16.msra.mxu0 %v5425
      %5457 = vmatprep.subr.bf16.mxu0 0
      %5458 = vmatpush2.bf16.msra.mxu0 0
      %5459 = vmatprep.subr.bf16.mxu0 0
      %5460 = vmatpush2.bf16.msra.mxu0 0
      %5461 = vmatprep.subr.bf16.mxu0 0
      %5462 = vmatpush2.bf16.msra.mxu0 0
      %5463 = vmatprep.subr.bf16.mxu0 0
      %5464 = vmatpush2.bf16.msra.mxu0 0
      %5465 = vmatprep.subr.bf16.mxu0 0
      %5466 = vmatpush2.bf16.msra.mxu0 0
      %5467 = vmatprep.subr.bf16.mxu0 0
      %5468 = vmatpush2.bf16.msra.mxu0 0
      %5469 = vmatprep.subr.bf16.mxu0 0
      %5470 = vmatpush2.bf16.msra.mxu0 0
      %5471 = vmatprep.subr.bf16.mxu0 0
      %5472 = vmatpush2.bf16.msra.mxu0 0
      %5473 = vmatprep.mubr.bf16.mxu0 0
      %5474 = vmatmul.mubr.bf16.gmra.mxu0 %v5361
      %v5475 = vpop.f32.mrf.mxu0
      %v5476 = vadd.f32 0.0, %v5475
      %v5477 = vpop.f32.mrf.mxu0
      %v5478 = vpop.f32.mrf.mxu0
      %v5479 = vadd.f32 0.0, %v5478
      %v5480 = vpop.f32.mrf.mxu0
      %5481 = vmatprep.mubr.bf16.mxu0 0
      %5482 = vmatmul.mubr.bf16.gmra.mxu0 %v5362
      %v5483 = vpop.f32.mrf.mxu0
      %v5484 = vadd.f32 0.0, %v5483
      %v5485 = vpop.f32.mrf.mxu0
      %v5486 = vpop.f32.mrf.mxu0
      %v5487 = vadd.f32 0.0, %v5486
      %v5488 = vpop.f32.mrf.mxu0
      %5489 = vmatprep.mubr.bf16.mxu0 0
      %5490 = vmatmul.mubr.bf16.gmra.mxu0 %v5363
      %v5491 = vpop.f32.mrf.mxu0
      %v5492 = vadd.f32 0.0, %v5491
      %v5493 = vpop.f32.mrf.mxu0
      %v5494 = vpop.f32.mrf.mxu0
      %v5495 = vadd.f32 0.0, %v5494
      %v5496 = vpop.f32.mrf.mxu0
      %5497 = vmatprep.mubr.bf16.mxu0 0
      %5498 = vmatmul.mubr.bf16.gmra.mxu0 %v5364
      %v5499 = vpop.f32.mrf.mxu0
      %v5500 = vadd.f32 0.0, %v5499
      %v5501 = vpop.f32.mrf.mxu0
      %v5502 = vpop.f32.mrf.mxu0
      %v5503 = vadd.f32 0.0, %v5502
      %v5504 = vpop.f32.mrf.mxu0
      %5505 = vmatprep.mubr.bf16.mxu0 0
      %5506 = vmatmul.mubr.bf16.gmra.mxu0 %v5365
      %v5507 = vpop.f32.mrf.mxu0
      %v5508 = vadd.f32 0.0, %v5507
      %v5509 = vpop.f32.mrf.mxu0
      %v5510 = vpop.f32.mrf.mxu0
      %v5511 = vadd.f32 0.0, %v5510
      %v5512 = vpop.f32.mrf.mxu0
      %5513 = vmatprep.mubr.bf16.mxu0 0
      %5514 = vmatmul.mubr.bf16.gmra.mxu0 %v5366
      %v5515 = vpop.f32.mrf.mxu0
      %v5516 = vadd.f32 0.0, %v5515
      %v5517 = vpop.f32.mrf.mxu0
      %v5518 = vpop.f32.mrf.mxu0
      %v5519 = vadd.f32 0.0, %v5518
      %v5520 = vpop.f32.mrf.mxu0
      %5521 = vmatprep.mubr.bf16.mxu0 0
      %5522 = vmatmul.mubr.bf16.gmra.mxu0 %v5367
      %v5523 = vpop.f32.mrf.mxu0
      %v5524 = vadd.f32 0.0, %v5523
      %v5525 = vpop.f32.mrf.mxu0
      %v5526 = vpop.f32.mrf.mxu0
      %v5527 = vadd.f32 0.0, %v5526
      %v5528 = vpop.f32.mrf.mxu0
      %5529 = vmatprep.mubr.bf16.mxu0 0
      %5530 = vmatmul.mubr.bf16.gmra.mxu0 %v5368
      %v5531 = vpop.f32.mrf.mxu0
      %v5532 = vadd.f32 0.0, %v5531
      %v5533 = vpop.f32.mrf.mxu0
      %v5534 = vpop.f32.mrf.mxu0
      %v5535 = vadd.f32 0.0, %v5534
      %v5536 = vpop.f32.mrf.mxu0
      %5537 = vmatprep.mubr.bf16.mxu0 0
      %5538 = vmatmul.mubr.bf16.gmra.mxu0 %v5369
      %v5539 = vpop.f32.mrf.mxu0
      %v5540 = vadd.f32 0.0, %v5539
      %v5541 = vpop.f32.mrf.mxu0
      %v5542 = vpop.f32.mrf.mxu0
      %v5543 = vadd.f32 0.0, %v5542
      %v5544 = vpop.f32.mrf.mxu0
      %5545 = vmatprep.mubr.bf16.mxu0 0
      %5546 = vmatmul.mubr.bf16.gmra.mxu0 %v5370
      %v5547 = vpop.f32.mrf.mxu0
      %v5548 = vadd.f32 0.0, %v5547
      %v5549 = vpop.f32.mrf.mxu0
      %v5550 = vpop.f32.mrf.mxu0
      %v5551 = vadd.f32 0.0, %v5550
      %v5552 = vpop.f32.mrf.mxu0
      %5553 = vmatprep.mubr.bf16.mxu0 0
      %5554 = vmatmul.mubr.bf16.gmra.mxu0 %v5371
      %v5555 = vpop.f32.mrf.mxu0
      %v5556 = vadd.f32 0.0, %v5555
      %v5557 = vpop.f32.mrf.mxu0
      %v5558 = vpop.f32.mrf.mxu0
      %v5559 = vadd.f32 0.0, %v5558
      %v5560 = vpop.f32.mrf.mxu0
      %5561 = vmatprep.mubr.bf16.mxu0 0
      %5562 = vmatmul.mubr.bf16.gmra.mxu0 %v5372
      %v5563 = vpop.f32.mrf.mxu0
      %v5564 = vadd.f32 0.0, %v5563
      %v5565 = vpop.f32.mrf.mxu0
      %v5566 = vpop.f32.mrf.mxu0
      %v5567 = vadd.f32 0.0, %v5566
      %v5568 = vpop.f32.mrf.mxu0
      %5569 = vmatprep.mubr.bf16.mxu0 0
      %5570 = vmatmul.mubr.bf16.gmra.mxu0 %v5373
      %v5571 = vpop.f32.mrf.mxu0
      %v5572 = vadd.f32 0.0, %v5571
      %v5573 = vpop.f32.mrf.mxu0
      %v5574 = vpop.f32.mrf.mxu0
      %v5575 = vadd.f32 0.0, %v5574
      %v5576 = vpop.f32.mrf.mxu0
      %5577 = vmatprep.mubr.bf16.mxu0 0
      %5578 = vmatmul.mubr.bf16.gmra.mxu0 %v5374
      %v5579 = vpop.f32.mrf.mxu0
      %v5580 = vadd.f32 0.0, %v5579
      %v5581 = vpop.f32.mrf.mxu0
      %v5582 = vpop.f32.mrf.mxu0
      %v5583 = vadd.f32 0.0, %v5582
      %v5584 = vpop.f32.mrf.mxu0
      %5585 = vmatprep.mubr.bf16.mxu0 0
      %5586 = vmatmul.mubr.bf16.gmra.mxu0 %v5375
      %v5587 = vpop.f32.mrf.mxu0
      %v5588 = vadd.f32 0.0, %v5587
      %v5589 = vpop.f32.mrf.mxu0
      %v5590 = vpop.f32.mrf.mxu0
      %v5591 = vadd.f32 0.0, %v5590
      %v5592 = vpop.f32.mrf.mxu0
      %5593 = vmatprep.mubr.bf16.mxu0 0
      %5594 = vmatmul.mubr.bf16.gmra.mxu0 %v5376
      %v5595 = vpop.f32.mrf.mxu0
      %v5596 = vadd.f32 0.0, %v5595
      %v5597 = vpop.f32.mrf.mxu0
      %v5598 = vpop.f32.mrf.mxu0
      %v5599 = vadd.f32 0.0, %v5598
      %v5600 = vpop.f32.mrf.mxu0
      %5601 = vdwg.mxu0
      %v5602 = vadd.f32 %v5104, %v5476
      %v5603 = vadd.f32 %v5105, %v5479
      %v5604 = vadd.f32 %v5106, %v5484
      %v5605 = vadd.f32 %v5107, %v5487
      %v5606 = vadd.f32 %v5108, %v5492
      %v5607 = vadd.f32 %v5109, %v5495
      %v5608 = vadd.f32 %v5110, %v5500
      %v5609 = vadd.f32 %v5111, %v5503
      %v5610 = vadd.f32 %v5112, %v5508
      %v5611 = vadd.f32 %v5113, %v5511
      %v5612 = vadd.f32 %v5114, %v5516
      %v5613 = vadd.f32 %v5115, %v5519
      %v5614 = vadd.f32 %v5116, %v5524
      %v5615 = vadd.f32 %v5117, %v5527
      %v5616 = vadd.f32 %v5118, %v5532
      %v5617 = vadd.f32 %v5119, %v5535
      %v5618 = vadd.f32 %v5120, %v5540
      %v5619 = vadd.f32 %v5121, %v5543
      %v5620 = vadd.f32 %v5122, %v5548
      %v5621 = vadd.f32 %v5123, %v5551
      %v5622 = vadd.f32 %v5124, %v5556
      %v5623 = vadd.f32 %v5125, %v5559
      %v5624 = vadd.f32 %v5126, %v5564
      %v5625 = vadd.f32 %v5127, %v5567
      %v5626 = vadd.f32 %v5128, %v5572
      %v5627 = vadd.f32 %v5129, %v5575
      %v5628 = vadd.f32 %v5130, %v5580
      %v5629 = vadd.f32 %v5131, %v5583
      %v5630 = vadd.f32 %v5132, %v5588
      %v5631 = vadd.f32 %v5133, %v5591
      %v5632 = vadd.f32 %v5134, %v5596
      %v5633 = vadd.f32 %v5135, %v5599
      %v5634 = vpack.c.bf16 %v5603, %v5602
      %v5635 = vpack.c.bf16 %v5605, %v5604
      %v5636 = vpack.c.bf16 %v5607, %v5606
      %v5637 = vpack.c.bf16 %v5609, %v5608
      %v5638 = vpack.c.bf16 %v5611, %v5610
      %v5639 = vpack.c.bf16 %v5613, %v5612
      %v5640 = vpack.c.bf16 %v5615, %v5614
      %v5641 = vpack.c.bf16 %v5617, %v5616
      %v5642 = vpack.c.bf16 %v5619, %v5618
      %v5643 = vpack.c.bf16 %v5621, %v5620
      %v5644 = vpack.c.bf16 %v5623, %v5622
      %v5645 = vpack.c.bf16 %v5625, %v5624
      %v5646 = vpack.c.bf16 %v5627, %v5626
      %v5647 = vpack.c.bf16 %v5629, %v5628
      %v5648 = vpack.c.bf16 %v5631, %v5630
      %v5649 = vpack.c.bf16 %v5633, %v5632
      %v5666 = vunpack.c.l.b16 %v5634
      %v5667 = vunpack.c.h.b16 %v5634
      %v5668 = vunpack.c.l.b16 %v5635
      %v5669 = vunpack.c.h.b16 %v5635
      %v5670 = vunpack.c.l.b16 %v5636
      %v5671 = vunpack.c.h.b16 %v5636
      %v5672 = vunpack.c.l.b16 %v5637
      %v5673 = vunpack.c.h.b16 %v5637
      %v5674 = vunpack.c.l.b16 %v5638
      %v5675 = vunpack.c.h.b16 %v5638
      %v5676 = vunpack.c.l.b16 %v5639
      %v5677 = vunpack.c.h.b16 %v5639
      %v5678 = vunpack.c.l.b16 %v5640
      %v5679 = vunpack.c.h.b16 %v5640
      %v5680 = vunpack.c.l.b16 %v5641
      %v5681 = vunpack.c.h.b16 %v5641
      %v5682 = vunpack.c.l.b16 %v5642
      %v5683 = vunpack.c.h.b16 %v5642
      %v5684 = vunpack.c.l.b16 %v5643
      %v5685 = vunpack.c.h.b16 %v5643
      %v5686 = vunpack.c.l.b16 %v5644
      %v5687 = vunpack.c.h.b16 %v5644
      %v5688 = vunpack.c.l.b16 %v5645
      %v5689 = vunpack.c.h.b16 %v5645
      %v5690 = vunpack.c.l.b16 %v5646
      %v5691 = vunpack.c.h.b16 %v5646
      %v5692 = vunpack.c.l.b16 %v5647
      %v5693 = vunpack.c.h.b16 %v5647
      %v5694 = vunpack.c.l.b16 %v5648
      %v5695 = vunpack.c.h.b16 %v5648
      %v5696 = vunpack.c.l.b16 %v5649
      %v5697 = vunpack.c.h.b16 %v5649
      %v5698 = vpack.c.b16 %v5666, %v5666
      %v5699 = vpack.c.b16 %v5667, %v5667
      %v5700 = vpack.c.b16 %v5668, %v5668
      %v5701 = vpack.c.b16 %v5669, %v5669
      %v5702 = vpack.c.b16 %v5670, %v5670
      %v5703 = vpack.c.b16 %v5671, %v5671
      %v5704 = vpack.c.b16 %v5672, %v5672
      %v5705 = vpack.c.b16 %v5673, %v5673
      %v5706 = vpack.c.b16 %v5674, %v5674
      %v5707 = vpack.c.b16 %v5675, %v5675
      %v5708 = vpack.c.b16 %v5676, %v5676
      %v5709 = vpack.c.b16 %v5677, %v5677
      %v5710 = vpack.c.b16 %v5678, %v5678
      %v5711 = vpack.c.b16 %v5679, %v5679
      %v5712 = vpack.c.b16 %v5680, %v5680
      %v5713 = vpack.c.b16 %v5681, %v5681
      %v5714 = vpack.c.b16 %v5682, %v5682
      %v5715 = vpack.c.b16 %v5683, %v5683
      %v5716 = vpack.c.b16 %v5684, %v5684
      %v5717 = vpack.c.b16 %v5685, %v5685
      %v5718 = vpack.c.b16 %v5686, %v5686
      %v5719 = vpack.c.b16 %v5687, %v5687
      %v5720 = vpack.c.b16 %v5688, %v5688
      %v5721 = vpack.c.b16 %v5689, %v5689
      %v5722 = vpack.c.b16 %v5690, %v5690
      %v5723 = vpack.c.b16 %v5691, %v5691
      %v5724 = vpack.c.b16 %v5692, %v5692
      %v5725 = vpack.c.b16 %v5693, %v5693
      %v5726 = vpack.c.b16 %v5694, %v5694
      %v5727 = vpack.c.b16 %v5695, %v5695
      %v5728 = vpack.c.b16 %v5696, %v5696
      %v5729 = vpack.c.b16 %v5697, %v5697
      %5762 = vst [vmem:[%s231] sm:$0xf] %v5698
      %5763 = vst [vmem:[%s231 + $0x4] sm:$0xf] %v5699
      %5764 = vst [vmem:[%s231 + $0x8] sm:$0xf] %v5700
      %5765 = vst [vmem:[%s231 + $0xc] sm:$0xf] %v5701
      %5766 = vst [vmem:[%s231 + $0x10] sm:$0xf] %v5702
      %5767 = vst [vmem:[%s231 + $0x14] sm:$0xf] %v5703
      %5768 = vst [vmem:[%s231 + $0x18] sm:$0xf] %v5704
      %5769 = vst [vmem:[%s231 + $0x1c] sm:$0xf] %v5705
      %5770 = vst [vmem:[%s231 + $0x20] sm:$0xf] %v5706
      %5771 = vst [vmem:[%s231 + $0x24] sm:$0xf] %v5707
      %5772 = vst [vmem:[%s231 + $0x28] sm:$0xf] %v5708
      %5773 = vst [vmem:[%s231 + $0x2c] sm:$0xf] %v5709
      %5774 = vst [vmem:[%s231 + $0x30] sm:$0xf] %v5710
      %5775 = vst [vmem:[%s231 + $0x34] sm:$0xf] %v5711
      %5776 = vst [vmem:[%s231 + $0x38] sm:$0xf] %v5712
      %5777 = vst [vmem:[%s231 + $0x3c] sm:$0xf] %v5713
      %5778 = vst [vmem:[%s231 + $0x40] sm:$0xf] %v5714
      %5779 = vst [vmem:[%s231 + $0x44] sm:$0xf] %v5715
      %5780 = vst [vmem:[%s231 + $0x48] sm:$0xf] %v5716
      %5781 = vst [vmem:[%s231 + $0x4c] sm:$0xf] %v5717
      %5782 = vst [vmem:[%s231 + $0x50] sm:$0xf] %v5718
      %5783 = vst [vmem:[%s231 + $0x54] sm:$0xf] %v5719
      %5784 = vst [vmem:[%s231 + $0x58] sm:$0xf] %v5720
      %5785 = vst [vmem:[%s231 + $0x5c] sm:$0xf] %v5721
      %5786 = vst [vmem:[%s231 + $0x60] sm:$0xf] %v5722
      %5787 = vst [vmem:[%s231 + $0x64] sm:$0xf] %v5723
      %5788 = vst [vmem:[%s231 + $0x68] sm:$0xf] %v5724
      %5789 = vst [vmem:[%s231 + $0x6c] sm:$0xf] %v5725
      %5790 = vst [vmem:[%s231 + $0x70] sm:$0xf] %v5726
      %5791 = vst [vmem:[%s231 + $0x74] sm:$0xf] %v5727
      %5792 = vst [vmem:[%s231 + $0x78] sm:$0xf] %v5728
      %5793 = vst [vmem:[%s231 + $0x7c] sm:$0xf] %v5729
      %v5794 = vadd.f32 %v5602, %v5603
      %v5795 = vadd.f32 %v5794, %v5604
      %v5796 = vadd.f32 %v5795, %v5605
      %v5797 = vadd.f32 %v5796, %v5606
      %v5798 = vadd.f32 %v5797, %v5607
      %v5799 = vadd.f32 %v5798, %v5608
      %v5800 = vadd.f32 %v5799, %v5609
      %v5801 = vadd.f32 %v5800, %v5610
      %v5802 = vadd.f32 %v5801, %v5611
      %v5803 = vadd.f32 %v5802, %v5612
      %v5804 = vadd.f32 %v5803, %v5613
      %v5805 = vadd.f32 %v5804, %v5614
      %v5806 = vadd.f32 %v5805, %v5615
      %v5807 = vadd.f32 %v5806, %v5616
      %v5808 = vadd.f32 %v5807, %v5617
      %v5809 = vadd.f32 %v5808, %v5618
      %v5810 = vadd.f32 %v5809, %v5619
      %v5811 = vadd.f32 %v5810, %v5620
      %v5812 = vadd.f32 %v5811, %v5621
      %v5813 = vadd.f32 %v5812, %v5622
      %v5814 = vadd.f32 %v5813, %v5623
      %v5815 = vadd.f32 %v5814, %v5624
      %v5816 = vadd.f32 %v5815, %v5625
      %v5817 = vadd.f32 %v5816, %v5626
      %v5818 = vadd.f32 %v5817, %v5627
      %v5819 = vadd.f32 %v5818, %v5628
      %v5820 = vadd.f32 %v5819, %v5629
      %v5821 = vadd.f32 %v5820, %v5630
      %v5822 = vadd.f32 %v5821, %v5631
      %v5823 = vadd.f32 %v5822, %v5632
      %v5824 = vadd.f32 %v5823, %v5633
      %v5825 = vrot.slane %v5824, 4
      %v5826 = vadd.f32 %v5824, %v5825
      %v5827 = vrot.slane %v5826, 2
      %v5828 = vadd.f32 %v5826, %v5827
      %v5829 = vrot.slane %v5828, 1
      %v5830 = vadd.f32 %v5828, %v5829
      %5831 = vst [vmem:[%s235] sm:$0x1] %v5830
      %v5832 = vmul.f32 %v5602, %v5602
      %v5833 = vmul.f32 %v5603, %v5603
      %v5834 = vmul.f32 %v5604, %v5604
      %v5835 = vmul.f32 %v5605, %v5605
      %v5836 = vmul.f32 %v5606, %v5606
      %v5837 = vmul.f32 %v5607, %v5607
      %v5838 = vmul.f32 %v5608, %v5608
      %v5839 = vmul.f32 %v5609, %v5609
      %v5840 = vmul.f32 %v5610, %v5610
      %v5841 = vmul.f32 %v5611, %v5611
      %v5842 = vmul.f32 %v5612, %v5612
      %v5843 = vmul.f32 %v5613, %v5613
      %v5844 = vmul.f32 %v5614, %v5614
      %v5845 = vmul.f32 %v5615, %v5615
      %v5846 = vmul.f32 %v5616, %v5616
      %v5847 = vmul.f32 %v5617, %v5617
      %v5848 = vmul.f32 %v5618, %v5618
      %v5849 = vmul.f32 %v5619, %v5619
      %v5850 = vmul.f32 %v5620, %v5620
      %v5851 = vmul.f32 %v5621, %v5621
      %v5852 = vmul.f32 %v5622, %v5622
      %v5853 = vmul.f32 %v5623, %v5623
      %v5854 = vmul.f32 %v5624, %v5624
      %v5855 = vmul.f32 %v5625, %v5625
      %v5856 = vmul.f32 %v5626, %v5626
      %v5857 = vmul.f32 %v5627, %v5627
      %v5858 = vmul.f32 %v5628, %v5628
      %v5859 = vmul.f32 %v5629, %v5629
      %v5860 = vmul.f32 %v5630, %v5630
      %v5861 = vmul.f32 %v5631, %v5631
      %v5862 = vmul.f32 %v5632, %v5632
      %v5863 = vmul.f32 %v5633, %v5633
      %v5864 = vadd.f32 %v5832, %v5833
      %v5865 = vadd.f32 %v5864, %v5834
      %v5866 = vadd.f32 %v5865, %v5835
      %v5867 = vadd.f32 %v5866, %v5836
      %v5868 = vadd.f32 %v5867, %v5837
      %v5869 = vadd.f32 %v5868, %v5838
      %v5870 = vadd.f32 %v5869, %v5839
      %v5871 = vadd.f32 %v5870, %v5840
      %v5872 = vadd.f32 %v5871, %v5841
      %v5873 = vadd.f32 %v5872, %v5842
      %v5874 = vadd.f32 %v5873, %v5843
      %v5875 = vadd.f32 %v5874, %v5844
      %v5876 = vadd.f32 %v5875, %v5845
      %v5877 = vadd.f32 %v5876, %v5846
      %v5878 = vadd.f32 %v5877, %v5847
      %v5879 = vadd.f32 %v5878, %v5848
      %v5880 = vadd.f32 %v5879, %v5849
      %v5881 = vadd.f32 %v5880, %v5850
      %v5882 = vadd.f32 %v5881, %v5851
      %v5883 = vadd.f32 %v5882, %v5852
      %v5884 = vadd.f32 %v5883, %v5853
      %v5885 = vadd.f32 %v5884, %v5854
      %v5886 = vadd.f32 %v5885, %v5855
      %v5887 = vadd.f32 %v5886, %v5856
      %v5888 = vadd.f32 %v5887, %v5857
      %v5889 = vadd.f32 %v5888, %v5858
      %v5890 = vadd.f32 %v5889, %v5859
      %v5891 = vadd.f32 %v5890, %v5860
      %v5892 = vadd.f32 %v5891, %v5861
      %v5893 = vadd.f32 %v5892, %v5862
      %v5894 = vadd.f32 %v5893, %v5863
      %v5895 = vrot.slane %v5894, 4
      %v5896 = vadd.f32 %v5894, %v5895
      %v5897 = vrot.slane %v5896, 2
      %v5898 = vadd.f32 %v5896, %v5897
      %v5899 = vrot.slane %v5898, 1
      %v5900 = vadd.f32 %v5898, %v5899
      %5901 = vst [vmem:[%s235 + $0x1] sm:$0x1] %v5900
      %p5902 = scmp.lt.s32.totalorder %s17, 1
      %s5903 = scalar_select %p5902, %s17, 1
      %s5904 = smul.addr %s5903, 32
      %s5905 = smul.addr %s5904, 4
      %s5906 = scalar_lea.vmem %s4, %s5905
      %p5907 = scmp.lt.s32.totalorder %s17, 1
      %s5908 = scalar_select %p5907, %s17, 1
      %s5909 = smul.addr %s5908, 2
      %s5910 = scalar_lea.vmem %s5, %s5909
      // Predicated region
      $region37: #{basic_block_forward.3} parent=35 // pred_check
        %p5911 = pneg %p124
      $region38: #{basic_block_forward.3} parent=35 // pred_check_branch
        %5913 = sbr.rel (%p5911) target = $region40
      $region39: #{basic_block_forward.3} parent=35 // pred_region
        _
      $region40: #{basic_block_forward.3} parent=35 // pred_fallthru
        _
      // Predicated region
      $region41: #{basic_block_forward.3} parent=35 // pred_check
        %p5914 = pneg %p150
      $region42: #{basic_block_forward.3} parent=35 // pred_check_branch
        %5916 = sbr.rel (%p5914) target = $region44
      $region43: #{basic_block_forward.3} parent=35 // pred_region
        _
      $region44: #{basic_block_forward.3} parent=35 // pred_fallthru
        _
    $region36: #{basic_block_forward.3} parent=5 // pred_fallthru
      _
    %p5917 = scmp.le.s32.totalorder 2, %s12
    // Predicated region
    $region45: #{basic_block_forward.3} parent=5 // pred_check
      %p5918 = pneg %p5917
    $region46: #{basic_block_forward.3} parent=5 // pred_check_branch
      %5920 = sbr.rel (%p5918) target = $region48
    $region47: #{basic_block_forward.3} parent=5 // pred_region
      %s5921 = ssub.s32 %s12, 2
      // Predicated region
      $region49: #{basic_block_forward.3} parent=47 // pred_check
        %p5922 = pneg %p130
      $region50: #{basic_block_forward.3} parent=47 // pred_check_branch
        %5924 = sbr.rel (%p5922) target = $region52
      $region51: #{basic_block_forward.3} parent=47 // pred_region
        %p5925 = scmp.lt.s32.totalorder %s18, 1
        %s5926 = scalar_select %p5925, %s18, 1
        %s5927 = smul.addr %s5926, 32
        %s5928 = smul.addr %s5927, 4
        %s5929 = scalar_lea.vmem %s4, %s5928
      $region52: #{basic_block_forward.3} parent=47 // pred_fallthru
        _
      // Predicated region
      $region53: #{basic_block_forward.3} parent=47 // pred_check
        %p5930 = pneg %p156
      $region54: #{basic_block_forward.3} parent=47 // pred_check_branch
        %5932 = sbr.rel (%p5930) target = $region56
      $region55: #{basic_block_forward.3} parent=47 // pred_region
        %p5933 = scmp.lt.s32.totalorder %s18, 1
        %s5934 = scalar_select %p5933, %s18, 1
        %s5935 = smul.addr %s5934, 2
        %s5936 = scalar_lea.vmem %s5, %s5935
      $region56: #{basic_block_forward.3} parent=47 // pred_fallthru
        _
    $region48: #{basic_block_forward.3} parent=5 // pred_fallthru
      _
  $region6: #{basic_block_forward.3} parent=0 // loop_footer
    %s16 = sadd.s32 1, %s12
  $region7: #{basic_block_forward.3} parent=0 // loop_footer_branch
    %11 = sbr.rel target = $region3
  $region8: #{basic_block_forward.3} parent=0 // loop_exit
    _

// kernel: basic_block_forward.4
$region0: #{basic_block_forward.4}
  #allocation0 [shape = 'u32[]', space=smem, size = 0x4, offset = 0x4, fixed_abs, tag = 'smem constant byte address 0x4 - core index']
  #allocation1 [shape = 'u32[144,128]{1,0:T(1,128)}', space=vmem, size = 0x12000, scoped, tag = 'internal scratch']
  #allocation2 [shape = 'bf16[18,18,128]{2,1,0:T(8,128)(2,1)}', space=vmem, size = 0x1b000, scoped, tag = 'scratch operand']
  %s0 = inlined_call_operand.vmem [shape: bf16[2,256,128], index: 0, kind: input, shape index: {}]
  %s1 = inlined_call_operand.vmem [shape: bf16[9,128,128], index: 1, kind: input, shape index: {}]
  %s2 = inlined_call_operand.vmem [shape: f32[1,128], index: 2, kind: input, shape index: {}]
  %s3 = inlined_call_operand.vmem [shape: f32[1,128], index: 3, kind: input, shape index: {}]
  %s4 = inlined_call_operand.vmem [shape: bf16[2,256,128], index: 4, kind: output, shape index: {0}]
  %s5 = inlined_call_operand.vmem [shape: f32[2,2,128], index: 5, kind: output, shape index: {1}]
  %6 = xla_tuple %s4, %s5
  %s7 = sld [smem:[#allocation0]]
  $region57: #{basic_block_forward.4} parent=0
    _
  %s9 = ssub.s32 1, %s7
  %s10 = scalar_select 0, %s9, %s7
  loop: start=0, step=1, limit=4
  $region2: #{basic_block_forward.4} parent=0 // loop_pre_header
    _
  $region3: #{basic_block_forward.4} parent=0 // loop_header
    %s12 = sphi 0, %s16
    %p13 = scmp.ge.s32.totalorder %s12, 4
    %s22 = sphi 0, %s24
    %s25 = sphi 0, %s22
    %s26 = sphi 0, %s25
    %s42 = sphi 0, %s26
    %s46 = sphi 0, %s46
    %s48 = sphi 0, %s46
    %s49 = sphi 0, %s48
    %s63 = sphi 0, %s49
    %s67 = sphi 0, %s67
    %s69 = sphi 0, %s67
    %s70 = sphi 0, %s69
    %s84 = sphi 0, %s70
    %s88 = sphi 0, %s88
    %s90 = sphi 0, %s88
    %s91 = sphi 0, %s90
    %s105 = sphi 0, %s91
    %s111 = sphi 0, %s113
    %s114 = sphi 0, %s111
    %s115 = sphi 0, %s114
    %s131 = sphi 0, %s115
    %s137 = sphi 0, %s139
    %s140 = sphi 0, %s137
    %s141 = sphi 0, %s140
    %s157 = sphi 0, %s141
  $region4: #{basic_block_forward.4} parent=0 // loop_header_branch
    %15 = sbr.rel (%p13) target = $region8
  $region5: #{basic_block_forward.4} parent=0 // loop_body
    %s17 = ssub.s32 %s12, 1
    %s18 = ssub.s32 %s12, 2
    %s19 = sadd.s32 %s12, 1
    %s20 = ssub.s32 %s12, %s19
    %p21 = scmp.eq.s32.totalorder %s20, 0
    %s23 = sadd.s32 %s22, 1
    %s24 = scalar_select %p21, %s22, %s23
    %p27 = pneg %p21
    %p28 = scmp.eq.s32.totalorder %s12, 1
    %p29 = por %p27, %p28
    %p30 = scmp.ne.s32.totalorder %s22, %s25
    %p31 = scmp.eq.s32.totalorder %s12, 0
    %p32 = por %p30, %p31
    %p33 = scmp.ne.s32.totalorder %s22, %s25
    %p34 = scmp.eq.s32.totalorder %s17, 1
    %p35 = por %p33, %p34
    %p36 = scmp.ne.s32.totalorder %s25, %s26
    %p37 = scmp.eq.s32.totalorder %s17, 0
    %p38 = por %p36, %p37
    %p39 = scmp.ne.s32.totalorder %s25, %s26
    %p40 = scmp.eq.s32.totalorder %s18, 1
    %p41 = por %p39, %p40
    %p43 = scmp.ne.s32.totalorder %s26, %s42
    %p44 = scmp.eq.s32.totalorder %s18, 0
    %p45 = por %p43, %p44
    %s47 = sadd.s32 %s46, 1
    %p50 = scmp.eq.s32.totalorder %s12, 1
    %p51 = scmp.ne.s32.totalorder %s46, %s48
    %p52 = scmp.eq.s32.totalorder %s12, 0
    %p53 = por %p51, %p52
    %p54 = scmp.ne.s32.totalorder %s46, %s48
    %p55 = scmp.eq.s32.totalorder %s17, 1
    %p56 = por %p54, %p55
    %p57 = scmp.ne.s32.totalorder %s48, %s49
    %p58 = scmp.eq.s32.totalorder %s17, 0
    %p59 = por %p57, %p58
    %p60 = scmp.ne.s32.totalorder %s48, %s49
    %p61 = scmp.eq.s32.totalorder %s18, 1
    %p62 = por %p60, %p61
    %p64 = scmp.ne.s32.totalorder %s49, %s63
    %p65 = scmp.eq.s32.totalorder %s18, 0
    %p66 = por %p64, %p65
    %s68 = sadd.s32 %s67, 1
    %p71 = scmp.eq.s32.totalorder %s12, 1
    %p72 = scmp.ne.s32.totalorder %s67, %s69
    %p73 = scmp.eq.s32.totalorder %s12, 0
    %p74 = por %p72, %p73
    %p75 = scmp.ne.s32.totalorder %s67, %s69
    %p76 = scmp.eq.s32.totalorder %s17, 1
    %p77 = por %p75, %p76
    %p78 = scmp.ne.s32.totalorder %s69, %s70
    %p79 = scmp.eq.s32.totalorder %s17, 0
    %p80 = por %p78, %p79
    %p81 = scmp.ne.s32.totalorder %s69, %s70
    %p82 = scmp.eq.s32.totalorder %s18, 1
    %p83 = por %p81, %p82
    %p85 = scmp.ne.s32.totalorder %s70, %s84
    %p86 = scmp.eq.s32.totalorder %s18, 0
    %p87 = por %p85, %p86
    %s89 = sadd.s32 %s88, 1
    %p92 = scmp.eq.s32.totalorder %s12, 1
    %p93 = scmp.ne.s32.totalorder %s88, %s90
    %p94 = scmp.eq.s32.totalorder %s12, 0
    %p95 = por %p93, %p94
    %p96 = scmp.ne.s32.totalorder %s88, %s90
    %p97 = scmp.eq.s32.totalorder %s17, 1
    %p98 = por %p96, %p97
    %p99 = scmp.ne.s32.totalorder %s90, %s91
    %p100 = scmp.eq.s32.totalorder %s17, 0
    %p101 = por %p99, %p100
    %p102 = scmp.ne.s32.totalorder %s90, %s91
    %p103 = scmp.eq.s32.totalorder %s18, 1
    %p104 = por %p102, %p103
    %p106 = scmp.ne.s32.totalorder %s91, %s105
    %p107 = scmp.eq.s32.totalorder %s18, 0
    %p108 = por %p106, %p107
    %s109 = ssub.s32 %s12, %s19
    %p110 = scmp.eq.s32.totalorder %s109, 0
    %s112 = sadd.s32 %s111, 1
    %s113 = scalar_select %p110, %s111, %s112
    %p116 = pneg %p110
    %p117 = scmp.eq.s32.totalorder %s12, 1
    %p118 = por %p116, %p117
    %p119 = scmp.ne.s32.totalorder %s111, %s114
    %p120 = scmp.eq.s32.totalorder %s12, 0
    %p121 = por %p119, %p120
    %p122 = scmp.ne.s32.totalorder %s111, %s114
    %p123 = scmp.eq.s32.totalorder %s17, 1
    %p124 = por %p122, %p123
    %p125 = scmp.ne.s32.totalorder %s114, %s115
    %p126 = scmp.eq.s32.totalorder %s17, 0
    %p127 = por %p125, %p126
    %p128 = scmp.ne.s32.totalorder %s114, %s115
    %p129 = scmp.eq.s32.totalorder %s18, 1
    %p130 = por %p128, %p129
    %p132 = scmp.ne.s32.totalorder %s115, %s131
    %p133 = scmp.eq.s32.totalorder %s18, 0
    %p134 = por %p132, %p133
    %s135 = ssub.s32 %s12, %s19
    %p136 = scmp.eq.s32.totalorder %s135, 0
    %s138 = sadd.s32 %s137, 1
    %s139 = scalar_select %p136, %s137, %s138
    %p142 = pneg %p136
    %p143 = scmp.eq.s32.totalorder %s12, 1
    %p144 = por %p142, %p143
    %p145 = scmp.ne.s32.totalorder %s137, %s140
    %p146 = scmp.eq.s32.totalorder %s12, 0
    %p147 = por %p145, %p146
    %p148 = scmp.ne.s32.totalorder %s137, %s140
    %p149 = scmp.eq.s32.totalorder %s17, 1
    %p150 = por %p148, %p149
    %p151 = scmp.ne.s32.totalorder %s140, %s141
    %p152 = scmp.eq.s32.totalorder %s17, 0
    %p153 = por %p151, %p152
    %p154 = scmp.ne.s32.totalorder %s140, %s141
    %p155 = scmp.eq.s32.totalorder %s18, 1
    %p156 = por %p154, %p155
    %p158 = scmp.ne.s32.totalorder %s141, %s157
    %p159 = scmp.eq.s32.totalorder %s18, 0
    %p160 = por %p158, %p159
    %p161 = scmp.le.s32.totalorder 1, %s12
    %p162 = scmp.lt.s32.totalorder %s12, 3
    %p163 = pnand %p161, %p162
    %p164 = pneg %p163
    // Predicated region
    $region9: #{basic_block_forward.4} parent=5 // pred_check
      _
    $region10: #{basic_block_forward.4} parent=5 // pred_check_branch
      %166 = sbr.rel (%p163) target = $region12
    $region11: #{basic_block_forward.4} parent=5 // pred_region
      %s167 = ssub.s32 %s12, 1
      // Predicated region
      $region13: #{basic_block_forward.4} parent=11 // pred_check
        %p168 = pneg %p59
      $region14: #{basic_block_forward.4} parent=11 // pred_check_branch
        %170 = sbr.rel (%p168) target = $region16
      $region15: #{basic_block_forward.4} parent=11 // pred_region
        _
      $region16: #{basic_block_forward.4} parent=11 // pred_fallthru
        _
      // Predicated region
      $region17: #{basic_block_forward.4} parent=11 // pred_check
        %p171 = pneg %p80
      $region18: #{basic_block_forward.4} parent=11 // pred_check_branch
        %173 = sbr.rel (%p171) target = $region20
      $region19: #{basic_block_forward.4} parent=11 // pred_region
        _
      $region20: #{basic_block_forward.4} parent=11 // pred_fallthru
        _
      // Predicated region
      $region21: #{basic_block_forward.4} parent=11 // pred_check
        %p174 = pneg %p101
      $region22: #{basic_block_forward.4} parent=11 // pred_check_branch
        %176 = sbr.rel (%p174) target = $region24
      $region23: #{basic_block_forward.4} parent=11 // pred_region
        _
      $region24: #{basic_block_forward.4} parent=11 // pred_fallthru
        _
    $region12: #{basic_block_forward.4} parent=5 // pred_fallthru
      _
    %p177 = scmp.lt.s32.totalorder %s12, 2
    // Predicated region
    $region25: #{basic_block_forward.4} parent=5 // pred_check
      %p178 = pneg %p177
    $region26: #{basic_block_forward.4} parent=5 // pred_check_branch
      %180 = sbr.rel (%p178) target = $region28
    $region27: #{basic_block_forward.4} parent=5 // pred_region
      // Predicated region
      $region29: #{basic_block_forward.4} parent=27 // pred_check
        %p181 = pneg %p32
      $region30: #{basic_block_forward.4} parent=27 // pred_check_branch
        %183 = sbr.rel (%p181) target = $region32
      $region31: #{basic_block_forward.4} parent=27 // pred_region
        %p184 = scmp.lt.s32.totalorder %s12, 1
        %s185 = scalar_select %p184, %s12, 1
        %s186 = smul.addr %s185, 32
        %s187 = smul.addr %s186, 4
        %s188 = scalar_lea.vmem %s0, %s187
      $region32: #{basic_block_forward.4} parent=27 // pred_fallthru
        _
    $region28: #{basic_block_forward.4} parent=5 // pred_fallthru
      _
    %p189 = scmp.le.s32.totalorder 1, %s12
    %p190 = scmp.lt.s32.totalorder %s12, 3
    %p191 = pnand %p189, %p190
    %p192 = pneg %p191
    // Predicated region
    $region33: #{basic_block_forward.4} parent=5 // pred_check
      _
    $region34: #{basic_block_forward.4} parent=5 // pred_check_branch
      %194 = sbr.rel (%p191) target = $region36
    $region35: #{basic_block_forward.4} parent=5 // pred_region
      %s195 = ssub.s32 %s12, 1
      %p196 = scmp.lt.s32.totalorder %s17, 1
      %s197 = scalar_select %p196, %s17, 1
      %s198 = smul.addr %s197, 32
      %s199 = smul.addr %s198, 4
      %s200 = scalar_lea.vmem %s0, %s199
      %p201 = pneg %p38
      %p202 = pneg %p35
      %p203 = pneg %p59
      %p204 = pneg %p56
      %p205 = pneg %p80
      %p206 = pneg %p77
      %p207 = pneg %p101
      %p208 = pneg %p98
      %p209 = pneg %p127
      %p210 = pneg %p124
      %p211 = scmp.lt.s32.totalorder %s17, 1
      %s212 = scalar_select %p211, %s17, 1
      %s213 = smul.addr %s212, 32
      %s214 = smul.addr %s213, 4
      %s215 = scalar_lea.vmem %s4, %s214
      %p216 = pneg %p153
      %p217 = pneg %p150
      %p218 = scmp.lt.s32.totalorder %s17, 1
      %s219 = scalar_select %p218, %s17, 1
      %s220 = smul.addr %s219, 2
      %s221 = scalar_lea.vmem %s5, %s220
      %p222 = scmp.lt.s32.totalorder %s17, 1
      %s223 = scalar_select %p222, %s17, 1
      %s224 = smul.addr %s223, 32
      %s225 = smul.addr %s224, 4
      %s226 = scalar_lea.vmem %s0, %s225
      %p227 = scmp.lt.s32.totalorder %s17, 1
      %s228 = scalar_select %p227, %s17, 1
      %s229 = smul.addr %s228, 32
      %s230 = smul.addr %s229, 4
      %s231 = scalar_lea.vmem %s4, %s230
      %p232 = scmp.lt.s32.totalorder %s17, 1
      %s233 = scalar_select %p232, %s17, 1
      %s234 = smul.addr %s233, 2
      %s235 = scalar_lea.vmem %s5, %s234
      %v237 = vld [vmem:[%s226] sm:$0xf]
      %v238 = vld [vmem:[%s226 + $0x4] sm:$0xf]
      %v239 = vld [vmem:[%s226 + $0x8] sm:$0xf]
      %v240 = vld [vmem:[%s226 + $0xc] sm:$0xf]
      %v241 = vld [vmem:[%s226 + $0x10] sm:$0xf]
      %v242 = vld [vmem:[%s226 + $0x14] sm:$0xf]
      %v243 = vld [vmem:[%s226 + $0x18] sm:$0xf]
      %v244 = vld [vmem:[%s226 + $0x1c] sm:$0xf]
      %v245 = vld [vmem:[%s226 + $0x20] sm:$0xf]
      %v246 = vld [vmem:[%s226 + $0x24] sm:$0xf]
      %v247 = vld [vmem:[%s226 + $0x28] sm:$0xf]
      %v248 = vld [vmem:[%s226 + $0x2c] sm:$0xf]
      %v249 = vld [vmem:[%s226 + $0x30] sm:$0xf]
      %v250 = vld [vmem:[%s226 + $0x34] sm:$0xf]
      %v251 = vld [vmem:[%s226 + $0x38] sm:$0xf]
      %v252 = vld [vmem:[%s226 + $0x3c] sm:$0xf]
      %v253 = vld [vmem:[%s226 + $0x40] sm:$0xf]
      %v254 = vld [vmem:[%s226 + $0x44] sm:$0xf]
      %v255 = vld [vmem:[%s226 + $0x48] sm:$0xf]
      %v256 = vld [vmem:[%s226 + $0x4c] sm:$0xf]
      %v257 = vld [vmem:[%s226 + $0x50] sm:$0xf]
      %v258 = vld [vmem:[%s226 + $0x54] sm:$0xf]
      %v259 = vld [vmem:[%s226 + $0x58] sm:$0xf]
      %v260 = vld [vmem:[%s226 + $0x5c] sm:$0xf]
      %v261 = vld [vmem:[%s226 + $0x60] sm:$0xf]
      %v262 = vld [vmem:[%s226 + $0x64] sm:$0xf]
      %v263 = vld [vmem:[%s226 + $0x68] sm:$0xf]
      %v264 = vld [vmem:[%s226 + $0x6c] sm:$0xf]
      %v265 = vld [vmem:[%s226 + $0x70] sm:$0xf]
      %v266 = vld [vmem:[%s226 + $0x74] sm:$0xf]
      %v267 = vld [vmem:[%s226 + $0x78] sm:$0xf]
      %v268 = vld [vmem:[%s226 + $0x7c] sm:$0xf]
      %v269 = vunpack.c.l.bf16 %v237
      %v270 = vunpack.c.l.bf16 %v238
      %v271 = vunpack.c.l.bf16 %v239
      %v272 = vunpack.c.l.bf16 %v240
      %v273 = vunpack.c.l.bf16 %v241
      %v274 = vunpack.c.l.bf16 %v242
      %v275 = vunpack.c.l.bf16 %v243
      %v276 = vunpack.c.l.bf16 %v244
      %v277 = vunpack.c.l.bf16 %v245
      %v278 = vunpack.c.l.bf16 %v246
      %v279 = vunpack.c.l.bf16 %v247
      %v280 = vunpack.c.l.bf16 %v248
      %v281 = vunpack.c.l.bf16 %v249
      %v282 = vunpack.c.l.bf16 %v250
      %v283 = vunpack.c.l.bf16 %v251
      %v284 = vunpack.c.l.bf16 %v252
      %v285 = vunpack.c.l.bf16 %v253
      %v286 = vunpack.c.l.bf16 %v254
      %v287 = vunpack.c.l.bf16 %v255
      %v288 = vunpack.c.l.bf16 %v256
      %v289 = vunpack.c.l.bf16 %v257
      %v290 = vunpack.c.l.bf16 %v258
      %v291 = vunpack.c.l.bf16 %v259
      %v292 = vunpack.c.l.bf16 %v260
      %v293 = vunpack.c.l.bf16 %v261
      %v294 = vunpack.c.l.bf16 %v262
      %v295 = vunpack.c.l.bf16 %v263
      %v296 = vunpack.c.l.bf16 %v264
      %v297 = vunpack.c.l.bf16 %v265
      %v298 = vunpack.c.l.bf16 %v266
      %v299 = vunpack.c.l.bf16 %v267
      %v300 = vunpack.c.l.bf16 %v268
      %v301 = vld [vmem:[%s2] sm:$0x1]
      %v303 = vlaneseq
      %v304 = vshrl.u32 %v303, 7
      %v305 = vsub.s32 0, %v304
      %v306 = vrot.slane %v301, %v305
      %v308 = vmul.f32 %v269, %v306
      %v309 = vmul.f32 %v270, %v306
      %v310 = vmul.f32 %v271, %v306
      %v311 = vmul.f32 %v272, %v306
      %v312 = vmul.f32 %v273, %v306
      %v313 = vmul.f32 %v274, %v306
      %v314 = vmul.f32 %v275, %v306
      %v315 = vmul.f32 %v276, %v306
      %v316 = vmul.f32 %v277, %v306
      %v317 = vmul.f32 %v278, %v306
      %v318 = vmul.f32 %v279, %v306
      %v319 = vmul.f32 %v280, %v306
      %v320 = vmul.f32 %v281, %v306
      %v321 = vmul.f32 %v282, %v306
      %v322 = vmul.f32 %v283, %v306
      %v323 = vmul.f32 %v284, %v306
      %v324 = vmul.f32 %v285, %v306
      %v325 = vmul.f32 %v286, %v306
      %v326 = vmul.f32 %v287, %v306
      %v327 = vmul.f32 %v288, %v306
      %v328 = vmul.f32 %v289, %v306
      %v329 = vmul.f32 %v290, %v306
      %v330 = vmul.f32 %v291, %v306
      %v331 = vmul.f32 %v292, %v306
      %v332 = vmul.f32 %v293, %v306
      %v333 = vmul.f32 %v294, %v306
      %v334 = vmul.f32 %v295, %v306
      %v335 = vmul.f32 %v296, %v306
      %v336 = vmul.f32 %v297, %v306
      %v337 = vmul.f32 %v298, %v306
      %v338 = vmul.f32 %v299, %v306
      %v339 = vmul.f32 %v300, %v306
      %v340 = vld [vmem:[%s3] sm:$0x1]
      %v342 = vlaneseq
      %v343 = vshrl.u32 %v342, 7
      %v344 = vsub.s32 0, %v343
      %v345 = vrot.slane %v340, %v344
      %v347 = vadd.f32 %v308, %v345
      %v348 = vadd.f32 %v309, %v345
      %v349 = vadd.f32 %v310, %v345
      %v350 = vadd.f32 %v311, %v345
      %v351 = vadd.f32 %v312, %v345
      %v352 = vadd.f32 %v313, %v345
      %v353 = vadd.f32 %v314, %v345
      %v354 = vadd.f32 %v315, %v345
      %v355 = vadd.f32 %v316, %v345
      %v356 = vadd.f32 %v317, %v345
      %v357 = vadd.f32 %v318, %v345
      %v358 = vadd.f32 %v319, %v345
      %v359 = vadd.f32 %v320, %v345
      %v360 = vadd.f32 %v321, %v345
      %v361 = vadd.f32 %v322, %v345
      %v362 = vadd.f32 %v323, %v345
      %v363 = vadd.f32 %v324, %v345
      %v364 = vadd.f32 %v325, %v345
      %v365 = vadd.f32 %v326, %v345
      %v366 = vadd.f32 %v327, %v345
      %v367 = vadd.f32 %v328, %v345
      %v368 = vadd.f32 %v329, %v345
      %v369 = vadd.f32 %v330, %v345
      %v370 = vadd.f32 %v331, %v345
      %v371 = vadd.f32 %v332, %v345
      %v372 = vadd.f32 %v333, %v345
      %v373 = vadd.f32 %v334, %v345
      %v374 = vadd.f32 %v335, %v345
      %v375 = vadd.f32 %v336, %v345
      %v376 = vadd.f32 %v337, %v345
      %v377 = vadd.f32 %v338, %v345
      %v378 = vadd.f32 %v339, %v345
      %v379 = vmax.f32 %v347, 0.0
      %v380 = vmax.f32 %v348, 0.0
      %v381 = vmax.f32 %v349, 0.0
      %v382 = vmax.f32 %v350, 0.0
      %v383 = vmax.f32 %v351, 0.0
      %v384 = vmax.f32 %v352, 0.0
      %v385 = vmax.f32 %v353, 0.0
      %v386 = vmax.f32 %v354, 0.0
      %v387 = vmax.f32 %v355, 0.0
      %v388 = vmax.f32 %v356, 0.0
      %v389 = vmax.f32 %v357, 0.0
      %v390 = vmax.f32 %v358, 0.0
      %v391 = vmax.f32 %v359, 0.0
      %v392 = vmax.f32 %v360, 0.0
      %v393 = vmax.f32 %v361, 0.0
      %v394 = vmax.f32 %v362, 0.0
      %v395 = vmax.f32 %v363, 0.0
      %v396 = vmax.f32 %v364, 0.0
      %v397 = vmax.f32 %v365, 0.0
      %v398 = vmax.f32 %v366, 0.0
      %v399 = vmax.f32 %v367, 0.0
      %v400 = vmax.f32 %v368, 0.0
      %v401 = vmax.f32 %v369, 0.0
      %v402 = vmax.f32 %v370, 0.0
      %v403 = vmax.f32 %v371, 0.0
      %v404 = vmax.f32 %v372, 0.0
      %v405 = vmax.f32 %v373, 0.0
      %v406 = vmax.f32 %v374, 0.0
      %v407 = vmax.f32 %v375, 0.0
      %v408 = vmax.f32 %v376, 0.0
      %v409 = vmax.f32 %v377, 0.0
      %v410 = vmax.f32 %v378, 0.0
      %v411 = vpack.c.bf16 %v380, %v379
      %v412 = vpack.c.bf16 %v382, %v381
      %v413 = vpack.c.bf16 %v384, %v383
      %v414 = vpack.c.bf16 %v386, %v385
      %v415 = vpack.c.bf16 %v388, %v387
      %v416 = vpack.c.bf16 %v390, %v389
      %v417 = vpack.c.bf16 %v392, %v391
      %v418 = vpack.c.bf16 %v394, %v393
      %v419 = vpack.c.bf16 %v396, %v395
      %v420 = vpack.c.bf16 %v398, %v397
      %v421 = vpack.c.bf16 %v400, %v399
      %v422 = vpack.c.bf16 %v402, %v401
      %v423 = vpack.c.bf16 %v404, %v403
      %v424 = vpack.c.bf16 %v406, %v405
      %v425 = vpack.c.bf16 %v408, %v407
      %v426 = vpack.c.bf16 %v410, %v409
      %427 = vst [vmem:[#allocation2] sm:$0xf] 0
      %428 = vst [vmem:[#allocation2 + $0x4] sm:$0xf] 0
      %429 = vst [vmem:[#allocation2 + $0x8] sm:$0x1] 0
      %s430 = scalar_lea.vmem [#allocation2], 204
      %431 = vst [vmem:[%s430] sm:$0xf] 0
      %432 = vst [vmem:[%s430 + $0x4] sm:$0xf] 0
      %433 = vst [vmem:[%s430 + $0x8] sm:$0x1] 0
      %vm434 = vcmask 1040384
      %vm435 = vsmask.f32 256
      %vm436 = vmand %vm434, %vm435
      %v437 = vld [vmem:[#allocation2] sm:$0x1]
      %v438 = vsel %vm436, 0, %v437
      %439 = vst [vmem:[#allocation2] sm:$0x1] %v438
      %v440 = vld [vmem:[#allocation2 + $0xc] sm:$0x1]
      %v441 = vsel %vm436, 0, %v440
      %442 = vst [vmem:[#allocation2 + $0xc] sm:$0x1] %v441
      %v443 = vld [vmem:[#allocation2 + $0x18] sm:$0x1]
      %v444 = vsel %vm436, 0, %v443
      %445 = vst [vmem:[#allocation2 + $0x18] sm:$0x1] %v444
      %v446 = vld [vmem:[#allocation2 + $0x24] sm:$0x1]
      %v447 = vsel %vm436, 0, %v446
      %448 = vst [vmem:[#allocation2 + $0x24] sm:$0x1] %v447
      %v449 = vld [vmem:[#allocation2 + $0x30] sm:$0x1]
      %v450 = vsel %vm436, 0, %v449
      %451 = vst [vmem:[#allocation2 + $0x30] sm:$0x1] %v450
      %v452 = vld [vmem:[#allocation2 + $0x3c] sm:$0x1]
      %v453 = vsel %vm436, 0, %v452
      %454 = vst [vmem:[#allocation2 + $0x3c] sm:$0x1] %v453
      %v455 = vld [vmem:[#allocation2 + $0x48] sm:$0x1]
      %v456 = vsel %vm436, 0, %v455
      %457 = vst [vmem:[#allocation2 + $0x48] sm:$0x1] %v456
      %v458 = vld [vmem:[#allocation2 + $0x54] sm:$0x1]
      %v459 = vsel %vm436, 0, %v458
      %460 = vst [vmem:[#allocation2 + $0x54] sm:$0x1] %v459
      %v461 = vld [vmem:[#allocation2 + $0x60] sm:$0x1]
      %v462 = vsel %vm436, 0, %v461
      %463 = vst [vmem:[#allocation2 + $0x60] sm:$0x1] %v462
      %v464 = vld [vmem:[#allocation2 + $0x6c] sm:$0x1]
      %v465 = vsel %vm436, 0, %v464
      %466 = vst [vmem:[#allocation2 + $0x6c] sm:$0x1] %v465
      %v467 = vld [vmem:[#allocation2 + $0x78] sm:$0x1]
      %v468 = vsel %vm436, 0, %v467
      %469 = vst [vmem:[#allocation2 + $0x78] sm:$0x1] %v468
      %v470 = vld [vmem:[#allocation2 + $0x84] sm:$0x1]
      %v471 = vsel %vm436, 0, %v470
      %472 = vst [vmem:[#allocation2 + $0x84] sm:$0x1] %v471
      %v473 = vld [vmem:[#allocation2 + $0x90] sm:$0x1]
      %v474 = vsel %vm436, 0, %v473
      %475 = vst [vmem:[#allocation2 + $0x90] sm:$0x1] %v474
      %v476 = vld [vmem:[#allocation2 + $0x9c] sm:$0x1]
      %v477 = vsel %vm436, 0, %v476
      %478 = vst [vmem:[#allocation2 + $0x9c] sm:$0x1] %v477
      %v479 = vld [vmem:[#allocation2 + $0xa8] sm:$0x1]
      %v480 = vsel %vm436, 0, %v479
      %481 = vst [vmem:[#allocation2 + $0xa8] sm:$0x1] %v480
      %v482 = vld [vmem:[#allocation2 + $0xb4] sm:$0x1]
      %v483 = vsel %vm436, 0, %v482
      %484 = vst [vmem:[#allocation2 + $0xb4] sm:$0x1] %v483
      %v485 = vld [vmem:[#allocation2 + $0xc0] sm:$0x1]
      %v486 = vsel %vm436, 0, %v485
      %487 = vst [vmem:[#allocation2 + $0xc0] sm:$0x1] %v486
      %v488 = vld [vmem:[#allocation2 + $0xcc] sm:$0x1]
      %v489 = vsel %vm436, 0, %v488
      %490 = vst [vmem:[#allocation2 + $0xcc] sm:$0x1] %v489
      %vm491 = vsmask.f32 7938
      %vm492 = vmand %vm434, %vm491
      %v493 = vld [vmem:[#allocation2 + $0x8] sm:$0x1]
      %v494 = vsel %vm492, 0, %v493
      %495 = vst [vmem:[#allocation2 + $0x8] sm:$0x1] %v494
      %v496 = vld [vmem:[#allocation2 + $0x14] sm:$0x1]
      %v497 = vsel %vm492, 0, %v496
      %498 = vst [vmem:[#allocation2 + $0x14] sm:$0x1] %v497
      %v499 = vld [vmem:[#allocation2 + $0x20] sm:$0x1]
      %v500 = vsel %vm492, 0, %v499
      %501 = vst [vmem:[#allocation2 + $0x20] sm:$0x1] %v500
      %v502 = vld [vmem:[#allocation2 + $0x2c] sm:$0x1]
      %v503 = vsel %vm492, 0, %v502
      %504 = vst [vmem:[#allocation2 + $0x2c] sm:$0x1] %v503
      %v505 = vld [vmem:[#allocation2 + $0x38] sm:$0x1]
      %v506 = vsel %vm492, 0, %v505
      %507 = vst [vmem:[#allocation2 + $0x38] sm:$0x1] %v506
      %v508 = vld [vmem:[#allocation2 + $0x44] sm:$0x1]
      %v509 = vsel %vm492, 0, %v508
      %510 = vst [vmem:[#allocation2 + $0x44] sm:$0x1] %v509
      %v511 = vld [vmem:[#allocation2 + $0x50] sm:$0x1]
      %v512 = vsel %vm492, 0, %v511
      %513 = vst [vmem:[#allocation2 + $0x50] sm:$0x1] %v512
      %v514 = vld [vmem:[#allocation2 + $0x5c] sm:$0x1]
      %v515 = vsel %vm492, 0, %v514
      %516 = vst [vmem:[#allocation2 + $0x5c] sm:$0x1] %v515
      %v517 = vld [vmem:[#allocation2 + $0x68] sm:$0x1]
      %v518 = vsel %vm492, 0, %v517
      %519 = vst [vmem:[#allocation2 + $0x68] sm:$0x1] %v518
      %v520 = vld [vmem:[#allocation2 + $0x74] sm:$0x1]
      %v521 = vsel %vm492, 0, %v520
      %522 = vst [vmem:[#allocation2 + $0x74] sm:$0x1] %v521
      %v523 = vld [vmem:[#allocation2 + $0x80] sm:$0x1]
      %v524 = vsel %vm492, 0, %v523
      %525 = vst [vmem:[#allocation2 + $0x80] sm:$0x1] %v524
      %v526 = vld [vmem:[#allocation2 + $0x8c] sm:$0x1]
      %v527 = vsel %vm492, 0, %v526
      %528 = vst [vmem:[#allocation2 + $0x8c] sm:$0x1] %v527
      %v529 = vld [vmem:[#allocation2 + $0x98] sm:$0x1]
      %v530 = vsel %vm492, 0, %v529
      %531 = vst [vmem:[#allocation2 + $0x98] sm:$0x1] %v530
      %v532 = vld [vmem:[#allocation2 + $0xa4] sm:$0x1]
      %v533 = vsel %vm492, 0, %v532
      %534 = vst [vmem:[#allocation2 + $0xa4] sm:$0x1] %v533
      %v535 = vld [vmem:[#allocation2 + $0xb0] sm:$0x1]
      %v536 = vsel %vm492, 0, %v535
      %537 = vst [vmem:[#allocation2 + $0xb0] sm:$0x1] %v536
      %v538 = vld [vmem:[#allocation2 + $0xbc] sm:$0x1]
      %v539 = vsel %vm492, 0, %v538
      %540 = vst [vmem:[#allocation2 + $0xbc] sm:$0x1] %v539
      %v541 = vld [vmem:[#allocation2 + $0xc8] sm:$0x1]
      %v542 = vsel %vm492, 0, %v541
      %543 = vst [vmem:[#allocation2 + $0xc8] sm:$0x1] %v542
      %v544 = vld [vmem:[#allocation2 + $0xd4] sm:$0x1]
      %v545 = vsel %vm492, 0, %v544
      %546 = vst [vmem:[#allocation2 + $0xd4] sm:$0x1] %v545
      %v563 = vunpack.c.l.b16 %v411
      %v564 = vunpack.c.h.b16 %v411
      %v565 = vunpack.c.l.b16 %v412
      %v566 = vunpack.c.h.b16 %v412
      %v567 = vunpack.c.l.b16 %v413
      %v568 = vunpack.c.h.b16 %v413
      %v569 = vunpack.c.l.b16 %v414
      %v570 = vunpack.c.h.b16 %v414
      %v571 = vunpack.c.l.b16 %v415
      %v572 = vunpack.c.h.b16 %v415
      %v573 = vunpack.c.l.b16 %v416
      %v574 = vunpack.c.h.b16 %v416
      %v575 = vunpack.c.l.b16 %v417
      %v576 = vunpack.c.h.b16 %v417
      %v577 = vunpack.c.l.b16 %v418
      %v578 = vunpack.c.h.b16 %v418
      %v579 = vunpack.c.l.b16 %v419
      %v580 = vunpack.c.h.b16 %v419
      %v581 = vunpack.c.l.b16 %v420
      %v582 = vunpack.c.h.b16 %v420
      %v583 = vunpack.c.l.b16 %v421
      %v584 = vunpack.c.h.b16 %v421
      %v585 = vunpack.c.l.b16 %v422
      %v586 = vunpack.c.h.b16 %v422
      %v587 = vunpack.c.l.b16 %v423
      %v588 = vunpack.c.h.b16 %v423
      %v589 = vunpack.c.l.b16 %v424
      %v590 = vunpack.c.h.b16 %v424
      %v591 = vunpack.c.l.b16 %v425
      %v592 = vunpack.c.h.b16 %v425
      %v593 = vunpack.c.l.b16 %v426
      %v594 = vunpack.c.h.b16 %v426
      %v595 = vpack.c.b16 %v563, %v563
      %v596 = vpack.c.b16 %v564, %v564
      %v597 = vpack.c.b16 %v565, %v565
      %v598 = vpack.c.b16 %v566, %v566
      %v599 = vpack.c.b16 %v567, %v567
      %v600 = vpack.c.b16 %v568, %v568
      %v601 = vpack.c.b16 %v569, %v569
      %v602 = vpack.c.b16 %v570, %v570
      %v603 = vpack.c.b16 %v571, %v571
      %v604 = vpack.c.b16 %v572, %v572
      %v605 = vpack.c.b16 %v573, %v573
      %v606 = vpack.c.b16 %v574, %v574
      %v607 = vpack.c.b16 %v575, %v575
      %v608 = vpack.c.b16 %v576, %v576
      %v609 = vpack.c.b16 %v577, %v577
      %v610 = vpack.c.b16 %v578, %v578
      %v611 = vpack.c.b16 %v579, %v579
      %v612 = vpack.c.b16 %v580, %v580
      %v613 = vpack.c.b16 %v581, %v581
      %v614 = vpack.c.b16 %v582, %v582
      %v615 = vpack.c.b16 %v583, %v583
      %v616 = vpack.c.b16 %v584, %v584
      %v617 = vpack.c.b16 %v585, %v585
      %v618 = vpack.c.b16 %v586, %v586
      %v619 = vpack.c.b16 %v587, %v587
      %v620 = vpack.c.b16 %v588, %v588
      %v621 = vpack.c.b16 %v589, %v589
      %v622 = vpack.c.b16 %v590, %v590
      %v623 = vpack.c.b16 %v591, %v591
      %v624 = vpack.c.b16 %v592, %v592
      %v625 = vpack.c.b16 %v593, %v593
      %v626 = vpack.c.b16 %v594, %v594
      %vm627 = vsmask.f32 4368
      %vm628 = vmor %vm435, %vm627
      %v630 = vshrl.u32 %v595, 16
      %v632 = vrot.slane %v630, 7
      %v633 = vshll.u32 %v595, 16
      %v635 = vor.u32 %v632, %v633
      %v636 = vrot.slane %v632, 4
      %v638 = vshrl.u32 %v596, 16
      %v640 = vrot.slane %v638, 7
      %v641 = vshll.u32 %v596, 16
      %v643 = vor.u32 %v640, %v641
      %v644 = vsel %vm628, %v636, %v643
      %v645 = vrot.slane %v640, 4
      %v647 = vshrl.u32 %v597, 16
      %v649 = vrot.slane %v647, 7
      %v650 = vshll.u32 %v597, 16
      %v652 = vor.u32 %v649, %v650
      %v653 = vrot.slane %v649, 4
      %v655 = vshrl.u32 %v598, 16
      %v657 = vrot.slane %v655, 7
      %v658 = vshll.u32 %v598, 16
      %v660 = vor.u32 %v657, %v658
      %v661 = vsel %vm628, %v653, %v660
      %v662 = vrot.slane %v657, 4
      %v664 = vshrl.u32 %v599, 16
      %v666 = vrot.slane %v664, 7
      %v667 = vshll.u32 %v599, 16
      %v669 = vor.u32 %v666, %v667
      %v670 = vrot.slane %v666, 4
      %v672 = vshrl.u32 %v600, 16
      %v674 = vrot.slane %v672, 7
      %v675 = vshll.u32 %v600, 16
      %v677 = vor.u32 %v674, %v675
      %v678 = vsel %vm628, %v670, %v677
      %v679 = vrot.slane %v674, 4
      %v681 = vshrl.u32 %v601, 16
      %v683 = vrot.slane %v681, 7
      %v684 = vshll.u32 %v601, 16
      %v686 = vor.u32 %v683, %v684
      %v687 = vrot.slane %v683, 4
      %v689 = vshrl.u32 %v602, 16
      %v691 = vrot.slane %v689, 7
      %v692 = vshll.u32 %v602, 16
      %v694 = vor.u32 %v691, %v692
      %v695 = vsel %vm628, %v687, %v694
      %v696 = vrot.slane %v691, 4
      %v698 = vshrl.u32 %v603, 16
      %v700 = vrot.slane %v698, 7
      %v701 = vshll.u32 %v603, 16
      %v703 = vor.u32 %v700, %v701
      %v704 = vrot.slane %v700, 4
      %v706 = vshrl.u32 %v604, 16
      %v708 = vrot.slane %v706, 7
      %v709 = vshll.u32 %v604, 16
      %v711 = vor.u32 %v708, %v709
      %v712 = vsel %vm628, %v704, %v711
      %v713 = vrot.slane %v708, 4
      %v715 = vshrl.u32 %v605, 16
      %v717 = vrot.slane %v715, 7
      %v718 = vshll.u32 %v605, 16
      %v720 = vor.u32 %v717, %v718
      %v721 = vrot.slane %v717, 4
      %v723 = vshrl.u32 %v606, 16
      %v725 = vrot.slane %v723, 7
      %v726 = vshll.u32 %v606, 16
      %v728 = vor.u32 %v725, %v726
      %v729 = vsel %vm628, %v721, %v728
      %v730 = vrot.slane %v725, 4
      %v732 = vshrl.u32 %v607, 16
      %v734 = vrot.slane %v732, 7
      %v735 = vshll.u32 %v607, 16
      %v737 = vor.u32 %v734, %v735
      %v738 = vrot.slane %v734, 4
      %v740 = vshrl.u32 %v608, 16
      %v742 = vrot.slane %v740, 7
      %v743 = vshll.u32 %v608, 16
      %v745 = vor.u32 %v742, %v743
      %v746 = vsel %vm628, %v738, %v745
      %v747 = vrot.slane %v742, 4
      %v749 = vshrl.u32 %v609, 16
      %v751 = vrot.slane %v749, 7
      %v752 = vshll.u32 %v609, 16
      %v754 = vor.u32 %v751, %v752
      %v755 = vrot.slane %v751, 4
      %v757 = vshrl.u32 %v610, 16
      %v759 = vrot.slane %v757, 7
      %v760 = vshll.u32 %v610, 16
      %v762 = vor.u32 %v759, %v760
      %v763 = vsel %vm628, %v755, %v762
      %v764 = vrot.slane %v759, 4
      %v766 = vshrl.u32 %v611, 16
      %v768 = vrot.slane %v766, 7
      %v769 = vshll.u32 %v611, 16
      %v771 = vor.u32 %v768, %v769
      %v772 = vrot.slane %v768, 4
      %v774 = vshrl.u32 %v612, 16
      %v776 = vrot.slane %v774, 7
      %v777 = vshll.u32 %v612, 16
      %v779 = vor.u32 %v776, %v777
      %v780 = vsel %vm628, %v772, %v779
      %v781 = vrot.slane %v776, 4
      %v783 = vshrl.u32 %v613, 16
      %v785 = vrot.slane %v783, 7
      %v786 = vshll.u32 %v613, 16
      %v788 = vor.u32 %v785, %v786
      %v789 = vrot.slane %v785, 4
      %v791 = vshrl.u32 %v614, 16
      %v793 = vrot.slane %v791, 7
      %v794 = vshll.u32 %v614, 16
      %v796 = vor.u32 %v793, %v794
      %v797 = vsel %vm628, %v789, %v796
      %v798 = vrot.slane %v793, 4
      %v800 = vshrl.u32 %v615, 16
      %v802 = vrot.slane %v800, 7
      %v803 = vshll.u32 %v615, 16
      %v805 = vor.u32 %v802, %v803
      %v806 = vrot.slane %v802, 4
      %v808 = vshrl.u32 %v616, 16
      %v810 = vrot.slane %v808, 7
      %v811 = vshll.u32 %v616, 16
      %v813 = vor.u32 %v810, %v811
      %v814 = vsel %vm628, %v806, %v813
      %v815 = vrot.slane %v810, 4
      %v817 = vshrl.u32 %v617, 16
      %v819 = vrot.slane %v817, 7
      %v820 = vshll.u32 %v617, 16
      %v822 = vor.u32 %v819, %v820
      %v823 = vrot.slane %v819, 4
      %v825 = vshrl.u32 %v618, 16
      %v827 = vrot.slane %v825, 7
      %v828 = vshll.u32 %v618, 16
      %v830 = vor.u32 %v827, %v828
      %v831 = vsel %vm628, %v823, %v830
      %v832 = vrot.slane %v827, 4
      %v834 = vshrl.u32 %v619, 16
      %v836 = vrot.slane %v834, 7
      %v837 = vshll.u32 %v619, 16
      %v839 = vor.u32 %v836, %v837
      %v840 = vrot.slane %v836, 4
      %v842 = vshrl.u32 %v620, 16
      %v844 = vrot.slane %v842, 7
      %v845 = vshll.u32 %v620, 16
      %v847 = vor.u32 %v844, %v845
      %v848 = vsel %vm628, %v840, %v847
      %v849 = vrot.slane %v844, 4
      %v851 = vshrl.u32 %v621, 16
      %v853 = vrot.slane %v851, 7
      %v854 = vshll.u32 %v621, 16
      %v856 = vor.u32 %v853, %v854
      %v857 = vrot.slane %v853, 4
      %v859 = vshrl.u32 %v622, 16
      %v861 = vrot.slane %v859, 7
      %v862 = vshll.u32 %v622, 16
      %v864 = vor.u32 %v861, %v862
      %v865 = vsel %vm628, %v857, %v864
      %v866 = vrot.slane %v861, 4
      %v868 = vshrl.u32 %v623, 16
      %v870 = vrot.slane %v868, 7
      %v871 = vshll.u32 %v623, 16
      %v873 = vor.u32 %v870, %v871
      %v874 = vrot.slane %v870, 4
      %v876 = vshrl.u32 %v624, 16
      %v878 = vrot.slane %v876, 7
      %v879 = vshll.u32 %v624, 16
      %v881 = vor.u32 %v878, %v879
      %v882 = vsel %vm628, %v874, %v881
      %v883 = vrot.slane %v878, 4
      %v885 = vshrl.u32 %v625, 16
      %v887 = vrot.slane %v885, 7
      %v888 = vshll.u32 %v625, 16
      %v890 = vor.u32 %v887, %v888
      %v891 = vrot.slane %v887, 4
      %v893 = vshrl.u32 %v626, 16
      %v895 = vrot.slane %v893, 7
      %v896 = vshll.u32 %v626, 16
      %v898 = vor.u32 %v895, %v896
      %v899 = vsel %vm628, %v891, %v898
      %v900 = vrot.slane %v895, 4
      %s949 = scalar_lea.vmem [#allocation2], 12
      %vm950 = vcmask 1043456
      %vm951 = vmand %vm950, %vm491
      %v952 = vld [vmem:[%s949] sm:$0xf]
      %v953 = vsel %vm951, %v635, %v952
      %954 = vst [vmem:[%s949] sm:$0xf] %v953
      %955 = vst [vmem:[%s949 + $0x4] sm:$0xf] %v644
      %v956 = vld [vmem:[%s949 + $0x8] sm:$0x1]
      %v957 = vsel %vm436, %v645, %v956
      %958 = vst [vmem:[%s949 + $0x8] sm:$0x1] %v957
      %v959 = vld [vmem:[%s949 + $0xc] sm:$0xf]
      %v960 = vsel %vm951, %v652, %v959
      %961 = vst [vmem:[%s949 + $0xc] sm:$0xf] %v960
      %962 = vst [vmem:[%s949 + $0x10] sm:$0xf] %v661
      %v963 = vld [vmem:[%s949 + $0x14] sm:$0x1]
      %v964 = vsel %vm436, %v662, %v963
      %965 = vst [vmem:[%s949 + $0x14] sm:$0x1] %v964
      %v966 = vld [vmem:[%s949 + $0x18] sm:$0xf]
      %v967 = vsel %vm951, %v669, %v966
      %968 = vst [vmem:[%s949 + $0x18] sm:$0xf] %v967
      %969 = vst [vmem:[%s949 + $0x1c] sm:$0xf] %v678
      %v970 = vld [vmem:[%s949 + $0x20] sm:$0x1]
      %v971 = vsel %vm436, %v679, %v970
      %972 = vst [vmem:[%s949 + $0x20] sm:$0x1] %v971
      %v973 = vld [vmem:[%s949 + $0x24] sm:$0xf]
      %v974 = vsel %vm951, %v686, %v973
      %975 = vst [vmem:[%s949 + $0x24] sm:$0xf] %v974
      %976 = vst [vmem:[%s949 + $0x28] sm:$0xf] %v695
      %v977 = vld [vmem:[%s949 + $0x2c] sm:$0x1]
      %v978 = vsel %vm436, %v696, %v977
      %979 = vst [vmem:[%s949 + $0x2c] sm:$0x1] %v978
      %v980 = vld [vmem:[%s949 + $0x30] sm:$0xf]
      %v981 = vsel %vm951, %v703, %v980
      %982 = vst [vmem:[%s949 + $0x30] sm:$0xf] %v981
      %983 = vst [vmem:[%s949 + $0x34] sm:$0xf] %v712
      %v984 = vld [vmem:[%s949 + $0x38] sm:$0x1]
      %v985 = vsel %vm436, %v713, %v984
      %986 = vst [vmem:[%s949 + $0x38] sm:$0x1] %v985
      %v987 = vld [vmem:[%s949 + $0x3c] sm:$0xf]
      %v988 = vsel %vm951, %v720, %v987
      %989 = vst [vmem:[%s949 + $0x3c] sm:$0xf] %v988
      %990 = vst [vmem:[%s949 + $0x40] sm:$0xf] %v729
      %v991 = vld [vmem:[%s949 + $0x44] sm:$0x1]
      %v992 = vsel %vm436, %v730, %v991
      %993 = vst [vmem:[%s949 + $0x44] sm:$0x1] %v992
      %v994 = vld [vmem:[%s949 + $0x48] sm:$0xf]
      %v995 = vsel %vm951, %v737, %v994
      %996 = vst [vmem:[%s949 + $0x48] sm:$0xf] %v995
      %997 = vst [vmem:[%s949 + $0x4c] sm:$0xf] %v746
      %v998 = vld [vmem:[%s949 + $0x50] sm:$0x1]
      %v999 = vsel %vm436, %v747, %v998
      %1000 = vst [vmem:[%s949 + $0x50] sm:$0x1] %v999
      %v1001 = vld [vmem:[%s949 + $0x54] sm:$0xf]
      %v1002 = vsel %vm951, %v754, %v1001
      %1003 = vst [vmem:[%s949 + $0x54] sm:$0xf] %v1002
      %1004 = vst [vmem:[%s949 + $0x58] sm:$0xf] %v763
      %v1005 = vld [vmem:[%s949 + $0x5c] sm:$0x1]
      %v1006 = vsel %vm436, %v764, %v1005
      %1007 = vst [vmem:[%s949 + $0x5c] sm:$0x1] %v1006
      %v1008 = vld [vmem:[%s949 + $0x60] sm:$0xf]
      %v1009 = vsel %vm951, %v771, %v1008
      %1010 = vst [vmem:[%s949 + $0x60] sm:$0xf] %v1009
      %1011 = vst [vmem:[%s949 + $0x64] sm:$0xf] %v780
      %v1012 = vld [vmem:[%s949 + $0x68] sm:$0x1]
      %v1013 = vsel %vm436, %v781, %v1012
      %1014 = vst [vmem:[%s949 + $0x68] sm:$0x1] %v1013
      %v1015 = vld [vmem:[%s949 + $0x6c] sm:$0xf]
      %v1016 = vsel %vm951, %v788, %v1015
      %1017 = vst [vmem:[%s949 + $0x6c] sm:$0xf] %v1016
      %1018 = vst [vmem:[%s949 + $0x70] sm:$0xf] %v797
      %v1019 = vld [vmem:[%s949 + $0x74] sm:$0x1]
      %v1020 = vsel %vm436, %v798, %v1019
      %1021 = vst [vmem:[%s949 + $0x74] sm:$0x1] %v1020
      %v1022 = vld [vmem:[%s949 + $0x78] sm:$0xf]
      %v1023 = vsel %vm951, %v805, %v1022
      %1024 = vst [vmem:[%s949 + $0x78] sm:$0xf] %v1023
      %1025 = vst [vmem:[%s949 + $0x7c] sm:$0xf] %v814
      %v1026 = vld [vmem:[%s949 + $0x80] sm:$0x1]
      %v1027 = vsel %vm436, %v815, %v1026
      %1028 = vst [vmem:[%s949 + $0x80] sm:$0x1] %v1027
      %v1029 = vld [vmem:[%s949 + $0x84] sm:$0xf]
      %v1030 = vsel %vm951, %v822, %v1029
      %1031 = vst [vmem:[%s949 + $0x84] sm:$0xf] %v1030
      %1032 = vst [vmem:[%s949 + $0x88] sm:$0xf] %v831
      %v1033 = vld [vmem:[%s949 + $0x8c] sm:$0x1]
      %v1034 = vsel %vm436, %v832, %v1033
      %1035 = vst [vmem:[%s949 + $0x8c] sm:$0x1] %v1034
      %v1036 = vld [vmem:[%s949 + $0x90] sm:$0xf]
      %v1037 = vsel %vm951, %v839, %v1036
      %1038 = vst [vmem:[%s949 + $0x90] sm:$0xf] %v1037
      %1039 = vst [vmem:[%s949 + $0x94] sm:$0xf] %v848
      %v1040 = vld [vmem:[%s949 + $0x98] sm:$0x1]
      %v1041 = vsel %vm436, %v849, %v1040
      %1042 = vst [vmem:[%s949 + $0x98] sm:$0x1] %v1041
      %v1043 = vld [vmem:[%s949 + $0x9c] sm:$0xf]
      %v1044 = vsel %vm951, %v856, %v1043
      %1045 = vst [vmem:[%s949 + $0x9c] sm:$0xf] %v1044
      %1046 = vst [vmem:[%s949 + $0xa0] sm:$0xf] %v865
      %v1047 = vld [vmem:[%s949 + $0xa4] sm:$0x1]
      %v1048 = vsel %vm436, %v866, %v1047
      %1049 = vst [vmem:[%s949 + $0xa4] sm:$0x1] %v1048
      %v1050 = vld [vmem:[%s949 + $0xa8] sm:$0xf]
      %v1051 = vsel %vm951, %v873, %v1050
      %1052 = vst [vmem:[%s949 + $0xa8] sm:$0xf] %v1051
      %1053 = vst [vmem:[%s949 + $0xac] sm:$0xf] %v882
      %v1054 = vld [vmem:[%s949 + $0xb0] sm:$0x1]
      %v1055 = vsel %vm436, %v883, %v1054
      %1056 = vst [vmem:[%s949 + $0xb0] sm:$0x1] %v1055
      %v1057 = vld [vmem:[%s949 + $0xb4] sm:$0xf]
      %v1058 = vsel %vm951, %v890, %v1057
      %1059 = vst [vmem:[%s949 + $0xb4] sm:$0xf] %v1058
      %1060 = vst [vmem:[%s949 + $0xb8] sm:$0xf] %v899
      %v1061 = vld [vmem:[%s949 + $0xbc] sm:$0x1]
      %v1062 = vsel %vm436, %v900, %v1061
      %1063 = vst [vmem:[%s949 + $0xbc] sm:$0x1] %v1062
      %v1064 = vld [vmem:[#allocation2] sm:$0xf]
      %v1065 = vld [vmem:[#allocation2 + $0x4] sm:$0xf]
      %v1066 = vld [vmem:[#allocation2 + $0xc] sm:$0xf]
      %v1067 = vld [vmem:[#allocation2 + $0x10] sm:$0xf]
      %v1068 = vld [vmem:[#allocation2 + $0x18] sm:$0xf]
      %v1069 = vld [vmem:[#allocation2 + $0x1c] sm:$0xf]
      %v1070 = vld [vmem:[#allocation2 + $0x24] sm:$0xf]
      %v1071 = vld [vmem:[#allocation2 + $0x28] sm:$0xf]
      %v1072 = vld [vmem:[#allocation2 + $0x30] sm:$0xf]
      %v1073 = vld [vmem:[#allocation2 + $0x34] sm:$0xf]
      %v1074 = vld [vmem:[#allocation2 + $0x3c] sm:$0xf]
      %v1075 = vld [vmem:[#allocation2 + $0x40] sm:$0xf]
      %v1076 = vld [vmem:[#allocation2 + $0x48] sm:$0xf]
      %v1077 = vld [vmem:[#allocation2 + $0x4c] sm:$0xf]
      %v1078 = vld [vmem:[#allocation2 + $0x54] sm:$0xf]
      %v1079 = vld [vmem:[#allocation2 + $0x58] sm:$0xf]
      %v1080 = vld [vmem:[#allocation2 + $0x60] sm:$0xf]
      %v1081 = vld [vmem:[#allocation2 + $0x64] sm:$0xf]
      %v1082 = vld [vmem:[#allocation2 + $0x6c] sm:$0xf]
      %v1083 = vld [vmem:[#allocation2 + $0x70] sm:$0xf]
      %v1084 = vld [vmem:[#allocation2 + $0x78] sm:$0xf]
      %v1085 = vld [vmem:[#allocation2 + $0x7c] sm:$0xf]
      %v1086 = vld [vmem:[#allocation2 + $0x84] sm:$0xf]
      %v1087 = vld [vmem:[#allocation2 + $0x88] sm:$0xf]
      %v1088 = vld [vmem:[#allocation2 + $0x90] sm:$0xf]
      %v1089 = vld [vmem:[#allocation2 + $0x94] sm:$0xf]
      %v1090 = vld [vmem:[#allocation2 + $0x9c] sm:$0xf]
      %v1091 = vld [vmem:[#allocation2 + $0xa0] sm:$0xf]
      %v1092 = vld [vmem:[#allocation2 + $0xa8] sm:$0xf]
      %v1093 = vld [vmem:[#allocation2 + $0xac] sm:$0xf]
      %v1094 = vld [vmem:[#allocation2 + $0xb4] sm:$0xf]
      %v1095 = vld [vmem:[#allocation2 + $0xb8] sm:$0xf]
      %v1096 = vld [vmem:[%s1] sm:$0xf]
      %v1097 = vld [vmem:[%s1 + $0x4] sm:$0xf]
      %v1098 = vld [vmem:[%s1 + $0x8] sm:$0xf]
      %v1099 = vld [vmem:[%s1 + $0xc] sm:$0xf]
      %v1100 = vld [vmem:[%s1 + $0x10] sm:$0xf]
      %v1101 = vld [vmem:[%s1 + $0x14] sm:$0xf]
      %v1102 = vld [vmem:[%s1 + $0x18] sm:$0xf]
      %v1103 = vld [vmem:[%s1 + $0x1c] sm:$0xf]
      %v1104 = vld [vmem:[%s1 + $0x20] sm:$0xf]
      %v1105 = vld [vmem:[%s1 + $0x24] sm:$0xf]
      %v1106 = vld [vmem:[%s1 + $0x28] sm:$0xf]
      %v1107 = vld [vmem:[%s1 + $0x2c] sm:$0xf]
      %v1108 = vld [vmem:[%s1 + $0x30] sm:$0xf]
      %v1109 = vld [vmem:[%s1 + $0x34] sm:$0xf]
      %v1110 = vld [vmem:[%s1 + $0x38] sm:$0xf]
      %v1111 = vld [vmem:[%s1 + $0x3c] sm:$0xf]
      %v1112 = vld [vmem:[#allocation2 + $0x8] sm:$0x1]
      %v1113 = vld [vmem:[#allocation2 + $0x14] sm:$0x1]
      %v1114 = vld [vmem:[#allocation2 + $0x20] sm:$0x1]
      %v1115 = vld [vmem:[#allocation2 + $0x2c] sm:$0x1]
      %v1116 = vld [vmem:[#allocation2 + $0x38] sm:$0x1]
      %v1117 = vld [vmem:[#allocation2 + $0x44] sm:$0x1]
      %v1118 = vld [vmem:[#allocation2 + $0x50] sm:$0x1]
      %v1119 = vld [vmem:[#allocation2 + $0x5c] sm:$0x1]
      %v1120 = vld [vmem:[#allocation2 + $0x68] sm:$0x1]
      %v1121 = vld [vmem:[#allocation2 + $0x74] sm:$0x1]
      %v1122 = vld [vmem:[#allocation2 + $0x80] sm:$0x1]
      %v1123 = vld [vmem:[#allocation2 + $0x8c] sm:$0x1]
      %v1124 = vld [vmem:[#allocation2 + $0x98] sm:$0x1]
      %v1125 = vld [vmem:[#allocation2 + $0xa4] sm:$0x1]
      %v1126 = vld [vmem:[#allocation2 + $0xb0] sm:$0x1]
      %v1127 = vld [vmem:[#allocation2 + $0xbc] sm:$0x1]
      %vm1128 = vsmask.f32 3328
      %vm1129 = vsmask.f32 7440
      %vm1130 = vmor %vm1128, %vm1129
      %v1132 = vshrl.u32 %v1064, 16
      %v1134 = vrot.slane %v1132, 4
      %v1135 = vshll.u32 %v1064, 16
      %v1137 = vrot.slane %v1135, 5
      %v1138 = vor.u32 %v1134, %v1137
      %v1139 = vrot.slane %v1138, 4
      %v1141 = vshll.u32 %v1065, 16
      %v1143 = vrot.slane %v1141, 5
      %v1144 = vsel %vm1130, %v1139, %v1143
      %v1145 = vshrl.u32 %v1065, 16
      %v1147 = vrot.slane %v1145, 4
      %v1148 = vor.u32 %v1147, %v1143
      %v1149 = vrot.slane %v1148, 4
      %v1151 = vshll.u32 %v1112, 16
      %v1153 = vrot.slane %v1151, 5
      %v1154 = vsel %vm1130, %v1149, %v1153
      %v1156 = vshrl.u32 %v1066, 16
      %v1158 = vrot.slane %v1156, 4
      %v1159 = vshll.u32 %v1066, 16
      %v1161 = vrot.slane %v1159, 5
      %v1162 = vor.u32 %v1158, %v1161
      %v1163 = vrot.slane %v1162, 4
      %v1165 = vshll.u32 %v1067, 16
      %v1167 = vrot.slane %v1165, 5
      %v1168 = vsel %vm1130, %v1163, %v1167
      %v1169 = vshrl.u32 %v1067, 16
      %v1171 = vrot.slane %v1169, 4
      %v1172 = vor.u32 %v1171, %v1167
      %v1173 = vrot.slane %v1172, 4
      %v1175 = vshll.u32 %v1113, 16
      %v1177 = vrot.slane %v1175, 5
      %v1178 = vsel %vm1130, %v1173, %v1177
      %v1180 = vshrl.u32 %v1068, 16
      %v1182 = vrot.slane %v1180, 4
      %v1183 = vshll.u32 %v1068, 16
      %v1185 = vrot.slane %v1183, 5
      %v1186 = vor.u32 %v1182, %v1185
      %v1187 = vrot.slane %v1186, 4
      %v1189 = vshll.u32 %v1069, 16
      %v1191 = vrot.slane %v1189, 5
      %v1192 = vsel %vm1130, %v1187, %v1191
      %v1193 = vshrl.u32 %v1069, 16
      %v1195 = vrot.slane %v1193, 4
      %v1196 = vor.u32 %v1195, %v1191
      %v1197 = vrot.slane %v1196, 4
      %v1199 = vshll.u32 %v1114, 16
      %v1201 = vrot.slane %v1199, 5
      %v1202 = vsel %vm1130, %v1197, %v1201
      %v1204 = vshrl.u32 %v1070, 16
      %v1206 = vrot.slane %v1204, 4
      %v1207 = vshll.u32 %v1070, 16
      %v1209 = vrot.slane %v1207, 5
      %v1210 = vor.u32 %v1206, %v1209
      %v1211 = vrot.slane %v1210, 4
      %v1213 = vshll.u32 %v1071, 16
      %v1215 = vrot.slane %v1213, 5
      %v1216 = vsel %vm1130, %v1211, %v1215
      %v1217 = vshrl.u32 %v1071, 16
      %v1219 = vrot.slane %v1217, 4
      %v1220 = vor.u32 %v1219, %v1215
      %v1221 = vrot.slane %v1220, 4
      %v1223 = vshll.u32 %v1115, 16
      %v1225 = vrot.slane %v1223, 5
      %v1226 = vsel %vm1130, %v1221, %v1225
      %v1228 = vshrl.u32 %v1072, 16
      %v1230 = vrot.slane %v1228, 4
      %v1231 = vshll.u32 %v1072, 16
      %v1233 = vrot.slane %v1231, 5
      %v1234 = vor.u32 %v1230, %v1233
      %v1235 = vrot.slane %v1234, 4
      %v1237 = vshll.u32 %v1073, 16
      %v1239 = vrot.slane %v1237, 5
      %v1240 = vsel %vm1130, %v1235, %v1239
      %v1241 = vshrl.u32 %v1073, 16
      %v1243 = vrot.slane %v1241, 4
      %v1244 = vor.u32 %v1243, %v1239
      %v1245 = vrot.slane %v1244, 4
      %v1247 = vshll.u32 %v1116, 16
      %v1249 = vrot.slane %v1247, 5
      %v1250 = vsel %vm1130, %v1245, %v1249
      %v1252 = vshrl.u32 %v1074, 16
      %v1254 = vrot.slane %v1252, 4
      %v1255 = vshll.u32 %v1074, 16
      %v1257 = vrot.slane %v1255, 5
      %v1258 = vor.u32 %v1254, %v1257
      %v1259 = vrot.slane %v1258, 4
      %v1261 = vshll.u32 %v1075, 16
      %v1263 = vrot.slane %v1261, 5
      %v1264 = vsel %vm1130, %v1259, %v1263
      %v1265 = vshrl.u32 %v1075, 16
      %v1267 = vrot.slane %v1265, 4
      %v1268 = vor.u32 %v1267, %v1263
      %v1269 = vrot.slane %v1268, 4
      %v1271 = vshll.u32 %v1117, 16
      %v1273 = vrot.slane %v1271, 5
      %v1274 = vsel %vm1130, %v1269, %v1273
      %v1276 = vshrl.u32 %v1076, 16
      %v1278 = vrot.slane %v1276, 4
      %v1279 = vshll.u32 %v1076, 16
      %v1281 = vrot.slane %v1279, 5
      %v1282 = vor.u32 %v1278, %v1281
      %v1283 = vrot.slane %v1282, 4
      %v1285 = vshll.u32 %v1077, 16
      %v1287 = vrot.slane %v1285, 5
      %v1288 = vsel %vm1130, %v1283, %v1287
      %v1289 = vshrl.u32 %v1077, 16
      %v1291 = vrot.slane %v1289, 4
      %v1292 = vor.u32 %v1291, %v1287
      %v1293 = vrot.slane %v1292, 4
      %v1295 = vshll.u32 %v1118, 16
      %v1297 = vrot.slane %v1295, 5
      %v1298 = vsel %vm1130, %v1293, %v1297
      %v1300 = vshrl.u32 %v1078, 16
      %v1302 = vrot.slane %v1300, 4
      %v1303 = vshll.u32 %v1078, 16
      %v1305 = vrot.slane %v1303, 5
      %v1306 = vor.u32 %v1302, %v1305
      %v1307 = vrot.slane %v1306, 4
      %v1309 = vshll.u32 %v1079, 16
      %v1311 = vrot.slane %v1309, 5
      %v1312 = vsel %vm1130, %v1307, %v1311
      %v1313 = vshrl.u32 %v1079, 16
      %v1315 = vrot.slane %v1313, 4
      %v1316 = vor.u32 %v1315, %v1311
      %v1317 = vrot.slane %v1316, 4
      %v1319 = vshll.u32 %v1119, 16
      %v1321 = vrot.slane %v1319, 5
      %v1322 = vsel %vm1130, %v1317, %v1321
      %v1324 = vshrl.u32 %v1080, 16
      %v1326 = vrot.slane %v1324, 4
      %v1327 = vshll.u32 %v1080, 16
      %v1329 = vrot.slane %v1327, 5
      %v1330 = vor.u32 %v1326, %v1329
      %v1331 = vrot.slane %v1330, 4
      %v1333 = vshll.u32 %v1081, 16
      %v1335 = vrot.slane %v1333, 5
      %v1336 = vsel %vm1130, %v1331, %v1335
      %v1337 = vshrl.u32 %v1081, 16
      %v1339 = vrot.slane %v1337, 4
      %v1340 = vor.u32 %v1339, %v1335
      %v1341 = vrot.slane %v1340, 4
      %v1343 = vshll.u32 %v1120, 16
      %v1345 = vrot.slane %v1343, 5
      %v1346 = vsel %vm1130, %v1341, %v1345
      %v1348 = vshrl.u32 %v1082, 16
      %v1350 = vrot.slane %v1348, 4
      %v1351 = vshll.u32 %v1082, 16
      %v1353 = vrot.slane %v1351, 5
      %v1354 = vor.u32 %v1350, %v1353
      %v1355 = vrot.slane %v1354, 4
      %v1357 = vshll.u32 %v1083, 16
      %v1359 = vrot.slane %v1357, 5
      %v1360 = vsel %vm1130, %v1355, %v1359
      %v1361 = vshrl.u32 %v1083, 16
      %v1363 = vrot.slane %v1361, 4
      %v1364 = vor.u32 %v1363, %v1359
      %v1365 = vrot.slane %v1364, 4
      %v1367 = vshll.u32 %v1121, 16
      %v1369 = vrot.slane %v1367, 5
      %v1370 = vsel %vm1130, %v1365, %v1369
      %v1372 = vshrl.u32 %v1084, 16
      %v1374 = vrot.slane %v1372, 4
      %v1375 = vshll.u32 %v1084, 16
      %v1377 = vrot.slane %v1375, 5
      %v1378 = vor.u32 %v1374, %v1377
      %v1379 = vrot.slane %v1378, 4
      %v1381 = vshll.u32 %v1085, 16
      %v1383 = vrot.slane %v1381, 5
      %v1384 = vsel %vm1130, %v1379, %v1383
      %v1385 = vshrl.u32 %v1085, 16
      %v1387 = vrot.slane %v1385, 4
      %v1388 = vor.u32 %v1387, %v1383
      %v1389 = vrot.slane %v1388, 4
      %v1391 = vshll.u32 %v1122, 16
      %v1393 = vrot.slane %v1391, 5
      %v1394 = vsel %vm1130, %v1389, %v1393
      %v1396 = vshrl.u32 %v1086, 16
      %v1398 = vrot.slane %v1396, 4
      %v1399 = vshll.u32 %v1086, 16
      %v1401 = vrot.slane %v1399, 5
      %v1402 = vor.u32 %v1398, %v1401
      %v1403 = vrot.slane %v1402, 4
      %v1405 = vshll.u32 %v1087, 16
      %v1407 = vrot.slane %v1405, 5
      %v1408 = vsel %vm1130, %v1403, %v1407
      %v1409 = vshrl.u32 %v1087, 16
      %v1411 = vrot.slane %v1409, 4
      %v1412 = vor.u32 %v1411, %v1407
      %v1413 = vrot.slane %v1412, 4
      %v1415 = vshll.u32 %v1123, 16
      %v1417 = vrot.slane %v1415, 5
      %v1418 = vsel %vm1130, %v1413, %v1417
      %v1420 = vshrl.u32 %v1088, 16
      %v1422 = vrot.slane %v1420, 4
      %v1423 = vshll.u32 %v1088, 16
      %v1425 = vrot.slane %v1423, 5
      %v1426 = vor.u32 %v1422, %v1425
      %v1427 = vrot.slane %v1426, 4
      %v1429 = vshll.u32 %v1089, 16
      %v1431 = vrot.slane %v1429, 5
      %v1432 = vsel %vm1130, %v1427, %v1431
      %v1433 = vshrl.u32 %v1089, 16
      %v1435 = vrot.slane %v1433, 4
      %v1436 = vor.u32 %v1435, %v1431
      %v1437 = vrot.slane %v1436, 4
      %v1439 = vshll.u32 %v1124, 16
      %v1441 = vrot.slane %v1439, 5
      %v1442 = vsel %vm1130, %v1437, %v1441
      %v1444 = vshrl.u32 %v1090, 16
      %v1446 = vrot.slane %v1444, 4
      %v1447 = vshll.u32 %v1090, 16
      %v1449 = vrot.slane %v1447, 5
      %v1450 = vor.u32 %v1446, %v1449
      %v1451 = vrot.slane %v1450, 4
      %v1453 = vshll.u32 %v1091, 16
      %v1455 = vrot.slane %v1453, 5
      %v1456 = vsel %vm1130, %v1451, %v1455
      %v1457 = vshrl.u32 %v1091, 16
      %v1459 = vrot.slane %v1457, 4
      %v1460 = vor.u32 %v1459, %v1455
      %v1461 = vrot.slane %v1460, 4
      %v1463 = vshll.u32 %v1125, 16
      %v1465 = vrot.slane %v1463, 5
      %v1466 = vsel %vm1130, %v1461, %v1465
      %v1468 = vshrl.u32 %v1092, 16
      %v1470 = vrot.slane %v1468, 4
      %v1471 = vshll.u32 %v1092, 16
      %v1473 = vrot.slane %v1471, 5
      %v1474 = vor.u32 %v1470, %v1473
      %v1475 = vrot.slane %v1474, 4
      %v1477 = vshll.u32 %v1093, 16
      %v1479 = vrot.slane %v1477, 5
      %v1480 = vsel %vm1130, %v1475, %v1479
      %v1481 = vshrl.u32 %v1093, 16
      %v1483 = vrot.slane %v1481, 4
      %v1484 = vor.u32 %v1483, %v1479
      %v1485 = vrot.slane %v1484, 4
      %v1487 = vshll.u32 %v1126, 16
      %v1489 = vrot.slane %v1487, 5
      %v1490 = vsel %vm1130, %v1485, %v1489
      %v1492 = vshrl.u32 %v1094, 16
      %v1494 = vrot.slane %v1492, 4
      %v1495 = vshll.u32 %v1094, 16
      %v1497 = vrot.slane %v1495, 5
      %v1498 = vor.u32 %v1494, %v1497
      %v1499 = vrot.slane %v1498, 4
      %v1501 = vshll.u32 %v1095, 16
      %v1503 = vrot.slane %v1501, 5
      %v1504 = vsel %vm1130, %v1499, %v1503
      %v1505 = vshrl.u32 %v1095, 16
      %v1507 = vrot.slane %v1505, 4
      %v1508 = vor.u32 %v1507, %v1503
      %v1509 = vrot.slane %v1508, 4
      %v1511 = vshll.u32 %v1127, 16
      %v1513 = vrot.slane %v1511, 5
      %v1514 = vsel %vm1130, %v1509, %v1513
      %s1515 = scalar_lea.vmem %s1, 64
      %v1516 = vld [vmem:[%s1515] sm:$0xf]
      %v1517 = vld [vmem:[%s1515 + $0x4] sm:$0xf]
      %v1518 = vld [vmem:[%s1515 + $0x8] sm:$0xf]
      %v1519 = vld [vmem:[%s1515 + $0xc] sm:$0xf]
      %v1520 = vld [vmem:[%s1515 + $0x10] sm:$0xf]
      %v1521 = vld [vmem:[%s1515 + $0x14] sm:$0xf]
      %v1522 = vld [vmem:[%s1515 + $0x18] sm:$0xf]
      %v1523 = vld [vmem:[%s1515 + $0x1c] sm:$0xf]
      %v1524 = vld [vmem:[%s1515 + $0x20] sm:$0xf]
      %v1525 = vld [vmem:[%s1515 + $0x24] sm:$0xf]
      %v1526 = vld [vmem:[%s1515 + $0x28] sm:$0xf]
      %v1527 = vld [vmem:[%s1515 + $0x2c] sm:$0xf]
      %v1528 = vld [vmem:[%s1515 + $0x30] sm:$0xf]
      %v1529 = vld [vmem:[%s1515 + $0x34] sm:$0xf]
      %v1530 = vld [vmem:[%s1515 + $0x38] sm:$0xf]
      %v1531 = vld [vmem:[%s1515 + $0x3c] sm:$0xf]
      %v1532 = vunpack.c.l.b16 %v1144
      %v1533 = vunpack.c.l.b16 %v1154
      %v1534 = vunpack.c.l.b16 %v1168
      %v1535 = vunpack.c.l.b16 %v1178
      %v1536 = vunpack.c.l.b16 %v1192
      %v1537 = vunpack.c.l.b16 %v1202
      %v1538 = vunpack.c.l.b16 %v1216
      %v1539 = vunpack.c.l.b16 %v1226
      %v1540 = vunpack.c.l.b16 %v1240
      %v1541 = vunpack.c.l.b16 %v1250
      %v1542 = vunpack.c.l.b16 %v1264
      %v1543 = vunpack.c.l.b16 %v1274
      %v1544 = vunpack.c.l.b16 %v1288
      %v1545 = vunpack.c.l.b16 %v1298
      %v1546 = vunpack.c.l.b16 %v1312
      %v1547 = vunpack.c.l.b16 %v1322
      %v1548 = vunpack.c.l.b16 %v1336
      %v1549 = vunpack.c.l.b16 %v1346
      %v1550 = vunpack.c.l.b16 %v1360
      %v1551 = vunpack.c.l.b16 %v1370
      %v1552 = vunpack.c.l.b16 %v1384
      %v1553 = vunpack.c.l.b16 %v1394
      %v1554 = vunpack.c.l.b16 %v1408
      %v1555 = vunpack.c.l.b16 %v1418
      %v1556 = vunpack.c.l.b16 %v1432
      %v1557 = vunpack.c.l.b16 %v1442
      %v1558 = vunpack.c.l.b16 %v1456
      %v1559 = vunpack.c.l.b16 %v1466
      %v1560 = vunpack.c.l.b16 %v1480
      %v1561 = vunpack.c.l.b16 %v1490
      %v1562 = vunpack.c.l.b16 %v1504
      %v1563 = vunpack.c.l.b16 %v1514
      %v1564 = vpack.c.b16 %v1533, %v1532
      %v1565 = vpack.c.b16 %v1535, %v1534
      %v1566 = vpack.c.b16 %v1537, %v1536
      %v1567 = vpack.c.b16 %v1539, %v1538
      %v1568 = vpack.c.b16 %v1541, %v1540
      %v1569 = vpack.c.b16 %v1543, %v1542
      %v1570 = vpack.c.b16 %v1545, %v1544
      %v1571 = vpack.c.b16 %v1547, %v1546
      %v1572 = vpack.c.b16 %v1549, %v1548
      %v1573 = vpack.c.b16 %v1551, %v1550
      %v1574 = vpack.c.b16 %v1553, %v1552
      %v1575 = vpack.c.b16 %v1555, %v1554
      %v1576 = vpack.c.b16 %v1557, %v1556
      %v1577 = vpack.c.b16 %v1559, %v1558
      %v1578 = vpack.c.b16 %v1561, %v1560
      %v1579 = vpack.c.b16 %v1563, %v1562
      %v1612 = vunpack.c.l.b16 %v1516
      %v1613 = vunpack.c.l.b16 %v1517
      %v1614 = vunpack.c.l.b16 %v1518
      %v1615 = vunpack.c.l.b16 %v1519
      %v1616 = vunpack.c.l.b16 %v1520
      %v1617 = vunpack.c.l.b16 %v1521
      %v1618 = vunpack.c.l.b16 %v1522
      %v1619 = vunpack.c.l.b16 %v1523
      %v1620 = vunpack.c.l.b16 %v1524
      %v1621 = vunpack.c.l.b16 %v1525
      %v1622 = vunpack.c.l.b16 %v1526
      %v1623 = vunpack.c.l.b16 %v1527
      %v1624 = vunpack.c.l.b16 %v1528
      %v1625 = vunpack.c.l.b16 %v1529
      %v1626 = vunpack.c.l.b16 %v1530
      %v1627 = vunpack.c.l.b16 %v1531
      %v1628 = vpack.c.b16 %v1613, %v1612
      %v1629 = vpack.c.b16 %v1615, %v1614
      %v1630 = vpack.c.b16 %v1617, %v1616
      %v1631 = vpack.c.b16 %v1619, %v1618
      %v1632 = vpack.c.b16 %v1621, %v1620
      %v1633 = vpack.c.b16 %v1623, %v1622
      %v1634 = vpack.c.b16 %v1625, %v1624
      %v1635 = vpack.c.b16 %v1627, %v1626
      %1644 = vmatprep.subr.bf16.mxu0 0
      %1645 = vmatpush1.bf16.msra.mxu0 %v1635
      %1646 = vmatprep.subr.bf16.mxu0 0
      %1647 = vmatpush1.bf16.msra.mxu0 %v1634
      %1648 = vmatprep.subr.bf16.mxu0 0
      %1649 = vmatpush1.bf16.msra.mxu0 %v1633
      %1650 = vmatprep.subr.bf16.mxu0 0
      %1651 = vmatpush1.bf16.msra.mxu0 %v1632
      %1652 = vmatprep.subr.bf16.mxu0 0
      %1653 = vmatpush1.bf16.msra.mxu0 %v1631
      %1654 = vmatprep.subr.bf16.mxu0 0
      %1655 = vmatpush1.bf16.msra.mxu0 %v1630
      %1656 = vmatprep.subr.bf16.mxu0 0
      %1657 = vmatpush1.bf16.msra.mxu0 %v1629
      %1658 = vmatprep.subr.bf16.mxu0 0
      %1659 = vmatpush1.bf16.msra.mxu0 %v1628
      %1660 = vmatprep.subr.bf16.mxu0 0
      %1661 = vmatpush2.bf16.msra.mxu0 0
      %1662 = vmatprep.subr.bf16.mxu0 0
      %1663 = vmatpush2.bf16.msra.mxu0 0
      %1664 = vmatprep.subr.bf16.mxu0 0
      %1665 = vmatpush2.bf16.msra.mxu0 0
      %1666 = vmatprep.subr.bf16.mxu0 0
      %1667 = vmatpush2.bf16.msra.mxu0 0
      %1668 = vmatprep.subr.bf16.mxu0 0
      %1669 = vmatpush2.bf16.msra.mxu0 0
      %1670 = vmatprep.subr.bf16.mxu0 0
      %1671 = vmatpush2.bf16.msra.mxu0 0
      %1672 = vmatprep.subr.bf16.mxu0 0
      %1673 = vmatpush2.bf16.msra.mxu0 0
      %1674 = vmatprep.subr.bf16.mxu0 0
      %1675 = vmatpush2.bf16.msra.mxu0 0
      %1676 = vmatprep.mubr.bf16.mxu0 0
      %1677 = vmatmul.mubr.bf16.gmra.mxu0 %v1564
      %v1678 = vpop.f32.mrf.mxu0
      %v1679 = vadd.f32 0.0, %v1678
      %v1680 = vpop.f32.mrf.mxu0
      %v1681 = vpop.f32.mrf.mxu0
      %v1682 = vadd.f32 0.0, %v1681
      %v1683 = vpop.f32.mrf.mxu0
      %1684 = vmatprep.mubr.bf16.mxu0 0
      %1685 = vmatmul.mubr.bf16.gmra.mxu0 %v1565
      %v1686 = vpop.f32.mrf.mxu0
      %v1687 = vadd.f32 0.0, %v1686
      %v1688 = vpop.f32.mrf.mxu0
      %v1689 = vpop.f32.mrf.mxu0
      %v1690 = vadd.f32 0.0, %v1689
      %v1691 = vpop.f32.mrf.mxu0
      %1692 = vmatprep.mubr.bf16.mxu0 0
      %1693 = vmatmul.mubr.bf16.gmra.mxu0 %v1566
      %v1694 = vpop.f32.mrf.mxu0
      %v1695 = vadd.f32 0.0, %v1694
      %v1696 = vpop.f32.mrf.mxu0
      %v1697 = vpop.f32.mrf.mxu0
      %v1698 = vadd.f32 0.0, %v1697
      %v1699 = vpop.f32.mrf.mxu0
      %1700 = vmatprep.mubr.bf16.mxu0 0
      %1701 = vmatmul.mubr.bf16.gmra.mxu0 %v1567
      %v1702 = vpop.f32.mrf.mxu0
      %v1703 = vadd.f32 0.0, %v1702
      %v1704 = vpop.f32.mrf.mxu0
      %v1705 = vpop.f32.mrf.mxu0
      %v1706 = vadd.f32 0.0, %v1705
      %v1707 = vpop.f32.mrf.mxu0
      %1708 = vmatprep.mubr.bf16.mxu0 0
      %1709 = vmatmul.mubr.bf16.gmra.mxu0 %v1568
      %v1710 = vpop.f32.mrf.mxu0
      %v1711 = vadd.f32 0.0, %v1710
      %v1712 = vpop.f32.mrf.mxu0
      %v1713 = vpop.f32.mrf.mxu0
      %v1714 = vadd.f32 0.0, %v1713
      %v1715 = vpop.f32.mrf.mxu0
      %1716 = vmatprep.mubr.bf16.mxu0 0
      %1717 = vmatmul.mubr.bf16.gmra.mxu0 %v1569
      %v1718 = vpop.f32.mrf.mxu0
      %v1719 = vadd.f32 0.0, %v1718
      %v1720 = vpop.f32.mrf.mxu0
      %v1721 = vpop.f32.mrf.mxu0
      %v1722 = vadd.f32 0.0, %v1721
      %v1723 = vpop.f32.mrf.mxu0
      %1724 = vmatprep.mubr.bf16.mxu0 0
      %1725 = vmatmul.mubr.bf16.gmra.mxu0 %v1570
      %v1726 = vpop.f32.mrf.mxu0
      %v1727 = vadd.f32 0.0, %v1726
      %v1728 = vpop.f32.mrf.mxu0
      %v1729 = vpop.f32.mrf.mxu0
      %v1730 = vadd.f32 0.0, %v1729
      %v1731 = vpop.f32.mrf.mxu0
      %1732 = vmatprep.mubr.bf16.mxu0 0
      %1733 = vmatmul.mubr.bf16.gmra.mxu0 %v1571
      %v1734 = vpop.f32.mrf.mxu0
      %v1735 = vadd.f32 0.0, %v1734
      %v1736 = vpop.f32.mrf.mxu0
      %v1737 = vpop.f32.mrf.mxu0
      %v1738 = vadd.f32 0.0, %v1737
      %v1739 = vpop.f32.mrf.mxu0
      %1740 = vmatprep.mubr.bf16.mxu0 0
      %1741 = vmatmul.mubr.bf16.gmra.mxu0 %v1572
      %v1742 = vpop.f32.mrf.mxu0
      %v1743 = vadd.f32 0.0, %v1742
      %v1744 = vpop.f32.mrf.mxu0
      %v1745 = vpop.f32.mrf.mxu0
      %v1746 = vadd.f32 0.0, %v1745
      %v1747 = vpop.f32.mrf.mxu0
      %1748 = vmatprep.mubr.bf16.mxu0 0
      %1749 = vmatmul.mubr.bf16.gmra.mxu0 %v1573
      %v1750 = vpop.f32.mrf.mxu0
      %v1751 = vadd.f32 0.0, %v1750
      %v1752 = vpop.f32.mrf.mxu0
      %v1753 = vpop.f32.mrf.mxu0
      %v1754 = vadd.f32 0.0, %v1753
      %v1755 = vpop.f32.mrf.mxu0
      %1756 = vmatprep.mubr.bf16.mxu0 0
      %1757 = vmatmul.mubr.bf16.gmra.mxu0 %v1574
      %v1758 = vpop.f32.mrf.mxu0
      %v1759 = vadd.f32 0.0, %v1758
      %v1760 = vpop.f32.mrf.mxu0
      %v1761 = vpop.f32.mrf.mxu0
      %v1762 = vadd.f32 0.0, %v1761
      %v1763 = vpop.f32.mrf.mxu0
      %1764 = vmatprep.mubr.bf16.mxu0 0
      %1765 = vmatmul.mubr.bf16.gmra.mxu0 %v1575
      %v1766 = vpop.f32.mrf.mxu0
      %v1767 = vadd.f32 0.0, %v1766
      %v1768 = vpop.f32.mrf.mxu0
      %v1769 = vpop.f32.mrf.mxu0
      %v1770 = vadd.f32 0.0, %v1769
      %v1771 = vpop.f32.mrf.mxu0
      %1772 = vmatprep.mubr.bf16.mxu0 0
      %1773 = vmatmul.mubr.bf16.gmra.mxu0 %v1576
      %v1774 = vpop.f32.mrf.mxu0
      %v1775 = vadd.f32 0.0, %v1774
      %v1776 = vpop.f32.mrf.mxu0
      %v1777 = vpop.f32.mrf.mxu0
      %v1778 = vadd.f32 0.0, %v1777
      %v1779 = vpop.f32.mrf.mxu0
      %1780 = vmatprep.mubr.bf16.mxu0 0
      %1781 = vmatmul.mubr.bf16.gmra.mxu0 %v1577
      %v1782 = vpop.f32.mrf.mxu0
      %v1783 = vadd.f32 0.0, %v1782
      %v1784 = vpop.f32.mrf.mxu0
      %v1785 = vpop.f32.mrf.mxu0
      %v1786 = vadd.f32 0.0, %v1785
      %v1787 = vpop.f32.mrf.mxu0
      %1788 = vmatprep.mubr.bf16.mxu0 0
      %1789 = vmatmul.mubr.bf16.gmra.mxu0 %v1578
      %v1790 = vpop.f32.mrf.mxu0
      %v1791 = vadd.f32 0.0, %v1790
      %v1792 = vpop.f32.mrf.mxu0
      %v1793 = vpop.f32.mrf.mxu0
      %v1794 = vadd.f32 0.0, %v1793
      %v1795 = vpop.f32.mrf.mxu0
      %1796 = vmatprep.mubr.bf16.mxu0 0
      %1797 = vmatmul.mubr.bf16.gmra.mxu0 %v1579
      %v1798 = vpop.f32.mrf.mxu0
      %v1799 = vadd.f32 0.0, %v1798
      %v1800 = vpop.f32.mrf.mxu0
      %v1801 = vpop.f32.mrf.mxu0
      %v1802 = vadd.f32 0.0, %v1801
      %v1803 = vpop.f32.mrf.mxu0
      %1804 = vdwg.mxu0
      %v1837 = vunpack.c.l.b16 %v1064
      %v1838 = vunpack.c.l.b16 %v1065
      %v1839 = vunpack.c.l.b16 %v1066
      %v1840 = vunpack.c.l.b16 %v1067
      %v1841 = vunpack.c.l.b16 %v1068
      %v1842 = vunpack.c.l.b16 %v1069
      %v1843 = vunpack.c.l.b16 %v1070
      %v1844 = vunpack.c.l.b16 %v1071
      %v1845 = vunpack.c.l.b16 %v1072
      %v1846 = vunpack.c.l.b16 %v1073
      %v1847 = vunpack.c.l.b16 %v1074
      %v1848 = vunpack.c.l.b16 %v1075
      %v1849 = vunpack.c.l.b16 %v1076
      %v1850 = vunpack.c.l.b16 %v1077
      %v1851 = vunpack.c.l.b16 %v1078
      %v1852 = vunpack.c.l.b16 %v1079
      %v1853 = vunpack.c.l.b16 %v1080
      %v1854 = vunpack.c.l.b16 %v1081
      %v1855 = vunpack.c.l.b16 %v1082
      %v1856 = vunpack.c.l.b16 %v1083
      %v1857 = vunpack.c.l.b16 %v1084
      %v1858 = vunpack.c.l.b16 %v1085
      %v1859 = vunpack.c.l.b16 %v1086
      %v1860 = vunpack.c.l.b16 %v1087
      %v1861 = vunpack.c.l.b16 %v1088
      %v1862 = vunpack.c.l.b16 %v1089
      %v1863 = vunpack.c.l.b16 %v1090
      %v1864 = vunpack.c.l.b16 %v1091
      %v1865 = vunpack.c.l.b16 %v1092
      %v1866 = vunpack.c.l.b16 %v1093
      %v1867 = vunpack.c.l.b16 %v1094
      %v1868 = vunpack.c.l.b16 %v1095
      %v1869 = vpack.c.b16 %v1838, %v1837
      %v1870 = vpack.c.b16 %v1840, %v1839
      %v1871 = vpack.c.b16 %v1842, %v1841
      %v1872 = vpack.c.b16 %v1844, %v1843
      %v1873 = vpack.c.b16 %v1846, %v1845
      %v1874 = vpack.c.b16 %v1848, %v1847
      %v1875 = vpack.c.b16 %v1850, %v1849
      %v1876 = vpack.c.b16 %v1852, %v1851
      %v1877 = vpack.c.b16 %v1854, %v1853
      %v1878 = vpack.c.b16 %v1856, %v1855
      %v1879 = vpack.c.b16 %v1858, %v1857
      %v1880 = vpack.c.b16 %v1860, %v1859
      %v1881 = vpack.c.b16 %v1862, %v1861
      %v1882 = vpack.c.b16 %v1864, %v1863
      %v1883 = vpack.c.b16 %v1866, %v1865
      %v1884 = vpack.c.b16 %v1868, %v1867
      %v1917 = vunpack.c.l.b16 %v1096
      %v1918 = vunpack.c.l.b16 %v1097
      %v1919 = vunpack.c.l.b16 %v1098
      %v1920 = vunpack.c.l.b16 %v1099
      %v1921 = vunpack.c.l.b16 %v1100
      %v1922 = vunpack.c.l.b16 %v1101
      %v1923 = vunpack.c.l.b16 %v1102
      %v1924 = vunpack.c.l.b16 %v1103
      %v1925 = vunpack.c.l.b16 %v1104
      %v1926 = vunpack.c.l.b16 %v1105
      %v1927 = vunpack.c.l.b16 %v1106
      %v1928 = vunpack.c.l.b16 %v1107
      %v1929 = vunpack.c.l.b16 %v1108
      %v1930 = vunpack.c.l.b16 %v1109
      %v1931 = vunpack.c.l.b16 %v1110
      %v1932 = vunpack.c.l.b16 %v1111
      %v1933 = vpack.c.b16 %v1918, %v1917
      %v1934 = vpack.c.b16 %v1920, %v1919
      %v1935 = vpack.c.b16 %v1922, %v1921
      %v1936 = vpack.c.b16 %v1924, %v1923
      %v1937 = vpack.c.b16 %v1926, %v1925
      %v1938 = vpack.c.b16 %v1928, %v1927
      %v1939 = vpack.c.b16 %v1930, %v1929
      %v1940 = vpack.c.b16 %v1932, %v1931
      %1949 = vmatprep.subr.bf16.mxu0 0
      %1950 = vmatpush1.bf16.msra.mxu0 %v1940
      %1951 = vmatprep.subr.bf16.mxu0 0
      %1952 = vmatpush1.bf16.msra.mxu0 %v1939
      %1953 = vmatprep.subr.bf16.mxu0 0
      %1954 = vmatpush1.bf16.msra.mxu0 %v1938
      %1955 = vmatprep.subr.bf16.mxu0 0
      %1956 = vmatpush1.bf16.msra.mxu0 %v1937
      %1957 = vmatprep.subr.bf16.mxu0 0
      %1958 = vmatpush1.bf16.msra.mxu0 %v1936
      %1959 = vmatprep.subr.bf16.mxu0 0
      %1960 = vmatpush1.bf16.msra.mxu0 %v1935
      %1961 = vmatprep.subr.bf16.mxu0 0
      %1962 = vmatpush1.bf16.msra.mxu0 %v1934
      %1963 = vmatprep.subr.bf16.mxu0 0
      %1964 = vmatpush1.bf16.msra.mxu0 %v1933
      %1965 = vmatprep.subr.bf16.mxu0 0
      %1966 = vmatpush2.bf16.msra.mxu0 0
      %1967 = vmatprep.subr.bf16.mxu0 0
      %1968 = vmatpush2.bf16.msra.mxu0 0
      %1969 = vmatprep.subr.bf16.mxu0 0
      %1970 = vmatpush2.bf16.msra.mxu0 0
      %1971 = vmatprep.subr.bf16.mxu0 0
      %1972 = vmatpush2.bf16.msra.mxu0 0
      %1973 = vmatprep.subr.bf16.mxu0 0
      %1974 = vmatpush2.bf16.msra.mxu0 0
      %1975 = vmatprep.subr.bf16.mxu0 0
      %1976 = vmatpush2.bf16.msra.mxu0 0
      %1977 = vmatprep.subr.bf16.mxu0 0
      %1978 = vmatpush2.bf16.msra.mxu0 0
      %1979 = vmatprep.subr.bf16.mxu0 0
      %1980 = vmatpush2.bf16.msra.mxu0 0
      %1981 = vmatprep.mubr.bf16.mxu0 0
      %1982 = vmatmul.mubr.bf16.gmra.mxu0 %v1869
      %v1983 = vpop.f32.mrf.mxu0
      %v1984 = vadd.f32 %v1679, %v1983
      %v1985 = vpop.f32.mrf.mxu0
      %v1986 = vpop.f32.mrf.mxu0
      %v1987 = vadd.f32 %v1682, %v1986
      %v1988 = vpop.f32.mrf.mxu0
      %1989 = vmatprep.mubr.bf16.mxu0 0
      %1990 = vmatmul.mubr.bf16.gmra.mxu0 %v1870
      %v1991 = vpop.f32.mrf.mxu0
      %v1992 = vadd.f32 %v1687, %v1991
      %v1993 = vpop.f32.mrf.mxu0
      %v1994 = vpop.f32.mrf.mxu0
      %v1995 = vadd.f32 %v1690, %v1994
      %v1996 = vpop.f32.mrf.mxu0
      %1997 = vmatprep.mubr.bf16.mxu0 0
      %1998 = vmatmul.mubr.bf16.gmra.mxu0 %v1871
      %v1999 = vpop.f32.mrf.mxu0
      %v2000 = vadd.f32 %v1695, %v1999
      %v2001 = vpop.f32.mrf.mxu0
      %v2002 = vpop.f32.mrf.mxu0
      %v2003 = vadd.f32 %v1698, %v2002
      %v2004 = vpop.f32.mrf.mxu0
      %2005 = vmatprep.mubr.bf16.mxu0 0
      %2006 = vmatmul.mubr.bf16.gmra.mxu0 %v1872
      %v2007 = vpop.f32.mrf.mxu0
      %v2008 = vadd.f32 %v1703, %v2007
      %v2009 = vpop.f32.mrf.mxu0
      %v2010 = vpop.f32.mrf.mxu0
      %v2011 = vadd.f32 %v1706, %v2010
      %v2012 = vpop.f32.mrf.mxu0
      %2013 = vmatprep.mubr.bf16.mxu0 0
      %2014 = vmatmul.mubr.bf16.gmra.mxu0 %v1873
      %v2015 = vpop.f32.mrf.mxu0
      %v2016 = vadd.f32 %v1711, %v2015
      %v2017 = vpop.f32.mrf.mxu0
      %v2018 = vpop.f32.mrf.mxu0
      %v2019 = vadd.f32 %v1714, %v2018
      %v2020 = vpop.f32.mrf.mxu0
      %2021 = vmatprep.mubr.bf16.mxu0 0
      %2022 = vmatmul.mubr.bf16.gmra.mxu0 %v1874
      %v2023 = vpop.f32.mrf.mxu0
      %v2024 = vadd.f32 %v1719, %v2023
      %v2025 = vpop.f32.mrf.mxu0
      %v2026 = vpop.f32.mrf.mxu0
      %v2027 = vadd.f32 %v1722, %v2026
      %v2028 = vpop.f32.mrf.mxu0
      %2029 = vmatprep.mubr.bf16.mxu0 0
      %2030 = vmatmul.mubr.bf16.gmra.mxu0 %v1875
      %v2031 = vpop.f32.mrf.mxu0
      %v2032 = vadd.f32 %v1727, %v2031
      %v2033 = vpop.f32.mrf.mxu0
      %v2034 = vpop.f32.mrf.mxu0
      %v2035 = vadd.f32 %v1730, %v2034
      %v2036 = vpop.f32.mrf.mxu0
      %2037 = vmatprep.mubr.bf16.mxu0 0
      %2038 = vmatmul.mubr.bf16.gmra.mxu0 %v1876
      %v2039 = vpop.f32.mrf.mxu0
      %v2040 = vadd.f32 %v1735, %v2039
      %v2041 = vpop.f32.mrf.mxu0
      %v2042 = vpop.f32.mrf.mxu0
      %v2043 = vadd.f32 %v1738, %v2042
      %v2044 = vpop.f32.mrf.mxu0
      %2045 = vmatprep.mubr.bf16.mxu0 0
      %2046 = vmatmul.mubr.bf16.gmra.mxu0 %v1877
      %v2047 = vpop.f32.mrf.mxu0
      %v2048 = vadd.f32 %v1743, %v2047
      %v2049 = vpop.f32.mrf.mxu0
      %v2050 = vpop.f32.mrf.mxu0
      %v2051 = vadd.f32 %v1746, %v2050
      %v2052 = vpop.f32.mrf.mxu0
      %2053 = vmatprep.mubr.bf16.mxu0 0
      %2054 = vmatmul.mubr.bf16.gmra.mxu0 %v1878
      %v2055 = vpop.f32.mrf.mxu0
      %v2056 = vadd.f32 %v1751, %v2055
      %v2057 = vpop.f32.mrf.mxu0
      %v2058 = vpop.f32.mrf.mxu0
      %v2059 = vadd.f32 %v1754, %v2058
      %v2060 = vpop.f32.mrf.mxu0
      %2061 = vmatprep.mubr.bf16.mxu0 0
      %2062 = vmatmul.mubr.bf16.gmra.mxu0 %v1879
      %v2063 = vpop.f32.mrf.mxu0
      %v2064 = vadd.f32 %v1759, %v2063
      %v2065 = vpop.f32.mrf.mxu0
      %v2066 = vpop.f32.mrf.mxu0
      %v2067 = vadd.f32 %v1762, %v2066
      %v2068 = vpop.f32.mrf.mxu0
      %2069 = vmatprep.mubr.bf16.mxu0 0
      %2070 = vmatmul.mubr.bf16.gmra.mxu0 %v1880
      %v2071 = vpop.f32.mrf.mxu0
      %v2072 = vadd.f32 %v1767, %v2071
      %v2073 = vpop.f32.mrf.mxu0
      %v2074 = vpop.f32.mrf.mxu0
      %v2075 = vadd.f32 %v1770, %v2074
      %v2076 = vpop.f32.mrf.mxu0
      %2077 = vmatprep.mubr.bf16.mxu0 0
      %2078 = vmatmul.mubr.bf16.gmra.mxu0 %v1881
      %v2079 = vpop.f32.mrf.mxu0
      %v2080 = vadd.f32 %v1775, %v2079
      %v2081 = vpop.f32.mrf.mxu0
      %v2082 = vpop.f32.mrf.mxu0
      %v2083 = vadd.f32 %v1778, %v2082
      %v2084 = vpop.f32.mrf.mxu0
      %2085 = vmatprep.mubr.bf16.mxu0 0
      %2086 = vmatmul.mubr.bf16.gmra.mxu0 %v1882
      %v2087 = vpop.f32.mrf.mxu0
      %v2088 = vadd.f32 %v1783, %v2087
      %v2089 = vpop.f32.mrf.mxu0
      %v2090 = vpop.f32.mrf.mxu0
      %v2091 = vadd.f32 %v1786, %v2090
      %v2092 = vpop.f32.mrf.mxu0
      %2093 = vmatprep.mubr.bf16.mxu0 0
      %2094 = vmatmul.mubr.bf16.gmra.mxu0 %v1883
      %v2095 = vpop.f32.mrf.mxu0
      %v2096 = vadd.f32 %v1791, %v2095
      %v2097 = vpop.f32.mrf.mxu0
      %v2098 = vpop.f32.mrf.mxu0
      %v2099 = vadd.f32 %v1794, %v2098
      %v2100 = vpop.f32.mrf.mxu0
      %2101 = vmatprep.mubr.bf16.mxu0 0
      %2102 = vmatmul.mubr.bf16.gmra.mxu0 %v1884
      %v2103 = vpop.f32.mrf.mxu0
      %v2104 = vadd.f32 %v1799, %v2103
      %v2105 = vpop.f32.mrf.mxu0
      %v2106 = vpop.f32.mrf.mxu0
      %v2107 = vadd.f32 %v1802, %v2106
      %v2108 = vpop.f32.mrf.mxu0
      %2109 = vdwg.mxu0
      %v2110 = vld [vmem:[#allocation2] sm:$0xe]
      %v2111 = vld [vmem:[#allocation2 + $0xc] sm:$0xe]
      %v2112 = vld [vmem:[#allocation2 + $0x18] sm:$0xe]
      %v2113 = vld [vmem:[#allocation2 + $0x24] sm:$0xe]
      %v2114 = vld [vmem:[#allocation2 + $0x30] sm:$0xe]
      %v2115 = vld [vmem:[#allocation2 + $0x3c] sm:$0xe]
      %v2116 = vld [vmem:[#allocation2 + $0x48] sm:$0xe]
      %v2117 = vld [vmem:[#allocation2 + $0x54] sm:$0xe]
      %v2118 = vld [vmem:[#allocation2 + $0x60] sm:$0xe]
      %v2119 = vld [vmem:[#allocation2 + $0x6c] sm:$0xe]
      %v2120 = vld [vmem:[#allocation2 + $0x78] sm:$0xe]
      %v2121 = vld [vmem:[#allocation2 + $0x84] sm:$0xe]
      %v2122 = vld [vmem:[#allocation2 + $0x90] sm:$0xe]
      %v2123 = vld [vmem:[#allocation2 + $0x9c] sm:$0xe]
      %v2124 = vld [vmem:[#allocation2 + $0xa8] sm:$0xe]
      %v2125 = vld [vmem:[#allocation2 + $0xb4] sm:$0xe]
      %vm2158 = vcmask 1042432
      %vm2159 = vcmask 1046532
      %vm2160 = vmor %vm2158, %vm2159
      %v2161 = vrot.slane %v2110, 5
      %v2162 = vrot.slane %v2161, 4
      %v2163 = vrot.slane %v1065, 5
      %v2164 = vsel %vm2160, %v2162, %v2163
      %v2165 = vrot.slane %v2163, 4
      %v2166 = vrot.slane %v1112, 5
      %v2167 = vsel %vm2160, %v2165, %v2166
      %v2168 = vrot.slane %v2111, 5
      %v2169 = vrot.slane %v2168, 4
      %v2170 = vrot.slane %v1067, 5
      %v2171 = vsel %vm2160, %v2169, %v2170
      %v2172 = vrot.slane %v2170, 4
      %v2173 = vrot.slane %v1113, 5
      %v2174 = vsel %vm2160, %v2172, %v2173
      %v2175 = vrot.slane %v2112, 5
      %v2176 = vrot.slane %v2175, 4
      %v2177 = vrot.slane %v1069, 5
      %v2178 = vsel %vm2160, %v2176, %v2177
      %v2179 = vrot.slane %v2177, 4
      %v2180 = vrot.slane %v1114, 5
      %v2181 = vsel %vm2160, %v2179, %v2180
      %v2182 = vrot.slane %v2113, 5
      %v2183 = vrot.slane %v2182, 4
      %v2184 = vrot.slane %v1071, 5
      %v2185 = vsel %vm2160, %v2183, %v2184
      %v2186 = vrot.slane %v2184, 4
      %v2187 = vrot.slane %v1115, 5
      %v2188 = vsel %vm2160, %v2186, %v2187
      %v2189 = vrot.slane %v2114, 5
      %v2190 = vrot.slane %v2189, 4
      %v2191 = vrot.slane %v1073, 5
      %v2192 = vsel %vm2160, %v2190, %v2191
      %v2193 = vrot.slane %v2191, 4
      %v2194 = vrot.slane %v1116, 5
      %v2195 = vsel %vm2160, %v2193, %v2194
      %v2196 = vrot.slane %v2115, 5
      %v2197 = vrot.slane %v2196, 4
      %v2198 = vrot.slane %v1075, 5
      %v2199 = vsel %vm2160, %v2197, %v2198
      %v2200 = vrot.slane %v2198, 4
      %v2201 = vrot.slane %v1117, 5
      %v2202 = vsel %vm2160, %v2200, %v2201
      %v2203 = vrot.slane %v2116, 5
      %v2204 = vrot.slane %v2203, 4
      %v2205 = vrot.slane %v1077, 5
      %v2206 = vsel %vm2160, %v2204, %v2205
      %v2207 = vrot.slane %v2205, 4
      %v2208 = vrot.slane %v1118, 5
      %v2209 = vsel %vm2160, %v2207, %v2208
      %v2210 = vrot.slane %v2117, 5
      %v2211 = vrot.slane %v2210, 4
      %v2212 = vrot.slane %v1079, 5
      %v2213 = vsel %vm2160, %v2211, %v2212
      %v2214 = vrot.slane %v2212, 4
      %v2215 = vrot.slane %v1119, 5
      %v2216 = vsel %vm2160, %v2214, %v2215
      %v2217 = vrot.slane %v2118, 5
      %v2218 = vrot.slane %v2217, 4
      %v2219 = vrot.slane %v1081, 5
      %v2220 = vsel %vm2160, %v2218, %v2219
      %v2221 = vrot.slane %v2219, 4
      %v2222 = vrot.slane %v1120, 5
      %v2223 = vsel %vm2160, %v2221, %v2222
      %v2224 = vrot.slane %v2119, 5
      %v2225 = vrot.slane %v2224, 4
      %v2226 = vrot.slane %v1083, 5
      %v2227 = vsel %vm2160, %v2225, %v2226
      %v2228 = vrot.slane %v2226, 4
      %v2229 = vrot.slane %v1121, 5
      %v2230 = vsel %vm2160, %v2228, %v2229
      %v2231 = vrot.slane %v2120, 5
      %v2232 = vrot.slane %v2231, 4
      %v2233 = vrot.slane %v1085, 5
      %v2234 = vsel %vm2160, %v2232, %v2233
      %v2235 = vrot.slane %v2233, 4
      %v2236 = vrot.slane %v1122, 5
      %v2237 = vsel %vm2160, %v2235, %v2236
      %v2238 = vrot.slane %v2121, 5
      %v2239 = vrot.slane %v2238, 4
      %v2240 = vrot.slane %v1087, 5
      %v2241 = vsel %vm2160, %v2239, %v2240
      %v2242 = vrot.slane %v2240, 4
      %v2243 = vrot.slane %v1123, 5
      %v2244 = vsel %vm2160, %v2242, %v2243
      %v2245 = vrot.slane %v2122, 5
      %v2246 = vrot.slane %v2245, 4
      %v2247 = vrot.slane %v1089, 5
      %v2248 = vsel %vm2160, %v2246, %v2247
      %v2249 = vrot.slane %v2247, 4
      %v2250 = vrot.slane %v1124, 5
      %v2251 = vsel %vm2160, %v2249, %v2250
      %v2252 = vrot.slane %v2123, 5
      %v2253 = vrot.slane %v2252, 4
      %v2254 = vrot.slane %v1091, 5
      %v2255 = vsel %vm2160, %v2253, %v2254
      %v2256 = vrot.slane %v2254, 4
      %v2257 = vrot.slane %v1125, 5
      %v2258 = vsel %vm2160, %v2256, %v2257
      %v2259 = vrot.slane %v2124, 5
      %v2260 = vrot.slane %v2259, 4
      %v2261 = vrot.slane %v1093, 5
      %v2262 = vsel %vm2160, %v2260, %v2261
      %v2263 = vrot.slane %v2261, 4
      %v2264 = vrot.slane %v1126, 5
      %v2265 = vsel %vm2160, %v2263, %v2264
      %v2266 = vrot.slane %v2125, 5
      %v2267 = vrot.slane %v2266, 4
      %v2268 = vrot.slane %v1095, 5
      %v2269 = vsel %vm2160, %v2267, %v2268
      %v2270 = vrot.slane %v2268, 4
      %v2271 = vrot.slane %v1127, 5
      %v2272 = vsel %vm2160, %v2270, %v2271
      %s2273 = scalar_lea.vmem %s1, 128
      %v2274 = vld [vmem:[%s2273] sm:$0xf]
      %v2275 = vld [vmem:[%s2273 + $0x4] sm:$0xf]
      %v2276 = vld [vmem:[%s2273 + $0x8] sm:$0xf]
      %v2277 = vld [vmem:[%s2273 + $0xc] sm:$0xf]
      %v2278 = vld [vmem:[%s2273 + $0x10] sm:$0xf]
      %v2279 = vld [vmem:[%s2273 + $0x14] sm:$0xf]
      %v2280 = vld [vmem:[%s2273 + $0x18] sm:$0xf]
      %v2281 = vld [vmem:[%s2273 + $0x1c] sm:$0xf]
      %v2282 = vld [vmem:[%s2273 + $0x20] sm:$0xf]
      %v2283 = vld [vmem:[%s2273 + $0x24] sm:$0xf]
      %v2284 = vld [vmem:[%s2273 + $0x28] sm:$0xf]
      %v2285 = vld [vmem:[%s2273 + $0x2c] sm:$0xf]
      %v2286 = vld [vmem:[%s2273 + $0x30] sm:$0xf]
      %v2287 = vld [vmem:[%s2273 + $0x34] sm:$0xf]
      %v2288 = vld [vmem:[%s2273 + $0x38] sm:$0xf]
      %v2289 = vld [vmem:[%s2273 + $0x3c] sm:$0xf]
      %v2290 = vunpack.c.l.b16 %v2164
      %v2291 = vunpack.c.l.b16 %v2167
      %v2292 = vunpack.c.l.b16 %v2171
      %v2293 = vunpack.c.l.b16 %v2174
      %v2294 = vunpack.c.l.b16 %v2178
      %v2295 = vunpack.c.l.b16 %v2181
      %v2296 = vunpack.c.l.b16 %v2185
      %v2297 = vunpack.c.l.b16 %v2188
      %v2298 = vunpack.c.l.b16 %v2192
      %v2299 = vunpack.c.l.b16 %v2195
      %v2300 = vunpack.c.l.b16 %v2199
      %v2301 = vunpack.c.l.b16 %v2202
      %v2302 = vunpack.c.l.b16 %v2206
      %v2303 = vunpack.c.l.b16 %v2209
      %v2304 = vunpack.c.l.b16 %v2213
      %v2305 = vunpack.c.l.b16 %v2216
      %v2306 = vunpack.c.l.b16 %v2220
      %v2307 = vunpack.c.l.b16 %v2223
      %v2308 = vunpack.c.l.b16 %v2227
      %v2309 = vunpack.c.l.b16 %v2230
      %v2310 = vunpack.c.l.b16 %v2234
      %v2311 = vunpack.c.l.b16 %v2237
      %v2312 = vunpack.c.l.b16 %v2241
      %v2313 = vunpack.c.l.b16 %v2244
      %v2314 = vunpack.c.l.b16 %v2248
      %v2315 = vunpack.c.l.b16 %v2251
      %v2316 = vunpack.c.l.b16 %v2255
      %v2317 = vunpack.c.l.b16 %v2258
      %v2318 = vunpack.c.l.b16 %v2262
      %v2319 = vunpack.c.l.b16 %v2265
      %v2320 = vunpack.c.l.b16 %v2269
      %v2321 = vunpack.c.l.b16 %v2272
      %v2322 = vpack.c.b16 %v2291, %v2290
      %v2323 = vpack.c.b16 %v2293, %v2292
      %v2324 = vpack.c.b16 %v2295, %v2294
      %v2325 = vpack.c.b16 %v2297, %v2296
      %v2326 = vpack.c.b16 %v2299, %v2298
      %v2327 = vpack.c.b16 %v2301, %v2300
      %v2328 = vpack.c.b16 %v2303, %v2302
      %v2329 = vpack.c.b16 %v2305, %v2304
      %v2330 = vpack.c.b16 %v2307, %v2306
      %v2331 = vpack.c.b16 %v2309, %v2308
      %v2332 = vpack.c.b16 %v2311, %v2310
      %v2333 = vpack.c.b16 %v2313, %v2312
      %v2334 = vpack.c.b16 %v2315, %v2314
      %v2335 = vpack.c.b16 %v2317, %v2316
      %v2336 = vpack.c.b16 %v2319, %v2318
      %v2337 = vpack.c.b16 %v2321, %v2320
      %v2370 = vunpack.c.l.b16 %v2274
      %v2371 = vunpack.c.l.b16 %v2275
      %v2372 = vunpack.c.l.b16 %v2276
      %v2373 = vunpack.c.l.b16 %v2277
      %v2374 = vunpack.c.l.b16 %v2278
      %v2375 = vunpack.c.l.b16 %v2279
      %v2376 = vunpack.c.l.b16 %v2280
      %v2377 = vunpack.c.l.b16 %v2281
      %v2378 = vunpack.c.l.b16 %v2282
      %v2379 = vunpack.c.l.b16 %v2283
      %v2380 = vunpack.c.l.b16 %v2284
      %v2381 = vunpack.c.l.b16 %v2285
      %v2382 = vunpack.c.l.b16 %v2286
      %v2383 = vunpack.c.l.b16 %v2287
      %v2384 = vunpack.c.l.b16 %v2288
      %v2385 = vunpack.c.l.b16 %v2289
      %v2386 = vpack.c.b16 %v2371, %v2370
      %v2387 = vpack.c.b16 %v2373, %v2372
      %v2388 = vpack.c.b16 %v2375, %v2374
      %v2389 = vpack.c.b16 %v2377, %v2376
      %v2390 = vpack.c.b16 %v2379, %v2378
      %v2391 = vpack.c.b16 %v2381, %v2380
      %v2392 = vpack.c.b16 %v2383, %v2382
      %v2393 = vpack.c.b16 %v2385, %v2384
      %2402 = vmatprep.subr.bf16.mxu0 0
      %2403 = vmatpush1.bf16.msra.mxu0 %v2393
      %2404 = vmatprep.subr.bf16.mxu0 0
      %2405 = vmatpush1.bf16.msra.mxu0 %v2392
      %2406 = vmatprep.subr.bf16.mxu0 0
      %2407 = vmatpush1.bf16.msra.mxu0 %v2391
      %2408 = vmatprep.subr.bf16.mxu0 0
      %2409 = vmatpush1.bf16.msra.mxu0 %v2390
      %2410 = vmatprep.subr.bf16.mxu0 0
      %2411 = vmatpush1.bf16.msra.mxu0 %v2389
      %2412 = vmatprep.subr.bf16.mxu0 0
      %2413 = vmatpush1.bf16.msra.mxu0 %v2388
      %2414 = vmatprep.subr.bf16.mxu0 0
      %2415 = vmatpush1.bf16.msra.mxu0 %v2387
      %2416 = vmatprep.subr.bf16.mxu0 0
      %2417 = vmatpush1.bf16.msra.mxu0 %v2386
      %2418 = vmatprep.subr.bf16.mxu0 0
      %2419 = vmatpush2.bf16.msra.mxu0 0
      %2420 = vmatprep.subr.bf16.mxu0 0
      %2421 = vmatpush2.bf16.msra.mxu0 0
      %2422 = vmatprep.subr.bf16.mxu0 0
      %2423 = vmatpush2.bf16.msra.mxu0 0
      %2424 = vmatprep.subr.bf16.mxu0 0
      %2425 = vmatpush2.bf16.msra.mxu0 0
      %2426 = vmatprep.subr.bf16.mxu0 0
      %2427 = vmatpush2.bf16.msra.mxu0 0
      %2428 = vmatprep.subr.bf16.mxu0 0
      %2429 = vmatpush2.bf16.msra.mxu0 0
      %2430 = vmatprep.subr.bf16.mxu0 0
      %2431 = vmatpush2.bf16.msra.mxu0 0
      %2432 = vmatprep.subr.bf16.mxu0 0
      %2433 = vmatpush2.bf16.msra.mxu0 0
      %2434 = vmatprep.mubr.bf16.mxu0 0
      %2435 = vmatmul.mubr.bf16.gmra.mxu0 %v2322
      %v2436 = vpop.f32.mrf.mxu0
      %v2437 = vadd.f32 0.0, %v2436
      %v2438 = vpop.f32.mrf.mxu0
      %v2439 = vpop.f32.mrf.mxu0
      %v2440 = vadd.f32 0.0, %v2439
      %v2441 = vpop.f32.mrf.mxu0
      %2442 = vmatprep.mubr.bf16.mxu0 0
      %2443 = vmatmul.mubr.bf16.gmra.mxu0 %v2323
      %v2444 = vpop.f32.mrf.mxu0
      %v2445 = vadd.f32 0.0, %v2444
      %v2446 = vpop.f32.mrf.mxu0
      %v2447 = vpop.f32.mrf.mxu0
      %v2448 = vadd.f32 0.0, %v2447
      %v2449 = vpop.f32.mrf.mxu0
      %2450 = vmatprep.mubr.bf16.mxu0 0
      %2451 = vmatmul.mubr.bf16.gmra.mxu0 %v2324
      %v2452 = vpop.f32.mrf.mxu0
      %v2453 = vadd.f32 0.0, %v2452
      %v2454 = vpop.f32.mrf.mxu0
      %v2455 = vpop.f32.mrf.mxu0
      %v2456 = vadd.f32 0.0, %v2455
      %v2457 = vpop.f32.mrf.mxu0
      %2458 = vmatprep.mubr.bf16.mxu0 0
      %2459 = vmatmul.mubr.bf16.gmra.mxu0 %v2325
      %v2460 = vpop.f32.mrf.mxu0
      %v2461 = vadd.f32 0.0, %v2460
      %v2462 = vpop.f32.mrf.mxu0
      %v2463 = vpop.f32.mrf.mxu0
      %v2464 = vadd.f32 0.0, %v2463
      %v2465 = vpop.f32.mrf.mxu0
      %2466 = vmatprep.mubr.bf16.mxu0 0
      %2467 = vmatmul.mubr.bf16.gmra.mxu0 %v2326
      %v2468 = vpop.f32.mrf.mxu0
      %v2469 = vadd.f32 0.0, %v2468
      %v2470 = vpop.f32.mrf.mxu0
      %v2471 = vpop.f32.mrf.mxu0
      %v2472 = vadd.f32 0.0, %v2471
      %v2473 = vpop.f32.mrf.mxu0
      %2474 = vmatprep.mubr.bf16.mxu0 0
      %2475 = vmatmul.mubr.bf16.gmra.mxu0 %v2327
      %v2476 = vpop.f32.mrf.mxu0
      %v2477 = vadd.f32 0.0, %v2476
      %v2478 = vpop.f32.mrf.mxu0
      %v2479 = vpop.f32.mrf.mxu0
      %v2480 = vadd.f32 0.0, %v2479
      %v2481 = vpop.f32.mrf.mxu0
      %2482 = vmatprep.mubr.bf16.mxu0 0
      %2483 = vmatmul.mubr.bf16.gmra.mxu0 %v2328
      %v2484 = vpop.f32.mrf.mxu0
      %v2485 = vadd.f32 0.0, %v2484
      %v2486 = vpop.f32.mrf.mxu0
      %v2487 = vpop.f32.mrf.mxu0
      %v2488 = vadd.f32 0.0, %v2487
      %v2489 = vpop.f32.mrf.mxu0
      %2490 = vmatprep.mubr.bf16.mxu0 0
      %2491 = vmatmul.mubr.bf16.gmra.mxu0 %v2329
      %v2492 = vpop.f32.mrf.mxu0
      %v2493 = vadd.f32 0.0, %v2492
      %v2494 = vpop.f32.mrf.mxu0
      %v2495 = vpop.f32.mrf.mxu0
      %v2496 = vadd.f32 0.0, %v2495
      %v2497 = vpop.f32.mrf.mxu0
      %2498 = vmatprep.mubr.bf16.mxu0 0
      %2499 = vmatmul.mubr.bf16.gmra.mxu0 %v2330
      %v2500 = vpop.f32.mrf.mxu0
      %v2501 = vadd.f32 0.0, %v2500
      %v2502 = vpop.f32.mrf.mxu0
      %v2503 = vpop.f32.mrf.mxu0
      %v2504 = vadd.f32 0.0, %v2503
      %v2505 = vpop.f32.mrf.mxu0
      %2506 = vmatprep.mubr.bf16.mxu0 0
      %2507 = vmatmul.mubr.bf16.gmra.mxu0 %v2331
      %v2508 = vpop.f32.mrf.mxu0
      %v2509 = vadd.f32 0.0, %v2508
      %v2510 = vpop.f32.mrf.mxu0
      %v2511 = vpop.f32.mrf.mxu0
      %v2512 = vadd.f32 0.0, %v2511
      %v2513 = vpop.f32.mrf.mxu0
      %2514 = vmatprep.mubr.bf16.mxu0 0
      %2515 = vmatmul.mubr.bf16.gmra.mxu0 %v2332
      %v2516 = vpop.f32.mrf.mxu0
      %v2517 = vadd.f32 0.0, %v2516
      %v2518 = vpop.f32.mrf.mxu0
      %v2519 = vpop.f32.mrf.mxu0
      %v2520 = vadd.f32 0.0, %v2519
      %v2521 = vpop.f32.mrf.mxu0
      %2522 = vmatprep.mubr.bf16.mxu0 0
      %2523 = vmatmul.mubr.bf16.gmra.mxu0 %v2333
      %v2524 = vpop.f32.mrf.mxu0
      %v2525 = vadd.f32 0.0, %v2524
      %v2526 = vpop.f32.mrf.mxu0
      %v2527 = vpop.f32.mrf.mxu0
      %v2528 = vadd.f32 0.0, %v2527
      %v2529 = vpop.f32.mrf.mxu0
      %2530 = vmatprep.mubr.bf16.mxu0 0
      %2531 = vmatmul.mubr.bf16.gmra.mxu0 %v2334
      %v2532 = vpop.f32.mrf.mxu0
      %v2533 = vadd.f32 0.0, %v2532
      %v2534 = vpop.f32.mrf.mxu0
      %v2535 = vpop.f32.mrf.mxu0
      %v2536 = vadd.f32 0.0, %v2535
      %v2537 = vpop.f32.mrf.mxu0
      %2538 = vmatprep.mubr.bf16.mxu0 0
      %2539 = vmatmul.mubr.bf16.gmra.mxu0 %v2335
      %v2540 = vpop.f32.mrf.mxu0
      %v2541 = vadd.f32 0.0, %v2540
      %v2542 = vpop.f32.mrf.mxu0
      %v2543 = vpop.f32.mrf.mxu0
      %v2544 = vadd.f32 0.0, %v2543
      %v2545 = vpop.f32.mrf.mxu0
      %2546 = vmatprep.mubr.bf16.mxu0 0
      %2547 = vmatmul.mubr.bf16.gmra.mxu0 %v2336
      %v2548 = vpop.f32.mrf.mxu0
      %v2549 = vadd.f32 0.0, %v2548
      %v2550 = vpop.f32.mrf.mxu0
      %v2551 = vpop.f32.mrf.mxu0
      %v2552 = vadd.f32 0.0, %v2551
      %v2553 = vpop.f32.mrf.mxu0
      %2554 = vmatprep.mubr.bf16.mxu0 0
      %2555 = vmatmul.mubr.bf16.gmra.mxu0 %v2337
      %v2556 = vpop.f32.mrf.mxu0
      %v2557 = vadd.f32 0.0, %v2556
      %v2558 = vpop.f32.mrf.mxu0
      %v2559 = vpop.f32.mrf.mxu0
      %v2560 = vadd.f32 0.0, %v2559
      %v2561 = vpop.f32.mrf.mxu0
      %2562 = vdwg.mxu0
      %v2563 = vadd.f32 %v1984, %v2437
      %v2564 = vadd.f32 %v1987, %v2440
      %v2565 = vadd.f32 %v1992, %v2445
      %v2566 = vadd.f32 %v1995, %v2448
      %v2567 = vadd.f32 %v2000, %v2453
      %v2568 = vadd.f32 %v2003, %v2456
      %v2569 = vadd.f32 %v2008, %v2461
      %v2570 = vadd.f32 %v2011, %v2464
      %v2571 = vadd.f32 %v2016, %v2469
      %v2572 = vadd.f32 %v2019, %v2472
      %v2573 = vadd.f32 %v2024, %v2477
      %v2574 = vadd.f32 %v2027, %v2480
      %v2575 = vadd.f32 %v2032, %v2485
      %v2576 = vadd.f32 %v2035, %v2488
      %v2577 = vadd.f32 %v2040, %v2493
      %v2578 = vadd.f32 %v2043, %v2496
      %v2579 = vadd.f32 %v2048, %v2501
      %v2580 = vadd.f32 %v2051, %v2504
      %v2581 = vadd.f32 %v2056, %v2509
      %v2582 = vadd.f32 %v2059, %v2512
      %v2583 = vadd.f32 %v2064, %v2517
      %v2584 = vadd.f32 %v2067, %v2520
      %v2585 = vadd.f32 %v2072, %v2525
      %v2586 = vadd.f32 %v2075, %v2528
      %v2587 = vadd.f32 %v2080, %v2533
      %v2588 = vadd.f32 %v2083, %v2536
      %v2589 = vadd.f32 %v2088, %v2541
      %v2590 = vadd.f32 %v2091, %v2544
      %v2591 = vadd.f32 %v2096, %v2549
      %v2592 = vadd.f32 %v2099, %v2552
      %v2593 = vadd.f32 %v2104, %v2557
      %v2594 = vadd.f32 %v2107, %v2560
      %v2595 = vld [vmem:[%s949] sm:$0xf]
      %v2596 = vld [vmem:[%s949 + $0x4] sm:$0xf]
      %v2597 = vld [vmem:[%s949 + $0xc] sm:$0xf]
      %v2598 = vld [vmem:[%s949 + $0x10] sm:$0xf]
      %v2599 = vld [vmem:[%s949 + $0x18] sm:$0xf]
      %v2600 = vld [vmem:[%s949 + $0x1c] sm:$0xf]
      %v2601 = vld [vmem:[%s949 + $0x24] sm:$0xf]
      %v2602 = vld [vmem:[%s949 + $0x28] sm:$0xf]
      %v2603 = vld [vmem:[%s949 + $0x30] sm:$0xf]
      %v2604 = vld [vmem:[%s949 + $0x34] sm:$0xf]
      %v2605 = vld [vmem:[%s949 + $0x3c] sm:$0xf]
      %v2606 = vld [vmem:[%s949 + $0x40] sm:$0xf]
      %v2607 = vld [vmem:[%s949 + $0x48] sm:$0xf]
      %v2608 = vld [vmem:[%s949 + $0x4c] sm:$0xf]
      %v2609 = vld [vmem:[%s949 + $0x54] sm:$0xf]
      %v2610 = vld [vmem:[%s949 + $0x58] sm:$0xf]
      %v2611 = vld [vmem:[%s949 + $0x60] sm:$0xf]
      %v2612 = vld [vmem:[%s949 + $0x64] sm:$0xf]
      %v2613 = vld [vmem:[%s949 + $0x6c] sm:$0xf]
      %v2614 = vld [vmem:[%s949 + $0x70] sm:$0xf]
      %v2615 = vld [vmem:[%s949 + $0x78] sm:$0xf]
      %v2616 = vld [vmem:[%s949 + $0x7c] sm:$0xf]
      %v2617 = vld [vmem:[%s949 + $0x84] sm:$0xf]
      %v2618 = vld [vmem:[%s949 + $0x88] sm:$0xf]
      %v2619 = vld [vmem:[%s949 + $0x90] sm:$0xf]
      %v2620 = vld [vmem:[%s949 + $0x94] sm:$0xf]
      %v2621 = vld [vmem:[%s949 + $0x9c] sm:$0xf]
      %v2622 = vld [vmem:[%s949 + $0xa0] sm:$0xf]
      %v2623 = vld [vmem:[%s949 + $0xa8] sm:$0xf]
      %v2624 = vld [vmem:[%s949 + $0xac] sm:$0xf]
      %v2625 = vld [vmem:[%s949 + $0xb4] sm:$0xf]
      %v2626 = vld [vmem:[%s949 + $0xb8] sm:$0xf]
      %s2627 = scalar_lea.vmem %s1, 192
      %v2628 = vld [vmem:[%s2627] sm:$0xf]
      %v2629 = vld [vmem:[%s2627 + $0x4] sm:$0xf]
      %v2630 = vld [vmem:[%s2627 + $0x8] sm:$0xf]
      %v2631 = vld [vmem:[%s2627 + $0xc] sm:$0xf]
      %v2632 = vld [vmem:[%s2627 + $0x10] sm:$0xf]
      %v2633 = vld [vmem:[%s2627 + $0x14] sm:$0xf]
      %v2634 = vld [vmem:[%s2627 + $0x18] sm:$0xf]
      %v2635 = vld [vmem:[%s2627 + $0x1c] sm:$0xf]
      %v2636 = vld [vmem:[%s2627 + $0x20] sm:$0xf]
      %v2637 = vld [vmem:[%s2627 + $0x24] sm:$0xf]
      %v2638 = vld [vmem:[%s2627 + $0x28] sm:$0xf]
      %v2639 = vld [vmem:[%s2627 + $0x2c] sm:$0xf]
      %v2640 = vld [vmem:[%s2627 + $0x30] sm:$0xf]
      %v2641 = vld [vmem:[%s2627 + $0x34] sm:$0xf]
      %v2642 = vld [vmem:[%s2627 + $0x38] sm:$0xf]
      %v2643 = vld [vmem:[%s2627 + $0x3c] sm:$0xf]
      %v2676 = vunpack.c.l.b16 %v2595
      %v2677 = vunpack.c.l.b16 %v2596
      %v2678 = vunpack.c.l.b16 %v2597
      %v2679 = vunpack.c.l.b16 %v2598
      %v2680 = vunpack.c.l.b16 %v2599
      %v2681 = vunpack.c.l.b16 %v2600
      %v2682 = vunpack.c.l.b16 %v2601
      %v2683 = vunpack.c.l.b16 %v2602
      %v2684 = vunpack.c.l.b16 %v2603
      %v2685 = vunpack.c.l.b16 %v2604
      %v2686 = vunpack.c.l.b16 %v2605
      %v2687 = vunpack.c.l.b16 %v2606
      %v2688 = vunpack.c.l.b16 %v2607
      %v2689 = vunpack.c.l.b16 %v2608
      %v2690 = vunpack.c.l.b16 %v2609
      %v2691 = vunpack.c.l.b16 %v2610
      %v2692 = vunpack.c.l.b16 %v2611
      %v2693 = vunpack.c.l.b16 %v2612
      %v2694 = vunpack.c.l.b16 %v2613
      %v2695 = vunpack.c.l.b16 %v2614
      %v2696 = vunpack.c.l.b16 %v2615
      %v2697 = vunpack.c.l.b16 %v2616
      %v2698 = vunpack.c.l.b16 %v2617
      %v2699 = vunpack.c.l.b16 %v2618
      %v2700 = vunpack.c.l.b16 %v2619
      %v2701 = vunpack.c.l.b16 %v2620
      %v2702 = vunpack.c.l.b16 %v2621
      %v2703 = vunpack.c.l.b16 %v2622
      %v2704 = vunpack.c.l.b16 %v2623
      %v2705 = vunpack.c.l.b16 %v2624
      %v2706 = vunpack.c.l.b16 %v2625
      %v2707 = vunpack.c.l.b16 %v2626
      %v2708 = vpack.c.b16 %v2677, %v2676
      %v2709 = vpack.c.b16 %v2679, %v2678
      %v2710 = vpack.c.b16 %v2681, %v2680
      %v2711 = vpack.c.b16 %v2683, %v2682
      %v2712 = vpack.c.b16 %v2685, %v2684
      %v2713 = vpack.c.b16 %v2687, %v2686
      %v2714 = vpack.c.b16 %v2689, %v2688
      %v2715 = vpack.c.b16 %v2691, %v2690
      %v2716 = vpack.c.b16 %v2693, %v2692
      %v2717 = vpack.c.b16 %v2695, %v2694
      %v2718 = vpack.c.b16 %v2697, %v2696
      %v2719 = vpack.c.b16 %v2699, %v2698
      %v2720 = vpack.c.b16 %v2701, %v2700
      %v2721 = vpack.c.b16 %v2703, %v2702
      %v2722 = vpack.c.b16 %v2705, %v2704
      %v2723 = vpack.c.b16 %v2707, %v2706
      %v2756 = vunpack.c.l.b16 %v2628
      %v2757 = vunpack.c.l.b16 %v2629
      %v2758 = vunpack.c.l.b16 %v2630
      %v2759 = vunpack.c.l.b16 %v2631
      %v2760 = vunpack.c.l.b16 %v2632
      %v2761 = vunpack.c.l.b16 %v2633
      %v2762 = vunpack.c.l.b16 %v2634
      %v2763 = vunpack.c.l.b16 %v2635
      %v2764 = vunpack.c.l.b16 %v2636
      %v2765 = vunpack.c.l.b16 %v2637
      %v2766 = vunpack.c.l.b16 %v2638
      %v2767 = vunpack.c.l.b16 %v2639
      %v2768 = vunpack.c.l.b16 %v2640
      %v2769 = vunpack.c.l.b16 %v2641
      %v2770 = vunpack.c.l.b16 %v2642
      %v2771 = vunpack.c.l.b16 %v2643
      %v2772 = vpack.c.b16 %v2757, %v2756
      %v2773 = vpack.c.b16 %v2759, %v2758
      %v2774 = vpack.c.b16 %v2761, %v2760
      %v2775 = vpack.c.b16 %v2763, %v2762
      %v2776 = vpack.c.b16 %v2765, %v2764
      %v2777 = vpack.c.b16 %v2767, %v2766
      %v2778 = vpack.c.b16 %v2769, %v2768
      %v2779 = vpack.c.b16 %v2771, %v2770
      %2788 = vmatprep.subr.bf16.mxu0 0
      %2789 = vmatpush1.bf16.msra.mxu0 %v2779
      %2790 = vmatprep.subr.bf16.mxu0 0
      %2791 = vmatpush1.bf16.msra.mxu0 %v2778
      %2792 = vmatprep.subr.bf16.mxu0 0
      %2793 = vmatpush1.bf16.msra.mxu0 %v2777
      %2794 = vmatprep.subr.bf16.mxu0 0
      %2795 = vmatpush1.bf16.msra.mxu0 %v2776
      %2796 = vmatprep.subr.bf16.mxu0 0
      %2797 = vmatpush1.bf16.msra.mxu0 %v2775
      %2798 = vmatprep.subr.bf16.mxu0 0
      %2799 = vmatpush1.bf16.msra.mxu0 %v2774
      %2800 = vmatprep.subr.bf16.mxu0 0
      %2801 = vmatpush1.bf16.msra.mxu0 %v2773
      %2802 = vmatprep.subr.bf16.mxu0 0
      %2803 = vmatpush1.bf16.msra.mxu0 %v2772
      %2804 = vmatprep.subr.bf16.mxu0 0
      %2805 = vmatpush2.bf16.msra.mxu0 0
      %2806 = vmatprep.subr.bf16.mxu0 0
      %2807 = vmatpush2.bf16.msra.mxu0 0
      %2808 = vmatprep.subr.bf16.mxu0 0
      %2809 = vmatpush2.bf16.msra.mxu0 0
      %2810 = vmatprep.subr.bf16.mxu0 0
      %2811 = vmatpush2.bf16.msra.mxu0 0
      %2812 = vmatprep.subr.bf16.mxu0 0
      %2813 = vmatpush2.bf16.msra.mxu0 0
      %2814 = vmatprep.subr.bf16.mxu0 0
      %2815 = vmatpush2.bf16.msra.mxu0 0
      %2816 = vmatprep.subr.bf16.mxu0 0
      %2817 = vmatpush2.bf16.msra.mxu0 0
      %2818 = vmatprep.subr.bf16.mxu0 0
      %2819 = vmatpush2.bf16.msra.mxu0 0
      %2820 = vmatprep.mubr.bf16.mxu0 0
      %2821 = vmatmul.mubr.bf16.gmra.mxu0 %v2708
      %v2822 = vpop.f32.mrf.mxu0
      %v2823 = vadd.f32 0.0, %v2822
      %v2824 = vpop.f32.mrf.mxu0
      %v2825 = vpop.f32.mrf.mxu0
      %v2826 = vadd.f32 0.0, %v2825
      %v2827 = vpop.f32.mrf.mxu0
      %2828 = vmatprep.mubr.bf16.mxu0 0
      %2829 = vmatmul.mubr.bf16.gmra.mxu0 %v2709
      %v2830 = vpop.f32.mrf.mxu0
      %v2831 = vadd.f32 0.0, %v2830
      %v2832 = vpop.f32.mrf.mxu0
      %v2833 = vpop.f32.mrf.mxu0
      %v2834 = vadd.f32 0.0, %v2833
      %v2835 = vpop.f32.mrf.mxu0
      %2836 = vmatprep.mubr.bf16.mxu0 0
      %2837 = vmatmul.mubr.bf16.gmra.mxu0 %v2710
      %v2838 = vpop.f32.mrf.mxu0
      %v2839 = vadd.f32 0.0, %v2838
      %v2840 = vpop.f32.mrf.mxu0
      %v2841 = vpop.f32.mrf.mxu0
      %v2842 = vadd.f32 0.0, %v2841
      %v2843 = vpop.f32.mrf.mxu0
      %2844 = vmatprep.mubr.bf16.mxu0 0
      %2845 = vmatmul.mubr.bf16.gmra.mxu0 %v2711
      %v2846 = vpop.f32.mrf.mxu0
      %v2847 = vadd.f32 0.0, %v2846
      %v2848 = vpop.f32.mrf.mxu0
      %v2849 = vpop.f32.mrf.mxu0
      %v2850 = vadd.f32 0.0, %v2849
      %v2851 = vpop.f32.mrf.mxu0
      %2852 = vmatprep.mubr.bf16.mxu0 0
      %2853 = vmatmul.mubr.bf16.gmra.mxu0 %v2712
      %v2854 = vpop.f32.mrf.mxu0
      %v2855 = vadd.f32 0.0, %v2854
      %v2856 = vpop.f32.mrf.mxu0
      %v2857 = vpop.f32.mrf.mxu0
      %v2858 = vadd.f32 0.0, %v2857
      %v2859 = vpop.f32.mrf.mxu0
      %2860 = vmatprep.mubr.bf16.mxu0 0
      %2861 = vmatmul.mubr.bf16.gmra.mxu0 %v2713
      %v2862 = vpop.f32.mrf.mxu0
      %v2863 = vadd.f32 0.0, %v2862
      %v2864 = vpop.f32.mrf.mxu0
      %v2865 = vpop.f32.mrf.mxu0
      %v2866 = vadd.f32 0.0, %v2865
      %v2867 = vpop.f32.mrf.mxu0
      %2868 = vmatprep.mubr.bf16.mxu0 0
      %2869 = vmatmul.mubr.bf16.gmra.mxu0 %v2714
      %v2870 = vpop.f32.mrf.mxu0
      %v2871 = vadd.f32 0.0, %v2870
      %v2872 = vpop.f32.mrf.mxu0
      %v2873 = vpop.f32.mrf.mxu0
      %v2874 = vadd.f32 0.0, %v2873
      %v2875 = vpop.f32.mrf.mxu0
      %2876 = vmatprep.mubr.bf16.mxu0 0
      %2877 = vmatmul.mubr.bf16.gmra.mxu0 %v2715
      %v2878 = vpop.f32.mrf.mxu0
      %v2879 = vadd.f32 0.0, %v2878
      %v2880 = vpop.f32.mrf.mxu0
      %v2881 = vpop.f32.mrf.mxu0
      %v2882 = vadd.f32 0.0, %v2881
      %v2883 = vpop.f32.mrf.mxu0
      %2884 = vmatprep.mubr.bf16.mxu0 0
      %2885 = vmatmul.mubr.bf16.gmra.mxu0 %v2716
      %v2886 = vpop.f32.mrf.mxu0
      %v2887 = vadd.f32 0.0, %v2886
      %v2888 = vpop.f32.mrf.mxu0
      %v2889 = vpop.f32.mrf.mxu0
      %v2890 = vadd.f32 0.0, %v2889
      %v2891 = vpop.f32.mrf.mxu0
      %2892 = vmatprep.mubr.bf16.mxu0 0
      %2893 = vmatmul.mubr.bf16.gmra.mxu0 %v2717
      %v2894 = vpop.f32.mrf.mxu0
      %v2895 = vadd.f32 0.0, %v2894
      %v2896 = vpop.f32.mrf.mxu0
      %v2897 = vpop.f32.mrf.mxu0
      %v2898 = vadd.f32 0.0, %v2897
      %v2899 = vpop.f32.mrf.mxu0
      %2900 = vmatprep.mubr.bf16.mxu0 0
      %2901 = vmatmul.mubr.bf16.gmra.mxu0 %v2718
      %v2902 = vpop.f32.mrf.mxu0
      %v2903 = vadd.f32 0.0, %v2902
      %v2904 = vpop.f32.mrf.mxu0
      %v2905 = vpop.f32.mrf.mxu0
      %v2906 = vadd.f32 0.0, %v2905
      %v2907 = vpop.f32.mrf.mxu0
      %2908 = vmatprep.mubr.bf16.mxu0 0
      %2909 = vmatmul.mubr.bf16.gmra.mxu0 %v2719
      %v2910 = vpop.f32.mrf.mxu0
      %v2911 = vadd.f32 0.0, %v2910
      %v2912 = vpop.f32.mrf.mxu0
      %v2913 = vpop.f32.mrf.mxu0
      %v2914 = vadd.f32 0.0, %v2913
      %v2915 = vpop.f32.mrf.mxu0
      %2916 = vmatprep.mubr.bf16.mxu0 0
      %2917 = vmatmul.mubr.bf16.gmra.mxu0 %v2720
      %v2918 = vpop.f32.mrf.mxu0
      %v2919 = vadd.f32 0.0, %v2918
      %v2920 = vpop.f32.mrf.mxu0
      %v2921 = vpop.f32.mrf.mxu0
      %v2922 = vadd.f32 0.0, %v2921
      %v2923 = vpop.f32.mrf.mxu0
      %2924 = vmatprep.mubr.bf16.mxu0 0
      %2925 = vmatmul.mubr.bf16.gmra.mxu0 %v2721
      %v2926 = vpop.f32.mrf.mxu0
      %v2927 = vadd.f32 0.0, %v2926
      %v2928 = vpop.f32.mrf.mxu0
      %v2929 = vpop.f32.mrf.mxu0
      %v2930 = vadd.f32 0.0, %v2929
      %v2931 = vpop.f32.mrf.mxu0
      %2932 = vmatprep.mubr.bf16.mxu0 0
      %2933 = vmatmul.mubr.bf16.gmra.mxu0 %v2722
      %v2934 = vpop.f32.mrf.mxu0
      %v2935 = vadd.f32 0.0, %v2934
      %v2936 = vpop.f32.mrf.mxu0
      %v2937 = vpop.f32.mrf.mxu0
      %v2938 = vadd.f32 0.0, %v2937
      %v2939 = vpop.f32.mrf.mxu0
      %2940 = vmatprep.mubr.bf16.mxu0 0
      %2941 = vmatmul.mubr.bf16.gmra.mxu0 %v2723
      %v2942 = vpop.f32.mrf.mxu0
      %v2943 = vadd.f32 0.0, %v2942
      %v2944 = vpop.f32.mrf.mxu0
      %v2945 = vpop.f32.mrf.mxu0
      %v2946 = vadd.f32 0.0, %v2945
      %v2947 = vpop.f32.mrf.mxu0
      %2948 = vdwg.mxu0
      %v2949 = vadd.f32 %v2563, %v2823
      %v2950 = vadd.f32 %v2564, %v2826
      %v2951 = vadd.f32 %v2565, %v2831
      %v2952 = vadd.f32 %v2566, %v2834
      %v2953 = vadd.f32 %v2567, %v2839
      %v2954 = vadd.f32 %v2568, %v2842
      %v2955 = vadd.f32 %v2569, %v2847
      %v2956 = vadd.f32 %v2570, %v2850
      %v2957 = vadd.f32 %v2571, %v2855
      %v2958 = vadd.f32 %v2572, %v2858
      %v2959 = vadd.f32 %v2573, %v2863
      %v2960 = vadd.f32 %v2574, %v2866
      %v2961 = vadd.f32 %v2575, %v2871
      %v2962 = vadd.f32 %v2576, %v2874
      %v2963 = vadd.f32 %v2577, %v2879
      %v2964 = vadd.f32 %v2578, %v2882
      %v2965 = vadd.f32 %v2579, %v2887
      %v2966 = vadd.f32 %v2580, %v2890
      %v2967 = vadd.f32 %v2581, %v2895
      %v2968 = vadd.f32 %v2582, %v2898
      %v2969 = vadd.f32 %v2583, %v2903
      %v2970 = vadd.f32 %v2584, %v2906
      %v2971 = vadd.f32 %v2585, %v2911
      %v2972 = vadd.f32 %v2586, %v2914
      %v2973 = vadd.f32 %v2587, %v2919
      %v2974 = vadd.f32 %v2588, %v2922
      %v2975 = vadd.f32 %v2589, %v2927
      %v2976 = vadd.f32 %v2590, %v2930
      %v2977 = vadd.f32 %v2591, %v2935
      %v2978 = vadd.f32 %v2592, %v2938
      %v2979 = vadd.f32 %v2593, %v2943
      %v2980 = vadd.f32 %v2594, %v2946
      %v2981 = vld [vmem:[%s949] sm:$0xf]
      %v2982 = vld [vmem:[%s949 + $0x4] sm:$0xf]
      %v2983 = vld [vmem:[%s949 + $0x8] sm:$0x1]
      %v2984 = vld [vmem:[%s949 + $0xc] sm:$0xf]
      %v2985 = vld [vmem:[%s949 + $0x10] sm:$0xf]
      %v2986 = vld [vmem:[%s949 + $0x14] sm:$0x1]
      %v2987 = vld [vmem:[%s949 + $0x18] sm:$0xf]
      %v2988 = vld [vmem:[%s949 + $0x1c] sm:$0xf]
      %v2989 = vld [vmem:[%s949 + $0x20] sm:$0x1]
      %v2990 = vld [vmem:[%s949 + $0x24] sm:$0xf]
      %v2991 = vld [vmem:[%s949 + $0x28] sm:$0xf]
      %v2992 = vld [vmem:[%s949 + $0x2c] sm:$0x1]
      %v2993 = vld [vmem:[%s949 + $0x30] sm:$0xf]
      %v2994 = vld [vmem:[%s949 + $0x34] sm:$0xf]
      %v2995 = vld [vmem:[%s949 + $0x38] sm:$0x1]
      %v2996 = vld [vmem:[%s949 + $0x3c] sm:$0xf]
      %v2997 = vld [vmem:[%s949 + $0x40] sm:$0xf]
      %v2998 = vld [vmem:[%s949 + $0x44] sm:$0x1]
      %v2999 = vld [vmem:[%s949 + $0x48] sm:$0xf]
      %v3000 = vld [vmem:[%s949 + $0x4c] sm:$0xf]
      %v3001 = vld [vmem:[%s949 + $0x50] sm:$0x1]
      %v3002 = vld [vmem:[%s949 + $0x54] sm:$0xf]
      %v3003 = vld [vmem:[%s949 + $0x58] sm:$0xf]
      %v3004 = vld [vmem:[%s949 + $0x5c] sm:$0x1]
      %v3005 = vld [vmem:[%s949 + $0x60] sm:$0xf]
      %v3006 = vld [vmem:[%s949 + $0x64] sm:$0xf]
      %v3007 = vld [vmem:[%s949 + $0x68] sm:$0x1]
      %v3008 = vld [vmem:[%s949 + $0x6c] sm:$0xf]
      %v3009 = vld [vmem:[%s949 + $0x70] sm:$0xf]
      %v3010 = vld [vmem:[%s949 + $0x74] sm:$0x1]
      %v3011 = vld [vmem:[%s949 + $0x78] sm:$0xf]
      %v3012 = vld [vmem:[%s949 + $0x7c] sm:$0xf]
      %v3013 = vld [vmem:[%s949 + $0x80] sm:$0x1]
      %v3014 = vld [vmem:[%s949 + $0x84] sm:$0xf]
      %v3015 = vld [vmem:[%s949 + $0x88] sm:$0xf]
      %v3016 = vld [vmem:[%s949 + $0x8c] sm:$0x1]
      %v3017 = vld [vmem:[%s949 + $0x90] sm:$0xf]
      %v3018 = vld [vmem:[%s949 + $0x94] sm:$0xf]
      %v3019 = vld [vmem:[%s949 + $0x98] sm:$0x1]
      %v3020 = vld [vmem:[%s949 + $0x9c] sm:$0xf]
      %v3021 = vld [vmem:[%s949 + $0xa0] sm:$0xf]
      %v3022 = vld [vmem:[%s949 + $0xa4] sm:$0x1]
      %v3023 = vld [vmem:[%s949 + $0xa8] sm:$0xf]
      %v3024 = vld [vmem:[%s949 + $0xac] sm:$0xf]
      %v3025 = vld [vmem:[%s949 + $0xb0] sm:$0x1]
      %v3026 = vld [vmem:[%s949 + $0xb4] sm:$0xf]
      %v3027 = vld [vmem:[%s949 + $0xb8] sm:$0xf]
      %v3028 = vld [vmem:[%s949 + $0xbc] sm:$0x1]
      %v3030 = vshrl.u32 %v2981, 16
      %v3032 = vrot.slane %v3030, 4
      %v3033 = vshll.u32 %v2981, 16
      %v3035 = vrot.slane %v3033, 5
      %v3036 = vor.u32 %v3032, %v3035
      %v3037 = vrot.slane %v3036, 4
      %v3039 = vshll.u32 %v2982, 16
      %v3041 = vrot.slane %v3039, 5
      %v3042 = vsel %vm1130, %v3037, %v3041
      %v3043 = vshrl.u32 %v2982, 16
      %v3045 = vrot.slane %v3043, 4
      %v3046 = vor.u32 %v3045, %v3041
      %v3047 = vrot.slane %v3046, 4
      %v3049 = vshll.u32 %v2983, 16
      %v3051 = vrot.slane %v3049, 5
      %v3052 = vsel %vm1130, %v3047, %v3051
      %v3054 = vshrl.u32 %v2984, 16
      %v3056 = vrot.slane %v3054, 4
      %v3057 = vshll.u32 %v2984, 16
      %v3059 = vrot.slane %v3057, 5
      %v3060 = vor.u32 %v3056, %v3059
      %v3061 = vrot.slane %v3060, 4
      %v3063 = vshll.u32 %v2985, 16
      %v3065 = vrot.slane %v3063, 5
      %v3066 = vsel %vm1130, %v3061, %v3065
      %v3067 = vshrl.u32 %v2985, 16
      %v3069 = vrot.slane %v3067, 4
      %v3070 = vor.u32 %v3069, %v3065
      %v3071 = vrot.slane %v3070, 4
      %v3073 = vshll.u32 %v2986, 16
      %v3075 = vrot.slane %v3073, 5
      %v3076 = vsel %vm1130, %v3071, %v3075
      %v3078 = vshrl.u32 %v2987, 16
      %v3080 = vrot.slane %v3078, 4
      %v3081 = vshll.u32 %v2987, 16
      %v3083 = vrot.slane %v3081, 5
      %v3084 = vor.u32 %v3080, %v3083
      %v3085 = vrot.slane %v3084, 4
      %v3087 = vshll.u32 %v2988, 16
      %v3089 = vrot.slane %v3087, 5
      %v3090 = vsel %vm1130, %v3085, %v3089
      %v3091 = vshrl.u32 %v2988, 16
      %v3093 = vrot.slane %v3091, 4
      %v3094 = vor.u32 %v3093, %v3089
      %v3095 = vrot.slane %v3094, 4
      %v3097 = vshll.u32 %v2989, 16
      %v3099 = vrot.slane %v3097, 5
      %v3100 = vsel %vm1130, %v3095, %v3099
      %v3102 = vshrl.u32 %v2990, 16
      %v3104 = vrot.slane %v3102, 4
      %v3105 = vshll.u32 %v2990, 16
      %v3107 = vrot.slane %v3105, 5
      %v3108 = vor.u32 %v3104, %v3107
      %v3109 = vrot.slane %v3108, 4
      %v3111 = vshll.u32 %v2991, 16
      %v3113 = vrot.slane %v3111, 5
      %v3114 = vsel %vm1130, %v3109, %v3113
      %v3115 = vshrl.u32 %v2991, 16
      %v3117 = vrot.slane %v3115, 4
      %v3118 = vor.u32 %v3117, %v3113
      %v3119 = vrot.slane %v3118, 4
      %v3121 = vshll.u32 %v2992, 16
      %v3123 = vrot.slane %v3121, 5
      %v3124 = vsel %vm1130, %v3119, %v3123
      %v3126 = vshrl.u32 %v2993, 16
      %v3128 = vrot.slane %v3126, 4
      %v3129 = vshll.u32 %v2993, 16
      %v3131 = vrot.slane %v3129, 5
      %v3132 = vor.u32 %v3128, %v3131
      %v3133 = vrot.slane %v3132, 4
      %v3135 = vshll.u32 %v2994, 16
      %v3137 = vrot.slane %v3135, 5
      %v3138 = vsel %vm1130, %v3133, %v3137
      %v3139 = vshrl.u32 %v2994, 16
      %v3141 = vrot.slane %v3139, 4
      %v3142 = vor.u32 %v3141, %v3137
      %v3143 = vrot.slane %v3142, 4
      %v3145 = vshll.u32 %v2995, 16
      %v3147 = vrot.slane %v3145, 5
      %v3148 = vsel %vm1130, %v3143, %v3147
      %v3150 = vshrl.u32 %v2996, 16
      %v3152 = vrot.slane %v3150, 4
      %v3153 = vshll.u32 %v2996, 16
      %v3155 = vrot.slane %v3153, 5
      %v3156 = vor.u32 %v3152, %v3155
      %v3157 = vrot.slane %v3156, 4
      %v3159 = vshll.u32 %v2997, 16
      %v3161 = vrot.slane %v3159, 5
      %v3162 = vsel %vm1130, %v3157, %v3161
      %v3163 = vshrl.u32 %v2997, 16
      %v3165 = vrot.slane %v3163, 4
      %v3166 = vor.u32 %v3165, %v3161
      %v3167 = vrot.slane %v3166, 4
      %v3169 = vshll.u32 %v2998, 16
      %v3171 = vrot.slane %v3169, 5
      %v3172 = vsel %vm1130, %v3167, %v3171
      %v3174 = vshrl.u32 %v2999, 16
      %v3176 = vrot.slane %v3174, 4
      %v3177 = vshll.u32 %v2999, 16
      %v3179 = vrot.slane %v3177, 5
      %v3180 = vor.u32 %v3176, %v3179
      %v3181 = vrot.slane %v3180, 4
      %v3183 = vshll.u32 %v3000, 16
      %v3185 = vrot.slane %v3183, 5
      %v3186 = vsel %vm1130, %v3181, %v3185
      %v3187 = vshrl.u32 %v3000, 16
      %v3189 = vrot.slane %v3187, 4
      %v3190 = vor.u32 %v3189, %v3185
      %v3191 = vrot.slane %v3190, 4
      %v3193 = vshll.u32 %v3001, 16
      %v3195 = vrot.slane %v3193, 5
      %v3196 = vsel %vm1130, %v3191, %v3195
      %v3198 = vshrl.u32 %v3002, 16
      %v3200 = vrot.slane %v3198, 4
      %v3201 = vshll.u32 %v3002, 16
      %v3203 = vrot.slane %v3201, 5
      %v3204 = vor.u32 %v3200, %v3203
      %v3205 = vrot.slane %v3204, 4
      %v3207 = vshll.u32 %v3003, 16
      %v3209 = vrot.slane %v3207, 5
      %v3210 = vsel %vm1130, %v3205, %v3209
      %v3211 = vshrl.u32 %v3003, 16
      %v3213 = vrot.slane %v3211, 4
      %v3214 = vor.u32 %v3213, %v3209
      %v3215 = vrot.slane %v3214, 4
      %v3217 = vshll.u32 %v3004, 16
      %v3219 = vrot.slane %v3217, 5
      %v3220 = vsel %vm1130, %v3215, %v3219
      %v3222 = vshrl.u32 %v3005, 16
      %v3224 = vrot.slane %v3222, 4
      %v3225 = vshll.u32 %v3005, 16
      %v3227 = vrot.slane %v3225, 5
      %v3228 = vor.u32 %v3224, %v3227
      %v3229 = vrot.slane %v3228, 4
      %v3231 = vshll.u32 %v3006, 16
      %v3233 = vrot.slane %v3231, 5
      %v3234 = vsel %vm1130, %v3229, %v3233
      %v3235 = vshrl.u32 %v3006, 16
      %v3237 = vrot.slane %v3235, 4
      %v3238 = vor.u32 %v3237, %v3233
      %v3239 = vrot.slane %v3238, 4
      %v3241 = vshll.u32 %v3007, 16
      %v3243 = vrot.slane %v3241, 5
      %v3244 = vsel %vm1130, %v3239, %v3243
      %v3246 = vshrl.u32 %v3008, 16
      %v3248 = vrot.slane %v3246, 4
      %v3249 = vshll.u32 %v3008, 16
      %v3251 = vrot.slane %v3249, 5
      %v3252 = vor.u32 %v3248, %v3251
      %v3253 = vrot.slane %v3252, 4
      %v3255 = vshll.u32 %v3009, 16
      %v3257 = vrot.slane %v3255, 5
      %v3258 = vsel %vm1130, %v3253, %v3257
      %v3259 = vshrl.u32 %v3009, 16
      %v3261 = vrot.slane %v3259, 4
      %v3262 = vor.u32 %v3261, %v3257
      %v3263 = vrot.slane %v3262, 4
      %v3265 = vshll.u32 %v3010, 16
      %v3267 = vrot.slane %v3265, 5
      %v3268 = vsel %vm1130, %v3263, %v3267
      %v3270 = vshrl.u32 %v3011, 16
      %v3272 = vrot.slane %v3270, 4
      %v3273 = vshll.u32 %v3011, 16
      %v3275 = vrot.slane %v3273, 5
      %v3276 = vor.u32 %v3272, %v3275
      %v3277 = vrot.slane %v3276, 4
      %v3279 = vshll.u32 %v3012, 16
      %v3281 = vrot.slane %v3279, 5
      %v3282 = vsel %vm1130, %v3277, %v3281
      %v3283 = vshrl.u32 %v3012, 16
      %v3285 = vrot.slane %v3283, 4
      %v3286 = vor.u32 %v3285, %v3281
      %v3287 = vrot.slane %v3286, 4
      %v3289 = vshll.u32 %v3013, 16
      %v3291 = vrot.slane %v3289, 5
      %v3292 = vsel %vm1130, %v3287, %v3291
      %v3294 = vshrl.u32 %v3014, 16
      %v3296 = vrot.slane %v3294, 4
      %v3297 = vshll.u32 %v3014, 16
      %v3299 = vrot.slane %v3297, 5
      %v3300 = vor.u32 %v3296, %v3299
      %v3301 = vrot.slane %v3300, 4
      %v3303 = vshll.u32 %v3015, 16
      %v3305 = vrot.slane %v3303, 5
      %v3306 = vsel %vm1130, %v3301, %v3305
      %v3307 = vshrl.u32 %v3015, 16
      %v3309 = vrot.slane %v3307, 4
      %v3310 = vor.u32 %v3309, %v3305
      %v3311 = vrot.slane %v3310, 4
      %v3313 = vshll.u32 %v3016, 16
      %v3315 = vrot.slane %v3313, 5
      %v3316 = vsel %vm1130, %v3311, %v3315
      %v3318 = vshrl.u32 %v3017, 16
      %v3320 = vrot.slane %v3318, 4
      %v3321 = vshll.u32 %v3017, 16
      %v3323 = vrot.slane %v3321, 5
      %v3324 = vor.u32 %v3320, %v3323
      %v3325 = vrot.slane %v3324, 4
      %v3327 = vshll.u32 %v3018, 16
      %v3329 = vrot.slane %v3327, 5
      %v3330 = vsel %vm1130, %v3325, %v3329
      %v3331 = vshrl.u32 %v3018, 16
      %v3333 = vrot.slane %v3331, 4
      %v3334 = vor.u32 %v3333, %v3329
      %v3335 = vrot.slane %v3334, 4
      %v3337 = vshll.u32 %v3019, 16
      %v3339 = vrot.slane %v3337, 5
      %v3340 = vsel %vm1130, %v3335, %v3339
      %v3342 = vshrl.u32 %v3020, 16
      %v3344 = vrot.slane %v3342, 4
      %v3345 = vshll.u32 %v3020, 16
      %v3347 = vrot.slane %v3345, 5
      %v3348 = vor.u32 %v3344, %v3347
      %v3349 = vrot.slane %v3348, 4
      %v3351 = vshll.u32 %v3021, 16
      %v3353 = vrot.slane %v3351, 5
      %v3354 = vsel %vm1130, %v3349, %v3353
      %v3355 = vshrl.u32 %v3021, 16
      %v3357 = vrot.slane %v3355, 4
      %v3358 = vor.u32 %v3357, %v3353
      %v3359 = vrot.slane %v3358, 4
      %v3361 = vshll.u32 %v3022, 16
      %v3363 = vrot.slane %v3361, 5
      %v3364 = vsel %vm1130, %v3359, %v3363
      %v3366 = vshrl.u32 %v3023, 16
      %v3368 = vrot.slane %v3366, 4
      %v3369 = vshll.u32 %v3023, 16
      %v3371 = vrot.slane %v3369, 5
      %v3372 = vor.u32 %v3368, %v3371
      %v3373 = vrot.slane %v3372, 4
      %v3375 = vshll.u32 %v3024, 16
      %v3377 = vrot.slane %v3375, 5
      %v3378 = vsel %vm1130, %v3373, %v3377
      %v3379 = vshrl.u32 %v3024, 16
      %v3381 = vrot.slane %v3379, 4
      %v3382 = vor.u32 %v3381, %v3377
      %v3383 = vrot.slane %v3382, 4
      %v3385 = vshll.u32 %v3025, 16
      %v3387 = vrot.slane %v3385, 5
      %v3388 = vsel %vm1130, %v3383, %v3387
      %v3390 = vshrl.u32 %v3026, 16
      %v3392 = vrot.slane %v3390, 4
      %v3393 = vshll.u32 %v3026, 16
      %v3395 = vrot.slane %v3393, 5
      %v3396 = vor.u32 %v3392, %v3395
      %v3397 = vrot.slane %v3396, 4
      %v3399 = vshll.u32 %v3027, 16
      %v3401 = vrot.slane %v3399, 5
      %v3402 = vsel %vm1130, %v3397, %v3401
      %v3403 = vshrl.u32 %v3027, 16
      %v3405 = vrot.slane %v3403, 4
      %v3406 = vor.u32 %v3405, %v3401
      %v3407 = vrot.slane %v3406, 4
      %v3409 = vshll.u32 %v3028, 16
      %v3411 = vrot.slane %v3409, 5
      %v3412 = vsel %vm1130, %v3407, %v3411
      %s3413 = scalar_lea.vmem %s1, 256
      %v3414 = vld [vmem:[%s3413] sm:$0xf]
      %v3415 = vld [vmem:[%s3413 + $0x4] sm:$0xf]
      %v3416 = vld [vmem:[%s3413 + $0x8] sm:$0xf]
      %v3417 = vld [vmem:[%s3413 + $0xc] sm:$0xf]
      %v3418 = vld [vmem:[%s3413 + $0x10] sm:$0xf]
      %v3419 = vld [vmem:[%s3413 + $0x14] sm:$0xf]
      %v3420 = vld [vmem:[%s3413 + $0x18] sm:$0xf]
      %v3421 = vld [vmem:[%s3413 + $0x1c] sm:$0xf]
      %v3422 = vld [vmem:[%s3413 + $0x20] sm:$0xf]
      %v3423 = vld [vmem:[%s3413 + $0x24] sm:$0xf]
      %v3424 = vld [vmem:[%s3413 + $0x28] sm:$0xf]
      %v3425 = vld [vmem:[%s3413 + $0x2c] sm:$0xf]
      %v3426 = vld [vmem:[%s3413 + $0x30] sm:$0xf]
      %v3427 = vld [vmem:[%s3413 + $0x34] sm:$0xf]
      %v3428 = vld [vmem:[%s3413 + $0x38] sm:$0xf]
      %v3429 = vld [vmem:[%s3413 + $0x3c] sm:$0xf]
      %v3430 = vunpack.c.l.b16 %v3042
      %v3431 = vunpack.c.l.b16 %v3052
      %v3432 = vunpack.c.l.b16 %v3066
      %v3433 = vunpack.c.l.b16 %v3076
      %v3434 = vunpack.c.l.b16 %v3090
      %v3435 = vunpack.c.l.b16 %v3100
      %v3436 = vunpack.c.l.b16 %v3114
      %v3437 = vunpack.c.l.b16 %v3124
      %v3438 = vunpack.c.l.b16 %v3138
      %v3439 = vunpack.c.l.b16 %v3148
      %v3440 = vunpack.c.l.b16 %v3162
      %v3441 = vunpack.c.l.b16 %v3172
      %v3442 = vunpack.c.l.b16 %v3186
      %v3443 = vunpack.c.l.b16 %v3196
      %v3444 = vunpack.c.l.b16 %v3210
      %v3445 = vunpack.c.l.b16 %v3220
      %v3446 = vunpack.c.l.b16 %v3234
      %v3447 = vunpack.c.l.b16 %v3244
      %v3448 = vunpack.c.l.b16 %v3258
      %v3449 = vunpack.c.l.b16 %v3268
      %v3450 = vunpack.c.l.b16 %v3282
      %v3451 = vunpack.c.l.b16 %v3292
      %v3452 = vunpack.c.l.b16 %v3306
      %v3453 = vunpack.c.l.b16 %v3316
      %v3454 = vunpack.c.l.b16 %v3330
      %v3455 = vunpack.c.l.b16 %v3340
      %v3456 = vunpack.c.l.b16 %v3354
      %v3457 = vunpack.c.l.b16 %v3364
      %v3458 = vunpack.c.l.b16 %v3378
      %v3459 = vunpack.c.l.b16 %v3388
      %v3460 = vunpack.c.l.b16 %v3402
      %v3461 = vunpack.c.l.b16 %v3412
      %v3462 = vpack.c.b16 %v3431, %v3430
      %v3463 = vpack.c.b16 %v3433, %v3432
      %v3464 = vpack.c.b16 %v3435, %v3434
      %v3465 = vpack.c.b16 %v3437, %v3436
      %v3466 = vpack.c.b16 %v3439, %v3438
      %v3467 = vpack.c.b16 %v3441, %v3440
      %v3468 = vpack.c.b16 %v3443, %v3442
      %v3469 = vpack.c.b16 %v3445, %v3444
      %v3470 = vpack.c.b16 %v3447, %v3446
      %v3471 = vpack.c.b16 %v3449, %v3448
      %v3472 = vpack.c.b16 %v3451, %v3450
      %v3473 = vpack.c.b16 %v3453, %v3452
      %v3474 = vpack.c.b16 %v3455, %v3454
      %v3475 = vpack.c.b16 %v3457, %v3456
      %v3476 = vpack.c.b16 %v3459, %v3458
      %v3477 = vpack.c.b16 %v3461, %v3460
      %v3510 = vunpack.c.l.b16 %v3414
      %v3511 = vunpack.c.l.b16 %v3415
      %v3512 = vunpack.c.l.b16 %v3416
      %v3513 = vunpack.c.l.b16 %v3417
      %v3514 = vunpack.c.l.b16 %v3418
      %v3515 = vunpack.c.l.b16 %v3419
      %v3516 = vunpack.c.l.b16 %v3420
      %v3517 = vunpack.c.l.b16 %v3421
      %v3518 = vunpack.c.l.b16 %v3422
      %v3519 = vunpack.c.l.b16 %v3423
      %v3520 = vunpack.c.l.b16 %v3424
      %v3521 = vunpack.c.l.b16 %v3425
      %v3522 = vunpack.c.l.b16 %v3426
      %v3523 = vunpack.c.l.b16 %v3427
      %v3524 = vunpack.c.l.b16 %v3428
      %v3525 = vunpack.c.l.b16 %v3429
      %v3526 = vpack.c.b16 %v3511, %v3510
      %v3527 = vpack.c.b16 %v3513, %v3512
      %v3528 = vpack.c.b16 %v3515, %v3514
      %v3529 = vpack.c.b16 %v3517, %v3516
      %v3530 = vpack.c.b16 %v3519, %v3518
      %v3531 = vpack.c.b16 %v3521, %v3520
      %v3532 = vpack.c.b16 %v3523, %v3522
      %v3533 = vpack.c.b16 %v3525, %v3524
      %3542 = vmatprep.subr.bf16.mxu0 0
      %3543 = vmatpush1.bf16.msra.mxu0 %v3533
      %3544 = vmatprep.subr.bf16.mxu0 0
      %3545 = vmatpush1.bf16.msra.mxu0 %v3532
      %3546 = vmatprep.subr.bf16.mxu0 0
      %3547 = vmatpush1.bf16.msra.mxu0 %v3531
      %3548 = vmatprep.subr.bf16.mxu0 0
      %3549 = vmatpush1.bf16.msra.mxu0 %v3530
      %3550 = vmatprep.subr.bf16.mxu0 0
      %3551 = vmatpush1.bf16.msra.mxu0 %v3529
      %3552 = vmatprep.subr.bf16.mxu0 0
      %3553 = vmatpush1.bf16.msra.mxu0 %v3528
      %3554 = vmatprep.subr.bf16.mxu0 0
      %3555 = vmatpush1.bf16.msra.mxu0 %v3527
      %3556 = vmatprep.subr.bf16.mxu0 0
      %3557 = vmatpush1.bf16.msra.mxu0 %v3526
      %3558 = vmatprep.subr.bf16.mxu0 0
      %3559 = vmatpush2.bf16.msra.mxu0 0
      %3560 = vmatprep.subr.bf16.mxu0 0
      %3561 = vmatpush2.bf16.msra.mxu0 0
      %3562 = vmatprep.subr.bf16.mxu0 0
      %3563 = vmatpush2.bf16.msra.mxu0 0
      %3564 = vmatprep.subr.bf16.mxu0 0
      %3565 = vmatpush2.bf16.msra.mxu0 0
      %3566 = vmatprep.subr.bf16.mxu0 0
      %3567 = vmatpush2.bf16.msra.mxu0 0
      %3568 = vmatprep.subr.bf16.mxu0 0
      %3569 = vmatpush2.bf16.msra.mxu0 0
      %3570 = vmatprep.subr.bf16.mxu0 0
      %3571 = vmatpush2.bf16.msra.mxu0 0
      %3572 = vmatprep.subr.bf16.mxu0 0
      %3573 = vmatpush2.bf16.msra.mxu0 0
      %3574 = vmatprep.mubr.bf16.mxu0 0
      %3575 = vmatmul.mubr.bf16.gmra.mxu0 %v3462
      %v3576 = vpop.f32.mrf.mxu0
      %v3577 = vadd.f32 0.0, %v3576
      %v3578 = vpop.f32.mrf.mxu0
      %v3579 = vpop.f32.mrf.mxu0
      %v3580 = vadd.f32 0.0, %v3579
      %v3581 = vpop.f32.mrf.mxu0
      %3582 = vmatprep.mubr.bf16.mxu0 0
      %3583 = vmatmul.mubr.bf16.gmra.mxu0 %v3463
      %v3584 = vpop.f32.mrf.mxu0
      %v3585 = vadd.f32 0.0, %v3584
      %v3586 = vpop.f32.mrf.mxu0
      %v3587 = vpop.f32.mrf.mxu0
      %v3588 = vadd.f32 0.0, %v3587
      %v3589 = vpop.f32.mrf.mxu0
      %3590 = vmatprep.mubr.bf16.mxu0 0
      %3591 = vmatmul.mubr.bf16.gmra.mxu0 %v3464
      %v3592 = vpop.f32.mrf.mxu0
      %v3593 = vadd.f32 0.0, %v3592
      %v3594 = vpop.f32.mrf.mxu0
      %v3595 = vpop.f32.mrf.mxu0
      %v3596 = vadd.f32 0.0, %v3595
      %v3597 = vpop.f32.mrf.mxu0
      %3598 = vmatprep.mubr.bf16.mxu0 0
      %3599 = vmatmul.mubr.bf16.gmra.mxu0 %v3465
      %v3600 = vpop.f32.mrf.mxu0
      %v3601 = vadd.f32 0.0, %v3600
      %v3602 = vpop.f32.mrf.mxu0
      %v3603 = vpop.f32.mrf.mxu0
      %v3604 = vadd.f32 0.0, %v3603
      %v3605 = vpop.f32.mrf.mxu0
      %3606 = vmatprep.mubr.bf16.mxu0 0
      %3607 = vmatmul.mubr.bf16.gmra.mxu0 %v3466
      %v3608 = vpop.f32.mrf.mxu0
      %v3609 = vadd.f32 0.0, %v3608
      %v3610 = vpop.f32.mrf.mxu0
      %v3611 = vpop.f32.mrf.mxu0
      %v3612 = vadd.f32 0.0, %v3611
      %v3613 = vpop.f32.mrf.mxu0
      %3614 = vmatprep.mubr.bf16.mxu0 0
      %3615 = vmatmul.mubr.bf16.gmra.mxu0 %v3467
      %v3616 = vpop.f32.mrf.mxu0
      %v3617 = vadd.f32 0.0, %v3616
      %v3618 = vpop.f32.mrf.mxu0
      %v3619 = vpop.f32.mrf.mxu0
      %v3620 = vadd.f32 0.0, %v3619
      %v3621 = vpop.f32.mrf.mxu0
      %3622 = vmatprep.mubr.bf16.mxu0 0
      %3623 = vmatmul.mubr.bf16.gmra.mxu0 %v3468
      %v3624 = vpop.f32.mrf.mxu0
      %v3625 = vadd.f32 0.0, %v3624
      %v3626 = vpop.f32.mrf.mxu0
      %v3627 = vpop.f32.mrf.mxu0
      %v3628 = vadd.f32 0.0, %v3627
      %v3629 = vpop.f32.mrf.mxu0
      %3630 = vmatprep.mubr.bf16.mxu0 0
      %3631 = vmatmul.mubr.bf16.gmra.mxu0 %v3469
      %v3632 = vpop.f32.mrf.mxu0
      %v3633 = vadd.f32 0.0, %v3632
      %v3634 = vpop.f32.mrf.mxu0
      %v3635 = vpop.f32.mrf.mxu0
      %v3636 = vadd.f32 0.0, %v3635
      %v3637 = vpop.f32.mrf.mxu0
      %3638 = vmatprep.mubr.bf16.mxu0 0
      %3639 = vmatmul.mubr.bf16.gmra.mxu0 %v3470
      %v3640 = vpop.f32.mrf.mxu0
      %v3641 = vadd.f32 0.0, %v3640
      %v3642 = vpop.f32.mrf.mxu0
      %v3643 = vpop.f32.mrf.mxu0
      %v3644 = vadd.f32 0.0, %v3643
      %v3645 = vpop.f32.mrf.mxu0
      %3646 = vmatprep.mubr.bf16.mxu0 0
      %3647 = vmatmul.mubr.bf16.gmra.mxu0 %v3471
      %v3648 = vpop.f32.mrf.mxu0
      %v3649 = vadd.f32 0.0, %v3648
      %v3650 = vpop.f32.mrf.mxu0
      %v3651 = vpop.f32.mrf.mxu0
      %v3652 = vadd.f32 0.0, %v3651
      %v3653 = vpop.f32.mrf.mxu0
      %3654 = vmatprep.mubr.bf16.mxu0 0
      %3655 = vmatmul.mubr.bf16.gmra.mxu0 %v3472
      %v3656 = vpop.f32.mrf.mxu0
      %v3657 = vadd.f32 0.0, %v3656
      %v3658 = vpop.f32.mrf.mxu0
      %v3659 = vpop.f32.mrf.mxu0
      %v3660 = vadd.f32 0.0, %v3659
      %v3661 = vpop.f32.mrf.mxu0
      %3662 = vmatprep.mubr.bf16.mxu0 0
      %3663 = vmatmul.mubr.bf16.gmra.mxu0 %v3473
      %v3664 = vpop.f32.mrf.mxu0
      %v3665 = vadd.f32 0.0, %v3664
      %v3666 = vpop.f32.mrf.mxu0
      %v3667 = vpop.f32.mrf.mxu0
      %v3668 = vadd.f32 0.0, %v3667
      %v3669 = vpop.f32.mrf.mxu0
      %3670 = vmatprep.mubr.bf16.mxu0 0
      %3671 = vmatmul.mubr.bf16.gmra.mxu0 %v3474
      %v3672 = vpop.f32.mrf.mxu0
      %v3673 = vadd.f32 0.0, %v3672
      %v3674 = vpop.f32.mrf.mxu0
      %v3675 = vpop.f32.mrf.mxu0
      %v3676 = vadd.f32 0.0, %v3675
      %v3677 = vpop.f32.mrf.mxu0
      %3678 = vmatprep.mubr.bf16.mxu0 0
      %3679 = vmatmul.mubr.bf16.gmra.mxu0 %v3475
      %v3680 = vpop.f32.mrf.mxu0
      %v3681 = vadd.f32 0.0, %v3680
      %v3682 = vpop.f32.mrf.mxu0
      %v3683 = vpop.f32.mrf.mxu0
      %v3684 = vadd.f32 0.0, %v3683
      %v3685 = vpop.f32.mrf.mxu0
      %3686 = vmatprep.mubr.bf16.mxu0 0
      %3687 = vmatmul.mubr.bf16.gmra.mxu0 %v3476
      %v3688 = vpop.f32.mrf.mxu0
      %v3689 = vadd.f32 0.0, %v3688
      %v3690 = vpop.f32.mrf.mxu0
      %v3691 = vpop.f32.mrf.mxu0
      %v3692 = vadd.f32 0.0, %v3691
      %v3693 = vpop.f32.mrf.mxu0
      %3694 = vmatprep.mubr.bf16.mxu0 0
      %3695 = vmatmul.mubr.bf16.gmra.mxu0 %v3477
      %v3696 = vpop.f32.mrf.mxu0
      %v3697 = vadd.f32 0.0, %v3696
      %v3698 = vpop.f32.mrf.mxu0
      %v3699 = vpop.f32.mrf.mxu0
      %v3700 = vadd.f32 0.0, %v3699
      %v3701 = vpop.f32.mrf.mxu0
      %3702 = vdwg.mxu0
      %v3703 = vadd.f32 %v2949, %v3577
      %v3704 = vadd.f32 %v2950, %v3580
      %v3705 = vadd.f32 %v2951, %v3585
      %v3706 = vadd.f32 %v2952, %v3588
      %v3707 = vadd.f32 %v2953, %v3593
      %v3708 = vadd.f32 %v2954, %v3596
      %v3709 = vadd.f32 %v2955, %v3601
      %v3710 = vadd.f32 %v2956, %v3604
      %v3711 = vadd.f32 %v2957, %v3609
      %v3712 = vadd.f32 %v2958, %v3612
      %v3713 = vadd.f32 %v2959, %v3617
      %v3714 = vadd.f32 %v2960, %v3620
      %v3715 = vadd.f32 %v2961, %v3625
      %v3716 = vadd.f32 %v2962, %v3628
      %v3717 = vadd.f32 %v2963, %v3633
      %v3718 = vadd.f32 %v2964, %v3636
      %v3719 = vadd.f32 %v2965, %v3641
      %v3720 = vadd.f32 %v2966, %v3644
      %v3721 = vadd.f32 %v2967, %v3649
      %v3722 = vadd.f32 %v2968, %v3652
      %v3723 = vadd.f32 %v2969, %v3657
      %v3724 = vadd.f32 %v2970, %v3660
      %v3725 = vadd.f32 %v2971, %v3665
      %v3726 = vadd.f32 %v2972, %v3668
      %v3727 = vadd.f32 %v2973, %v3673
      %v3728 = vadd.f32 %v2974, %v3676
      %v3729 = vadd.f32 %v2975, %v3681
      %v3730 = vadd.f32 %v2976, %v3684
      %v3731 = vadd.f32 %v2977, %v3689
      %v3732 = vadd.f32 %v2978, %v3692
      %v3733 = vadd.f32 %v2979, %v3697
      %v3734 = vadd.f32 %v2980, %v3700
      %v3735 = vld [vmem:[%s949] sm:$0xe]
      %v3736 = vld [vmem:[%s949 + $0xc] sm:$0xe]
      %v3737 = vld [vmem:[%s949 + $0x18] sm:$0xe]
      %v3738 = vld [vmem:[%s949 + $0x24] sm:$0xe]
      %v3739 = vld [vmem:[%s949 + $0x30] sm:$0xe]
      %v3740 = vld [vmem:[%s949 + $0x3c] sm:$0xe]
      %v3741 = vld [vmem:[%s949 + $0x48] sm:$0xe]
      %v3742 = vld [vmem:[%s949 + $0x54] sm:$0xe]
      %v3743 = vld [vmem:[%s949 + $0x60] sm:$0xe]
      %v3744 = vld [vmem:[%s949 + $0x6c] sm:$0xe]
      %v3745 = vld [vmem:[%s949 + $0x78] sm:$0xe]
      %v3746 = vld [vmem:[%s949 + $0x84] sm:$0xe]
      %v3747 = vld [vmem:[%s949 + $0x90] sm:$0xe]
      %v3748 = vld [vmem:[%s949 + $0x9c] sm:$0xe]
      %v3749 = vld [vmem:[%s949 + $0xa8] sm:$0xe]
      %v3750 = vld [vmem:[%s949 + $0xb4] sm:$0xe]
      %v3799 = vrot.slane %v3735, 5
      %v3800 = vrot.slane %v3799, 4
      %v3801 = vrot.slane %v2982, 5
      %v3802 = vsel %vm2160, %v3800, %v3801
      %v3803 = vrot.slane %v3801, 4
      %v3804 = vrot.slane %v2983, 5
      %v3805 = vsel %vm2160, %v3803, %v3804
      %v3806 = vrot.slane %v3736, 5
      %v3807 = vrot.slane %v3806, 4
      %v3808 = vrot.slane %v2985, 5
      %v3809 = vsel %vm2160, %v3807, %v3808
      %v3810 = vrot.slane %v3808, 4
      %v3811 = vrot.slane %v2986, 5
      %v3812 = vsel %vm2160, %v3810, %v3811
      %v3813 = vrot.slane %v3737, 5
      %v3814 = vrot.slane %v3813, 4
      %v3815 = vrot.slane %v2988, 5
      %v3816 = vsel %vm2160, %v3814, %v3815
      %v3817 = vrot.slane %v3815, 4
      %v3818 = vrot.slane %v2989, 5
      %v3819 = vsel %vm2160, %v3817, %v3818
      %v3820 = vrot.slane %v3738, 5
      %v3821 = vrot.slane %v3820, 4
      %v3822 = vrot.slane %v2991, 5
      %v3823 = vsel %vm2160, %v3821, %v3822
      %v3824 = vrot.slane %v3822, 4
      %v3825 = vrot.slane %v2992, 5
      %v3826 = vsel %vm2160, %v3824, %v3825
      %v3827 = vrot.slane %v3739, 5
      %v3828 = vrot.slane %v3827, 4
      %v3829 = vrot.slane %v2994, 5
      %v3830 = vsel %vm2160, %v3828, %v3829
      %v3831 = vrot.slane %v3829, 4
      %v3832 = vrot.slane %v2995, 5
      %v3833 = vsel %vm2160, %v3831, %v3832
      %v3834 = vrot.slane %v3740, 5
      %v3835 = vrot.slane %v3834, 4
      %v3836 = vrot.slane %v2997, 5
      %v3837 = vsel %vm2160, %v3835, %v3836
      %v3838 = vrot.slane %v3836, 4
      %v3839 = vrot.slane %v2998, 5
      %v3840 = vsel %vm2160, %v3838, %v3839
      %v3841 = vrot.slane %v3741, 5
      %v3842 = vrot.slane %v3841, 4
      %v3843 = vrot.slane %v3000, 5
      %v3844 = vsel %vm2160, %v3842, %v3843
      %v3845 = vrot.slane %v3843, 4
      %v3846 = vrot.slane %v3001, 5
      %v3847 = vsel %vm2160, %v3845, %v3846
      %v3848 = vrot.slane %v3742, 5
      %v3849 = vrot.slane %v3848, 4
      %v3850 = vrot.slane %v3003, 5
      %v3851 = vsel %vm2160, %v3849, %v3850
      %v3852 = vrot.slane %v3850, 4
      %v3853 = vrot.slane %v3004, 5
      %v3854 = vsel %vm2160, %v3852, %v3853
      %v3855 = vrot.slane %v3743, 5
      %v3856 = vrot.slane %v3855, 4
      %v3857 = vrot.slane %v3006, 5
      %v3858 = vsel %vm2160, %v3856, %v3857
      %v3859 = vrot.slane %v3857, 4
      %v3860 = vrot.slane %v3007, 5
      %v3861 = vsel %vm2160, %v3859, %v3860
      %v3862 = vrot.slane %v3744, 5
      %v3863 = vrot.slane %v3862, 4
      %v3864 = vrot.slane %v3009, 5
      %v3865 = vsel %vm2160, %v3863, %v3864
      %v3866 = vrot.slane %v3864, 4
      %v3867 = vrot.slane %v3010, 5
      %v3868 = vsel %vm2160, %v3866, %v3867
      %v3869 = vrot.slane %v3745, 5
      %v3870 = vrot.slane %v3869, 4
      %v3871 = vrot.slane %v3012, 5
      %v3872 = vsel %vm2160, %v3870, %v3871
      %v3873 = vrot.slane %v3871, 4
      %v3874 = vrot.slane %v3013, 5
      %v3875 = vsel %vm2160, %v3873, %v3874
      %v3876 = vrot.slane %v3746, 5
      %v3877 = vrot.slane %v3876, 4
      %v3878 = vrot.slane %v3015, 5
      %v3879 = vsel %vm2160, %v3877, %v3878
      %v3880 = vrot.slane %v3878, 4
      %v3881 = vrot.slane %v3016, 5
      %v3882 = vsel %vm2160, %v3880, %v3881
      %v3883 = vrot.slane %v3747, 5
      %v3884 = vrot.slane %v3883, 4
      %v3885 = vrot.slane %v3018, 5
      %v3886 = vsel %vm2160, %v3884, %v3885
      %v3887 = vrot.slane %v3885, 4
      %v3888 = vrot.slane %v3019, 5
      %v3889 = vsel %vm2160, %v3887, %v3888
      %v3890 = vrot.slane %v3748, 5
      %v3891 = vrot.slane %v3890, 4
      %v3892 = vrot.slane %v3021, 5
      %v3893 = vsel %vm2160, %v3891, %v3892
      %v3894 = vrot.slane %v3892, 4
      %v3895 = vrot.slane %v3022, 5
      %v3896 = vsel %vm2160, %v3894, %v3895
      %v3897 = vrot.slane %v3749, 5
      %v3898 = vrot.slane %v3897, 4
      %v3899 = vrot.slane %v3024, 5
      %v3900 = vsel %vm2160, %v3898, %v3899
      %v3901 = vrot.slane %v3899, 4
      %v3902 = vrot.slane %v3025, 5
      %v3903 = vsel %vm2160, %v3901, %v3902
      %v3904 = vrot.slane %v3750, 5
      %v3905 = vrot.slane %v3904, 4
      %v3906 = vrot.slane %v3027, 5
      %v3907 = vsel %vm2160, %v3905, %v3906
      %v3908 = vrot.slane %v3906, 4
      %v3909 = vrot.slane %v3028, 5
      %v3910 = vsel %vm2160, %v3908, %v3909
      %s3911 = scalar_lea.vmem %s1, 320
      %v3912 = vld [vmem:[%s3911] sm:$0xf]
      %v3913 = vld [vmem:[%s3911 + $0x4] sm:$0xf]
      %v3914 = vld [vmem:[%s3911 + $0x8] sm:$0xf]
      %v3915 = vld [vmem:[%s3911 + $0xc] sm:$0xf]
      %v3916 = vld [vmem:[%s3911 + $0x10] sm:$0xf]
      %v3917 = vld [vmem:[%s3911 + $0x14] sm:$0xf]
      %v3918 = vld [vmem:[%s3911 + $0x18] sm:$0xf]
      %v3919 = vld [vmem:[%s3911 + $0x1c] sm:$0xf]
      %v3920 = vld [vmem:[%s3911 + $0x20] sm:$0xf]
      %v3921 = vld [vmem:[%s3911 + $0x24] sm:$0xf]
      %v3922 = vld [vmem:[%s3911 + $0x28] sm:$0xf]
      %v3923 = vld [vmem:[%s3911 + $0x2c] sm:$0xf]
      %v3924 = vld [vmem:[%s3911 + $0x30] sm:$0xf]
      %v3925 = vld [vmem:[%s3911 + $0x34] sm:$0xf]
      %v3926 = vld [vmem:[%s3911 + $0x38] sm:$0xf]
      %v3927 = vld [vmem:[%s3911 + $0x3c] sm:$0xf]
      %v3928 = vunpack.c.l.b16 %v3802
      %v3929 = vunpack.c.l.b16 %v3805
      %v3930 = vunpack.c.l.b16 %v3809
      %v3931 = vunpack.c.l.b16 %v3812
      %v3932 = vunpack.c.l.b16 %v3816
      %v3933 = vunpack.c.l.b16 %v3819
      %v3934 = vunpack.c.l.b16 %v3823
      %v3935 = vunpack.c.l.b16 %v3826
      %v3936 = vunpack.c.l.b16 %v3830
      %v3937 = vunpack.c.l.b16 %v3833
      %v3938 = vunpack.c.l.b16 %v3837
      %v3939 = vunpack.c.l.b16 %v3840
      %v3940 = vunpack.c.l.b16 %v3844
      %v3941 = vunpack.c.l.b16 %v3847
      %v3942 = vunpack.c.l.b16 %v3851
      %v3943 = vunpack.c.l.b16 %v3854
      %v3944 = vunpack.c.l.b16 %v3858
      %v3945 = vunpack.c.l.b16 %v3861
      %v3946 = vunpack.c.l.b16 %v3865
      %v3947 = vunpack.c.l.b16 %v3868
      %v3948 = vunpack.c.l.b16 %v3872
      %v3949 = vunpack.c.l.b16 %v3875
      %v3950 = vunpack.c.l.b16 %v3879
      %v3951 = vunpack.c.l.b16 %v3882
      %v3952 = vunpack.c.l.b16 %v3886
      %v3953 = vunpack.c.l.b16 %v3889
      %v3954 = vunpack.c.l.b16 %v3893
      %v3955 = vunpack.c.l.b16 %v3896
      %v3956 = vunpack.c.l.b16 %v3900
      %v3957 = vunpack.c.l.b16 %v3903
      %v3958 = vunpack.c.l.b16 %v3907
      %v3959 = vunpack.c.l.b16 %v3910
      %v3960 = vpack.c.b16 %v3929, %v3928
      %v3961 = vpack.c.b16 %v3931, %v3930
      %v3962 = vpack.c.b16 %v3933, %v3932
      %v3963 = vpack.c.b16 %v3935, %v3934
      %v3964 = vpack.c.b16 %v3937, %v3936
      %v3965 = vpack.c.b16 %v3939, %v3938
      %v3966 = vpack.c.b16 %v3941, %v3940
      %v3967 = vpack.c.b16 %v3943, %v3942
      %v3968 = vpack.c.b16 %v3945, %v3944
      %v3969 = vpack.c.b16 %v3947, %v3946
      %v3970 = vpack.c.b16 %v3949, %v3948
      %v3971 = vpack.c.b16 %v3951, %v3950
      %v3972 = vpack.c.b16 %v3953, %v3952
      %v3973 = vpack.c.b16 %v3955, %v3954
      %v3974 = vpack.c.b16 %v3957, %v3956
      %v3975 = vpack.c.b16 %v3959, %v3958
      %v4008 = vunpack.c.l.b16 %v3912
      %v4009 = vunpack.c.l.b16 %v3913
      %v4010 = vunpack.c.l.b16 %v3914
      %v4011 = vunpack.c.l.b16 %v3915
      %v4012 = vunpack.c.l.b16 %v3916
      %v4013 = vunpack.c.l.b16 %v3917
      %v4014 = vunpack.c.l.b16 %v3918
      %v4015 = vunpack.c.l.b16 %v3919
      %v4016 = vunpack.c.l.b16 %v3920
      %v4017 = vunpack.c.l.b16 %v3921
      %v4018 = vunpack.c.l.b16 %v3922
      %v4019 = vunpack.c.l.b16 %v3923
      %v4020 = vunpack.c.l.b16 %v3924
      %v4021 = vunpack.c.l.b16 %v3925
      %v4022 = vunpack.c.l.b16 %v3926
      %v4023 = vunpack.c.l.b16 %v3927
      %v4024 = vpack.c.b16 %v4009, %v4008
      %v4025 = vpack.c.b16 %v4011, %v4010
      %v4026 = vpack.c.b16 %v4013, %v4012
      %v4027 = vpack.c.b16 %v4015, %v4014
      %v4028 = vpack.c.b16 %v4017, %v4016
      %v4029 = vpack.c.b16 %v4019, %v4018
      %v4030 = vpack.c.b16 %v4021, %v4020
      %v4031 = vpack.c.b16 %v4023, %v4022
      %4040 = vmatprep.subr.bf16.mxu0 0
      %4041 = vmatpush1.bf16.msra.mxu0 %v4031
      %4042 = vmatprep.subr.bf16.mxu0 0
      %4043 = vmatpush1.bf16.msra.mxu0 %v4030
      %4044 = vmatprep.subr.bf16.mxu0 0
      %4045 = vmatpush1.bf16.msra.mxu0 %v4029
      %4046 = vmatprep.subr.bf16.mxu0 0
      %4047 = vmatpush1.bf16.msra.mxu0 %v4028
      %4048 = vmatprep.subr.bf16.mxu0 0
      %4049 = vmatpush1.bf16.msra.mxu0 %v4027
      %4050 = vmatprep.subr.bf16.mxu0 0
      %4051 = vmatpush1.bf16.msra.mxu0 %v4026
      %4052 = vmatprep.subr.bf16.mxu0 0
      %4053 = vmatpush1.bf16.msra.mxu0 %v4025
      %4054 = vmatprep.subr.bf16.mxu0 0
      %4055 = vmatpush1.bf16.msra.mxu0 %v4024
      %4056 = vmatprep.subr.bf16.mxu0 0
      %4057 = vmatpush2.bf16.msra.mxu0 0
      %4058 = vmatprep.subr.bf16.mxu0 0
      %4059 = vmatpush2.bf16.msra.mxu0 0
      %4060 = vmatprep.subr.bf16.mxu0 0
      %4061 = vmatpush2.bf16.msra.mxu0 0
      %4062 = vmatprep.subr.bf16.mxu0 0
      %4063 = vmatpush2.bf16.msra.mxu0 0
      %4064 = vmatprep.subr.bf16.mxu0 0
      %4065 = vmatpush2.bf16.msra.mxu0 0
      %4066 = vmatprep.subr.bf16.mxu0 0
      %4067 = vmatpush2.bf16.msra.mxu0 0
      %4068 = vmatprep.subr.bf16.mxu0 0
      %4069 = vmatpush2.bf16.msra.mxu0 0
      %4070 = vmatprep.subr.bf16.mxu0 0
      %4071 = vmatpush2.bf16.msra.mxu0 0
      %4072 = vmatprep.mubr.bf16.mxu0 0
      %4073 = vmatmul.mubr.bf16.gmra.mxu0 %v3960
      %v4074 = vpop.f32.mrf.mxu0
      %v4075 = vadd.f32 0.0, %v4074
      %v4076 = vpop.f32.mrf.mxu0
      %v4077 = vpop.f32.mrf.mxu0
      %v4078 = vadd.f32 0.0, %v4077
      %v4079 = vpop.f32.mrf.mxu0
      %4080 = vmatprep.mubr.bf16.mxu0 0
      %4081 = vmatmul.mubr.bf16.gmra.mxu0 %v3961
      %v4082 = vpop.f32.mrf.mxu0
      %v4083 = vadd.f32 0.0, %v4082
      %v4084 = vpop.f32.mrf.mxu0
      %v4085 = vpop.f32.mrf.mxu0
      %v4086 = vadd.f32 0.0, %v4085
      %v4087 = vpop.f32.mrf.mxu0
      %4088 = vmatprep.mubr.bf16.mxu0 0
      %4089 = vmatmul.mubr.bf16.gmra.mxu0 %v3962
      %v4090 = vpop.f32.mrf.mxu0
      %v4091 = vadd.f32 0.0, %v4090
      %v4092 = vpop.f32.mrf.mxu0
      %v4093 = vpop.f32.mrf.mxu0
      %v4094 = vadd.f32 0.0, %v4093
      %v4095 = vpop.f32.mrf.mxu0
      %4096 = vmatprep.mubr.bf16.mxu0 0
      %4097 = vmatmul.mubr.bf16.gmra.mxu0 %v3963
      %v4098 = vpop.f32.mrf.mxu0
      %v4099 = vadd.f32 0.0, %v4098
      %v4100 = vpop.f32.mrf.mxu0
      %v4101 = vpop.f32.mrf.mxu0
      %v4102 = vadd.f32 0.0, %v4101
      %v4103 = vpop.f32.mrf.mxu0
      %4104 = vmatprep.mubr.bf16.mxu0 0
      %4105 = vmatmul.mubr.bf16.gmra.mxu0 %v3964
      %v4106 = vpop.f32.mrf.mxu0
      %v4107 = vadd.f32 0.0, %v4106
      %v4108 = vpop.f32.mrf.mxu0
      %v4109 = vpop.f32.mrf.mxu0
      %v4110 = vadd.f32 0.0, %v4109
      %v4111 = vpop.f32.mrf.mxu0
      %4112 = vmatprep.mubr.bf16.mxu0 0
      %4113 = vmatmul.mubr.bf16.gmra.mxu0 %v3965
      %v4114 = vpop.f32.mrf.mxu0
      %v4115 = vadd.f32 0.0, %v4114
      %v4116 = vpop.f32.mrf.mxu0
      %v4117 = vpop.f32.mrf.mxu0
      %v4118 = vadd.f32 0.0, %v4117
      %v4119 = vpop.f32.mrf.mxu0
      %4120 = vmatprep.mubr.bf16.mxu0 0
      %4121 = vmatmul.mubr.bf16.gmra.mxu0 %v3966
      %v4122 = vpop.f32.mrf.mxu0
      %v4123 = vadd.f32 0.0, %v4122
      %v4124 = vpop.f32.mrf.mxu0
      %v4125 = vpop.f32.mrf.mxu0
      %v4126 = vadd.f32 0.0, %v4125
      %v4127 = vpop.f32.mrf.mxu0
      %4128 = vmatprep.mubr.bf16.mxu0 0
      %4129 = vmatmul.mubr.bf16.gmra.mxu0 %v3967
      %v4130 = vpop.f32.mrf.mxu0
      %v4131 = vadd.f32 0.0, %v4130
      %v4132 = vpop.f32.mrf.mxu0
      %v4133 = vpop.f32.mrf.mxu0
      %v4134 = vadd.f32 0.0, %v4133
      %v4135 = vpop.f32.mrf.mxu0
      %4136 = vmatprep.mubr.bf16.mxu0 0
      %4137 = vmatmul.mubr.bf16.gmra.mxu0 %v3968
      %v4138 = vpop.f32.mrf.mxu0
      %v4139 = vadd.f32 0.0, %v4138
      %v4140 = vpop.f32.mrf.mxu0
      %v4141 = vpop.f32.mrf.mxu0
      %v4142 = vadd.f32 0.0, %v4141
      %v4143 = vpop.f32.mrf.mxu0
      %4144 = vmatprep.mubr.bf16.mxu0 0
      %4145 = vmatmul.mubr.bf16.gmra.mxu0 %v3969
      %v4146 = vpop.f32.mrf.mxu0
      %v4147 = vadd.f32 0.0, %v4146
      %v4148 = vpop.f32.mrf.mxu0
      %v4149 = vpop.f32.mrf.mxu0
      %v4150 = vadd.f32 0.0, %v4149
      %v4151 = vpop.f32.mrf.mxu0
      %4152 = vmatprep.mubr.bf16.mxu0 0
      %4153 = vmatmul.mubr.bf16.gmra.mxu0 %v3970
      %v4154 = vpop.f32.mrf.mxu0
      %v4155 = vadd.f32 0.0, %v4154
      %v4156 = vpop.f32.mrf.mxu0
      %v4157 = vpop.f32.mrf.mxu0
      %v4158 = vadd.f32 0.0, %v4157
      %v4159 = vpop.f32.mrf.mxu0
      %4160 = vmatprep.mubr.bf16.mxu0 0
      %4161 = vmatmul.mubr.bf16.gmra.mxu0 %v3971
      %v4162 = vpop.f32.mrf.mxu0
      %v4163 = vadd.f32 0.0, %v4162
      %v4164 = vpop.f32.mrf.mxu0
      %v4165 = vpop.f32.mrf.mxu0
      %v4166 = vadd.f32 0.0, %v4165
      %v4167 = vpop.f32.mrf.mxu0
      %4168 = vmatprep.mubr.bf16.mxu0 0
      %4169 = vmatmul.mubr.bf16.gmra.mxu0 %v3972
      %v4170 = vpop.f32.mrf.mxu0
      %v4171 = vadd.f32 0.0, %v4170
      %v4172 = vpop.f32.mrf.mxu0
      %v4173 = vpop.f32.mrf.mxu0
      %v4174 = vadd.f32 0.0, %v4173
      %v4175 = vpop.f32.mrf.mxu0
      %4176 = vmatprep.mubr.bf16.mxu0 0
      %4177 = vmatmul.mubr.bf16.gmra.mxu0 %v3973
      %v4178 = vpop.f32.mrf.mxu0
      %v4179 = vadd.f32 0.0, %v4178
      %v4180 = vpop.f32.mrf.mxu0
      %v4181 = vpop.f32.mrf.mxu0
      %v4182 = vadd.f32 0.0, %v4181
      %v4183 = vpop.f32.mrf.mxu0
      %4184 = vmatprep.mubr.bf16.mxu0 0
      %4185 = vmatmul.mubr.bf16.gmra.mxu0 %v3974
      %v4186 = vpop.f32.mrf.mxu0
      %v4187 = vadd.f32 0.0, %v4186
      %v4188 = vpop.f32.mrf.mxu0
      %v4189 = vpop.f32.mrf.mxu0
      %v4190 = vadd.f32 0.0, %v4189
      %v4191 = vpop.f32.mrf.mxu0
      %4192 = vmatprep.mubr.bf16.mxu0 0
      %4193 = vmatmul.mubr.bf16.gmra.mxu0 %v3975
      %v4194 = vpop.f32.mrf.mxu0
      %v4195 = vadd.f32 0.0, %v4194
      %v4196 = vpop.f32.mrf.mxu0
      %v4197 = vpop.f32.mrf.mxu0
      %v4198 = vadd.f32 0.0, %v4197
      %v4199 = vpop.f32.mrf.mxu0
      %4200 = vdwg.mxu0
      %v4201 = vadd.f32 %v3703, %v4075
      %v4202 = vadd.f32 %v3704, %v4078
      %v4203 = vadd.f32 %v3705, %v4083
      %v4204 = vadd.f32 %v3706, %v4086
      %v4205 = vadd.f32 %v3707, %v4091
      %v4206 = vadd.f32 %v3708, %v4094
      %v4207 = vadd.f32 %v3709, %v4099
      %v4208 = vadd.f32 %v3710, %v4102
      %v4209 = vadd.f32 %v3711, %v4107
      %v4210 = vadd.f32 %v3712, %v4110
      %v4211 = vadd.f32 %v3713, %v4115
      %v4212 = vadd.f32 %v3714, %v4118
      %v4213 = vadd.f32 %v3715, %v4123
      %v4214 = vadd.f32 %v3716, %v4126
      %v4215 = vadd.f32 %v3717, %v4131
      %v4216 = vadd.f32 %v3718, %v4134
      %v4217 = vadd.f32 %v3719, %v4139
      %v4218 = vadd.f32 %v3720, %v4142
      %v4219 = vadd.f32 %v3721, %v4147
      %v4220 = vadd.f32 %v3722, %v4150
      %v4221 = vadd.f32 %v3723, %v4155
      %v4222 = vadd.f32 %v3724, %v4158
      %v4223 = vadd.f32 %v3725, %v4163
      %v4224 = vadd.f32 %v3726, %v4166
      %v4225 = vadd.f32 %v3727, %v4171
      %v4226 = vadd.f32 %v3728, %v4174
      %v4227 = vadd.f32 %v3729, %v4179
      %v4228 = vadd.f32 %v3730, %v4182
      %v4229 = vadd.f32 %v3731, %v4187
      %v4230 = vadd.f32 %v3732, %v4190
      %v4231 = vadd.f32 %v3733, %v4195
      %v4232 = vadd.f32 %v3734, %v4198
      %s4233 = scalar_lea.vmem [#allocation2], 24
      %v4234 = vld [vmem:[%s4233] sm:$0xf]
      %v4235 = vld [vmem:[%s4233 + $0x4] sm:$0xf]
      %v4236 = vld [vmem:[%s4233 + $0xc] sm:$0xf]
      %v4237 = vld [vmem:[%s4233 + $0x10] sm:$0xf]
      %v4238 = vld [vmem:[%s4233 + $0x18] sm:$0xf]
      %v4239 = vld [vmem:[%s4233 + $0x1c] sm:$0xf]
      %v4240 = vld [vmem:[%s4233 + $0x24] sm:$0xf]
      %v4241 = vld [vmem:[%s4233 + $0x28] sm:$0xf]
      %v4242 = vld [vmem:[%s4233 + $0x30] sm:$0xf]
      %v4243 = vld [vmem:[%s4233 + $0x34] sm:$0xf]
      %v4244 = vld [vmem:[%s4233 + $0x3c] sm:$0xf]
      %v4245 = vld [vmem:[%s4233 + $0x40] sm:$0xf]
      %v4246 = vld [vmem:[%s4233 + $0x48] sm:$0xf]
      %v4247 = vld [vmem:[%s4233 + $0x4c] sm:$0xf]
      %v4248 = vld [vmem:[%s4233 + $0x54] sm:$0xf]
      %v4249 = vld [vmem:[%s4233 + $0x58] sm:$0xf]
      %v4250 = vld [vmem:[%s4233 + $0x60] sm:$0xf]
      %v4251 = vld [vmem:[%s4233 + $0x64] sm:$0xf]
      %v4252 = vld [vmem:[%s4233 + $0x6c] sm:$0xf]
      %v4253 = vld [vmem:[%s4233 + $0x70] sm:$0xf]
      %v4254 = vld [vmem:[%s4233 + $0x78] sm:$0xf]
      %v4255 = vld [vmem:[%s4233 + $0x7c] sm:$0xf]
      %v4256 = vld [vmem:[%s4233 + $0x84] sm:$0xf]
      %v4257 = vld [vmem:[%s4233 + $0x88] sm:$0xf]
      %v4258 = vld [vmem:[%s4233 + $0x90] sm:$0xf]
      %v4259 = vld [vmem:[%s4233 + $0x94] sm:$0xf]
      %v4260 = vld [vmem:[%s4233 + $0x9c] sm:$0xf]
      %v4261 = vld [vmem:[%s4233 + $0xa0] sm:$0xf]
      %v4262 = vld [vmem:[%s4233 + $0xa8] sm:$0xf]
      %v4263 = vld [vmem:[%s4233 + $0xac] sm:$0xf]
      %v4264 = vld [vmem:[%s4233 + $0xb4] sm:$0xf]
      %v4265 = vld [vmem:[%s4233 + $0xb8] sm:$0xf]
      %s4266 = scalar_lea.vmem %s1, 384
      %v4267 = vld [vmem:[%s4266] sm:$0xf]
      %v4268 = vld [vmem:[%s4266 + $0x4] sm:$0xf]
      %v4269 = vld [vmem:[%s4266 + $0x8] sm:$0xf]
      %v4270 = vld [vmem:[%s4266 + $0xc] sm:$0xf]
      %v4271 = vld [vmem:[%s4266 + $0x10] sm:$0xf]
      %v4272 = vld [vmem:[%s4266 + $0x14] sm:$0xf]
      %v4273 = vld [vmem:[%s4266 + $0x18] sm:$0xf]
      %v4274 = vld [vmem:[%s4266 + $0x1c] sm:$0xf]
      %v4275 = vld [vmem:[%s4266 + $0x20] sm:$0xf]
      %v4276 = vld [vmem:[%s4266 + $0x24] sm:$0xf]
      %v4277 = vld [vmem:[%s4266 + $0x28] sm:$0xf]
      %v4278 = vld [vmem:[%s4266 + $0x2c] sm:$0xf]
      %v4279 = vld [vmem:[%s4266 + $0x30] sm:$0xf]
      %v4280 = vld [vmem:[%s4266 + $0x34] sm:$0xf]
      %v4281 = vld [vmem:[%s4266 + $0x38] sm:$0xf]
      %v4282 = vld [vmem:[%s4266 + $0x3c] sm:$0xf]
      %v4315 = vunpack.c.l.b16 %v4234
      %v4316 = vunpack.c.l.b16 %v4235
      %v4317 = vunpack.c.l.b16 %v4236
      %v4318 = vunpack.c.l.b16 %v4237
      %v4319 = vunpack.c.l.b16 %v4238
      %v4320 = vunpack.c.l.b16 %v4239
      %v4321 = vunpack.c.l.b16 %v4240
      %v4322 = vunpack.c.l.b16 %v4241
      %v4323 = vunpack.c.l.b16 %v4242
      %v4324 = vunpack.c.l.b16 %v4243
      %v4325 = vunpack.c.l.b16 %v4244
      %v4326 = vunpack.c.l.b16 %v4245
      %v4327 = vunpack.c.l.b16 %v4246
      %v4328 = vunpack.c.l.b16 %v4247
      %v4329 = vunpack.c.l.b16 %v4248
      %v4330 = vunpack.c.l.b16 %v4249
      %v4331 = vunpack.c.l.b16 %v4250
      %v4332 = vunpack.c.l.b16 %v4251
      %v4333 = vunpack.c.l.b16 %v4252
      %v4334 = vunpack.c.l.b16 %v4253
      %v4335 = vunpack.c.l.b16 %v4254
      %v4336 = vunpack.c.l.b16 %v4255
      %v4337 = vunpack.c.l.b16 %v4256
      %v4338 = vunpack.c.l.b16 %v4257
      %v4339 = vunpack.c.l.b16 %v4258
      %v4340 = vunpack.c.l.b16 %v4259
      %v4341 = vunpack.c.l.b16 %v4260
      %v4342 = vunpack.c.l.b16 %v4261
      %v4343 = vunpack.c.l.b16 %v4262
      %v4344 = vunpack.c.l.b16 %v4263
      %v4345 = vunpack.c.l.b16 %v4264
      %v4346 = vunpack.c.l.b16 %v4265
      %v4347 = vpack.c.b16 %v4316, %v4315
      %v4348 = vpack.c.b16 %v4318, %v4317
      %v4349 = vpack.c.b16 %v4320, %v4319
      %v4350 = vpack.c.b16 %v4322, %v4321
      %v4351 = vpack.c.b16 %v4324, %v4323
      %v4352 = vpack.c.b16 %v4326, %v4325
      %v4353 = vpack.c.b16 %v4328, %v4327
      %v4354 = vpack.c.b16 %v4330, %v4329
      %v4355 = vpack.c.b16 %v4332, %v4331
      %v4356 = vpack.c.b16 %v4334, %v4333
      %v4357 = vpack.c.b16 %v4336, %v4335
      %v4358 = vpack.c.b16 %v4338, %v4337
      %v4359 = vpack.c.b16 %v4340, %v4339
      %v4360 = vpack.c.b16 %v4342, %v4341
      %v4361 = vpack.c.b16 %v4344, %v4343
      %v4362 = vpack.c.b16 %v4346, %v4345
      %v4395 = vunpack.c.l.b16 %v4267
      %v4396 = vunpack.c.l.b16 %v4268
      %v4397 = vunpack.c.l.b16 %v4269
      %v4398 = vunpack.c.l.b16 %v4270
      %v4399 = vunpack.c.l.b16 %v4271
      %v4400 = vunpack.c.l.b16 %v4272
      %v4401 = vunpack.c.l.b16 %v4273
      %v4402 = vunpack.c.l.b16 %v4274
      %v4403 = vunpack.c.l.b16 %v4275
      %v4404 = vunpack.c.l.b16 %v4276
      %v4405 = vunpack.c.l.b16 %v4277
      %v4406 = vunpack.c.l.b16 %v4278
      %v4407 = vunpack.c.l.b16 %v4279
      %v4408 = vunpack.c.l.b16 %v4280
      %v4409 = vunpack.c.l.b16 %v4281
      %v4410 = vunpack.c.l.b16 %v4282
      %v4411 = vpack.c.b16 %v4396, %v4395
      %v4412 = vpack.c.b16 %v4398, %v4397
      %v4413 = vpack.c.b16 %v4400, %v4399
      %v4414 = vpack.c.b16 %v4402, %v4401
      %v4415 = vpack.c.b16 %v4404, %v4403
      %v4416 = vpack.c.b16 %v4406, %v4405
      %v4417 = vpack.c.b16 %v4408, %v4407
      %v4418 = vpack.c.b16 %v4410, %v4409
      %4427 = vmatprep.subr.bf16.mxu0 0
      %4428 = vmatpush1.bf16.msra.mxu0 %v4418
      %4429 = vmatprep.subr.bf16.mxu0 0
      %4430 = vmatpush1.bf16.msra.mxu0 %v4417
      %4431 = vmatprep.subr.bf16.mxu0 0
      %4432 = vmatpush1.bf16.msra.mxu0 %v4416
      %4433 = vmatprep.subr.bf16.mxu0 0
      %4434 = vmatpush1.bf16.msra.mxu0 %v4415
      %4435 = vmatprep.subr.bf16.mxu0 0
      %4436 = vmatpush1.bf16.msra.mxu0 %v4414
      %4437 = vmatprep.subr.bf16.mxu0 0
      %4438 = vmatpush1.bf16.msra.mxu0 %v4413
      %4439 = vmatprep.subr.bf16.mxu0 0
      %4440 = vmatpush1.bf16.msra.mxu0 %v4412
      %4441 = vmatprep.subr.bf16.mxu0 0
      %4442 = vmatpush1.bf16.msra.mxu0 %v4411
      %4443 = vmatprep.subr.bf16.mxu0 0
      %4444 = vmatpush2.bf16.msra.mxu0 0
      %4445 = vmatprep.subr.bf16.mxu0 0
      %4446 = vmatpush2.bf16.msra.mxu0 0
      %4447 = vmatprep.subr.bf16.mxu0 0
      %4448 = vmatpush2.bf16.msra.mxu0 0
      %4449 = vmatprep.subr.bf16.mxu0 0
      %4450 = vmatpush2.bf16.msra.mxu0 0
      %4451 = vmatprep.subr.bf16.mxu0 0
      %4452 = vmatpush2.bf16.msra.mxu0 0
      %4453 = vmatprep.subr.bf16.mxu0 0
      %4454 = vmatpush2.bf16.msra.mxu0 0
      %4455 = vmatprep.subr.bf16.mxu0 0
      %4456 = vmatpush2.bf16.msra.mxu0 0
      %4457 = vmatprep.subr.bf16.mxu0 0
      %4458 = vmatpush2.bf16.msra.mxu0 0
      %4459 = vmatprep.mubr.bf16.mxu0 0
      %4460 = vmatmul.mubr.bf16.gmra.mxu0 %v4347
      %v4461 = vpop.f32.mrf.mxu0
      %v4462 = vadd.f32 0.0, %v4461
      %v4463 = vpop.f32.mrf.mxu0
      %v4464 = vpop.f32.mrf.mxu0
      %v4465 = vadd.f32 0.0, %v4464
      %v4466 = vpop.f32.mrf.mxu0
      %4467 = vmatprep.mubr.bf16.mxu0 0
      %4468 = vmatmul.mubr.bf16.gmra.mxu0 %v4348
      %v4469 = vpop.f32.mrf.mxu0
      %v4470 = vadd.f32 0.0, %v4469
      %v4471 = vpop.f32.mrf.mxu0
      %v4472 = vpop.f32.mrf.mxu0
      %v4473 = vadd.f32 0.0, %v4472
      %v4474 = vpop.f32.mrf.mxu0
      %4475 = vmatprep.mubr.bf16.mxu0 0
      %4476 = vmatmul.mubr.bf16.gmra.mxu0 %v4349
      %v4477 = vpop.f32.mrf.mxu0
      %v4478 = vadd.f32 0.0, %v4477
      %v4479 = vpop.f32.mrf.mxu0
      %v4480 = vpop.f32.mrf.mxu0
      %v4481 = vadd.f32 0.0, %v4480
      %v4482 = vpop.f32.mrf.mxu0
      %4483 = vmatprep.mubr.bf16.mxu0 0
      %4484 = vmatmul.mubr.bf16.gmra.mxu0 %v4350
      %v4485 = vpop.f32.mrf.mxu0
      %v4486 = vadd.f32 0.0, %v4485
      %v4487 = vpop.f32.mrf.mxu0
      %v4488 = vpop.f32.mrf.mxu0
      %v4489 = vadd.f32 0.0, %v4488
      %v4490 = vpop.f32.mrf.mxu0
      %4491 = vmatprep.mubr.bf16.mxu0 0
      %4492 = vmatmul.mubr.bf16.gmra.mxu0 %v4351
      %v4493 = vpop.f32.mrf.mxu0
      %v4494 = vadd.f32 0.0, %v4493
      %v4495 = vpop.f32.mrf.mxu0
      %v4496 = vpop.f32.mrf.mxu0
      %v4497 = vadd.f32 0.0, %v4496
      %v4498 = vpop.f32.mrf.mxu0
      %4499 = vmatprep.mubr.bf16.mxu0 0
      %4500 = vmatmul.mubr.bf16.gmra.mxu0 %v4352
      %v4501 = vpop.f32.mrf.mxu0
      %v4502 = vadd.f32 0.0, %v4501
      %v4503 = vpop.f32.mrf.mxu0
      %v4504 = vpop.f32.mrf.mxu0
      %v4505 = vadd.f32 0.0, %v4504
      %v4506 = vpop.f32.mrf.mxu0
      %4507 = vmatprep.mubr.bf16.mxu0 0
      %4508 = vmatmul.mubr.bf16.gmra.mxu0 %v4353
      %v4509 = vpop.f32.mrf.mxu0
      %v4510 = vadd.f32 0.0, %v4509
      %v4511 = vpop.f32.mrf.mxu0
      %v4512 = vpop.f32.mrf.mxu0
      %v4513 = vadd.f32 0.0, %v4512
      %v4514 = vpop.f32.mrf.mxu0
      %4515 = vmatprep.mubr.bf16.mxu0 0
      %4516 = vmatmul.mubr.bf16.gmra.mxu0 %v4354
      %v4517 = vpop.f32.mrf.mxu0
      %v4518 = vadd.f32 0.0, %v4517
      %v4519 = vpop.f32.mrf.mxu0
      %v4520 = vpop.f32.mrf.mxu0
      %v4521 = vadd.f32 0.0, %v4520
      %v4522 = vpop.f32.mrf.mxu0
      %4523 = vmatprep.mubr.bf16.mxu0 0
      %4524 = vmatmul.mubr.bf16.gmra.mxu0 %v4355
      %v4525 = vpop.f32.mrf.mxu0
      %v4526 = vadd.f32 0.0, %v4525
      %v4527 = vpop.f32.mrf.mxu0
      %v4528 = vpop.f32.mrf.mxu0
      %v4529 = vadd.f32 0.0, %v4528
      %v4530 = vpop.f32.mrf.mxu0
      %4531 = vmatprep.mubr.bf16.mxu0 0
      %4532 = vmatmul.mubr.bf16.gmra.mxu0 %v4356
      %v4533 = vpop.f32.mrf.mxu0
      %v4534 = vadd.f32 0.0, %v4533
      %v4535 = vpop.f32.mrf.mxu0
      %v4536 = vpop.f32.mrf.mxu0
      %v4537 = vadd.f32 0.0, %v4536
      %v4538 = vpop.f32.mrf.mxu0
      %4539 = vmatprep.mubr.bf16.mxu0 0
      %4540 = vmatmul.mubr.bf16.gmra.mxu0 %v4357
      %v4541 = vpop.f32.mrf.mxu0
      %v4542 = vadd.f32 0.0, %v4541
      %v4543 = vpop.f32.mrf.mxu0
      %v4544 = vpop.f32.mrf.mxu0
      %v4545 = vadd.f32 0.0, %v4544
      %v4546 = vpop.f32.mrf.mxu0
      %4547 = vmatprep.mubr.bf16.mxu0 0
      %4548 = vmatmul.mubr.bf16.gmra.mxu0 %v4358
      %v4549 = vpop.f32.mrf.mxu0
      %v4550 = vadd.f32 0.0, %v4549
      %v4551 = vpop.f32.mrf.mxu0
      %v4552 = vpop.f32.mrf.mxu0
      %v4553 = vadd.f32 0.0, %v4552
      %v4554 = vpop.f32.mrf.mxu0
      %4555 = vmatprep.mubr.bf16.mxu0 0
      %4556 = vmatmul.mubr.bf16.gmra.mxu0 %v4359
      %v4557 = vpop.f32.mrf.mxu0
      %v4558 = vadd.f32 0.0, %v4557
      %v4559 = vpop.f32.mrf.mxu0
      %v4560 = vpop.f32.mrf.mxu0
      %v4561 = vadd.f32 0.0, %v4560
      %v4562 = vpop.f32.mrf.mxu0
      %4563 = vmatprep.mubr.bf16.mxu0 0
      %4564 = vmatmul.mubr.bf16.gmra.mxu0 %v4360
      %v4565 = vpop.f32.mrf.mxu0
      %v4566 = vadd.f32 0.0, %v4565
      %v4567 = vpop.f32.mrf.mxu0
      %v4568 = vpop.f32.mrf.mxu0
      %v4569 = vadd.f32 0.0, %v4568
      %v4570 = vpop.f32.mrf.mxu0
      %4571 = vmatprep.mubr.bf16.mxu0 0
      %4572 = vmatmul.mubr.bf16.gmra.mxu0 %v4361
      %v4573 = vpop.f32.mrf.mxu0
      %v4574 = vadd.f32 0.0, %v4573
      %v4575 = vpop.f32.mrf.mxu0
      %v4576 = vpop.f32.mrf.mxu0
      %v4577 = vadd.f32 0.0, %v4576
      %v4578 = vpop.f32.mrf.mxu0
      %4579 = vmatprep.mubr.bf16.mxu0 0
      %4580 = vmatmul.mubr.bf16.gmra.mxu0 %v4362
      %v4581 = vpop.f32.mrf.mxu0
      %v4582 = vadd.f32 0.0, %v4581
      %v4583 = vpop.f32.mrf.mxu0
      %v4584 = vpop.f32.mrf.mxu0
      %v4585 = vadd.f32 0.0, %v4584
      %v4586 = vpop.f32.mrf.mxu0
      %4587 = vdwg.mxu0
      %v4588 = vadd.f32 %v4201, %v4462
      %v4589 = vadd.f32 %v4202, %v4465
      %v4590 = vadd.f32 %v4203, %v4470
      %v4591 = vadd.f32 %v4204, %v4473
      %v4592 = vadd.f32 %v4205, %v4478
      %v4593 = vadd.f32 %v4206, %v4481
      %v4594 = vadd.f32 %v4207, %v4486
      %v4595 = vadd.f32 %v4208, %v4489
      %v4596 = vadd.f32 %v4209, %v4494
      %v4597 = vadd.f32 %v4210, %v4497
      %v4598 = vadd.f32 %v4211, %v4502
      %v4599 = vadd.f32 %v4212, %v4505
      %v4600 = vadd.f32 %v4213, %v4510
      %v4601 = vadd.f32 %v4214, %v4513
      %v4602 = vadd.f32 %v4215, %v4518
      %v4603 = vadd.f32 %v4216, %v4521
      %v4604 = vadd.f32 %v4217, %v4526
      %v4605 = vadd.f32 %v4218, %v4529
      %v4606 = vadd.f32 %v4219, %v4534
      %v4607 = vadd.f32 %v4220, %v4537
      %v4608 = vadd.f32 %v4221, %v4542
      %v4609 = vadd.f32 %v4222, %v4545
      %v4610 = vadd.f32 %v4223, %v4550
      %v4611 = vadd.f32 %v4224, %v4553
      %v4612 = vadd.f32 %v4225, %v4558
      %v4613 = vadd.f32 %v4226, %v4561
      %v4614 = vadd.f32 %v4227, %v4566
      %v4615 = vadd.f32 %v4228, %v4569
      %v4616 = vadd.f32 %v4229, %v4574
      %v4617 = vadd.f32 %v4230, %v4577
      %v4618 = vadd.f32 %v4231, %v4582
      %v4619 = vadd.f32 %v4232, %v4585
      %v4620 = vld [vmem:[%s4233] sm:$0xf]
      %v4621 = vld [vmem:[%s4233 + $0x4] sm:$0xf]
      %v4622 = vld [vmem:[%s4233 + $0x8] sm:$0x1]
      %v4623 = vld [vmem:[%s4233 + $0xc] sm:$0xf]
      %v4624 = vld [vmem:[%s4233 + $0x10] sm:$0xf]
      %v4625 = vld [vmem:[%s4233 + $0x14] sm:$0x1]
      %v4626 = vld [vmem:[%s4233 + $0x18] sm:$0xf]
      %v4627 = vld [vmem:[%s4233 + $0x1c] sm:$0xf]
      %v4628 = vld [vmem:[%s4233 + $0x20] sm:$0x1]
      %v4629 = vld [vmem:[%s4233 + $0x24] sm:$0xf]
      %v4630 = vld [vmem:[%s4233 + $0x28] sm:$0xf]
      %v4631 = vld [vmem:[%s4233 + $0x2c] sm:$0x1]
      %v4632 = vld [vmem:[%s4233 + $0x30] sm:$0xf]
      %v4633 = vld [vmem:[%s4233 + $0x34] sm:$0xf]
      %v4634 = vld [vmem:[%s4233 + $0x38] sm:$0x1]
      %v4635 = vld [vmem:[%s4233 + $0x3c] sm:$0xf]
      %v4636 = vld [vmem:[%s4233 + $0x40] sm:$0xf]
      %v4637 = vld [vmem:[%s4233 + $0x44] sm:$0x1]
      %v4638 = vld [vmem:[%s4233 + $0x48] sm:$0xf]
      %v4639 = vld [vmem:[%s4233 + $0x4c] sm:$0xf]
      %v4640 = vld [vmem:[%s4233 + $0x50] sm:$0x1]
      %v4641 = vld [vmem:[%s4233 + $0x54] sm:$0xf]
      %v4642 = vld [vmem:[%s4233 + $0x58] sm:$0xf]
      %v4643 = vld [vmem:[%s4233 + $0x5c] sm:$0x1]
      %v4644 = vld [vmem:[%s4233 + $0x60] sm:$0xf]
      %v4645 = vld [vmem:[%s4233 + $0x64] sm:$0xf]
      %v4646 = vld [vmem:[%s4233 + $0x68] sm:$0x1]
      %v4647 = vld [vmem:[%s4233 + $0x6c] sm:$0xf]
      %v4648 = vld [vmem:[%s4233 + $0x70] sm:$0xf]
      %v4649 = vld [vmem:[%s4233 + $0x74] sm:$0x1]
      %v4650 = vld [vmem:[%s4233 + $0x78] sm:$0xf]
      %v4651 = vld [vmem:[%s4233 + $0x7c] sm:$0xf]
      %v4652 = vld [vmem:[%s4233 + $0x80] sm:$0x1]
      %v4653 = vld [vmem:[%s4233 + $0x84] sm:$0xf]
      %v4654 = vld [vmem:[%s4233 + $0x88] sm:$0xf]
      %v4655 = vld [vmem:[%s4233 + $0x8c] sm:$0x1]
      %v4656 = vld [vmem:[%s4233 + $0x90] sm:$0xf]
      %v4657 = vld [vmem:[%s4233 + $0x94] sm:$0xf]
      %v4658 = vld [vmem:[%s4233 + $0x98] sm:$0x1]
      %v4659 = vld [vmem:[%s4233 + $0x9c] sm:$0xf]
      %v4660 = vld [vmem:[%s4233 + $0xa0] sm:$0xf]
      %v4661 = vld [vmem:[%s4233 + $0xa4] sm:$0x1]
      %v4662 = vld [vmem:[%s4233 + $0xa8] sm:$0xf]
      %v4663 = vld [vmem:[%s4233 + $0xac] sm:$0xf]
      %v4664 = vld [vmem:[%s4233 + $0xb0] sm:$0x1]
      %v4665 = vld [vmem:[%s4233 + $0xb4] sm:$0xf]
      %v4666 = vld [vmem:[%s4233 + $0xb8] sm:$0xf]
      %v4667 = vld [vmem:[%s4233 + $0xbc] sm:$0x1]
      %v4669 = vshrl.u32 %v4620, 16
      %v4671 = vrot.slane %v4669, 4
      %v4672 = vshll.u32 %v4620, 16
      %v4674 = vrot.slane %v4672, 5
      %v4675 = vor.u32 %v4671, %v4674
      %v4676 = vrot.slane %v4675, 4
      %v4678 = vshll.u32 %v4621, 16
      %v4680 = vrot.slane %v4678, 5
      %v4681 = vsel %vm1130, %v4676, %v4680
      %v4682 = vshrl.u32 %v4621, 16
      %v4684 = vrot.slane %v4682, 4
      %v4685 = vor.u32 %v4684, %v4680
      %v4686 = vrot.slane %v4685, 4
      %v4688 = vshll.u32 %v4622, 16
      %v4690 = vrot.slane %v4688, 5
      %v4691 = vsel %vm1130, %v4686, %v4690
      %v4693 = vshrl.u32 %v4623, 16
      %v4695 = vrot.slane %v4693, 4
      %v4696 = vshll.u32 %v4623, 16
      %v4698 = vrot.slane %v4696, 5
      %v4699 = vor.u32 %v4695, %v4698
      %v4700 = vrot.slane %v4699, 4
      %v4702 = vshll.u32 %v4624, 16
      %v4704 = vrot.slane %v4702, 5
      %v4705 = vsel %vm1130, %v4700, %v4704
      %v4706 = vshrl.u32 %v4624, 16
      %v4708 = vrot.slane %v4706, 4
      %v4709 = vor.u32 %v4708, %v4704
      %v4710 = vrot.slane %v4709, 4
      %v4712 = vshll.u32 %v4625, 16
      %v4714 = vrot.slane %v4712, 5
      %v4715 = vsel %vm1130, %v4710, %v4714
      %v4717 = vshrl.u32 %v4626, 16
      %v4719 = vrot.slane %v4717, 4
      %v4720 = vshll.u32 %v4626, 16
      %v4722 = vrot.slane %v4720, 5
      %v4723 = vor.u32 %v4719, %v4722
      %v4724 = vrot.slane %v4723, 4
      %v4726 = vshll.u32 %v4627, 16
      %v4728 = vrot.slane %v4726, 5
      %v4729 = vsel %vm1130, %v4724, %v4728
      %v4730 = vshrl.u32 %v4627, 16
      %v4732 = vrot.slane %v4730, 4
      %v4733 = vor.u32 %v4732, %v4728
      %v4734 = vrot.slane %v4733, 4
      %v4736 = vshll.u32 %v4628, 16
      %v4738 = vrot.slane %v4736, 5
      %v4739 = vsel %vm1130, %v4734, %v4738
      %v4741 = vshrl.u32 %v4629, 16
      %v4743 = vrot.slane %v4741, 4
      %v4744 = vshll.u32 %v4629, 16
      %v4746 = vrot.slane %v4744, 5
      %v4747 = vor.u32 %v4743, %v4746
      %v4748 = vrot.slane %v4747, 4
      %v4750 = vshll.u32 %v4630, 16
      %v4752 = vrot.slane %v4750, 5
      %v4753 = vsel %vm1130, %v4748, %v4752
      %v4754 = vshrl.u32 %v4630, 16
      %v4756 = vrot.slane %v4754, 4
      %v4757 = vor.u32 %v4756, %v4752
      %v4758 = vrot.slane %v4757, 4
      %v4760 = vshll.u32 %v4631, 16
      %v4762 = vrot.slane %v4760, 5
      %v4763 = vsel %vm1130, %v4758, %v4762
      %v4765 = vshrl.u32 %v4632, 16
      %v4767 = vrot.slane %v4765, 4
      %v4768 = vshll.u32 %v4632, 16
      %v4770 = vrot.slane %v4768, 5
      %v4771 = vor.u32 %v4767, %v4770
      %v4772 = vrot.slane %v4771, 4
      %v4774 = vshll.u32 %v4633, 16
      %v4776 = vrot.slane %v4774, 5
      %v4777 = vsel %vm1130, %v4772, %v4776
      %v4778 = vshrl.u32 %v4633, 16
      %v4780 = vrot.slane %v4778, 4
      %v4781 = vor.u32 %v4780, %v4776
      %v4782 = vrot.slane %v4781, 4
      %v4784 = vshll.u32 %v4634, 16
      %v4786 = vrot.slane %v4784, 5
      %v4787 = vsel %vm1130, %v4782, %v4786
      %v4789 = vshrl.u32 %v4635, 16
      %v4791 = vrot.slane %v4789, 4
      %v4792 = vshll.u32 %v4635, 16
      %v4794 = vrot.slane %v4792, 5
      %v4795 = vor.u32 %v4791, %v4794
      %v4796 = vrot.slane %v4795, 4
      %v4798 = vshll.u32 %v4636, 16
      %v4800 = vrot.slane %v4798, 5
      %v4801 = vsel %vm1130, %v4796, %v4800
      %v4802 = vshrl.u32 %v4636, 16
      %v4804 = vrot.slane %v4802, 4
      %v4805 = vor.u32 %v4804, %v4800
      %v4806 = vrot.slane %v4805, 4
      %v4808 = vshll.u32 %v4637, 16
      %v4810 = vrot.slane %v4808, 5
      %v4811 = vsel %vm1130, %v4806, %v4810
      %v4813 = vshrl.u32 %v4638, 16
      %v4815 = vrot.slane %v4813, 4
      %v4816 = vshll.u32 %v4638, 16
      %v4818 = vrot.slane %v4816, 5
      %v4819 = vor.u32 %v4815, %v4818
      %v4820 = vrot.slane %v4819, 4
      %v4822 = vshll.u32 %v4639, 16
      %v4824 = vrot.slane %v4822, 5
      %v4825 = vsel %vm1130, %v4820, %v4824
      %v4826 = vshrl.u32 %v4639, 16
      %v4828 = vrot.slane %v4826, 4
      %v4829 = vor.u32 %v4828, %v4824
      %v4830 = vrot.slane %v4829, 4
      %v4832 = vshll.u32 %v4640, 16
      %v4834 = vrot.slane %v4832, 5
      %v4835 = vsel %vm1130, %v4830, %v4834
      %v4837 = vshrl.u32 %v4641, 16
      %v4839 = vrot.slane %v4837, 4
      %v4840 = vshll.u32 %v4641, 16
      %v4842 = vrot.slane %v4840, 5
      %v4843 = vor.u32 %v4839, %v4842
      %v4844 = vrot.slane %v4843, 4
      %v4846 = vshll.u32 %v4642, 16
      %v4848 = vrot.slane %v4846, 5
      %v4849 = vsel %vm1130, %v4844, %v4848
      %v4850 = vshrl.u32 %v4642, 16
      %v4852 = vrot.slane %v4850, 4
      %v4853 = vor.u32 %v4852, %v4848
      %v4854 = vrot.slane %v4853, 4
      %v4856 = vshll.u32 %v4643, 16
      %v4858 = vrot.slane %v4856, 5
      %v4859 = vsel %vm1130, %v4854, %v4858
      %v4861 = vshrl.u32 %v4644, 16
      %v4863 = vrot.slane %v4861, 4
      %v4864 = vshll.u32 %v4644, 16
      %v4866 = vrot.slane %v4864, 5
      %v4867 = vor.u32 %v4863, %v4866
      %v4868 = vrot.slane %v4867, 4
      %v4870 = vshll.u32 %v4645, 16
      %v4872 = vrot.slane %v4870, 5
      %v4873 = vsel %vm1130, %v4868, %v4872
      %v4874 = vshrl.u32 %v4645, 16
      %v4876 = vrot.slane %v4874, 4
      %v4877 = vor.u32 %v4876, %v4872
      %v4878 = vrot.slane %v4877, 4
      %v4880 = vshll.u32 %v4646, 16
      %v4882 = vrot.slane %v4880, 5
      %v4883 = vsel %vm1130, %v4878, %v4882
      %v4885 = vshrl.u32 %v4647, 16
      %v4887 = vrot.slane %v4885, 4
      %v4888 = vshll.u32 %v4647, 16
      %v4890 = vrot.slane %v4888, 5
      %v4891 = vor.u32 %v4887, %v4890
      %v4892 = vrot.slane %v4891, 4
      %v4894 = vshll.u32 %v4648, 16
      %v4896 = vrot.slane %v4894, 5
      %v4897 = vsel %vm1130, %v4892, %v4896
      %v4898 = vshrl.u32 %v4648, 16
      %v4900 = vrot.slane %v4898, 4
      %v4901 = vor.u32 %v4900, %v4896
      %v4902 = vrot.slane %v4901, 4
      %v4904 = vshll.u32 %v4649, 16
      %v4906 = vrot.slane %v4904, 5
      %v4907 = vsel %vm1130, %v4902, %v4906
      %v4909 = vshrl.u32 %v4650, 16
      %v4911 = vrot.slane %v4909, 4
      %v4912 = vshll.u32 %v4650, 16
      %v4914 = vrot.slane %v4912, 5
      %v4915 = vor.u32 %v4911, %v4914
      %v4916 = vrot.slane %v4915, 4
      %v4918 = vshll.u32 %v4651, 16
      %v4920 = vrot.slane %v4918, 5
      %v4921 = vsel %vm1130, %v4916, %v4920
      %v4922 = vshrl.u32 %v4651, 16
      %v4924 = vrot.slane %v4922, 4
      %v4925 = vor.u32 %v4924, %v4920
      %v4926 = vrot.slane %v4925, 4
      %v4928 = vshll.u32 %v4652, 16
      %v4930 = vrot.slane %v4928, 5
      %v4931 = vsel %vm1130, %v4926, %v4930
      %v4933 = vshrl.u32 %v4653, 16
      %v4935 = vrot.slane %v4933, 4
      %v4936 = vshll.u32 %v4653, 16
      %v4938 = vrot.slane %v4936, 5
      %v4939 = vor.u32 %v4935, %v4938
      %v4940 = vrot.slane %v4939, 4
      %v4942 = vshll.u32 %v4654, 16
      %v4944 = vrot.slane %v4942, 5
      %v4945 = vsel %vm1130, %v4940, %v4944
      %v4946 = vshrl.u32 %v4654, 16
      %v4948 = vrot.slane %v4946, 4
      %v4949 = vor.u32 %v4948, %v4944
      %v4950 = vrot.slane %v4949, 4
      %v4952 = vshll.u32 %v4655, 16
      %v4954 = vrot.slane %v4952, 5
      %v4955 = vsel %vm1130, %v4950, %v4954
      %v4957 = vshrl.u32 %v4656, 16
      %v4959 = vrot.slane %v4957, 4
      %v4960 = vshll.u32 %v4656, 16
      %v4962 = vrot.slane %v4960, 5
      %v4963 = vor.u32 %v4959, %v4962
      %v4964 = vrot.slane %v4963, 4
      %v4966 = vshll.u32 %v4657, 16
      %v4968 = vrot.slane %v4966, 5
      %v4969 = vsel %vm1130, %v4964, %v4968
      %v4970 = vshrl.u32 %v4657, 16
      %v4972 = vrot.slane %v4970, 4
      %v4973 = vor.u32 %v4972, %v4968
      %v4974 = vrot.slane %v4973, 4
      %v4976 = vshll.u32 %v4658, 16
      %v4978 = vrot.slane %v4976, 5
      %v4979 = vsel %vm1130, %v4974, %v4978
      %v4981 = vshrl.u32 %v4659, 16
      %v4983 = vrot.slane %v4981, 4
      %v4984 = vshll.u32 %v4659, 16
      %v4986 = vrot.slane %v4984, 5
      %v4987 = vor.u32 %v4983, %v4986
      %v4988 = vrot.slane %v4987, 4
      %v4990 = vshll.u32 %v4660, 16
      %v4992 = vrot.slane %v4990, 5
      %v4993 = vsel %vm1130, %v4988, %v4992
      %v4994 = vshrl.u32 %v4660, 16
      %v4996 = vrot.slane %v4994, 4
      %v4997 = vor.u32 %v4996, %v4992
      %v4998 = vrot.slane %v4997, 4
      %v5000 = vshll.u32 %v4661, 16
      %v5002 = vrot.slane %v5000, 5
      %v5003 = vsel %vm1130, %v4998, %v5002
      %v5005 = vshrl.u32 %v4662, 16
      %v5007 = vrot.slane %v5005, 4
      %v5008 = vshll.u32 %v4662, 16
      %v5010 = vrot.slane %v5008, 5
      %v5011 = vor.u32 %v5007, %v5010
      %v5012 = vrot.slane %v5011, 4
      %v5014 = vshll.u32 %v4663, 16
      %v5016 = vrot.slane %v5014, 5
      %v5017 = vsel %vm1130, %v5012, %v5016
      %v5018 = vshrl.u32 %v4663, 16
      %v5020 = vrot.slane %v5018, 4
      %v5021 = vor.u32 %v5020, %v5016
      %v5022 = vrot.slane %v5021, 4
      %v5024 = vshll.u32 %v4664, 16
      %v5026 = vrot.slane %v5024, 5
      %v5027 = vsel %vm1130, %v5022, %v5026
      %v5029 = vshrl.u32 %v4665, 16
      %v5031 = vrot.slane %v5029, 4
      %v5032 = vshll.u32 %v4665, 16
      %v5034 = vrot.slane %v5032, 5
      %v5035 = vor.u32 %v5031, %v5034
      %v5036 = vrot.slane %v5035, 4
      %v5038 = vshll.u32 %v4666, 16
      %v5040 = vrot.slane %v5038, 5
      %v5041 = vsel %vm1130, %v5036, %v5040
      %v5042 = vshrl.u32 %v4666, 16
      %v5044 = vrot.slane %v5042, 4
      %v5045 = vor.u32 %v5044, %v5040
      %v5046 = vrot.slane %v5045, 4
      %v5048 = vshll.u32 %v4667, 16
      %v5050 = vrot.slane %v5048, 5
      %v5051 = vsel %vm1130, %v5046, %v5050
      %s5052 = scalar_lea.vmem %s1, 448
      %v5053 = vld [vmem:[%s5052] sm:$0xf]
      %v5054 = vld [vmem:[%s5052 + $0x4] sm:$0xf]
      %v5055 = vld [vmem:[%s5052 + $0x8] sm:$0xf]
      %v5056 = vld [vmem:[%s5052 + $0xc] sm:$0xf]
      %v5057 = vld [vmem:[%s5052 + $0x10] sm:$0xf]
      %v5058 = vld [vmem:[%s5052 + $0x14] sm:$0xf]
      %v5059 = vld [vmem:[%s5052 + $0x18] sm:$0xf]
      %v5060 = vld [vmem:[%s5052 + $0x1c] sm:$0xf]
      %v5061 = vld [vmem:[%s5052 + $0x20] sm:$0xf]
      %v5062 = vld [vmem:[%s5052 + $0x24] sm:$0xf]
      %v5063 = vld [vmem:[%s5052 + $0x28] sm:$0xf]
      %v5064 = vld [vmem:[%s5052 + $0x2c] sm:$0xf]
      %v5065 = vld [vmem:[%s5052 + $0x30] sm:$0xf]
      %v5066 = vld [vmem:[%s5052 + $0x34] sm:$0xf]
      %v5067 = vld [vmem:[%s5052 + $0x38] sm:$0xf]
      %v5068 = vld [vmem:[%s5052 + $0x3c] sm:$0xf]
      %v5069 = vunpack.c.l.b16 %v4681
      %v5070 = vunpack.c.l.b16 %v4691
      %v5071 = vunpack.c.l.b16 %v4705
      %v5072 = vunpack.c.l.b16 %v4715
      %v5073 = vunpack.c.l.b16 %v4729
      %v5074 = vunpack.c.l.b16 %v4739
      %v5075 = vunpack.c.l.b16 %v4753
      %v5076 = vunpack.c.l.b16 %v4763
      %v5077 = vunpack.c.l.b16 %v4777
      %v5078 = vunpack.c.l.b16 %v4787
      %v5079 = vunpack.c.l.b16 %v4801
      %v5080 = vunpack.c.l.b16 %v4811
      %v5081 = vunpack.c.l.b16 %v4825
      %v5082 = vunpack.c.l.b16 %v4835
      %v5083 = vunpack.c.l.b16 %v4849
      %v5084 = vunpack.c.l.b16 %v4859
      %v5085 = vunpack.c.l.b16 %v4873
      %v5086 = vunpack.c.l.b16 %v4883
      %v5087 = vunpack.c.l.b16 %v4897
      %v5088 = vunpack.c.l.b16 %v4907
      %v5089 = vunpack.c.l.b16 %v4921
      %v5090 = vunpack.c.l.b16 %v4931
      %v5091 = vunpack.c.l.b16 %v4945
      %v5092 = vunpack.c.l.b16 %v4955
      %v5093 = vunpack.c.l.b16 %v4969
      %v5094 = vunpack.c.l.b16 %v4979
      %v5095 = vunpack.c.l.b16 %v4993
      %v5096 = vunpack.c.l.b16 %v5003
      %v5097 = vunpack.c.l.b16 %v5017
      %v5098 = vunpack.c.l.b16 %v5027
      %v5099 = vunpack.c.l.b16 %v5041
      %v5100 = vunpack.c.l.b16 %v5051
      %v5101 = vpack.c.b16 %v5070, %v5069
      %v5102 = vpack.c.b16 %v5072, %v5071
      %v5103 = vpack.c.b16 %v5074, %v5073
      %v5104 = vpack.c.b16 %v5076, %v5075
      %v5105 = vpack.c.b16 %v5078, %v5077
      %v5106 = vpack.c.b16 %v5080, %v5079
      %v5107 = vpack.c.b16 %v5082, %v5081
      %v5108 = vpack.c.b16 %v5084, %v5083
      %v5109 = vpack.c.b16 %v5086, %v5085
      %v5110 = vpack.c.b16 %v5088, %v5087
      %v5111 = vpack.c.b16 %v5090, %v5089
      %v5112 = vpack.c.b16 %v5092, %v5091
      %v5113 = vpack.c.b16 %v5094, %v5093
      %v5114 = vpack.c.b16 %v5096, %v5095
      %v5115 = vpack.c.b16 %v5098, %v5097
      %v5116 = vpack.c.b16 %v5100, %v5099
      %v5149 = vunpack.c.l.b16 %v5053
      %v5150 = vunpack.c.l.b16 %v5054
      %v5151 = vunpack.c.l.b16 %v5055
      %v5152 = vunpack.c.l.b16 %v5056
      %v5153 = vunpack.c.l.b16 %v5057
      %v5154 = vunpack.c.l.b16 %v5058
      %v5155 = vunpack.c.l.b16 %v5059
      %v5156 = vunpack.c.l.b16 %v5060
      %v5157 = vunpack.c.l.b16 %v5061
      %v5158 = vunpack.c.l.b16 %v5062
      %v5159 = vunpack.c.l.b16 %v5063
      %v5160 = vunpack.c.l.b16 %v5064
      %v5161 = vunpack.c.l.b16 %v5065
      %v5162 = vunpack.c.l.b16 %v5066
      %v5163 = vunpack.c.l.b16 %v5067
      %v5164 = vunpack.c.l.b16 %v5068
      %v5165 = vpack.c.b16 %v5150, %v5149
      %v5166 = vpack.c.b16 %v5152, %v5151
      %v5167 = vpack.c.b16 %v5154, %v5153
      %v5168 = vpack.c.b16 %v5156, %v5155
      %v5169 = vpack.c.b16 %v5158, %v5157
      %v5170 = vpack.c.b16 %v5160, %v5159
      %v5171 = vpack.c.b16 %v5162, %v5161
      %v5172 = vpack.c.b16 %v5164, %v5163
      %5181 = vmatprep.subr.bf16.mxu0 0
      %5182 = vmatpush1.bf16.msra.mxu0 %v5172
      %5183 = vmatprep.subr.bf16.mxu0 0
      %5184 = vmatpush1.bf16.msra.mxu0 %v5171
      %5185 = vmatprep.subr.bf16.mxu0 0
      %5186 = vmatpush1.bf16.msra.mxu0 %v5170
      %5187 = vmatprep.subr.bf16.mxu0 0
      %5188 = vmatpush1.bf16.msra.mxu0 %v5169
      %5189 = vmatprep.subr.bf16.mxu0 0
      %5190 = vmatpush1.bf16.msra.mxu0 %v5168
      %5191 = vmatprep.subr.bf16.mxu0 0
      %5192 = vmatpush1.bf16.msra.mxu0 %v5167
      %5193 = vmatprep.subr.bf16.mxu0 0
      %5194 = vmatpush1.bf16.msra.mxu0 %v5166
      %5195 = vmatprep.subr.bf16.mxu0 0
      %5196 = vmatpush1.bf16.msra.mxu0 %v5165
      %5197 = vmatprep.subr.bf16.mxu0 0
      %5198 = vmatpush2.bf16.msra.mxu0 0
      %5199 = vmatprep.subr.bf16.mxu0 0
      %5200 = vmatpush2.bf16.msra.mxu0 0
      %5201 = vmatprep.subr.bf16.mxu0 0
      %5202 = vmatpush2.bf16.msra.mxu0 0
      %5203 = vmatprep.subr.bf16.mxu0 0
      %5204 = vmatpush2.bf16.msra.mxu0 0
      %5205 = vmatprep.subr.bf16.mxu0 0
      %5206 = vmatpush2.bf16.msra.mxu0 0
      %5207 = vmatprep.subr.bf16.mxu0 0
      %5208 = vmatpush2.bf16.msra.mxu0 0
      %5209 = vmatprep.subr.bf16.mxu0 0
      %5210 = vmatpush2.bf16.msra.mxu0 0
      %5211 = vmatprep.subr.bf16.mxu0 0
      %5212 = vmatpush2.bf16.msra.mxu0 0
      %5213 = vmatprep.mubr.bf16.mxu0 0
      %5214 = vmatmul.mubr.bf16.gmra.mxu0 %v5101
      %v5215 = vpop.f32.mrf.mxu0
      %v5216 = vadd.f32 0.0, %v5215
      %v5217 = vpop.f32.mrf.mxu0
      %v5218 = vpop.f32.mrf.mxu0
      %v5219 = vadd.f32 0.0, %v5218
      %v5220 = vpop.f32.mrf.mxu0
      %5221 = vmatprep.mubr.bf16.mxu0 0
      %5222 = vmatmul.mubr.bf16.gmra.mxu0 %v5102
      %v5223 = vpop.f32.mrf.mxu0
      %v5224 = vadd.f32 0.0, %v5223
      %v5225 = vpop.f32.mrf.mxu0
      %v5226 = vpop.f32.mrf.mxu0
      %v5227 = vadd.f32 0.0, %v5226
      %v5228 = vpop.f32.mrf.mxu0
      %5229 = vmatprep.mubr.bf16.mxu0 0
      %5230 = vmatmul.mubr.bf16.gmra.mxu0 %v5103
      %v5231 = vpop.f32.mrf.mxu0
      %v5232 = vadd.f32 0.0, %v5231
      %v5233 = vpop.f32.mrf.mxu0
      %v5234 = vpop.f32.mrf.mxu0
      %v5235 = vadd.f32 0.0, %v5234
      %v5236 = vpop.f32.mrf.mxu0
      %5237 = vmatprep.mubr.bf16.mxu0 0
      %5238 = vmatmul.mubr.bf16.gmra.mxu0 %v5104
      %v5239 = vpop.f32.mrf.mxu0
      %v5240 = vadd.f32 0.0, %v5239
      %v5241 = vpop.f32.mrf.mxu0
      %v5242 = vpop.f32.mrf.mxu0
      %v5243 = vadd.f32 0.0, %v5242
      %v5244 = vpop.f32.mrf.mxu0
      %5245 = vmatprep.mubr.bf16.mxu0 0
      %5246 = vmatmul.mubr.bf16.gmra.mxu0 %v5105
      %v5247 = vpop.f32.mrf.mxu0
      %v5248 = vadd.f32 0.0, %v5247
      %v5249 = vpop.f32.mrf.mxu0
      %v5250 = vpop.f32.mrf.mxu0
      %v5251 = vadd.f32 0.0, %v5250
      %v5252 = vpop.f32.mrf.mxu0
      %5253 = vmatprep.mubr.bf16.mxu0 0
      %5254 = vmatmul.mubr.bf16.gmra.mxu0 %v5106
      %v5255 = vpop.f32.mrf.mxu0
      %v5256 = vadd.f32 0.0, %v5255
      %v5257 = vpop.f32.mrf.mxu0
      %v5258 = vpop.f32.mrf.mxu0
      %v5259 = vadd.f32 0.0, %v5258
      %v5260 = vpop.f32.mrf.mxu0
      %5261 = vmatprep.mubr.bf16.mxu0 0
      %5262 = vmatmul.mubr.bf16.gmra.mxu0 %v5107
      %v5263 = vpop.f32.mrf.mxu0
      %v5264 = vadd.f32 0.0, %v5263
      %v5265 = vpop.f32.mrf.mxu0
      %v5266 = vpop.f32.mrf.mxu0
      %v5267 = vadd.f32 0.0, %v5266
      %v5268 = vpop.f32.mrf.mxu0
      %5269 = vmatprep.mubr.bf16.mxu0 0
      %5270 = vmatmul.mubr.bf16.gmra.mxu0 %v5108
      %v5271 = vpop.f32.mrf.mxu0
      %v5272 = vadd.f32 0.0, %v5271
      %v5273 = vpop.f32.mrf.mxu0
      %v5274 = vpop.f32.mrf.mxu0
      %v5275 = vadd.f32 0.0, %v5274
      %v5276 = vpop.f32.mrf.mxu0
      %5277 = vmatprep.mubr.bf16.mxu0 0
      %5278 = vmatmul.mubr.bf16.gmra.mxu0 %v5109
      %v5279 = vpop.f32.mrf.mxu0
      %v5280 = vadd.f32 0.0, %v5279
      %v5281 = vpop.f32.mrf.mxu0
      %v5282 = vpop.f32.mrf.mxu0
      %v5283 = vadd.f32 0.0, %v5282
      %v5284 = vpop.f32.mrf.mxu0
      %5285 = vmatprep.mubr.bf16.mxu0 0
      %5286 = vmatmul.mubr.bf16.gmra.mxu0 %v5110
      %v5287 = vpop.f32.mrf.mxu0
      %v5288 = vadd.f32 0.0, %v5287
      %v5289 = vpop.f32.mrf.mxu0
      %v5290 = vpop.f32.mrf.mxu0
      %v5291 = vadd.f32 0.0, %v5290
      %v5292 = vpop.f32.mrf.mxu0
      %5293 = vmatprep.mubr.bf16.mxu0 0
      %5294 = vmatmul.mubr.bf16.gmra.mxu0 %v5111
      %v5295 = vpop.f32.mrf.mxu0
      %v5296 = vadd.f32 0.0, %v5295
      %v5297 = vpop.f32.mrf.mxu0
      %v5298 = vpop.f32.mrf.mxu0
      %v5299 = vadd.f32 0.0, %v5298
      %v5300 = vpop.f32.mrf.mxu0
      %5301 = vmatprep.mubr.bf16.mxu0 0
      %5302 = vmatmul.mubr.bf16.gmra.mxu0 %v5112
      %v5303 = vpop.f32.mrf.mxu0
      %v5304 = vadd.f32 0.0, %v5303
      %v5305 = vpop.f32.mrf.mxu0
      %v5306 = vpop.f32.mrf.mxu0
      %v5307 = vadd.f32 0.0, %v5306
      %v5308 = vpop.f32.mrf.mxu0
      %5309 = vmatprep.mubr.bf16.mxu0 0
      %5310 = vmatmul.mubr.bf16.gmra.mxu0 %v5113
      %v5311 = vpop.f32.mrf.mxu0
      %v5312 = vadd.f32 0.0, %v5311
      %v5313 = vpop.f32.mrf.mxu0
      %v5314 = vpop.f32.mrf.mxu0
      %v5315 = vadd.f32 0.0, %v5314
      %v5316 = vpop.f32.mrf.mxu0
      %5317 = vmatprep.mubr.bf16.mxu0 0
      %5318 = vmatmul.mubr.bf16.gmra.mxu0 %v5114
      %v5319 = vpop.f32.mrf.mxu0
      %v5320 = vadd.f32 0.0, %v5319
      %v5321 = vpop.f32.mrf.mxu0
      %v5322 = vpop.f32.mrf.mxu0
      %v5323 = vadd.f32 0.0, %v5322
      %v5324 = vpop.f32.mrf.mxu0
      %5325 = vmatprep.mubr.bf16.mxu0 0
      %5326 = vmatmul.mubr.bf16.gmra.mxu0 %v5115
      %v5327 = vpop.f32.mrf.mxu0
      %v5328 = vadd.f32 0.0, %v5327
      %v5329 = vpop.f32.mrf.mxu0
      %v5330 = vpop.f32.mrf.mxu0
      %v5331 = vadd.f32 0.0, %v5330
      %v5332 = vpop.f32.mrf.mxu0
      %5333 = vmatprep.mubr.bf16.mxu0 0
      %5334 = vmatmul.mubr.bf16.gmra.mxu0 %v5116
      %v5335 = vpop.f32.mrf.mxu0
      %v5336 = vadd.f32 0.0, %v5335
      %v5337 = vpop.f32.mrf.mxu0
      %v5338 = vpop.f32.mrf.mxu0
      %v5339 = vadd.f32 0.0, %v5338
      %v5340 = vpop.f32.mrf.mxu0
      %5341 = vdwg.mxu0
      %v5342 = vadd.f32 %v4588, %v5216
      %v5343 = vadd.f32 %v4589, %v5219
      %v5344 = vadd.f32 %v4590, %v5224
      %v5345 = vadd.f32 %v4591, %v5227
      %v5346 = vadd.f32 %v4592, %v5232
      %v5347 = vadd.f32 %v4593, %v5235
      %v5348 = vadd.f32 %v4594, %v5240
      %v5349 = vadd.f32 %v4595, %v5243
      %v5350 = vadd.f32 %v4596, %v5248
      %v5351 = vadd.f32 %v4597, %v5251
      %v5352 = vadd.f32 %v4598, %v5256
      %v5353 = vadd.f32 %v4599, %v5259
      %v5354 = vadd.f32 %v4600, %v5264
      %v5355 = vadd.f32 %v4601, %v5267
      %v5356 = vadd.f32 %v4602, %v5272
      %v5357 = vadd.f32 %v4603, %v5275
      %v5358 = vadd.f32 %v4604, %v5280
      %v5359 = vadd.f32 %v4605, %v5283
      %v5360 = vadd.f32 %v4606, %v5288
      %v5361 = vadd.f32 %v4607, %v5291
      %v5362 = vadd.f32 %v4608, %v5296
      %v5363 = vadd.f32 %v4609, %v5299
      %v5364 = vadd.f32 %v4610, %v5304
      %v5365 = vadd.f32 %v4611, %v5307
      %v5366 = vadd.f32 %v4612, %v5312
      %v5367 = vadd.f32 %v4613, %v5315
      %v5368 = vadd.f32 %v4614, %v5320
      %v5369 = vadd.f32 %v4615, %v5323
      %v5370 = vadd.f32 %v4616, %v5328
      %v5371 = vadd.f32 %v4617, %v5331
      %v5372 = vadd.f32 %v4618, %v5336
      %v5373 = vadd.f32 %v4619, %v5339
      %v5374 = vld [vmem:[%s4233] sm:$0xe]
      %v5375 = vld [vmem:[%s4233 + $0xc] sm:$0xe]
      %v5376 = vld [vmem:[%s4233 + $0x18] sm:$0xe]
      %v5377 = vld [vmem:[%s4233 + $0x24] sm:$0xe]
      %v5378 = vld [vmem:[%s4233 + $0x30] sm:$0xe]
      %v5379 = vld [vmem:[%s4233 + $0x3c] sm:$0xe]
      %v5380 = vld [vmem:[%s4233 + $0x48] sm:$0xe]
      %v5381 = vld [vmem:[%s4233 + $0x54] sm:$0xe]
      %v5382 = vld [vmem:[%s4233 + $0x60] sm:$0xe]
      %v5383 = vld [vmem:[%s4233 + $0x6c] sm:$0xe]
      %v5384 = vld [vmem:[%s4233 + $0x78] sm:$0xe]
      %v5385 = vld [vmem:[%s4233 + $0x84] sm:$0xe]
      %v5386 = vld [vmem:[%s4233 + $0x90] sm:$0xe]
      %v5387 = vld [vmem:[%s4233 + $0x9c] sm:$0xe]
      %v5388 = vld [vmem:[%s4233 + $0xa8] sm:$0xe]
      %v5389 = vld [vmem:[%s4233 + $0xb4] sm:$0xe]
      %v5438 = vrot.slane %v5374, 5
      %v5439 = vrot.slane %v5438, 4
      %v5440 = vrot.slane %v4621, 5
      %v5441 = vsel %vm2160, %v5439, %v5440
      %v5442 = vrot.slane %v5440, 4
      %v5443 = vrot.slane %v4622, 5
      %v5444 = vsel %vm2160, %v5442, %v5443
      %v5445 = vrot.slane %v5375, 5
      %v5446 = vrot.slane %v5445, 4
      %v5447 = vrot.slane %v4624, 5
      %v5448 = vsel %vm2160, %v5446, %v5447
      %v5449 = vrot.slane %v5447, 4
      %v5450 = vrot.slane %v4625, 5
      %v5451 = vsel %vm2160, %v5449, %v5450
      %v5452 = vrot.slane %v5376, 5
      %v5453 = vrot.slane %v5452, 4
      %v5454 = vrot.slane %v4627, 5
      %v5455 = vsel %vm2160, %v5453, %v5454
      %v5456 = vrot.slane %v5454, 4
      %v5457 = vrot.slane %v4628, 5
      %v5458 = vsel %vm2160, %v5456, %v5457
      %v5459 = vrot.slane %v5377, 5
      %v5460 = vrot.slane %v5459, 4
      %v5461 = vrot.slane %v4630, 5
      %v5462 = vsel %vm2160, %v5460, %v5461
      %v5463 = vrot.slane %v5461, 4
      %v5464 = vrot.slane %v4631, 5
      %v5465 = vsel %vm2160, %v5463, %v5464
      %v5466 = vrot.slane %v5378, 5
      %v5467 = vrot.slane %v5466, 4
      %v5468 = vrot.slane %v4633, 5
      %v5469 = vsel %vm2160, %v5467, %v5468
      %v5470 = vrot.slane %v5468, 4
      %v5471 = vrot.slane %v4634, 5
      %v5472 = vsel %vm2160, %v5470, %v5471
      %v5473 = vrot.slane %v5379, 5
      %v5474 = vrot.slane %v5473, 4
      %v5475 = vrot.slane %v4636, 5
      %v5476 = vsel %vm2160, %v5474, %v5475
      %v5477 = vrot.slane %v5475, 4
      %v5478 = vrot.slane %v4637, 5
      %v5479 = vsel %vm2160, %v5477, %v5478
      %v5480 = vrot.slane %v5380, 5
      %v5481 = vrot.slane %v5480, 4
      %v5482 = vrot.slane %v4639, 5
      %v5483 = vsel %vm2160, %v5481, %v5482
      %v5484 = vrot.slane %v5482, 4
      %v5485 = vrot.slane %v4640, 5
      %v5486 = vsel %vm2160, %v5484, %v5485
      %v5487 = vrot.slane %v5381, 5
      %v5488 = vrot.slane %v5487, 4
      %v5489 = vrot.slane %v4642, 5
      %v5490 = vsel %vm2160, %v5488, %v5489
      %v5491 = vrot.slane %v5489, 4
      %v5492 = vrot.slane %v4643, 5
      %v5493 = vsel %vm2160, %v5491, %v5492
      %v5494 = vrot.slane %v5382, 5
      %v5495 = vrot.slane %v5494, 4
      %v5496 = vrot.slane %v4645, 5
      %v5497 = vsel %vm2160, %v5495, %v5496
      %v5498 = vrot.slane %v5496, 4
      %v5499 = vrot.slane %v4646, 5
      %v5500 = vsel %vm2160, %v5498, %v5499
      %v5501 = vrot.slane %v5383, 5
      %v5502 = vrot.slane %v5501, 4
      %v5503 = vrot.slane %v4648, 5
      %v5504 = vsel %vm2160, %v5502, %v5503
      %v5505 = vrot.slane %v5503, 4
      %v5506 = vrot.slane %v4649, 5
      %v5507 = vsel %vm2160, %v5505, %v5506
      %v5508 = vrot.slane %v5384, 5
      %v5509 = vrot.slane %v5508, 4
      %v5510 = vrot.slane %v4651, 5
      %v5511 = vsel %vm2160, %v5509, %v5510
      %v5512 = vrot.slane %v5510, 4
      %v5513 = vrot.slane %v4652, 5
      %v5514 = vsel %vm2160, %v5512, %v5513
      %v5515 = vrot.slane %v5385, 5
      %v5516 = vrot.slane %v5515, 4
      %v5517 = vrot.slane %v4654, 5
      %v5518 = vsel %vm2160, %v5516, %v5517
      %v5519 = vrot.slane %v5517, 4
      %v5520 = vrot.slane %v4655, 5
      %v5521 = vsel %vm2160, %v5519, %v5520
      %v5522 = vrot.slane %v5386, 5
      %v5523 = vrot.slane %v5522, 4
      %v5524 = vrot.slane %v4657, 5
      %v5525 = vsel %vm2160, %v5523, %v5524
      %v5526 = vrot.slane %v5524, 4
      %v5527 = vrot.slane %v4658, 5
      %v5528 = vsel %vm2160, %v5526, %v5527
      %v5529 = vrot.slane %v5387, 5
      %v5530 = vrot.slane %v5529, 4
      %v5531 = vrot.slane %v4660, 5
      %v5532 = vsel %vm2160, %v5530, %v5531
      %v5533 = vrot.slane %v5531, 4
      %v5534 = vrot.slane %v4661, 5
      %v5535 = vsel %vm2160, %v5533, %v5534
      %v5536 = vrot.slane %v5388, 5
      %v5537 = vrot.slane %v5536, 4
      %v5538 = vrot.slane %v4663, 5
      %v5539 = vsel %vm2160, %v5537, %v5538
      %v5540 = vrot.slane %v5538, 4
      %v5541 = vrot.slane %v4664, 5
      %v5542 = vsel %vm2160, %v5540, %v5541
      %v5543 = vrot.slane %v5389, 5
      %v5544 = vrot.slane %v5543, 4
      %v5545 = vrot.slane %v4666, 5
      %v5546 = vsel %vm2160, %v5544, %v5545
      %v5547 = vrot.slane %v5545, 4
      %v5548 = vrot.slane %v4667, 5
      %v5549 = vsel %vm2160, %v5547, %v5548
      %s5550 = scalar_lea.vmem %s1, 512
      %v5551 = vld [vmem:[%s5550] sm:$0xf]
      %v5552 = vld [vmem:[%s5550 + $0x4] sm:$0xf]
      %v5553 = vld [vmem:[%s5550 + $0x8] sm:$0xf]
      %v5554 = vld [vmem:[%s5550 + $0xc] sm:$0xf]
      %v5555 = vld [vmem:[%s5550 + $0x10] sm:$0xf]
      %v5556 = vld [vmem:[%s5550 + $0x14] sm:$0xf]
      %v5557 = vld [vmem:[%s5550 + $0x18] sm:$0xf]
      %v5558 = vld [vmem:[%s5550 + $0x1c] sm:$0xf]
      %v5559 = vld [vmem:[%s5550 + $0x20] sm:$0xf]
      %v5560 = vld [vmem:[%s5550 + $0x24] sm:$0xf]
      %v5561 = vld [vmem:[%s5550 + $0x28] sm:$0xf]
      %v5562 = vld [vmem:[%s5550 + $0x2c] sm:$0xf]
      %v5563 = vld [vmem:[%s5550 + $0x30] sm:$0xf]
      %v5564 = vld [vmem:[%s5550 + $0x34] sm:$0xf]
      %v5565 = vld [vmem:[%s5550 + $0x38] sm:$0xf]
      %v5566 = vld [vmem:[%s5550 + $0x3c] sm:$0xf]
      %v5567 = vunpack.c.l.b16 %v5441
      %v5568 = vunpack.c.l.b16 %v5444
      %v5569 = vunpack.c.l.b16 %v5448
      %v5570 = vunpack.c.l.b16 %v5451
      %v5571 = vunpack.c.l.b16 %v5455
      %v5572 = vunpack.c.l.b16 %v5458
      %v5573 = vunpack.c.l.b16 %v5462
      %v5574 = vunpack.c.l.b16 %v5465
      %v5575 = vunpack.c.l.b16 %v5469
      %v5576 = vunpack.c.l.b16 %v5472
      %v5577 = vunpack.c.l.b16 %v5476
      %v5578 = vunpack.c.l.b16 %v5479
      %v5579 = vunpack.c.l.b16 %v5483
      %v5580 = vunpack.c.l.b16 %v5486
      %v5581 = vunpack.c.l.b16 %v5490
      %v5582 = vunpack.c.l.b16 %v5493
      %v5583 = vunpack.c.l.b16 %v5497
      %v5584 = vunpack.c.l.b16 %v5500
      %v5585 = vunpack.c.l.b16 %v5504
      %v5586 = vunpack.c.l.b16 %v5507
      %v5587 = vunpack.c.l.b16 %v5511
      %v5588 = vunpack.c.l.b16 %v5514
      %v5589 = vunpack.c.l.b16 %v5518
      %v5590 = vunpack.c.l.b16 %v5521
      %v5591 = vunpack.c.l.b16 %v5525
      %v5592 = vunpack.c.l.b16 %v5528
      %v5593 = vunpack.c.l.b16 %v5532
      %v5594 = vunpack.c.l.b16 %v5535
      %v5595 = vunpack.c.l.b16 %v5539
      %v5596 = vunpack.c.l.b16 %v5542
      %v5597 = vunpack.c.l.b16 %v5546
      %v5598 = vunpack.c.l.b16 %v5549
      %v5599 = vpack.c.b16 %v5568, %v5567
      %v5600 = vpack.c.b16 %v5570, %v5569
      %v5601 = vpack.c.b16 %v5572, %v5571
      %v5602 = vpack.c.b16 %v5574, %v5573
      %v5603 = vpack.c.b16 %v5576, %v5575
      %v5604 = vpack.c.b16 %v5578, %v5577
      %v5605 = vpack.c.b16 %v5580, %v5579
      %v5606 = vpack.c.b16 %v5582, %v5581
      %v5607 = vpack.c.b16 %v5584, %v5583
      %v5608 = vpack.c.b16 %v5586, %v5585
      %v5609 = vpack.c.b16 %v5588, %v5587
      %v5610 = vpack.c.b16 %v5590, %v5589
      %v5611 = vpack.c.b16 %v5592, %v5591
      %v5612 = vpack.c.b16 %v5594, %v5593
      %v5613 = vpack.c.b16 %v5596, %v5595
      %v5614 = vpack.c.b16 %v5598, %v5597
      %v5647 = vunpack.c.l.b16 %v5551
      %v5648 = vunpack.c.l.b16 %v5552
      %v5649 = vunpack.c.l.b16 %v5553
      %v5650 = vunpack.c.l.b16 %v5554
      %v5651 = vunpack.c.l.b16 %v5555
      %v5652 = vunpack.c.l.b16 %v5556
      %v5653 = vunpack.c.l.b16 %v5557
      %v5654 = vunpack.c.l.b16 %v5558
      %v5655 = vunpack.c.l.b16 %v5559
      %v5656 = vunpack.c.l.b16 %v5560
      %v5657 = vunpack.c.l.b16 %v5561
      %v5658 = vunpack.c.l.b16 %v5562
      %v5659 = vunpack.c.l.b16 %v5563
      %v5660 = vunpack.c.l.b16 %v5564
      %v5661 = vunpack.c.l.b16 %v5565
      %v5662 = vunpack.c.l.b16 %v5566
      %v5663 = vpack.c.b16 %v5648, %v5647
      %v5664 = vpack.c.b16 %v5650, %v5649
      %v5665 = vpack.c.b16 %v5652, %v5651
      %v5666 = vpack.c.b16 %v5654, %v5653
      %v5667 = vpack.c.b16 %v5656, %v5655
      %v5668 = vpack.c.b16 %v5658, %v5657
      %v5669 = vpack.c.b16 %v5660, %v5659
      %v5670 = vpack.c.b16 %v5662, %v5661
      %5679 = vmatprep.subr.bf16.mxu0 0
      %5680 = vmatpush1.bf16.msra.mxu0 %v5670
      %5681 = vmatprep.subr.bf16.mxu0 0
      %5682 = vmatpush1.bf16.msra.mxu0 %v5669
      %5683 = vmatprep.subr.bf16.mxu0 0
      %5684 = vmatpush1.bf16.msra.mxu0 %v5668
      %5685 = vmatprep.subr.bf16.mxu0 0
      %5686 = vmatpush1.bf16.msra.mxu0 %v5667
      %5687 = vmatprep.subr.bf16.mxu0 0
      %5688 = vmatpush1.bf16.msra.mxu0 %v5666
      %5689 = vmatprep.subr.bf16.mxu0 0
      %5690 = vmatpush1.bf16.msra.mxu0 %v5665
      %5691 = vmatprep.subr.bf16.mxu0 0
      %5692 = vmatpush1.bf16.msra.mxu0 %v5664
      %5693 = vmatprep.subr.bf16.mxu0 0
      %5694 = vmatpush1.bf16.msra.mxu0 %v5663
      %5695 = vmatprep.subr.bf16.mxu0 0
      %5696 = vmatpush2.bf16.msra.mxu0 0
      %5697 = vmatprep.subr.bf16.mxu0 0
      %5698 = vmatpush2.bf16.msra.mxu0 0
      %5699 = vmatprep.subr.bf16.mxu0 0
      %5700 = vmatpush2.bf16.msra.mxu0 0
      %5701 = vmatprep.subr.bf16.mxu0 0
      %5702 = vmatpush2.bf16.msra.mxu0 0
      %5703 = vmatprep.subr.bf16.mxu0 0
      %5704 = vmatpush2.bf16.msra.mxu0 0
      %5705 = vmatprep.subr.bf16.mxu0 0
      %5706 = vmatpush2.bf16.msra.mxu0 0
      %5707 = vmatprep.subr.bf16.mxu0 0
      %5708 = vmatpush2.bf16.msra.mxu0 0
      %5709 = vmatprep.subr.bf16.mxu0 0
      %5710 = vmatpush2.bf16.msra.mxu0 0
      %5711 = vmatprep.mubr.bf16.mxu0 0
      %5712 = vmatmul.mubr.bf16.gmra.mxu0 %v5599
      %v5713 = vpop.f32.mrf.mxu0
      %v5714 = vadd.f32 0.0, %v5713
      %v5715 = vpop.f32.mrf.mxu0
      %v5716 = vpop.f32.mrf.mxu0
      %v5717 = vadd.f32 0.0, %v5716
      %v5718 = vpop.f32.mrf.mxu0
      %5719 = vmatprep.mubr.bf16.mxu0 0
      %5720 = vmatmul.mubr.bf16.gmra.mxu0 %v5600
      %v5721 = vpop.f32.mrf.mxu0
      %v5722 = vadd.f32 0.0, %v5721
      %v5723 = vpop.f32.mrf.mxu0
      %v5724 = vpop.f32.mrf.mxu0
      %v5725 = vadd.f32 0.0, %v5724
      %v5726 = vpop.f32.mrf.mxu0
      %5727 = vmatprep.mubr.bf16.mxu0 0
      %5728 = vmatmul.mubr.bf16.gmra.mxu0 %v5601
      %v5729 = vpop.f32.mrf.mxu0
      %v5730 = vadd.f32 0.0, %v5729
      %v5731 = vpop.f32.mrf.mxu0
      %v5732 = vpop.f32.mrf.mxu0
      %v5733 = vadd.f32 0.0, %v5732
      %v5734 = vpop.f32.mrf.mxu0
      %5735 = vmatprep.mubr.bf16.mxu0 0
      %5736 = vmatmul.mubr.bf16.gmra.mxu0 %v5602
      %v5737 = vpop.f32.mrf.mxu0
      %v5738 = vadd.f32 0.0, %v5737
      %v5739 = vpop.f32.mrf.mxu0
      %v5740 = vpop.f32.mrf.mxu0
      %v5741 = vadd.f32 0.0, %v5740
      %v5742 = vpop.f32.mrf.mxu0
      %5743 = vmatprep.mubr.bf16.mxu0 0
      %5744 = vmatmul.mubr.bf16.gmra.mxu0 %v5603
      %v5745 = vpop.f32.mrf.mxu0
      %v5746 = vadd.f32 0.0, %v5745
      %v5747 = vpop.f32.mrf.mxu0
      %v5748 = vpop.f32.mrf.mxu0
      %v5749 = vadd.f32 0.0, %v5748
      %v5750 = vpop.f32.mrf.mxu0
      %5751 = vmatprep.mubr.bf16.mxu0 0
      %5752 = vmatmul.mubr.bf16.gmra.mxu0 %v5604
      %v5753 = vpop.f32.mrf.mxu0
      %v5754 = vadd.f32 0.0, %v5753
      %v5755 = vpop.f32.mrf.mxu0
      %v5756 = vpop.f32.mrf.mxu0
      %v5757 = vadd.f32 0.0, %v5756
      %v5758 = vpop.f32.mrf.mxu0
      %5759 = vmatprep.mubr.bf16.mxu0 0
      %5760 = vmatmul.mubr.bf16.gmra.mxu0 %v5605
      %v5761 = vpop.f32.mrf.mxu0
      %v5762 = vadd.f32 0.0, %v5761
      %v5763 = vpop.f32.mrf.mxu0
      %v5764 = vpop.f32.mrf.mxu0
      %v5765 = vadd.f32 0.0, %v5764
      %v5766 = vpop.f32.mrf.mxu0
      %5767 = vmatprep.mubr.bf16.mxu0 0
      %5768 = vmatmul.mubr.bf16.gmra.mxu0 %v5606
      %v5769 = vpop.f32.mrf.mxu0
      %v5770 = vadd.f32 0.0, %v5769
      %v5771 = vpop.f32.mrf.mxu0
      %v5772 = vpop.f32.mrf.mxu0
      %v5773 = vadd.f32 0.0, %v5772
      %v5774 = vpop.f32.mrf.mxu0
      %5775 = vmatprep.mubr.bf16.mxu0 0
      %5776 = vmatmul.mubr.bf16.gmra.mxu0 %v5607
      %v5777 = vpop.f32.mrf.mxu0
      %v5778 = vadd.f32 0.0, %v5777
      %v5779 = vpop.f32.mrf.mxu0
      %v5780 = vpop.f32.mrf.mxu0
      %v5781 = vadd.f32 0.0, %v5780
      %v5782 = vpop.f32.mrf.mxu0
      %5783 = vmatprep.mubr.bf16.mxu0 0
      %5784 = vmatmul.mubr.bf16.gmra.mxu0 %v5608
      %v5785 = vpop.f32.mrf.mxu0
      %v5786 = vadd.f32 0.0, %v5785
      %v5787 = vpop.f32.mrf.mxu0
      %v5788 = vpop.f32.mrf.mxu0
      %v5789 = vadd.f32 0.0, %v5788
      %v5790 = vpop.f32.mrf.mxu0
      %5791 = vmatprep.mubr.bf16.mxu0 0
      %5792 = vmatmul.mubr.bf16.gmra.mxu0 %v5609
      %v5793 = vpop.f32.mrf.mxu0
      %v5794 = vadd.f32 0.0, %v5793
      %v5795 = vpop.f32.mrf.mxu0
      %v5796 = vpop.f32.mrf.mxu0
      %v5797 = vadd.f32 0.0, %v5796
      %v5798 = vpop.f32.mrf.mxu0
      %5799 = vmatprep.mubr.bf16.mxu0 0
      %5800 = vmatmul.mubr.bf16.gmra.mxu0 %v5610
      %v5801 = vpop.f32.mrf.mxu0
      %v5802 = vadd.f32 0.0, %v5801
      %v5803 = vpop.f32.mrf.mxu0
      %v5804 = vpop.f32.mrf.mxu0
      %v5805 = vadd.f32 0.0, %v5804
      %v5806 = vpop.f32.mrf.mxu0
      %5807 = vmatprep.mubr.bf16.mxu0 0
      %5808 = vmatmul.mubr.bf16.gmra.mxu0 %v5611
      %v5809 = vpop.f32.mrf.mxu0
      %v5810 = vadd.f32 0.0, %v5809
      %v5811 = vpop.f32.mrf.mxu0
      %v5812 = vpop.f32.mrf.mxu0
      %v5813 = vadd.f32 0.0, %v5812
      %v5814 = vpop.f32.mrf.mxu0
      %5815 = vmatprep.mubr.bf16.mxu0 0
      %5816 = vmatmul.mubr.bf16.gmra.mxu0 %v5612
      %v5817 = vpop.f32.mrf.mxu0
      %v5818 = vadd.f32 0.0, %v5817
      %v5819 = vpop.f32.mrf.mxu0
      %v5820 = vpop.f32.mrf.mxu0
      %v5821 = vadd.f32 0.0, %v5820
      %v5822 = vpop.f32.mrf.mxu0
      %5823 = vmatprep.mubr.bf16.mxu0 0
      %5824 = vmatmul.mubr.bf16.gmra.mxu0 %v5613
      %v5825 = vpop.f32.mrf.mxu0
      %v5826 = vadd.f32 0.0, %v5825
      %v5827 = vpop.f32.mrf.mxu0
      %v5828 = vpop.f32.mrf.mxu0
      %v5829 = vadd.f32 0.0, %v5828
      %v5830 = vpop.f32.mrf.mxu0
      %5831 = vmatprep.mubr.bf16.mxu0 0
      %5832 = vmatmul.mubr.bf16.gmra.mxu0 %v5614
      %v5833 = vpop.f32.mrf.mxu0
      %v5834 = vadd.f32 0.0, %v5833
      %v5835 = vpop.f32.mrf.mxu0
      %v5836 = vpop.f32.mrf.mxu0
      %v5837 = vadd.f32 0.0, %v5836
      %v5838 = vpop.f32.mrf.mxu0
      %5839 = vdwg.mxu0
      %v5840 = vadd.f32 %v5342, %v5714
      %v5841 = vadd.f32 %v5343, %v5717
      %v5842 = vadd.f32 %v5344, %v5722
      %v5843 = vadd.f32 %v5345, %v5725
      %v5844 = vadd.f32 %v5346, %v5730
      %v5845 = vadd.f32 %v5347, %v5733
      %v5846 = vadd.f32 %v5348, %v5738
      %v5847 = vadd.f32 %v5349, %v5741
      %v5848 = vadd.f32 %v5350, %v5746
      %v5849 = vadd.f32 %v5351, %v5749
      %v5850 = vadd.f32 %v5352, %v5754
      %v5851 = vadd.f32 %v5353, %v5757
      %v5852 = vadd.f32 %v5354, %v5762
      %v5853 = vadd.f32 %v5355, %v5765
      %v5854 = vadd.f32 %v5356, %v5770
      %v5855 = vadd.f32 %v5357, %v5773
      %v5856 = vadd.f32 %v5358, %v5778
      %v5857 = vadd.f32 %v5359, %v5781
      %v5858 = vadd.f32 %v5360, %v5786
      %v5859 = vadd.f32 %v5361, %v5789
      %v5860 = vadd.f32 %v5362, %v5794
      %v5861 = vadd.f32 %v5363, %v5797
      %v5862 = vadd.f32 %v5364, %v5802
      %v5863 = vadd.f32 %v5365, %v5805
      %v5864 = vadd.f32 %v5366, %v5810
      %v5865 = vadd.f32 %v5367, %v5813
      %v5866 = vadd.f32 %v5368, %v5818
      %v5867 = vadd.f32 %v5369, %v5821
      %v5868 = vadd.f32 %v5370, %v5826
      %v5869 = vadd.f32 %v5371, %v5829
      %v5870 = vadd.f32 %v5372, %v5834
      %v5871 = vadd.f32 %v5373, %v5837
      %v5872 = vpack.c.bf16 %v5841, %v5840
      %v5873 = vpack.c.bf16 %v5843, %v5842
      %v5874 = vpack.c.bf16 %v5845, %v5844
      %v5875 = vpack.c.bf16 %v5847, %v5846
      %v5876 = vpack.c.bf16 %v5849, %v5848
      %v5877 = vpack.c.bf16 %v5851, %v5850
      %v5878 = vpack.c.bf16 %v5853, %v5852
      %v5879 = vpack.c.bf16 %v5855, %v5854
      %v5880 = vpack.c.bf16 %v5857, %v5856
      %v5881 = vpack.c.bf16 %v5859, %v5858
      %v5882 = vpack.c.bf16 %v5861, %v5860
      %v5883 = vpack.c.bf16 %v5863, %v5862
      %v5884 = vpack.c.bf16 %v5865, %v5864
      %v5885 = vpack.c.bf16 %v5867, %v5866
      %v5886 = vpack.c.bf16 %v5869, %v5868
      %v5887 = vpack.c.bf16 %v5871, %v5870
      %v5904 = vunpack.c.l.b16 %v5872
      %v5905 = vunpack.c.h.b16 %v5872
      %v5906 = vunpack.c.l.b16 %v5873
      %v5907 = vunpack.c.h.b16 %v5873
      %v5908 = vunpack.c.l.b16 %v5874
      %v5909 = vunpack.c.h.b16 %v5874
      %v5910 = vunpack.c.l.b16 %v5875
      %v5911 = vunpack.c.h.b16 %v5875
      %v5912 = vunpack.c.l.b16 %v5876
      %v5913 = vunpack.c.h.b16 %v5876
      %v5914 = vunpack.c.l.b16 %v5877
      %v5915 = vunpack.c.h.b16 %v5877
      %v5916 = vunpack.c.l.b16 %v5878
      %v5917 = vunpack.c.h.b16 %v5878
      %v5918 = vunpack.c.l.b16 %v5879
      %v5919 = vunpack.c.h.b16 %v5879
      %v5920 = vunpack.c.l.b16 %v5880
      %v5921 = vunpack.c.h.b16 %v5880
      %v5922 = vunpack.c.l.b16 %v5881
      %v5923 = vunpack.c.h.b16 %v5881
      %v5924 = vunpack.c.l.b16 %v5882
      %v5925 = vunpack.c.h.b16 %v5882
      %v5926 = vunpack.c.l.b16 %v5883
      %v5927 = vunpack.c.h.b16 %v5883
      %v5928 = vunpack.c.l.b16 %v5884
      %v5929 = vunpack.c.h.b16 %v5884
      %v5930 = vunpack.c.l.b16 %v5885
      %v5931 = vunpack.c.h.b16 %v5885
      %v5932 = vunpack.c.l.b16 %v5886
      %v5933 = vunpack.c.h.b16 %v5886
      %v5934 = vunpack.c.l.b16 %v5887
      %v5935 = vunpack.c.h.b16 %v5887
      %v5936 = vpack.c.b16 %v5904, %v5904
      %v5937 = vpack.c.b16 %v5905, %v5905
      %v5938 = vpack.c.b16 %v5906, %v5906
      %v5939 = vpack.c.b16 %v5907, %v5907
      %v5940 = vpack.c.b16 %v5908, %v5908
      %v5941 = vpack.c.b16 %v5909, %v5909
      %v5942 = vpack.c.b16 %v5910, %v5910
      %v5943 = vpack.c.b16 %v5911, %v5911
      %v5944 = vpack.c.b16 %v5912, %v5912
      %v5945 = vpack.c.b16 %v5913, %v5913
      %v5946 = vpack.c.b16 %v5914, %v5914
      %v5947 = vpack.c.b16 %v5915, %v5915
      %v5948 = vpack.c.b16 %v5916, %v5916
      %v5949 = vpack.c.b16 %v5917, %v5917
      %v5950 = vpack.c.b16 %v5918, %v5918
      %v5951 = vpack.c.b16 %v5919, %v5919
      %v5952 = vpack.c.b16 %v5920, %v5920
      %v5953 = vpack.c.b16 %v5921, %v5921
      %v5954 = vpack.c.b16 %v5922, %v5922
      %v5955 = vpack.c.b16 %v5923, %v5923
      %v5956 = vpack.c.b16 %v5924, %v5924
      %v5957 = vpack.c.b16 %v5925, %v5925
      %v5958 = vpack.c.b16 %v5926, %v5926
      %v5959 = vpack.c.b16 %v5927, %v5927
      %v5960 = vpack.c.b16 %v5928, %v5928
      %v5961 = vpack.c.b16 %v5929, %v5929
      %v5962 = vpack.c.b16 %v5930, %v5930
      %v5963 = vpack.c.b16 %v5931, %v5931
      %v5964 = vpack.c.b16 %v5932, %v5932
      %v5965 = vpack.c.b16 %v5933, %v5933
      %v5966 = vpack.c.b16 %v5934, %v5934
      %v5967 = vpack.c.b16 %v5935, %v5935
      %6000 = vst [vmem:[%s231] sm:$0xf] %v5936
      %6001 = vst [vmem:[%s231 + $0x4] sm:$0xf] %v5937
      %6002 = vst [vmem:[%s231 + $0x8] sm:$0xf] %v5938
      %6003 = vst [vmem:[%s231 + $0xc] sm:$0xf] %v5939
      %6004 = vst [vmem:[%s231 + $0x10] sm:$0xf] %v5940
      %6005 = vst [vmem:[%s231 + $0x14] sm:$0xf] %v5941
      %6006 = vst [vmem:[%s231 + $0x18] sm:$0xf] %v5942
      %6007 = vst [vmem:[%s231 + $0x1c] sm:$0xf] %v5943
      %6008 = vst [vmem:[%s231 + $0x20] sm:$0xf] %v5944
      %6009 = vst [vmem:[%s231 + $0x24] sm:$0xf] %v5945
      %6010 = vst [vmem:[%s231 + $0x28] sm:$0xf] %v5946
      %6011 = vst [vmem:[%s231 + $0x2c] sm:$0xf] %v5947
      %6012 = vst [vmem:[%s231 + $0x30] sm:$0xf] %v5948
      %6013 = vst [vmem:[%s231 + $0x34] sm:$0xf] %v5949
      %6014 = vst [vmem:[%s231 + $0x38] sm:$0xf] %v5950
      %6015 = vst [vmem:[%s231 + $0x3c] sm:$0xf] %v5951
      %6016 = vst [vmem:[%s231 + $0x40] sm:$0xf] %v5952
      %6017 = vst [vmem:[%s231 + $0x44] sm:$0xf] %v5953
      %6018 = vst [vmem:[%s231 + $0x48] sm:$0xf] %v5954
      %6019 = vst [vmem:[%s231 + $0x4c] sm:$0xf] %v5955
      %6020 = vst [vmem:[%s231 + $0x50] sm:$0xf] %v5956
      %6021 = vst [vmem:[%s231 + $0x54] sm:$0xf] %v5957
      %6022 = vst [vmem:[%s231 + $0x58] sm:$0xf] %v5958
      %6023 = vst [vmem:[%s231 + $0x5c] sm:$0xf] %v5959
      %6024 = vst [vmem:[%s231 + $0x60] sm:$0xf] %v5960
      %6025 = vst [vmem:[%s231 + $0x64] sm:$0xf] %v5961
      %6026 = vst [vmem:[%s231 + $0x68] sm:$0xf] %v5962
      %6027 = vst [vmem:[%s231 + $0x6c] sm:$0xf] %v5963
      %6028 = vst [vmem:[%s231 + $0x70] sm:$0xf] %v5964
      %6029 = vst [vmem:[%s231 + $0x74] sm:$0xf] %v5965
      %6030 = vst [vmem:[%s231 + $0x78] sm:$0xf] %v5966
      %6031 = vst [vmem:[%s231 + $0x7c] sm:$0xf] %v5967
      %v6032 = vadd.f32 %v5840, %v5841
      %v6033 = vadd.f32 %v6032, %v5842
      %v6034 = vadd.f32 %v6033, %v5843
      %v6035 = vadd.f32 %v6034, %v5844
      %v6036 = vadd.f32 %v6035, %v5845
      %v6037 = vadd.f32 %v6036, %v5846
      %v6038 = vadd.f32 %v6037, %v5847
      %v6039 = vadd.f32 %v6038, %v5848
      %v6040 = vadd.f32 %v6039, %v5849
      %v6041 = vadd.f32 %v6040, %v5850
      %v6042 = vadd.f32 %v6041, %v5851
      %v6043 = vadd.f32 %v6042, %v5852
      %v6044 = vadd.f32 %v6043, %v5853
      %v6045 = vadd.f32 %v6044, %v5854
      %v6046 = vadd.f32 %v6045, %v5855
      %v6047 = vadd.f32 %v6046, %v5856
      %v6048 = vadd.f32 %v6047, %v5857
      %v6049 = vadd.f32 %v6048, %v5858
      %v6050 = vadd.f32 %v6049, %v5859
      %v6051 = vadd.f32 %v6050, %v5860
      %v6052 = vadd.f32 %v6051, %v5861
      %v6053 = vadd.f32 %v6052, %v5862
      %v6054 = vadd.f32 %v6053, %v5863
      %v6055 = vadd.f32 %v6054, %v5864
      %v6056 = vadd.f32 %v6055, %v5865
      %v6057 = vadd.f32 %v6056, %v5866
      %v6058 = vadd.f32 %v6057, %v5867
      %v6059 = vadd.f32 %v6058, %v5868
      %v6060 = vadd.f32 %v6059, %v5869
      %v6061 = vadd.f32 %v6060, %v5870
      %v6062 = vadd.f32 %v6061, %v5871
      %v6063 = vrot.slane %v6062, 4
      %v6064 = vadd.f32 %v6062, %v6063
      %v6065 = vrot.slane %v6064, 2
      %v6066 = vadd.f32 %v6064, %v6065
      %v6067 = vrot.slane %v6066, 1
      %v6068 = vadd.f32 %v6066, %v6067
      %6069 = vst [vmem:[%s235] sm:$0x1] %v6068
      %v6070 = vmul.f32 %v5840, %v5840
      %v6071 = vmul.f32 %v5841, %v5841
      %v6072 = vmul.f32 %v5842, %v5842
      %v6073 = vmul.f32 %v5843, %v5843
      %v6074 = vmul.f32 %v5844, %v5844
      %v6075 = vmul.f32 %v5845, %v5845
      %v6076 = vmul.f32 %v5846, %v5846
      %v6077 = vmul.f32 %v5847, %v5847
      %v6078 = vmul.f32 %v5848, %v5848
      %v6079 = vmul.f32 %v5849, %v5849
      %v6080 = vmul.f32 %v5850, %v5850
      %v6081 = vmul.f32 %v5851, %v5851
      %v6082 = vmul.f32 %v5852, %v5852
      %v6083 = vmul.f32 %v5853, %v5853
      %v6084 = vmul.f32 %v5854, %v5854
      %v6085 = vmul.f32 %v5855, %v5855
      %v6086 = vmul.f32 %v5856, %v5856
      %v6087 = vmul.f32 %v5857, %v5857
      %v6088 = vmul.f32 %v5858, %v5858
      %v6089 = vmul.f32 %v5859, %v5859
      %v6090 = vmul.f32 %v5860, %v5860
      %v6091 = vmul.f32 %v5861, %v5861
      %v6092 = vmul.f32 %v5862, %v5862
      %v6093 = vmul.f32 %v5863, %v5863
      %v6094 = vmul.f32 %v5864, %v5864
      %v6095 = vmul.f32 %v5865, %v5865
      %v6096 = vmul.f32 %v5866, %v5866
      %v6097 = vmul.f32 %v5867, %v5867
      %v6098 = vmul.f32 %v5868, %v5868
      %v6099 = vmul.f32 %v5869, %v5869
      %v6100 = vmul.f32 %v5870, %v5870
      %v6101 = vmul.f32 %v5871, %v5871
      %v6102 = vadd.f32 %v6070, %v6071
      %v6103 = vadd.f32 %v6102, %v6072
      %v6104 = vadd.f32 %v6103, %v6073
      %v6105 = vadd.f32 %v6104, %v6074
      %v6106 = vadd.f32 %v6105, %v6075
      %v6107 = vadd.f32 %v6106, %v6076
      %v6108 = vadd.f32 %v6107, %v6077
      %v6109 = vadd.f32 %v6108, %v6078
      %v6110 = vadd.f32 %v6109, %v6079
      %v6111 = vadd.f32 %v6110, %v6080
      %v6112 = vadd.f32 %v6111, %v6081
      %v6113 = vadd.f32 %v6112, %v6082
      %v6114 = vadd.f32 %v6113, %v6083
      %v6115 = vadd.f32 %v6114, %v6084
      %v6116 = vadd.f32 %v6115, %v6085
      %v6117 = vadd.f32 %v6116, %v6086
      %v6118 = vadd.f32 %v6117, %v6087
      %v6119 = vadd.f32 %v6118, %v6088
      %v6120 = vadd.f32 %v6119, %v6089
      %v6121 = vadd.f32 %v6120, %v6090
      %v6122 = vadd.f32 %v6121, %v6091
      %v6123 = vadd.f32 %v6122, %v6092
      %v6124 = vadd.f32 %v6123, %v6093
      %v6125 = vadd.f32 %v6124, %v6094
      %v6126 = vadd.f32 %v6125, %v6095
      %v6127 = vadd.f32 %v6126, %v6096
      %v6128 = vadd.f32 %v6127, %v6097
      %v6129 = vadd.f32 %v6128, %v6098
      %v6130 = vadd.f32 %v6129, %v6099
      %v6131 = vadd.f32 %v6130, %v6100
      %v6132 = vadd.f32 %v6131, %v6101
      %v6133 = vrot.slane %v6132, 4
      %v6134 = vadd.f32 %v6132, %v6133
      %v6135 = vrot.slane %v6134, 2
      %v6136 = vadd.f32 %v6134, %v6135
      %v6137 = vrot.slane %v6136, 1
      %v6138 = vadd.f32 %v6136, %v6137
      %6139 = vst [vmem:[%s235 + $0x1] sm:$0x1] %v6138
      %p6140 = scmp.lt.s32.totalorder %s17, 1
      %s6141 = scalar_select %p6140, %s17, 1
      %s6142 = smul.addr %s6141, 32
      %s6143 = smul.addr %s6142, 4
      %s6144 = scalar_lea.vmem %s4, %s6143
      %p6145 = scmp.lt.s32.totalorder %s17, 1
      %s6146 = scalar_select %p6145, %s17, 1
      %s6147 = smul.addr %s6146, 2
      %s6148 = scalar_lea.vmem %s5, %s6147
      // Predicated region
      $region37: #{basic_block_forward.4} parent=35 // pred_check
        %p6149 = pneg %p124
      $region38: #{basic_block_forward.4} parent=35 // pred_check_branch
        %6151 = sbr.rel (%p6149) target = $region40
      $region39: #{basic_block_forward.4} parent=35 // pred_region
        _
      $region40: #{basic_block_forward.4} parent=35 // pred_fallthru
        _
      // Predicated region
      $region41: #{basic_block_forward.4} parent=35 // pred_check
        %p6152 = pneg %p150
      $region42: #{basic_block_forward.4} parent=35 // pred_check_branch
        %6154 = sbr.rel (%p6152) target = $region44
      $region43: #{basic_block_forward.4} parent=35 // pred_region
        _
      $region44: #{basic_block_forward.4} parent=35 // pred_fallthru
        _
    $region36: #{basic_block_forward.4} parent=5 // pred_fallthru
      _
    %p6155 = scmp.le.s32.totalorder 2, %s12
    // Predicated region
    $region45: #{basic_block_forward.4} parent=5 // pred_check
      %p6156 = pneg %p6155
    $region46: #{basic_block_forward.4} parent=5 // pred_check_branch
      %6158 = sbr.rel (%p6156) target = $region48
    $region47: #{basic_block_forward.4} parent=5 // pred_region
      %s6159 = ssub.s32 %s12, 2
      // Predicated region
      $region49: #{basic_block_forward.4} parent=47 // pred_check
        %p6160 = pneg %p130
      $region50: #{basic_block_forward.4} parent=47 // pred_check_branch
        %6162 = sbr.rel (%p6160) target = $region52
      $region51: #{basic_block_forward.4} parent=47 // pred_region
        %p6163 = scmp.lt.s32.totalorder %s18, 1
        %s6164 = scalar_select %p6163, %s18, 1
        %s6165 = smul.addr %s6164, 32
        %s6166 = smul.addr %s6165, 4
        %s6167 = scalar_lea.vmem %s4, %s6166
      $region52: #{basic_block_forward.4} parent=47 // pred_fallthru
        _
      // Predicated region
      $region53: #{basic_block_forward.4} parent=47 // pred_check
        %p6168 = pneg %p156
      $region54: #{basic_block_forward.4} parent=47 // pred_check_branch
        %6170 = sbr.rel (%p6168) target = $region56
      $region55: #{basic_block_forward.4} parent=47 // pred_region
        %p6171 = scmp.lt.s32.totalorder %s18, 1
        %s6172 = scalar_select %p6171, %s18, 1
        %s6173 = smul.addr %s6172, 2
        %s6174 = scalar_lea.vmem %s5, %s6173
      $region56: #{basic_block_forward.4} parent=47 // pred_fallthru
        _
    $region48: #{basic_block_forward.4} parent=5 // pred_fallthru
      _
  $region6: #{basic_block_forward.4} parent=0 // loop_footer
    %s16 = sadd.s32 1, %s12
  $region7: #{basic_block_forward.4} parent=0 // loop_footer_branch
    %11 = sbr.rel target = $region3
  $region8: #{basic_block_forward.4} parent=0 // loop_exit
    _

</llo_original>
